<compile_context>
chip_gen: v7x
topology: tpu7x:2x2x1
jax: 0.10.0
libtpu: 0.0.40
codegen_flags: <defaults>
</compile_context>

<pallas_src>
import jax
import jax.numpy as jnp
from jax import lax
from jax.experimental import pallas as pl
from jax.experimental.pallas import tpu as pltpu

EPS = 1e-5
LANE = 128


def _round_up(x, m):
    return (x + m - 1) // m * m


def _pick_tm(m):
    """Largest row-block size (<=512, multiple of 16) that divides M."""
    for tm in (512, 256, 128, 64, 32, 16):
        if m % tm == 0:
            return tm
    return m


def _cparams(est_bytes):
    """Per-stage VMEM budget derived from block sizes (+ headroom), clamped."""
    lim = int(min(max(2 * est_bytes + (16 << 20), 32 << 20), 96 << 20))
    return pltpu.CompilerParams(dimension_semantics=("parallel",),
                                vmem_limit_bytes=lim)


# -----------------------------------------------------------------------------
# Kernels
# -----------------------------------------------------------------------------
def _stats(out, m, stats_ref):
    """Per-tile (sum, centered M2) of the f32 matmul output -> stats_ref."""
    s = jnp.sum(out, axis=0, keepdims=True)
    mu = s * (1.0 / m)
    m2 = jnp.sum((out - mu) ** 2, axis=0, keepdims=True)
    stats_ref[...] = jnp.concatenate([s, m2], axis=0).reshape(stats_ref.shape)


def _conv1_kernel(x_ref, w_ref, out_ref, stats_ref):
    """1x1 conv on a (TM, Cin) row block + per-tile BN1 partial stats."""
    m = x_ref.shape[0]
    a = x_ref[...].astype(jnp.bfloat16)
    out = jnp.dot(a, w_ref[...], preferred_element_type=jnp.float32)
    out_ref[...] = out.astype(out_ref.dtype)            # bf16 intermediate
    _stats(out, m, stats_ref)


def _bn_relu_conv3x3_kernel(h_ref, scale_ref, shift_ref, w_ref, mask_ref,
                            out_ref, stats_ref):
    """Folded-BN1 -> relu -> 3x3 same-pad conv (roll + mask taps, 9 MXU dots).

    Tile = one full image, so the 1-pixel halo is entirely in-tile.  Each tap is
    pltpu.roll on the flattened f32 slab (XLU) * a precomputed validity mask
    (VPU broadcast mul); no shifted copies / no (H*W, 9C) im2col slab.
    """
    _, hh, ww, c = h_ref.shape
    hw = hh * ww
    h = h_ref[...].reshape(hw, c).astype(jnp.float32)
    a = jnp.maximum(h * scale_ref[...] + shift_ref[...], 0.0)   # f32 (HW, C)

    acc = None
    for ky in range(3):
        dy = ky - 1
        for kx in range(3):
            dx = kx - 1
            t = ky * 3 + kx
            d = dy * ww + dx
            if d == 0:
                tap = a
            else:
                # rolled[i] = a[i + d]; wrapped rows/cols zeroed by the mask.
                tap = pltpu.roll(a, (-d) % hw, 0) * mask_ref[t]
            tap = tap.astype(jnp.bfloat16)
            p = jnp.dot(tap, w_ref[t * c:(t + 1) * c, :],
                        preferred_element_type=jnp.float32)
            acc = p if acc is None else acc + p

    out_ref[...] = acc.astype(out_ref.dtype).reshape(out_ref.shape)  # bf16
    _stats(acc, hw, stats_ref)


def _bn_relu_conv1x1_kernel(h_ref, scale_ref, shift_ref, w_ref, out_ref,
                            stats_ref):
    """Folded-BN2 -> relu -> 1x1 conv on a (TM, P) row block + BN3 stats."""
    m = h_ref.shape[0]
    h = h_ref[...].astype(jnp.float32)
    a = jnp.maximum(h * scale_ref[...] + shift_ref[...], 0.0).astype(jnp.bfloat16)
    out = jnp.dot(a, w_ref[...], preferred_element_type=jnp.float32)
    out_ref[...] = out                                    # f32 (residual path)
    _stats(out, m, stats_ref)


def _bn_add_relu_kernel(h_ref, x_ref, scale_ref, shift_ref, out_ref):
    """Folded-BN3 + residual add + relu (lane-dense f32 store)."""
    out_ref[...] = jnp.maximum(
        h_ref[...] * scale_ref[...] + shift_ref[...] + x_ref[...], 0.0)


# -----------------------------------------------------------------------------
# Wrapper
# -----------------------------------------------------------------------------
def _finalize_bn(stats, gamma, beta, tile_count, total_count):
    """Per-tile (sum, centered M2) -> folded BN affine via Chan's combine."""
    sums = stats[:, 0, :]                                   # (T, C)
    m2s = stats[:, 1, :]                                    # (T, C)
    mean = jnp.sum(sums, axis=0) / total_count              # (C,)
    tile_means = sums / tile_count
    m2 = jnp.sum(m2s, axis=0) + tile_count * jnp.sum(
        (tile_means - mean) ** 2, axis=0)
    var = jnp.maximum(m2 / total_count, 0.0)                # biased (training BN)
    inv = lax.rsqrt(var + EPS)
    g = gamma.reshape(-1)
    b = beta.reshape(-1)
    scale = g * inv
    shift = b - mean * scale
    return scale.reshape(1, -1), shift.reshape(1, -1)


@jax.jit
def bottleneck_v1b_pallas(x_nhwc, params):
    """x_nhwc: (N, H, W, Cin) float32, Cin == planes * 4 (identity residual)."""
    N, H, W, Cin = x_nhwc.shape
    P = params["w1"].shape[1]
    Cout = params["w3"].shape[1]
    assert Cin == Cout == 4 * P, "identity residual requires in_channel == planes*4"

    Cp = _round_up(Cin, LANE)        # padded in/out channels (lane-dense)
    Pp = _round_up(P, LANE)          # padded bottleneck channels
    HW = H * W
    M = N * H * W                    # total pixel rows
    TM = _pick_tm(M)                 # large row block for the streaming stages
    nt = M // TM
    count = float(M)                 # BN sample count per channel

    # ---- pad params; weights become bf16 matmul operands ----------------------
    w1 = jnp.pad(params["w1"], ((0, Cp - Cin), (0, Pp - P))).astype(jnp.bfloat16)
    w2 = jnp.pad(params["w2"], ((0, 0), (0, 0), (0, Pp - P), (0, Pp - P)))
    w2 = w2.reshape(9 * Pp, Pp).astype(jnp.bfloat16)        # tap-major rows
    w3 = jnp.pad(params["w3"], ((0, Pp - P), (0, Cp - Cout))).astype(jnp.bfloat16)
    g1 = jnp.pad(params["g1"], ((0, 0), (0, Pp - P)))
    b1 = jnp.pad(params["b1"], ((0, 0), (0, Pp - P)))
    g2 = jnp.pad(params["g2"], ((0, 0), (0, Pp - P)))
    b2 = jnp.pad(params["b2"], ((0, 0), (0, Pp - P)))
    g3 = jnp.pad(params["g3"], ((0, 0), (0, Cp - Cout)))
    b3 = jnp.pad(params["b3"], ((0, 0), (0, Cp - Cout)))
    xp = jnp.pad(x_nhwc, ((0, 0), (0, 0), (0, 0), (0, Cp - Cin)))
    x2d = xp.reshape(M, Cp)                                  # free reshape

    # ---- halo-validity masks for the 9 taps (tiny, built once in XLA) ---------
    yy = lax.broadcasted_iota(jnp.int32, (H, W), 0)
    xx = lax.broadcasted_iota(jnp.int32, (H, W), 1)
    masks = []
    for dy in (-1, 0, 1):
        for dx in (-1, 0, 1):
            valid = ((yy + dy >= 0) & (yy + dy < H) &
                     (xx + dx >= 0) & (xx + dx < W))
            masks.append(valid.reshape(HW, 1).astype(jnp.float32))
    tap_masks = jnp.stack(masks, axis=0)                     # (9, HW, 1)

    # ---- block specs -----------------------------------------------------------
    def row_spec(c):        # (TM, C) row block of a flattened activation
        return pl.BlockSpec((TM, c), lambda i: (i, 0))

    def img_spec(c):        # one full image per grid step (3x3 halo in-tile)
        return pl.BlockSpec((1, H, W, c), lambda n: (n, 0, 0, 0))

    def stat_spec(c):       # per-tile partial BN stats (sum, M2)
        return pl.BlockSpec((1, 2, c), lambda i: (i, 0, 0))

    def bcast_spec(arr):    # small array, same whole-array block every step
        return pl.BlockSpec(arr.shape, lambda *_: (0,) * arr.ndim)

    # ---- stage 1: conv1 (1x1) -> bf16 h1 + partial BN1 stats -------------------
    h1, st1 = pl.pallas_call(
        _conv1_kernel,
        grid=(nt,),
        in_specs=[row_spec(Cp), bcast_spec(w1)],
        out_specs=[row_spec(Pp), stat_spec(Pp)],
        out_shape=[jax.ShapeDtypeStruct((M, Pp), jnp.bfloat16),
                   jax.ShapeDtypeStruct((nt, 2, Pp), jnp.float32)],
        compiler_params=_cparams(TM * Cp * 4 + TM * Pp * 2 + Cp * Pp * 2),
    )(x2d, w1)
    scale1, shift1 = _finalize_bn(st1, g1, b1, float(TM), count)

    # ---- stage 2: bn1+relu -> conv2 (3x3, roll+mask taps) -> bf16 h2 -----------
    h1_4d = h1.reshape(N, H, W, Pp)
    h2, st2 = pl.pallas_call(
        _bn_relu_conv3x3_kernel,
        grid=(N,),
        in_specs=[img_spec(Pp), bcast_spec(scale1), bcast_spec(shift1),
                  bcast_spec(w2), bcast_spec(tap_masks)],
        out_specs=[img_spec(Pp), stat_spec(Pp)],
        out_shape=[jax.ShapeDtypeStruct((N, H, W, Pp), jnp.bfloat16),
                   jax.ShapeDtypeStruct((N, 2, Pp), jnp.float32)],
        compiler_params=_cparams(2 * HW * Pp * 2 + 9 * Pp * Pp * 2
                                 + 9 * HW * 4 + 12 * HW * Pp * 4),
    )(h1_4d, scale1, shift1, w2, tap_masks)
    scale2, shift2 = _finalize_bn(st2, g2, b2, float(HW), count)

    # ---- stage 3: bn2+relu -> conv3 (1x1) -> f32 h3 + partial BN3 stats --------
    h2_2d = h2.reshape(M, Pp)
    h3, st3 = pl.pallas_call(
        _bn_relu_conv1x1_kernel,
        grid=(nt,),
        in_specs=[row_spec(Pp), bcast_spec(scale2), bcast_spec(shift2),
                  bcast_spec(w3)],
        out_specs=[row_spec(Cp), stat_spec(Cp)],
        out_shape=[jax.ShapeDtypeStruct((M, Cp), jnp.float32),
                   jax.ShapeDtypeStruct((nt, 2, Cp), jnp.float32)],
        compiler_params=_cparams(TM * Pp * 2 + TM * Cp * 4 + Pp * Cp * 2),
    )(h2_2d, scale2, shift2, w3)
    scale3, shift3 = _finalize_bn(st3, g3, b3, float(TM), count)

    # ---- stage 4: bn3 + residual add + relu (x buffer aliased to output) -------
    out2d = pl.pallas_call(
        _bn_add_relu_kernel,
        grid=(nt,),
        in_specs=[row_spec(Cp), row_spec(Cp), bcast_spec(scale3),
                  bcast_spec(shift3)],
        out_specs=row_spec(Cp),
        out_shape=jax.ShapeDtypeStruct((M, Cp), jnp.float32),
        input_output_aliases={1: 0},
        compiler_params=_cparams(3 * TM * Cp * 4),
    )(h3, x2d, scale3, shift3)

    out = out2d.reshape(N, H, W, Cp)
    if Cp != Cin:
        # No-op for real ResNet widths (Cin % 128 == 0); only narrow test configs
        # pay this channel-slice copy.
        out = out[..., :Cin]
    return out


# -----------------------------------------------------------------------------
# Pure-JAX reference (same bf16-input / f32-accumulate matmul quantization)
# -----------------------------------------------------------------------------
def bottleneck_v1b_ref(x_nhwc, params, matmul_dtype=jnp.bfloat16):
    dn = ("NHWC", "HWIO", "NHWC")

    def conv(h, w, padding):
        return lax.conv_general_dilated(
            h.astype(matmul_dtype), w.astype(matmul_dtype), (1, 1), padding,
            dimension_numbers=dn, preferred_element_type=jnp.float32)

    def bn(h, gamma, beta):
        mean = jnp.mean(h, axis=(0, 1, 2), keepdims=True)
        var = jnp.mean((h - mean) ** 2, axis=(0, 1, 2), keepdims=True)
        return (h - mean) * lax.rsqrt(var + EPS) * gamma.reshape(1, 1, 1, -1) \
            + beta.reshape(1, 1, 1, -1)

    h = conv(x_nhwc, params["w1"][None, None], "VALID")
    h = jnp.maximum(bn(h, params["g1"], params["b1"]), 0.0)
    h = conv(h, params["w2"], [(1, 1), (1, 1)])
    h = jnp.maximum(bn(h, params["g2"], params["b2"]), 0.0)
    h = conv(h, params["w3"][None, None], "VALID")
    h = bn(h, params["g3"], params["b3"])
    return jnp.maximum(h + x_nhwc, 0.0)


# -----------------------------------------------------------------------------
# main
# -----------------------------------------------------------------------------
if __name__ == "__main__":
    # Small shapes: batch=2, in_channel=16, planes=4 (expansion 4 -> 16), 16x16.
    N, H, W = 2, 16, 16
    planes = 4
    in_channel = planes * 4   # identity residual path applies

    key = jax.random.PRNGKey(0)
    keys = jax.random.split(key, 10)

    # Built in PyTorch's NCHW convention, transposed to NHWC for the kernel.
    x_nchw = jax.random.normal(keys[0], (N, in_channel, H, W), jnp.float32)
    x_nhwc = jnp.transpose(x_nchw, (0, 2, 3, 1))

    params = {
        # conv weights in matmul-friendly layouts:
        #   w1: (Cin, P), w2: (3, 3, P, P) [HWIO], w3: (P, 4P)
        "w1": 0.1 * jax.random.normal(keys[1], (in_channel, planes), jnp.float32),
        "w2": 0.1 * jax.random.normal(keys[2], (3, 3, planes, planes), jnp.float32),
        "w3": 0.1 * jax.random.normal(keys[3], (planes, planes * 4), jnp.float32),
        # BN affine params, (1, C) for broadcasting.
        "g1": 1.0 + 0.1 * jax.random.normal(keys[4], (1, planes), jnp.float32),
        "b1": 0.1 * jax.random.normal(keys[5], (1, planes), jnp.float32),
        "g2": 1.0 + 0.1 * jax.random.normal(keys[6], (1, planes), jnp.float32),
        "b2": 0.1 * jax.random.normal(keys[7], (1, planes), jnp.float32),
        "g3": 1.0 + 0.1 * jax.random.normal(keys[8], (1, planes * 4), jnp.float32),
        "b3": 0.1 * jax.random.normal(keys[9], (1, planes * 4), jnp.float32),
    }

    out_nhwc = bottleneck_v1b_pallas(x_nhwc, params)
    out_nhwc = jax.block_until_ready(out_nhwc)

    ref_nhwc = bottleneck_v1b_ref(x_nhwc, params)
    max_err = float(jnp.max(jnp.abs(out_nhwc - ref_nhwc)))
    # Tolerance widened slightly vs the f32-intermediate version: h1/h2 are now
    # stored as bf16 between stages (still catches any real tap/BN bug).
    assert jnp.allclose(out_nhwc, ref_nhwc, rtol=3e-2, atol=3e-2), (
        f"mismatch vs reference: max abs err {max_err}")

    # Back to NCHW to match the PyTorch module's output convention.
    out_nchw = jnp.transpose(out_nhwc, (0, 3, 1, 2))
    _ = jax.block_until_ready(out_nchw)

    print("KERNEL_OK")
</pallas_src>

<mosaic_0001>
module attributes {stable_mosaic.version = 11 : i64} {
  func.func @_conv1_kernel(%arg0: i32, %arg1: memref<512x128xf32, #tpu.memory_space<vmem>>, %arg2: memref<128x128xbf16, #tpu.memory_space<vmem>>, %arg3: memref<512x128xbf16, #tpu.memory_space<vmem>>, %arg4: memref<1x2x128xf32, #tpu.memory_space<vmem>>) attributes {dimension_semantics = [#tpu.dimension_semantics<parallel>], iteration_bounds = array<i64: 1>, scalar_prefetch = 0 : i64, scratch_operands = 0 : i64, tpu.core_type = #tpu.core_type<tc>, window_params = [{transform_indices = @transform_0, window_bounds = array<i64: 512, 128>}, {pipeline_mode = #tpu.pipeline_mode<synchronous>, transform_indices = @transform_1, window_bounds = array<i64: 128, 128>}, {transform_indices = @transform_2, window_bounds = array<i64: 512, 128>}, {transform_indices = @transform_3, window_bounds = array<i64: 1, 2, 128>}]} {
    %c0 = arith.constant 0 : index
    %c0_0 = arith.constant 0 : index
    %0 = vector.load %arg1[%c0, %c0_0] : memref<512x128xf32, #tpu.memory_space<vmem>>, vector<512x128xf32>
    %1 = arith.truncf %0 : vector<512x128xf32> to vector<512x128xbf16>
    %c0_1 = arith.constant 0 : index
    %c0_2 = arith.constant 0 : index
    %2 = vector.load %arg2[%c0_1, %c0_2] : memref<128x128xbf16, #tpu.memory_space<vmem>>, vector<128x128xbf16>
    %cst = arith.constant dense<0.000000e+00> : vector<512x128xf32>
    %3 = tpu.matmul %1, %2, %cst {dimension_numbers = #tpu.dot_dimension_numbers<[1], [0], [0], [1], [0, 0, 1, 1], [], []>} : vector<512x128xbf16>, vector<128x128xbf16>, vector<512x128xf32> -> vector<512x128xf32>
    %4 = arith.truncf %3 : vector<512x128xf32> to vector<512x128xbf16>
    %c0_3 = arith.constant 0 : index
    %c0_4 = arith.constant 0 : index
    %5 = vector.load %arg3[%c0_3, %c0_4] : memref<512x128xbf16, #tpu.memory_space<vmem>>, vector<512x128xbf16>
    tpu.vector_store %arg3[%c0_3, %c0_4], %4 {strides = array<i32>} : memref<512x128xbf16, #tpu.memory_space<vmem>>, vector<512x128xbf16>,
    %cst_5 = arith.constant dense<0.000000e+00> : vector<128xf32>
    %6 = vector.multi_reduction <add>, %3, %cst_5 [0] : vector<512x128xf32> to vector<128xf32>
    %7 = vector.shape_cast %6 : vector<128xf32> to vector<1x128xf32>
    %cst_6 = arith.constant 0.001953125 : f32
    %8 = vector.broadcast %cst_6 : f32 to vector<1x128xf32>
    %9 = arith.mulf %7, %8 : vector<1x128xf32>
    %10 = vector.broadcast %9 : vector<1x128xf32> to vector<512x128xf32>
    %11 = arith.subf %3, %10 : vector<512x128xf32>
    %12 = arith.mulf %11, %11 : vector<512x128xf32>
    %cst_7 = arith.constant dense<0.000000e+00> : vector<128xf32>
    %13 = vector.multi_reduction <add>, %12, %cst_7 [0] : vector<512x128xf32> to vector<128xf32>
    %14 = vector.shape_cast %13 : vector<128xf32> to vector<1x128xf32>
    %15 = tpu.concatenate %7, %14 in 0 : vector<1x128xf32>, vector<1x128xf32> -> vector<2x128xf32>
    %16 = vector.shape_cast %15 : vector<2x128xf32> to vector<1x2x128xf32>
    %c0_8 = arith.constant 0 : index
    %c0_9 = arith.constant 0 : index
    %c0_10 = arith.constant 0 : index
    %17 = vector.load %arg4[%c0_8, %c0_9, %c0_10] : memref<1x2x128xf32, #tpu.memory_space<vmem>>, vector<1x2x128xf32>
    tpu.vector_store %arg4[%c0_8, %c0_9, %c0_10], %16 {strides = array<i32>} : memref<1x2x128xf32, #tpu.memory_space<vmem>>, vector<1x2x128xf32>,
    return
  }
  func.func @transform_0(%arg0: i32) -> (i32, i32) {
    %c0_i32 = arith.constant 0 : i32
    %c0_i32_0 = arith.constant 0 : i32
    return %arg0, %c0_i32 : i32, i32
  }
  func.func @transform_1(%arg0: i32) -> (i32, i32) {
    %c0_i32 = arith.constant 0 : i32
    %c0_i32_0 = arith.constant 0 : i32
    %c0_i32_1 = arith.constant 0 : i32
    return %c0_i32, %c0_i32_0 : i32, i32
  }
  func.func @transform_2(%arg0: i32) -> (i32, i32) {
    %c0_i32 = arith.constant 0 : i32
    %c0_i32_0 = arith.constant 0 : i32
    return %arg0, %c0_i32 : i32, i32
  }
  func.func @transform_3(%arg0: i32) -> (i32, i32, i32) {
    %c0_i32 = arith.constant 0 : i32
    %c0_i32_0 = arith.constant 0 : i32
    %c0_i32_1 = arith.constant 0 : i32
    return %arg0, %c0_i32, %c0_i32_0 : i32, i32, i32
  }
}

module attributes {stable_mosaic.version = 11 : i64} {
  func.func @_bn_relu_conv3x3_kernel(%arg0: i32, %arg1: memref<1x16x16x128xbf16, #tpu.memory_space<vmem>>, %arg2: memref<1x128xf32, #tpu.memory_space<vmem>>, %arg3: memref<1x128xf32, #tpu.memory_space<vmem>>, %arg4: memref<1152x128xbf16, #tpu.memory_space<vmem>>, %arg5: memref<9x256x1xf32, #tpu.memory_space<vmem>>, %arg6: memref<1x16x16x128xbf16, #tpu.memory_space<vmem>>, %arg7: memref<1x2x128xf32, #tpu.memory_space<vmem>>) attributes {dimension_semantics = [#tpu.dimension_semantics<parallel>], iteration_bounds = array<i64: 2>, scalar_prefetch = 0 : i64, scratch_operands = 0 : i64, tpu.core_type = #tpu.core_type<tc>, window_params = [{transform_indices = @transform_0, window_bounds = array<i64: 1, 16, 16, 128>}, {pipeline_mode = #tpu.pipeline_mode<synchronous>, transform_indices = @transform_1, window_bounds = array<i64: 1, 128>}, {pipeline_mode = #tpu.pipeline_mode<synchronous>, transform_indices = @transform_2, window_bounds = array<i64: 1, 128>}, {pipeline_mode = #tpu.pipeline_mode<synchronous>, transform_indices = @transform_3, window_bounds = array<i64: 1152, 128>}, {pipeline_mode = #tpu.pipeline_mode<synchronous>, transform_indices = @transform_4, window_bounds = array<i64: 9, 256, 1>}, {transform_indices = @transform_5, window_bounds = array<i64: 1, 16, 16, 128>}, {transform_indices = @transform_6, window_bounds = array<i64: 1, 2, 128>}]} {
    %c0 = arith.constant 0 : index
    %c0_0 = arith.constant 0 : index
    %c0_1 = arith.constant 0 : index
    %c0_2 = arith.constant 0 : index
    %0 = vector.load %arg1[%c0, %c0_0, %c0_1, %c0_2] : memref<1x16x16x128xbf16, #tpu.memory_space<vmem>>, vector<1x16x16x128xbf16>
    %1 = vector.shape_cast %0 : vector<1x16x16x128xbf16> to vector<256x128xbf16>
    %2 = arith.extf %1 : vector<256x128xbf16> to vector<256x128xf32>
    %c0_3 = arith.constant 0 : index
    %c0_4 = arith.constant 0 : index
    %3 = vector.load %arg2[%c0_3, %c0_4] : memref<1x128xf32, #tpu.memory_space<vmem>>, vector<1x128xf32>
    %4 = vector.broadcast %3 : vector<1x128xf32> to vector<256x128xf32>
    %5 = arith.mulf %2, %4 : vector<256x128xf32>
    %c0_5 = arith.constant 0 : index
    %c0_6 = arith.constant 0 : index
    %6 = vector.load %arg3[%c0_5, %c0_6] : memref<1x128xf32, #tpu.memory_space<vmem>>, vector<1x128xf32>
    %7 = vector.broadcast %6 : vector<1x128xf32> to vector<256x128xf32>
    %8 = arith.addf %5, %7 : vector<256x128xf32>
    %cst = arith.constant 0.000000e+00 : f32
    %9 = vector.broadcast %cst : f32 to vector<256x128xf32>
    %10 = arith.maximumf %8, %9 : vector<256x128xf32>
    %c17_i32 = arith.constant 17 : i32
    %11 = tpu.dynamic_rotate %10 by %c17_i32 dim 0 : vector<256x128xf32>, i32 -> vector<256x128xf32>
    %c0_7 = arith.constant 0 : index
    %c0_8 = arith.constant 0 : index
    %c0_9 = arith.constant 0 : index
    %12 = vector.load %arg5[%c0_7, %c0_8, %c0_9] : memref<9x256x1xf32, #tpu.memory_space<vmem>>, vector<1x256x1xf32>
    %13 = vector.shape_cast %12 : vector<1x256x1xf32> to vector<256x1xf32>
    %14 = vector.broadcast %13 : vector<256x1xf32> to vector<256x128xf32>
    %15 = arith.mulf %11, %14 : vector<256x128xf32>
    %16 = arith.truncf %15 : vector<256x128xf32> to vector<256x128xbf16>
    %c0_10 = arith.constant 0 : index
    %c0_11 = arith.constant 0 : index
    %17 = vector.load %arg4[%c0_10, %c0_11] : memref<1152x128xbf16, #tpu.memory_space<vmem>>, vector<128x128xbf16>
    %cst_12 = arith.constant dense<0.000000e+00> : vector<256x128xf32>
    %18 = tpu.matmul %16, %17, %cst_12 {dimension_numbers = #tpu.dot_dimension_numbers<[1], [0], [0], [1], [0, 0, 1, 1], [], []>} : vector<256x128xbf16>, vector<128x128xbf16>, vector<256x128xf32> -> vector<256x128xf32>
    %c16_i32 = arith.constant 16 : i32
    %19 = tpu.dynamic_rotate %10 by %c16_i32 dim 0 : vector<256x128xf32>, i32 -> vector<256x128xf32>
    %c1 = arith.constant 1 : index
    %c0_13 = arith.constant 0 : index
    %c0_14 = arith.constant 0 : index
    %20 = vector.load %arg5[%c1, %c0_13, %c0_14] : memref<9x256x1xf32, #tpu.memory_space<vmem>>, vector<1x256x1xf32>
    %21 = vector.shape_cast %20 : vector<1x256x1xf32> to vector<256x1xf32>
    %22 = vector.broadcast %21 : vector<256x1xf32> to vector<256x128xf32>
    %23 = arith.mulf %19, %22 : vector<256x128xf32>
    %24 = arith.truncf %23 : vector<256x128xf32> to vector<256x128xbf16>
    %c128 = arith.constant 128 : index
    %c0_15 = arith.constant 0 : index
    %25 = vector.load %arg4[%c128, %c0_15] : memref<1152x128xbf16, #tpu.memory_space<vmem>>, vector<128x128xbf16>
    %cst_16 = arith.constant dense<0.000000e+00> : vector<256x128xf32>
    %26 = tpu.matmul %24, %25, %cst_16 {dimension_numbers = #tpu.dot_dimension_numbers<[1], [0], [0], [1], [0, 0, 1, 1], [], []>} : vector<256x128xbf16>, vector<128x128xbf16>, vector<256x128xf32> -> vector<256x128xf32>
    %27 = arith.addf %18, %26 : vector<256x128xf32>
    %c15_i32 = arith.constant 15 : i32
    %28 = tpu.dynamic_rotate %10 by %c15_i32 dim 0 : vector<256x128xf32>, i32 -> vector<256x128xf32>
    %c2 = arith.constant 2 : index
    %c0_17 = arith.constant 0 : index
    %c0_18 = arith.constant 0 : index
    %29 = vector.load %arg5[%c2, %c0_17, %c0_18] : memref<9x256x1xf32, #tpu.memory_space<vmem>>, vector<1x256x1xf32>
    %30 = vector.shape_cast %29 : vector<1x256x1xf32> to vector<256x1xf32>
    %31 = vector.broadcast %30 : vector<256x1xf32> to vector<256x128xf32>
    %32 = arith.mulf %28, %31 : vector<256x128xf32>
    %33 = arith.truncf %32 : vector<256x128xf32> to vector<256x128xbf16>
    %c256 = arith.constant 256 : index
    %c0_19 = arith.constant 0 : index
    %34 = vector.load %arg4[%c256, %c0_19] : memref<1152x128xbf16, #tpu.memory_space<vmem>>, vector<128x128xbf16>
    %cst_20 = arith.constant dense<0.000000e+00> : vector<256x128xf32>
    %35 = tpu.matmul %33, %34, %cst_20 {dimension_numbers = #tpu.dot_dimension_numbers<[1], [0], [0], [1], [0, 0, 1, 1], [], []>} : vector<256x128xbf16>, vector<128x128xbf16>, vector<256x128xf32> -> vector<256x128xf32>
    %36 = arith.addf %27, %35 : vector<256x128xf32>
    %c1_i32 = arith.constant 1 : i32
    %37 = tpu.dynamic_rotate %10 by %c1_i32 dim 0 : vector<256x128xf32>, i32 -> vector<256x128xf32>
    %c3 = arith.constant 3 : index
    %c0_21 = arith.constant 0 : index
    %c0_22 = arith.constant 0 : index
    %38 = vector.load %arg5[%c3, %c0_21, %c0_22] : memref<9x256x1xf32, #tpu.memory_space<vmem>>, vector<1x256x1xf32>
    %39 = vector.shape_cast %38 : vector<1x256x1xf32> to vector<256x1xf32>
    %40 = vector.broadcast %39 : vector<256x1xf32> to vector<256x128xf32>
    %41 = arith.mulf %37, %40 : vector<256x128xf32>
    %42 = arith.truncf %41 : vector<256x128xf32> to vector<256x128xbf16>
    %c384 = arith.constant 384 : index
    %c0_23 = arith.constant 0 : index
    %43 = vector.load %arg4[%c384, %c0_23] : memref<1152x128xbf16, #tpu.memory_space<vmem>>, vector<128x128xbf16>
    %cst_24 = arith.constant dense<0.000000e+00> : vector<256x128xf32>
    %44 = tpu.matmul %42, %43, %cst_24 {dimension_numbers = #tpu.dot_dimension_numbers<[1], [0], [0], [1], [0, 0, 1, 1], [], []>} : vector<256x128xbf16>, vector<128x128xbf16>, vector<256x128xf32> -> vector<256x128xf32>
    %45 = arith.addf %36, %44 : vector<256x128xf32>
    %46 = arith.truncf %10 : vector<256x128xf32> to vector<256x128xbf16>
    %c512 = arith.constant 512 : index
    %c0_25 = arith.constant 0 : index
    %47 = vector.load %arg4[%c512, %c0_25] : memref<1152x128xbf16, #tpu.memory_space<vmem>>, vector<128x128xbf16>
    %cst_26 = arith.constant dense<0.000000e+00> : vector<256x128xf32>
    %48 = tpu.matmul %46, %47, %cst_26 {dimension_numbers = #tpu.dot_dimension_numbers<[1], [0], [0], [1], [0, 0, 1, 1], [], []>} : vector<256x128xbf16>, vector<128x128xbf16>, vector<256x128xf32> -> vector<256x128xf32>
    %49 = arith.addf %45, %48 : vector<256x128xf32>
    %c255_i32 = arith.constant 255 : i32
    %50 = tpu.dynamic_rotate %10 by %c255_i32 dim 0 : vector<256x128xf32>, i32 -> vector<256x128xf32>
    %c5 = arith.constant 5 : index
    %c0_27 = arith.constant 0 : index
    %c0_28 = arith.constant 0 : index
    %51 = vector.load %arg5[%c5, %c0_27, %c0_28] : memref<9x256x1xf32, #tpu.memory_space<vmem>>, vector<1x256x1xf32>
    %52 = vector.shape_cast %51 : vector<1x256x1xf32> to vector<256x1xf32>
    %53 = vector.broadcast %52 : vector<256x1xf32> to vector<256x128xf32>
    %54 = arith.mulf %50, %53 : vector<256x128xf32>
    %55 = arith.truncf %54 : vector<256x128xf32> to vector<256x128xbf16>
    %c640 = arith.constant 640 : index
    %c0_29 = arith.constant 0 : index
    %56 = vector.load %arg4[%c640, %c0_29] : memref<1152x128xbf16, #tpu.memory_space<vmem>>, vector<128x128xbf16>
    %cst_30 = arith.constant dense<0.000000e+00> : vector<256x128xf32>
    %57 = tpu.matmul %55, %56, %cst_30 {dimension_numbers = #tpu.dot_dimension_numbers<[1], [0], [0], [1], [0, 0, 1, 1], [], []>} : vector<256x128xbf16>, vector<128x128xbf16>, vector<256x128xf32> -> vector<256x128xf32>
    %58 = arith.addf %49, %57 : vector<256x128xf32>
    %c241_i32 = arith.constant 241 : i32
    %59 = tpu.dynamic_rotate %10 by %c241_i32 dim 0 : vector<256x128xf32>, i32 -> vector<256x128xf32>
    %c6 = arith.constant 6 : index
    %c0_31 = arith.constant 0 : index
    %c0_32 = arith.constant 0 : index
    %60 = vector.load %arg5[%c6, %c0_31, %c0_32] : memref<9x256x1xf32, #tpu.memory_space<vmem>>, vector<1x256x1xf32>
    %61 = vector.shape_cast %60 : vector<1x256x1xf32> to vector<256x1xf32>
    %62 = vector.broadcast %61 : vector<256x1xf32> to vector<256x128xf32>
    %63 = arith.mulf %59, %62 : vector<256x128xf32>
    %64 = arith.truncf %63 : vector<256x128xf32> to vector<256x128xbf16>
    %c768 = arith.constant 768 : index
    %c0_33 = arith.constant 0 : index
    %65 = vector.load %arg4[%c768, %c0_33] : memref<1152x128xbf16, #tpu.memory_space<vmem>>, vector<128x128xbf16>
    %cst_34 = arith.constant dense<0.000000e+00> : vector<256x128xf32>
    %66 = tpu.matmul %64, %65, %cst_34 {dimension_numbers = #tpu.dot_dimension_numbers<[1], [0], [0], [1], [0, 0, 1, 1], [], []>} : vector<256x128xbf16>, vector<128x128xbf16>, vector<256x128xf32> -> vector<256x128xf32>
    %67 = arith.addf %58, %66 : vector<256x128xf32>
    %c240_i32 = arith.constant 240 : i32
    %68 = tpu.dynamic_rotate %10 by %c240_i32 dim 0 : vector<256x128xf32>, i32 -> vector<256x128xf32>
    %c7 = arith.constant 7 : index
    %c0_35 = arith.constant 0 : index
    %c0_36 = arith.constant 0 : index
    %69 = vector.load %arg5[%c7, %c0_35, %c0_36] : memref<9x256x1xf32, #tpu.memory_space<vmem>>, vector<1x256x1xf32>
    %70 = vector.shape_cast %69 : vector<1x256x1xf32> to vector<256x1xf32>
    %71 = vector.broadcast %70 : vector<256x1xf32> to vector<256x128xf32>
    %72 = arith.mulf %68, %71 : vector<256x128xf32>
    %73 = arith.truncf %72 : vector<256x128xf32> to vector<256x128xbf16>
    %c896 = arith.constant 896 : index
    %c0_37 = arith.constant 0 : index
    %74 = vector.load %arg4[%c896, %c0_37] : memref<1152x128xbf16, #tpu.memory_space<vmem>>, vector<128x128xbf16>
    %cst_38 = arith.constant dense<0.000000e+00> : vector<256x128xf32>
    %75 = tpu.matmul %73, %74, %cst_38 {dimension_numbers = #tpu.dot_dimension_numbers<[1], [0], [0], [1], [0, 0, 1, 1], [], []>} : vector<256x128xbf16>, vector<128x128xbf16>, vector<256x128xf32> -> vector<256x128xf32>
    %76 = arith.addf %67, %75 : vector<256x128xf32>
    %c239_i32 = arith.constant 239 : i32
    %77 = tpu.dynamic_rotate %10 by %c239_i32 dim 0 : vector<256x128xf32>, i32 -> vector<256x128xf32>
    %c8 = arith.constant 8 : index
    %c0_39 = arith.constant 0 : index
    %c0_40 = arith.constant 0 : index
    %78 = vector.load %arg5[%c8, %c0_39, %c0_40] : memref<9x256x1xf32, #tpu.memory_space<vmem>>, vector<1x256x1xf32>
    %79 = vector.shape_cast %78 : vector<1x256x1xf32> to vector<256x1xf32>
    %80 = vector.broadcast %79 : vector<256x1xf32> to vector<256x128xf32>
    %81 = arith.mulf %77, %80 : vector<256x128xf32>
    %82 = arith.truncf %81 : vector<256x128xf32> to vector<256x128xbf16>
    %c1024 = arith.constant 1024 : index
    %c0_41 = arith.constant 0 : index
    %83 = vector.load %arg4[%c1024, %c0_41] : memref<1152x128xbf16, #tpu.memory_space<vmem>>, vector<128x128xbf16>
    %cst_42 = arith.constant dense<0.000000e+00> : vector<256x128xf32>
    %84 = tpu.matmul %82, %83, %cst_42 {dimension_numbers = #tpu.dot_dimension_numbers<[1], [0], [0], [1], [0, 0, 1, 1], [], []>} : vector<256x128xbf16>, vector<128x128xbf16>, vector<256x128xf32> -> vector<256x128xf32>
    %85 = arith.addf %76, %84 : vector<256x128xf32>
    %86 = arith.truncf %85 : vector<256x128xf32> to vector<256x128xbf16>
    %87 = vector.shape_cast %86 : vector<256x128xbf16> to vector<1x16x16x128xbf16>
    %c0_43 = arith.constant 0 : index
    %c0_44 = arith.constant 0 : index
    %c0_45 = arith.constant 0 : index
    %c0_46 = arith.constant 0 : index
    %88 = vector.load %arg6[%c0_43, %c0_44, %c0_45, %c0_46] : memref<1x16x16x128xbf16, #tpu.memory_space<vmem>>, vector<1x16x16x128xbf16>
    tpu.vector_store %arg6[%c0_43, %c0_44, %c0_45, %c0_46], %87 {strides = array<i32>} : memref<1x16x16x128xbf16, #tpu.memory_space<vmem>>, vector<1x16x16x128xbf16>,
    %cst_47 = arith.constant dense<0.000000e+00> : vector<128xf32>
    %89 = vector.multi_reduction <add>, %85, %cst_47 [0] : vector<256x128xf32> to vector<128xf32>
    %90 = vector.shape_cast %89 : vector<128xf32> to vector<1x128xf32>
    %cst_48 = arith.constant 3.906250e-03 : f32
    %91 = vector.broadcast %cst_48 : f32 to vector<1x128xf32>
    %92 = arith.mulf %90, %91 : vector<1x128xf32>
    %93 = vector.broadcast %92 : vector<1x128xf32> to vector<256x128xf32>
    %94 = arith.subf %85, %93 : vector<256x128xf32>
    %95 = arith.mulf %94, %94 : vector<256x128xf32>
    %cst_49 = arith.constant dense<0.000000e+00> : vector<128xf32>
    %96 = vector.multi_reduction <add>, %95, %cst_49 [0] : vector<256x128xf32> to vector<128xf32>
    %97 = vector.shape_cast %96 : vector<128xf32> to vector<1x128xf32>
    %98 = tpu.concatenate %90, %97 in 0 : vector<1x128xf32>, vector<1x128xf32> -> vector<2x128xf32>
    %99 = vector.shape_cast %98 : vector<2x128xf32> to vector<1x2x128xf32>
    %c0_50 = arith.constant 0 : index
    %c0_51 = arith.constant 0 : index
    %c0_52 = arith.constant 0 : index
    %100 = vector.load %arg7[%c0_50, %c0_51, %c0_52] : memref<1x2x128xf32, #tpu.memory_space<vmem>>, vector<1x2x128xf32>
    tpu.vector_store %arg7[%c0_50, %c0_51, %c0_52], %99 {strides = array<i32>} : memref<1x2x128xf32, #tpu.memory_space<vmem>>, vector<1x2x128xf32>,
    return
  }
  func.func @transform_0(%arg0: i32) -> (i32, i32, i32, i32) {
    %c0_i32 = arith.constant 0 : i32
    %c0_i32_0 = arith.constant 0 : i32
    %c0_i32_1 = arith.constant 0 : i32
    %c0_i32_2 = arith.constant 0 : i32
    return %arg0, %c0_i32, %c0_i32_0, %c0_i32_1 : i32, i32, i32, i32
  }
  func.func @transform_1(%arg0: i32) -> (i32, i32) {
    %c0_i32 = arith.constant 0 : i32
    %c0_i32_0 = arith.constant 0 : i32
    %c0_i32_1 = arith.constant 0 : i32
    return %c0_i32, %c0_i32_0 : i32, i32
  }
  func.func @transform_2(%arg0: i32) -> (i32, i32) {
    %c0_i32 = arith.constant 0 : i32
    %c0_i32_0 = arith.constant 0 : i32
    %c0_i32_1 = arith.constant 0 : i32
    return %c0_i32, %c0_i32_0 : i32, i32
  }
  func.func @transform_3(%arg0: i32) -> (i32, i32) {
    %c0_i32 = arith.constant 0 : i32
    %c0_i32_0 = arith.constant 0 : i32
    %c0_i32_1 = arith.constant 0 : i32
    return %c0_i32, %c0_i32_0 : i32, i32
  }
  func.func @transform_4(%arg0: i32) -> (i32, i32, i32) {
    %c0_i32 = arith.constant 0 : i32
    %c0_i32_0 = arith.constant 0 : i32
    %c0_i32_1 = arith.constant 0 : i32
    %c0_i32_2 = arith.constant 0 : i32
    return %c0_i32, %c0_i32_0, %c0_i32_1 : i32, i32, i32
  }
  func.func @transform_5(%arg0: i32) -> (i32, i32, i32, i32) {
    %c0_i32 = arith.constant 0 : i32
    %c0_i32_0 = arith.constant 0 : i32
    %c0_i32_1 = arith.constant 0 : i32
    %c0_i32_2 = arith.constant 0 : i32
    return %arg0, %c0_i32, %c0_i32_0, %c0_i32_1 : i32, i32, i32, i32
  }
  func.func @transform_6(%arg0: i32) -> (i32, i32, i32) {
    %c0_i32 = arith.constant 0 : i32
    %c0_i32_0 = arith.constant 0 : i32
    %c0_i32_1 = arith.constant 0 : i32
    return %arg0, %c0_i32, %c0_i32_0 : i32, i32, i32
  }
}

module attributes {stable_mosaic.version = 11 : i64} {
  func.func @_bn_relu_conv1x1_kernel(%arg0: i32, %arg1: memref<512x128xbf16, #tpu.memory_space<vmem>>, %arg2: memref<1x128xf32, #tpu.memory_space<vmem>>, %arg3: memref<1x128xf32, #tpu.memory_space<vmem>>, %arg4: memref<128x128xbf16, #tpu.memory_space<vmem>>, %arg5: memref<512x128xf32, #tpu.memory_space<vmem>>, %arg6: memref<1x2x128xf32, #tpu.memory_space<vmem>>) attributes {dimension_semantics = [#tpu.dimension_semantics<parallel>], iteration_bounds = array<i64: 1>, scalar_prefetch = 0 : i64, scratch_operands = 0 : i64, tpu.core_type = #tpu.core_type<tc>, window_params = [{transform_indices = @transform_0, window_bounds = array<i64: 512, 128>}, {pipeline_mode = #tpu.pipeline_mode<synchronous>, transform_indices = @transform_1, window_bounds = array<i64: 1, 128>}, {pipeline_mode = #tpu.pipeline_mode<synchronous>, transform_indices = @transform_2, window_bounds = array<i64: 1, 128>}, {pipeline_mode = #tpu.pipeline_mode<synchronous>, transform_indices = @transform_3, window_bounds = array<i64: 128, 128>}, {transform_indices = @transform_4, window_bounds = array<i64: 512, 128>}, {transform_indices = @transform_5, window_bounds = array<i64: 1, 2, 128>}]} {
    %c0 = arith.constant 0 : index
    %c0_0 = arith.constant 0 : index
    %0 = vector.load %arg1[%c0, %c0_0] : memref<512x128xbf16, #tpu.memory_space<vmem>>, vector<512x128xbf16>
    %1 = arith.extf %0 : vector<512x128xbf16> to vector<512x128xf32>
    %c0_1 = arith.constant 0 : index
    %c0_2 = arith.constant 0 : index
    %2 = vector.load %arg2[%c0_1, %c0_2] : memref<1x128xf32, #tpu.memory_space<vmem>>, vector<1x128xf32>
    %3 = vector.broadcast %2 : vector<1x128xf32> to vector<512x128xf32>
    %4 = arith.mulf %1, %3 : vector<512x128xf32>
    %c0_3 = arith.constant 0 : index
    %c0_4 = arith.constant 0 : index
    %5 = vector.load %arg3[%c0_3, %c0_4] : memref<1x128xf32, #tpu.memory_space<vmem>>, vector<1x128xf32>
    %6 = vector.broadcast %5 : vector<1x128xf32> to vector<512x128xf32>
    %7 = arith.addf %4, %6 : vector<512x128xf32>
    %cst = arith.constant 0.000000e+00 : f32
    %8 = vector.broadcast %cst : f32 to vector<512x128xf32>
    %9 = arith.maximumf %7, %8 : vector<512x128xf32>
    %10 = arith.truncf %9 : vector<512x128xf32> to vector<512x128xbf16>
    %c0_5 = arith.constant 0 : index
    %c0_6 = arith.constant 0 : index
    %11 = vector.load %arg4[%c0_5, %c0_6] : memref<128x128xbf16, #tpu.memory_space<vmem>>, vector<128x128xbf16>
    %cst_7 = arith.constant dense<0.000000e+00> : vector<512x128xf32>
    %12 = tpu.matmul %10, %11, %cst_7 {dimension_numbers = #tpu.dot_dimension_numbers<[1], [0], [0], [1], [0, 0, 1, 1], [], []>} : vector<512x128xbf16>, vector<128x128xbf16>, vector<512x128xf32> -> vector<512x128xf32>
    %c0_8 = arith.constant 0 : index
    %c0_9 = arith.constant 0 : index
    %13 = vector.load %arg5[%c0_8, %c0_9] : memref<512x128xf32, #tpu.memory_space<vmem>>, vector<512x128xf32>
    tpu.vector_store %arg5[%c0_8, %c0_9], %12 {strides = array<i32>} : memref<512x128xf32, #tpu.memory_space<vmem>>, vector<512x128xf32>,
    %cst_10 = arith.constant dense<0.000000e+00> : vector<128xf32>
    %14 = vector.multi_reduction <add>, %12, %cst_10 [0] : vector<512x128xf32> to vector<128xf32>
    %15 = vector.shape_cast %14 : vector<128xf32> to vector<1x128xf32>
    %cst_11 = arith.constant 0.001953125 : f32
    %16 = vector.broadcast %cst_11 : f32 to vector<1x128xf32>
    %17 = arith.mulf %15, %16 : vector<1x128xf32>
    %18 = vector.broadcast %17 : vector<1x128xf32> to vector<512x128xf32>
    %19 = arith.subf %12, %18 : vector<512x128xf32>
    %20 = arith.mulf %19, %19 : vector<512x128xf32>
    %cst_12 = arith.constant dense<0.000000e+00> : vector<128xf32>
    %21 = vector.multi_reduction <add>, %20, %cst_12 [0] : vector<512x128xf32> to vector<128xf32>
    %22 = vector.shape_cast %21 : vector<128xf32> to vector<1x128xf32>
    %23 = tpu.concatenate %15, %22 in 0 : vector<1x128xf32>, vector<1x128xf32> -> vector<2x128xf32>
    %24 = vector.shape_cast %23 : vector<2x128xf32> to vector<1x2x128xf32>
    %c0_13 = arith.constant 0 : index
    %c0_14 = arith.constant 0 : index
    %c0_15 = arith.constant 0 : index
    %25 = vector.load %arg6[%c0_13, %c0_14, %c0_15] : memref<1x2x128xf32, #tpu.memory_space<vmem>>, vector<1x2x128xf32>
    tpu.vector_store %arg6[%c0_13, %c0_14, %c0_15], %24 {strides = array<i32>} : memref<1x2x128xf32, #tpu.memory_space<vmem>>, vector<1x2x128xf32>,
    return
  }
  func.func @transform_0(%arg0: i32) -> (i32, i32) {
    %c0_i32 = arith.constant 0 : i32
    %c0_i32_0 = arith.constant 0 : i32
    return %arg0, %c0_i32 : i32, i32
  }
  func.func @transform_1(%arg0: i32) -> (i32, i32) {
    %c0_i32 = arith.constant 0 : i32
    %c0_i32_0 = arith.constant 0 : i32
    %c0_i32_1 = arith.constant 0 : i32
    return %c0_i32, %c0_i32_0 : i32, i32
  }
  func.func @transform_2(%arg0: i32) -> (i32, i32) {
    %c0_i32 = arith.constant 0 : i32
    %c0_i32_0 = arith.constant 0 : i32
    %c0_i32_1 = arith.constant 0 : i32
    return %c0_i32, %c0_i32_0 : i32, i32
  }
  func.func @transform_3(%arg0: i32) -> (i32, i32) {
    %c0_i32 = arith.constant 0 : i32
    %c0_i32_0 = arith.constant 0 : i32
    %c0_i32_1 = arith.constant 0 : i32
    return %c0_i32, %c0_i32_0 : i32, i32
  }
  func.func @transform_4(%arg0: i32) -> (i32, i32) {
    %c0_i32 = arith.constant 0 : i32
    %c0_i32_0 = arith.constant 0 : i32
    return %arg0, %c0_i32 : i32, i32
  }
  func.func @transform_5(%arg0: i32) -> (i32, i32, i32) {
    %c0_i32 = arith.constant 0 : i32
    %c0_i32_0 = arith.constant 0 : i32
    %c0_i32_1 = arith.constant 0 : i32
    return %arg0, %c0_i32, %c0_i32_0 : i32, i32, i32
  }
}

module attributes {stable_mosaic.version = 11 : i64} {
  func.func @_bn_add_relu_kernel(%arg0: i32, %arg1: memref<512x128xf32, #tpu.memory_space<vmem>>, %arg2: memref<512x128xf32, #tpu.memory_space<vmem>>, %arg3: memref<1x128xf32, #tpu.memory_space<vmem>>, %arg4: memref<1x128xf32, #tpu.memory_space<vmem>>, %arg5: memref<512x128xf32, #tpu.memory_space<vmem>>) attributes {dimension_semantics = [#tpu.dimension_semantics<parallel>], iteration_bounds = array<i64: 1>, scalar_prefetch = 0 : i64, scratch_operands = 0 : i64, tpu.core_type = #tpu.core_type<tc>, window_params = [{transform_indices = @transform_0, window_bounds = array<i64: 512, 128>}, {transform_indices = @transform_1, window_bounds = array<i64: 512, 128>}, {pipeline_mode = #tpu.pipeline_mode<synchronous>, transform_indices = @transform_2, window_bounds = array<i64: 1, 128>}, {pipeline_mode = #tpu.pipeline_mode<synchronous>, transform_indices = @transform_3, window_bounds = array<i64: 1, 128>}, {transform_indices = @transform_4, window_bounds = array<i64: 512, 128>}]} {
    %c0 = arith.constant 0 : index
    %c0_0 = arith.constant 0 : index
    %0 = vector.load %arg1[%c0, %c0_0] : memref<512x128xf32, #tpu.memory_space<vmem>>, vector<512x128xf32>
    %c0_1 = arith.constant 0 : index
    %c0_2 = arith.constant 0 : index
    %1 = vector.load %arg3[%c0_1, %c0_2] : memref<1x128xf32, #tpu.memory_space<vmem>>, vector<1x128xf32>
    %2 = vector.broadcast %1 : vector<1x128xf32> to vector<512x128xf32>
    %3 = arith.mulf %0, %2 : vector<512x128xf32>
    %c0_3 = arith.constant 0 : index
    %c0_4 = arith.constant 0 : index
    %4 = vector.load %arg4[%c0_3, %c0_4] : memref<1x128xf32, #tpu.memory_space<vmem>>, vector<1x128xf32>
    %5 = vector.broadcast %4 : vector<1x128xf32> to vector<512x128xf32>
    %6 = arith.addf %3, %5 : vector<512x128xf32>
    %c0_5 = arith.constant 0 : index
    %c0_6 = arith.constant 0 : index
    %7 = vector.load %arg2[%c0_5, %c0_6] : memref<512x128xf32, #tpu.memory_space<vmem>>, vector<512x128xf32>
    %8 = arith.addf %6, %7 : vector<512x128xf32>
    %cst = arith.constant 0.000000e+00 : f32
    %9 = vector.broadcast %cst : f32 to vector<512x128xf32>
    %10 = arith.maximumf %8, %9 : vector<512x128xf32>
    %c0_7 = arith.constant 0 : index
    %c0_8 = arith.constant 0 : index
    %11 = vector.load %arg5[%c0_7, %c0_8] : memref<512x128xf32, #tpu.memory_space<vmem>>, vector<512x128xf32>
    tpu.vector_store %arg5[%c0_7, %c0_8], %10 {strides = array<i32>} : memref<512x128xf32, #tpu.memory_space<vmem>>, vector<512x128xf32>,
    return
  }
  func.func @transform_0(%arg0: i32) -> (i32, i32) {
    %c0_i32 = arith.constant 0 : i32
    %c0_i32_0 = arith.constant 0 : i32
    return %arg0, %c0_i32 : i32, i32
  }
  func.func @transform_1(%arg0: i32) -> (i32, i32) {
    %c0_i32 = arith.constant 0 : i32
    %c0_i32_0 = arith.constant 0 : i32
    return %arg0, %c0_i32 : i32, i32
  }
  func.func @transform_2(%arg0: i32) -> (i32, i32) {
    %c0_i32 = arith.constant 0 : i32
    %c0_i32_0 = arith.constant 0 : i32
    %c0_i32_1 = arith.constant 0 : i32
    return %c0_i32, %c0_i32_0 : i32, i32
  }
  func.func @transform_3(%arg0: i32) -> (i32, i32) {
    %c0_i32 = arith.constant 0 : i32
    %c0_i32_0 = arith.constant 0 : i32
    %c0_i32_1 = arith.constant 0 : i32
    return %c0_i32, %c0_i32_0 : i32, i32
  }
  func.func @transform_4(%arg0: i32) -> (i32, i32) {
    %c0_i32 = arith.constant 0 : i32
    %c0_i32_0 = arith.constant 0 : i32
    return %arg0, %c0_i32 : i32, i32
  }
}

</mosaic_0001>

<llo_original>
// kernel: bottleneck_v1b_pallas.4
$region0: #{bottleneck_v1b_pallas.4}
  #allocation0 [shape = 'u32[]', space=smem, size = 0x4, offset = 0x4, fixed_abs, tag = 'smem constant byte address 0x4 - core index']
  #allocation1 [shape = 'u32[144,128]{1,0:T(1,128)}', space=vmem, size = 0x12000, scoped, tag = 'internal scratch']
  %s0 = inlined_call_operand.vmem [shape: f32[512,128], index: 0, kind: input, shape index: {}]
  %s1 = inlined_call_operand.vmem [shape: bf16[128,128], index: 1, kind: input, shape index: {}]
  %s2 = inlined_call_operand.vmem [shape: bf16[512,128], index: 2, kind: output, shape index: {0}]
  %s3 = inlined_call_operand.vmem [shape: f32[1,2,128], index: 3, kind: output, shape index: {1}]
  %4 = xla_tuple %s2, %s3
  %s5 = sld [smem:[#allocation0]]
  $region26: #{bottleneck_v1b_pallas.4} parent=0
    _
  %s7 = ssub.s32 1, %s5
  %s8 = scalar_select 0, %s7, %s5
  // Predicated region
  $region2: #{bottleneck_v1b_pallas.4} parent=0 // pred_check
    _
  $region3: #{bottleneck_v1b_pallas.4} parent=0 // pred_check_branch
    %10 = sbr.rel (0) target = $region5
  $region4: #{bottleneck_v1b_pallas.4} parent=0 // pred_region
    _
  $region5: #{bottleneck_v1b_pallas.4} parent=0 // pred_fallthru
    _
  // Predicated region
  $region6: #{bottleneck_v1b_pallas.4} parent=0 // pred_check
    _
  $region7: #{bottleneck_v1b_pallas.4} parent=0 // pred_check_branch
    %12 = sbr.rel (0) target = $region9
  $region8: #{bottleneck_v1b_pallas.4} parent=0 // pred_region
    _
  $region9: #{bottleneck_v1b_pallas.4} parent=0 // pred_fallthru
    _
  %v14 = vld [vmem:[%s0] sm:$0xff]
  %v15 = vld [vmem:[%s0 + $0x8] sm:$0xff]
  %v16 = vld [vmem:[%s0 + $0x10] sm:$0xff]
  %v17 = vld [vmem:[%s0 + $0x18] sm:$0xff]
  %v18 = vld [vmem:[%s0 + $0x20] sm:$0xff]
  %v19 = vld [vmem:[%s0 + $0x28] sm:$0xff]
  %v20 = vld [vmem:[%s0 + $0x30] sm:$0xff]
  %v21 = vld [vmem:[%s0 + $0x38] sm:$0xff]
  %v22 = vld [vmem:[%s0 + $0x40] sm:$0xff]
  %v23 = vld [vmem:[%s0 + $0x48] sm:$0xff]
  %v24 = vld [vmem:[%s0 + $0x50] sm:$0xff]
  %v25 = vld [vmem:[%s0 + $0x58] sm:$0xff]
  %v26 = vld [vmem:[%s0 + $0x60] sm:$0xff]
  %v27 = vld [vmem:[%s0 + $0x68] sm:$0xff]
  %v28 = vld [vmem:[%s0 + $0x70] sm:$0xff]
  %v29 = vld [vmem:[%s0 + $0x78] sm:$0xff]
  %v30 = vld [vmem:[%s0 + $0x80] sm:$0xff]
  %v31 = vld [vmem:[%s0 + $0x88] sm:$0xff]
  %v32 = vld [vmem:[%s0 + $0x90] sm:$0xff]
  %v33 = vld [vmem:[%s0 + $0x98] sm:$0xff]
  %v34 = vld [vmem:[%s0 + $0xa0] sm:$0xff]
  %v35 = vld [vmem:[%s0 + $0xa8] sm:$0xff]
  %v36 = vld [vmem:[%s0 + $0xb0] sm:$0xff]
  %v37 = vld [vmem:[%s0 + $0xb8] sm:$0xff]
  %v38 = vld [vmem:[%s0 + $0xc0] sm:$0xff]
  %v39 = vld [vmem:[%s0 + $0xc8] sm:$0xff]
  %v40 = vld [vmem:[%s0 + $0xd0] sm:$0xff]
  %v41 = vld [vmem:[%s0 + $0xd8] sm:$0xff]
  %v42 = vld [vmem:[%s0 + $0xe0] sm:$0xff]
  %v43 = vld [vmem:[%s0 + $0xe8] sm:$0xff]
  %v44 = vld [vmem:[%s0 + $0xf0] sm:$0xff]
  %v45 = vld [vmem:[%s0 + $0xf8] sm:$0xff]
  %v46 = vld [vmem:[%s0 + $0x100] sm:$0xff]
  %v47 = vld [vmem:[%s0 + $0x108] sm:$0xff]
  %v48 = vld [vmem:[%s0 + $0x110] sm:$0xff]
  %v49 = vld [vmem:[%s0 + $0x118] sm:$0xff]
  %v50 = vld [vmem:[%s0 + $0x120] sm:$0xff]
  %v51 = vld [vmem:[%s0 + $0x128] sm:$0xff]
  %v52 = vld [vmem:[%s0 + $0x130] sm:$0xff]
  %v53 = vld [vmem:[%s0 + $0x138] sm:$0xff]
  %v54 = vld [vmem:[%s0 + $0x140] sm:$0xff]
  %v55 = vld [vmem:[%s0 + $0x148] sm:$0xff]
  %v56 = vld [vmem:[%s0 + $0x150] sm:$0xff]
  %v57 = vld [vmem:[%s0 + $0x158] sm:$0xff]
  %v58 = vld [vmem:[%s0 + $0x160] sm:$0xff]
  %v59 = vld [vmem:[%s0 + $0x168] sm:$0xff]
  %v60 = vld [vmem:[%s0 + $0x170] sm:$0xff]
  %v61 = vld [vmem:[%s0 + $0x178] sm:$0xff]
  %v62 = vld [vmem:[%s0 + $0x180] sm:$0xff]
  %v63 = vld [vmem:[%s0 + $0x188] sm:$0xff]
  %v64 = vld [vmem:[%s0 + $0x190] sm:$0xff]
  %v65 = vld [vmem:[%s0 + $0x198] sm:$0xff]
  %v66 = vld [vmem:[%s0 + $0x1a0] sm:$0xff]
  %v67 = vld [vmem:[%s0 + $0x1a8] sm:$0xff]
  %v68 = vld [vmem:[%s0 + $0x1b0] sm:$0xff]
  %v69 = vld [vmem:[%s0 + $0x1b8] sm:$0xff]
  %v70 = vld [vmem:[%s0 + $0x1c0] sm:$0xff]
  %v71 = vld [vmem:[%s0 + $0x1c8] sm:$0xff]
  %v72 = vld [vmem:[%s0 + $0x1d0] sm:$0xff]
  %v73 = vld [vmem:[%s0 + $0x1d8] sm:$0xff]
  %v74 = vld [vmem:[%s0 + $0x1e0] sm:$0xff]
  %v75 = vld [vmem:[%s0 + $0x1e8] sm:$0xff]
  %v76 = vld [vmem:[%s0 + $0x1f0] sm:$0xff]
  %v77 = vld [vmem:[%s0 + $0x1f8] sm:$0xff]
  %v78 = vpack.c.bf16 %v15, %v14
  %v79 = vpack.c.bf16 %v17, %v16
  %v80 = vpack.c.bf16 %v19, %v18
  %v81 = vpack.c.bf16 %v21, %v20
  %v82 = vpack.c.bf16 %v23, %v22
  %v83 = vpack.c.bf16 %v25, %v24
  %v84 = vpack.c.bf16 %v27, %v26
  %v85 = vpack.c.bf16 %v29, %v28
  %v86 = vpack.c.bf16 %v31, %v30
  %v87 = vpack.c.bf16 %v33, %v32
  %v88 = vpack.c.bf16 %v35, %v34
  %v89 = vpack.c.bf16 %v37, %v36
  %v90 = vpack.c.bf16 %v39, %v38
  %v91 = vpack.c.bf16 %v41, %v40
  %v92 = vpack.c.bf16 %v43, %v42
  %v93 = vpack.c.bf16 %v45, %v44
  %v94 = vpack.c.bf16 %v47, %v46
  %v95 = vpack.c.bf16 %v49, %v48
  %v96 = vpack.c.bf16 %v51, %v50
  %v97 = vpack.c.bf16 %v53, %v52
  %v98 = vpack.c.bf16 %v55, %v54
  %v99 = vpack.c.bf16 %v57, %v56
  %v100 = vpack.c.bf16 %v59, %v58
  %v101 = vpack.c.bf16 %v61, %v60
  %v102 = vpack.c.bf16 %v63, %v62
  %v103 = vpack.c.bf16 %v65, %v64
  %v104 = vpack.c.bf16 %v67, %v66
  %v105 = vpack.c.bf16 %v69, %v68
  %v106 = vpack.c.bf16 %v71, %v70
  %v107 = vpack.c.bf16 %v73, %v72
  %v108 = vpack.c.bf16 %v75, %v74
  %v109 = vpack.c.bf16 %v77, %v76
  %v110 = vld [vmem:[%s1] sm:$0xf]
  %v111 = vld [vmem:[%s1 + $0x4] sm:$0xf]
  %v112 = vld [vmem:[%s1 + $0x8] sm:$0xf]
  %v113 = vld [vmem:[%s1 + $0xc] sm:$0xf]
  %v114 = vld [vmem:[%s1 + $0x10] sm:$0xf]
  %v115 = vld [vmem:[%s1 + $0x14] sm:$0xf]
  %v116 = vld [vmem:[%s1 + $0x18] sm:$0xf]
  %v117 = vld [vmem:[%s1 + $0x1c] sm:$0xf]
  %v118 = vld [vmem:[%s1 + $0x20] sm:$0xf]
  %v119 = vld [vmem:[%s1 + $0x24] sm:$0xf]
  %v120 = vld [vmem:[%s1 + $0x28] sm:$0xf]
  %v121 = vld [vmem:[%s1 + $0x2c] sm:$0xf]
  %v122 = vld [vmem:[%s1 + $0x30] sm:$0xf]
  %v123 = vld [vmem:[%s1 + $0x34] sm:$0xf]
  %v124 = vld [vmem:[%s1 + $0x38] sm:$0xf]
  %v125 = vld [vmem:[%s1 + $0x3c] sm:$0xf]
  %v142 = vunpack.c.l.b16 %v110
  %v143 = vunpack.c.l.b16 %v111
  %v144 = vunpack.c.l.b16 %v112
  %v145 = vunpack.c.l.b16 %v113
  %v146 = vunpack.c.l.b16 %v114
  %v147 = vunpack.c.l.b16 %v115
  %v148 = vunpack.c.l.b16 %v116
  %v149 = vunpack.c.l.b16 %v117
  %v150 = vunpack.c.l.b16 %v118
  %v151 = vunpack.c.l.b16 %v119
  %v152 = vunpack.c.l.b16 %v120
  %v153 = vunpack.c.l.b16 %v121
  %v154 = vunpack.c.l.b16 %v122
  %v155 = vunpack.c.l.b16 %v123
  %v156 = vunpack.c.l.b16 %v124
  %v157 = vunpack.c.l.b16 %v125
  %v158 = vpack.c.b16 %v143, %v142
  %v159 = vpack.c.b16 %v145, %v144
  %v160 = vpack.c.b16 %v147, %v146
  %v161 = vpack.c.b16 %v149, %v148
  %v162 = vpack.c.b16 %v151, %v150
  %v163 = vpack.c.b16 %v153, %v152
  %v164 = vpack.c.b16 %v155, %v154
  %v165 = vpack.c.b16 %v157, %v156
  %174 = vmatprep.subr.bf16.mxu0 0
  %175 = vmatpush1.bf16.msra.mxu0 %v158
  %176 = vmatprep.subr.bf16.mxu0 0
  %177 = vmatpush1.bf16.msra.mxu0 %v159
  %178 = vmatprep.subr.bf16.mxu0 0
  %179 = vmatpush1.bf16.msra.mxu0 %v160
  %180 = vmatprep.subr.bf16.mxu0 0
  %181 = vmatpush1.bf16.msra.mxu0 %v161
  %182 = vmatprep.subr.bf16.mxu0 0
  %183 = vmatpush1.bf16.msra.mxu0 %v162
  %184 = vmatprep.subr.bf16.mxu0 0
  %185 = vmatpush1.bf16.msra.mxu0 %v163
  %186 = vmatprep.subr.bf16.mxu0 0
  %187 = vmatpush1.bf16.msra.mxu0 %v164
  %188 = vmatprep.subr.bf16.mxu0 0
  %189 = vmatpush1.bf16.msra.mxu0 %v165
  %190 = vmatprep.subr.bf16.mxu0 0
  %191 = vmatpush1.bf16.msra.mxu0 0
  %192 = vmatprep.subr.bf16.mxu0 0
  %193 = vmatpush1.bf16.msra.mxu0 0
  %194 = vmatprep.subr.bf16.mxu0 0
  %195 = vmatpush1.bf16.msra.mxu0 0
  %196 = vmatprep.subr.bf16.mxu0 0
  %197 = vmatpush1.bf16.msra.mxu0 0
  %198 = vmatprep.subr.bf16.mxu0 0
  %199 = vmatpush1.bf16.msra.mxu0 0
  %200 = vmatprep.subr.bf16.mxu0 0
  %201 = vmatpush1.bf16.msra.mxu0 0
  %202 = vmatprep.subr.bf16.mxu0 0
  %203 = vmatpush1.bf16.msra.mxu0 0
  %204 = vmatprep.subr.bf16.mxu0 0
  %205 = vmatpush1.bf16.msra.mxu0 0
  %206 = vmatprep.mubr.bf16.mxu0 0
  %207 = vmatmul.mubr.bf16.gmra.mrb[0].mxu0 %v78
  %v208 = vpop.f32.mrb[0].mxu0
  %v209 = vadd.f32 0.0, %v208
  %v210 = vpop.f32.mrb[0].mxu0
  %v211 = vpop.f32.mrb[0].mxu0
  %v212 = vadd.f32 0.0, %v211
  %v213 = vpop.f32.mrb[0].mxu0
  %214 = vmatprep.mubr.bf16.mxu0 0
  %215 = vmatmul.mubr.bf16.gmra.mrb[0].mxu0 %v79
  %v216 = vpop.f32.mrb[0].mxu0
  %v217 = vadd.f32 0.0, %v216
  %v218 = vpop.f32.mrb[0].mxu0
  %v219 = vpop.f32.mrb[0].mxu0
  %v220 = vadd.f32 0.0, %v219
  %v221 = vpop.f32.mrb[0].mxu0
  %222 = vmatprep.mubr.bf16.mxu0 0
  %223 = vmatmul.mubr.bf16.gmra.mrb[0].mxu0 %v80
  %v224 = vpop.f32.mrb[0].mxu0
  %v225 = vadd.f32 0.0, %v224
  %v226 = vpop.f32.mrb[0].mxu0
  %v227 = vpop.f32.mrb[0].mxu0
  %v228 = vadd.f32 0.0, %v227
  %v229 = vpop.f32.mrb[0].mxu0
  %230 = vmatprep.mubr.bf16.mxu0 0
  %231 = vmatmul.mubr.bf16.gmra.mrb[0].mxu0 %v81
  %v232 = vpop.f32.mrb[0].mxu0
  %v233 = vadd.f32 0.0, %v232
  %v234 = vpop.f32.mrb[0].mxu0
  %v235 = vpop.f32.mrb[0].mxu0
  %v236 = vadd.f32 0.0, %v235
  %v237 = vpop.f32.mrb[0].mxu0
  %238 = vmatprep.mubr.bf16.mxu0 0
  %239 = vmatmul.mubr.bf16.gmra.mrb[0].mxu0 %v82
  %v240 = vpop.f32.mrb[0].mxu0
  %v241 = vadd.f32 0.0, %v240
  %v242 = vpop.f32.mrb[0].mxu0
  %v243 = vpop.f32.mrb[0].mxu0
  %v244 = vadd.f32 0.0, %v243
  %v245 = vpop.f32.mrb[0].mxu0
  %246 = vmatprep.mubr.bf16.mxu0 0
  %247 = vmatmul.mubr.bf16.gmra.mrb[0].mxu0 %v83
  %v248 = vpop.f32.mrb[0].mxu0
  %v249 = vadd.f32 0.0, %v248
  %v250 = vpop.f32.mrb[0].mxu0
  %v251 = vpop.f32.mrb[0].mxu0
  %v252 = vadd.f32 0.0, %v251
  %v253 = vpop.f32.mrb[0].mxu0
  %254 = vmatprep.mubr.bf16.mxu0 0
  %255 = vmatmul.mubr.bf16.gmra.mrb[0].mxu0 %v84
  %v256 = vpop.f32.mrb[0].mxu0
  %v257 = vadd.f32 0.0, %v256
  %v258 = vpop.f32.mrb[0].mxu0
  %v259 = vpop.f32.mrb[0].mxu0
  %v260 = vadd.f32 0.0, %v259
  %v261 = vpop.f32.mrb[0].mxu0
  %262 = vmatprep.mubr.bf16.mxu0 0
  %263 = vmatmul.mubr.bf16.gmra.mrb[0].mxu0 %v85
  %v264 = vpop.f32.mrb[0].mxu0
  %v265 = vadd.f32 0.0, %v264
  %v266 = vpop.f32.mrb[0].mxu0
  %v267 = vpop.f32.mrb[0].mxu0
  %v268 = vadd.f32 0.0, %v267
  %v269 = vpop.f32.mrb[0].mxu0
  %270 = vmatprep.mubr.bf16.mxu0 0
  %271 = vmatmul.mubr.bf16.gmra.mrb[0].mxu0 %v86
  %v272 = vpop.f32.mrb[0].mxu0
  %v273 = vadd.f32 0.0, %v272
  %v274 = vpop.f32.mrb[0].mxu0
  %v275 = vpop.f32.mrb[0].mxu0
  %v276 = vadd.f32 0.0, %v275
  %v277 = vpop.f32.mrb[0].mxu0
  %278 = vmatprep.mubr.bf16.mxu0 0
  %279 = vmatmul.mubr.bf16.gmra.mrb[0].mxu0 %v87
  %v280 = vpop.f32.mrb[0].mxu0
  %v281 = vadd.f32 0.0, %v280
  %v282 = vpop.f32.mrb[0].mxu0
  %v283 = vpop.f32.mrb[0].mxu0
  %v284 = vadd.f32 0.0, %v283
  %v285 = vpop.f32.mrb[0].mxu0
  %286 = vmatprep.mubr.bf16.mxu0 0
  %287 = vmatmul.mubr.bf16.gmra.mrb[0].mxu0 %v88
  %v288 = vpop.f32.mrb[0].mxu0
  %v289 = vadd.f32 0.0, %v288
  %v290 = vpop.f32.mrb[0].mxu0
  %v291 = vpop.f32.mrb[0].mxu0
  %v292 = vadd.f32 0.0, %v291
  %v293 = vpop.f32.mrb[0].mxu0
  %294 = vmatprep.mubr.bf16.mxu0 0
  %295 = vmatmul.mubr.bf16.gmra.mrb[0].mxu0 %v89
  %v296 = vpop.f32.mrb[0].mxu0
  %v297 = vadd.f32 0.0, %v296
  %v298 = vpop.f32.mrb[0].mxu0
  %v299 = vpop.f32.mrb[0].mxu0
  %v300 = vadd.f32 0.0, %v299
  %v301 = vpop.f32.mrb[0].mxu0
  %302 = vmatprep.mubr.bf16.mxu0 0
  %303 = vmatmul.mubr.bf16.gmra.mrb[0].mxu0 %v90
  %v304 = vpop.f32.mrb[0].mxu0
  %v305 = vadd.f32 0.0, %v304
  %v306 = vpop.f32.mrb[0].mxu0
  %v307 = vpop.f32.mrb[0].mxu0
  %v308 = vadd.f32 0.0, %v307
  %v309 = vpop.f32.mrb[0].mxu0
  %310 = vmatprep.mubr.bf16.mxu0 0
  %311 = vmatmul.mubr.bf16.gmra.mrb[0].mxu0 %v91
  %v312 = vpop.f32.mrb[0].mxu0
  %v313 = vadd.f32 0.0, %v312
  %v314 = vpop.f32.mrb[0].mxu0
  %v315 = vpop.f32.mrb[0].mxu0
  %v316 = vadd.f32 0.0, %v315
  %v317 = vpop.f32.mrb[0].mxu0
  %318 = vmatprep.mubr.bf16.mxu0 0
  %319 = vmatmul.mubr.bf16.gmra.mrb[0].mxu0 %v92
  %v320 = vpop.f32.mrb[0].mxu0
  %v321 = vadd.f32 0.0, %v320
  %v322 = vpop.f32.mrb[0].mxu0
  %v323 = vpop.f32.mrb[0].mxu0
  %v324 = vadd.f32 0.0, %v323
  %v325 = vpop.f32.mrb[0].mxu0
  %326 = vmatprep.mubr.bf16.mxu0 0
  %327 = vmatmul.mubr.bf16.gmra.mrb[0].mxu0 %v93
  %v328 = vpop.f32.mrb[0].mxu0
  %v329 = vadd.f32 0.0, %v328
  %v330 = vpop.f32.mrb[0].mxu0
  %v331 = vpop.f32.mrb[0].mxu0
  %v332 = vadd.f32 0.0, %v331
  %v333 = vpop.f32.mrb[0].mxu0
  %334 = vmatprep.mubr.bf16.mxu0 0
  %335 = vmatmul.mubr.bf16.gmra.mrb[0].mxu0 %v94
  %v336 = vpop.f32.mrb[0].mxu0
  %v337 = vadd.f32 0.0, %v336
  %v338 = vpop.f32.mrb[0].mxu0
  %v339 = vpop.f32.mrb[0].mxu0
  %v340 = vadd.f32 0.0, %v339
  %v341 = vpop.f32.mrb[0].mxu0
  %342 = vmatprep.mubr.bf16.mxu0 0
  %343 = vmatmul.mubr.bf16.gmra.mrb[0].mxu0 %v95
  %v344 = vpop.f32.mrb[0].mxu0
  %v345 = vadd.f32 0.0, %v344
  %v346 = vpop.f32.mrb[0].mxu0
  %v347 = vpop.f32.mrb[0].mxu0
  %v348 = vadd.f32 0.0, %v347
  %v349 = vpop.f32.mrb[0].mxu0
  %350 = vmatprep.mubr.bf16.mxu0 0
  %351 = vmatmul.mubr.bf16.gmra.mrb[0].mxu0 %v96
  %v352 = vpop.f32.mrb[0].mxu0
  %v353 = vadd.f32 0.0, %v352
  %v354 = vpop.f32.mrb[0].mxu0
  %v355 = vpop.f32.mrb[0].mxu0
  %v356 = vadd.f32 0.0, %v355
  %v357 = vpop.f32.mrb[0].mxu0
  %358 = vmatprep.mubr.bf16.mxu0 0
  %359 = vmatmul.mubr.bf16.gmra.mrb[0].mxu0 %v97
  %v360 = vpop.f32.mrb[0].mxu0
  %v361 = vadd.f32 0.0, %v360
  %v362 = vpop.f32.mrb[0].mxu0
  %v363 = vpop.f32.mrb[0].mxu0
  %v364 = vadd.f32 0.0, %v363
  %v365 = vpop.f32.mrb[0].mxu0
  %366 = vmatprep.mubr.bf16.mxu0 0
  %367 = vmatmul.mubr.bf16.gmra.mrb[0].mxu0 %v98
  %v368 = vpop.f32.mrb[0].mxu0
  %v369 = vadd.f32 0.0, %v368
  %v370 = vpop.f32.mrb[0].mxu0
  %v371 = vpop.f32.mrb[0].mxu0
  %v372 = vadd.f32 0.0, %v371
  %v373 = vpop.f32.mrb[0].mxu0
  %374 = vmatprep.mubr.bf16.mxu0 0
  %375 = vmatmul.mubr.bf16.gmra.mrb[0].mxu0 %v99
  %v376 = vpop.f32.mrb[0].mxu0
  %v377 = vadd.f32 0.0, %v376
  %v378 = vpop.f32.mrb[0].mxu0
  %v379 = vpop.f32.mrb[0].mxu0
  %v380 = vadd.f32 0.0, %v379
  %v381 = vpop.f32.mrb[0].mxu0
  %382 = vmatprep.mubr.bf16.mxu0 0
  %383 = vmatmul.mubr.bf16.gmra.mrb[0].mxu0 %v100
  %v384 = vpop.f32.mrb[0].mxu0
  %v385 = vadd.f32 0.0, %v384
  %v386 = vpop.f32.mrb[0].mxu0
  %v387 = vpop.f32.mrb[0].mxu0
  %v388 = vadd.f32 0.0, %v387
  %v389 = vpop.f32.mrb[0].mxu0
  %390 = vmatprep.mubr.bf16.mxu0 0
  %391 = vmatmul.mubr.bf16.gmra.mrb[0].mxu0 %v101
  %v392 = vpop.f32.mrb[0].mxu0
  %v393 = vadd.f32 0.0, %v392
  %v394 = vpop.f32.mrb[0].mxu0
  %v395 = vpop.f32.mrb[0].mxu0
  %v396 = vadd.f32 0.0, %v395
  %v397 = vpop.f32.mrb[0].mxu0
  %398 = vmatprep.mubr.bf16.mxu0 0
  %399 = vmatmul.mubr.bf16.gmra.mrb[0].mxu0 %v102
  %v400 = vpop.f32.mrb[0].mxu0
  %v401 = vadd.f32 0.0, %v400
  %v402 = vpop.f32.mrb[0].mxu0
  %v403 = vpop.f32.mrb[0].mxu0
  %v404 = vadd.f32 0.0, %v403
  %v405 = vpop.f32.mrb[0].mxu0
  %406 = vmatprep.mubr.bf16.mxu0 0
  %407 = vmatmul.mubr.bf16.gmra.mrb[0].mxu0 %v103
  %v408 = vpop.f32.mrb[0].mxu0
  %v409 = vadd.f32 0.0, %v408
  %v410 = vpop.f32.mrb[0].mxu0
  %v411 = vpop.f32.mrb[0].mxu0
  %v412 = vadd.f32 0.0, %v411
  %v413 = vpop.f32.mrb[0].mxu0
  %414 = vmatprep.mubr.bf16.mxu0 0
  %415 = vmatmul.mubr.bf16.gmra.mrb[0].mxu0 %v104
  %v416 = vpop.f32.mrb[0].mxu0
  %v417 = vadd.f32 0.0, %v416
  %v418 = vpop.f32.mrb[0].mxu0
  %v419 = vpop.f32.mrb[0].mxu0
  %v420 = vadd.f32 0.0, %v419
  %v421 = vpop.f32.mrb[0].mxu0
  %422 = vmatprep.mubr.bf16.mxu0 0
  %423 = vmatmul.mubr.bf16.gmra.mrb[0].mxu0 %v105
  %v424 = vpop.f32.mrb[0].mxu0
  %v425 = vadd.f32 0.0, %v424
  %v426 = vpop.f32.mrb[0].mxu0
  %v427 = vpop.f32.mrb[0].mxu0
  %v428 = vadd.f32 0.0, %v427
  %v429 = vpop.f32.mrb[0].mxu0
  %430 = vmatprep.mubr.bf16.mxu0 0
  %431 = vmatmul.mubr.bf16.gmra.mrb[0].mxu0 %v106
  %v432 = vpop.f32.mrb[0].mxu0
  %v433 = vadd.f32 0.0, %v432
  %v434 = vpop.f32.mrb[0].mxu0
  %v435 = vpop.f32.mrb[0].mxu0
  %v436 = vadd.f32 0.0, %v435
  %v437 = vpop.f32.mrb[0].mxu0
  %438 = vmatprep.mubr.bf16.mxu0 0
  %439 = vmatmul.mubr.bf16.gmra.mrb[0].mxu0 %v107
  %v440 = vpop.f32.mrb[0].mxu0
  %v441 = vadd.f32 0.0, %v440
  %v442 = vpop.f32.mrb[0].mxu0
  %v443 = vpop.f32.mrb[0].mxu0
  %v444 = vadd.f32 0.0, %v443
  %v445 = vpop.f32.mrb[0].mxu0
  %446 = vmatprep.mubr.bf16.mxu0 0
  %447 = vmatmul.mubr.bf16.gmra.mrb[0].mxu0 %v108
  %v448 = vpop.f32.mrb[0].mxu0
  %v449 = vadd.f32 0.0, %v448
  %v450 = vpop.f32.mrb[0].mxu0
  %v451 = vpop.f32.mrb[0].mxu0
  %v452 = vadd.f32 0.0, %v451
  %v453 = vpop.f32.mrb[0].mxu0
  %454 = vmatprep.mubr.bf16.mxu0 0
  %455 = vmatmul.mubr.bf16.gmra.mrb[0].mxu0 %v109
  %v456 = vpop.f32.mrb[0].mxu0
  %v457 = vadd.f32 0.0, %v456
  %v458 = vpop.f32.mrb[0].mxu0
  %v459 = vpop.f32.mrb[0].mxu0
  %v460 = vadd.f32 0.0, %v459
  %v461 = vpop.f32.mrb[0].mxu0
  %462 = vdwg.mxu0
  %v463 = vpack.c.bf16 %v212, %v209
  %v464 = vpack.c.bf16 %v220, %v217
  %v465 = vpack.c.bf16 %v228, %v225
  %v466 = vpack.c.bf16 %v236, %v233
  %v467 = vpack.c.bf16 %v244, %v241
  %v468 = vpack.c.bf16 %v252, %v249
  %v469 = vpack.c.bf16 %v260, %v257
  %v470 = vpack.c.bf16 %v268, %v265
  %v471 = vpack.c.bf16 %v276, %v273
  %v472 = vpack.c.bf16 %v284, %v281
  %v473 = vpack.c.bf16 %v292, %v289
  %v474 = vpack.c.bf16 %v300, %v297
  %v475 = vpack.c.bf16 %v308, %v305
  %v476 = vpack.c.bf16 %v316, %v313
  %v477 = vpack.c.bf16 %v324, %v321
  %v478 = vpack.c.bf16 %v332, %v329
  %v479 = vpack.c.bf16 %v340, %v337
  %v480 = vpack.c.bf16 %v348, %v345
  %v481 = vpack.c.bf16 %v356, %v353
  %v482 = vpack.c.bf16 %v364, %v361
  %v483 = vpack.c.bf16 %v372, %v369
  %v484 = vpack.c.bf16 %v380, %v377
  %v485 = vpack.c.bf16 %v388, %v385
  %v486 = vpack.c.bf16 %v396, %v393
  %v487 = vpack.c.bf16 %v404, %v401
  %v488 = vpack.c.bf16 %v412, %v409
  %v489 = vpack.c.bf16 %v420, %v417
  %v490 = vpack.c.bf16 %v428, %v425
  %v491 = vpack.c.bf16 %v436, %v433
  %v492 = vpack.c.bf16 %v444, %v441
  %v493 = vpack.c.bf16 %v452, %v449
  %v494 = vpack.c.bf16 %v460, %v457
  %v527 = vunpack.c.l.b16 %v463
  %v528 = vunpack.c.h.b16 %v463
  %v529 = vunpack.c.l.b16 %v464
  %v530 = vunpack.c.h.b16 %v464
  %v531 = vunpack.c.l.b16 %v465
  %v532 = vunpack.c.h.b16 %v465
  %v533 = vunpack.c.l.b16 %v466
  %v534 = vunpack.c.h.b16 %v466
  %v535 = vunpack.c.l.b16 %v467
  %v536 = vunpack.c.h.b16 %v467
  %v537 = vunpack.c.l.b16 %v468
  %v538 = vunpack.c.h.b16 %v468
  %v539 = vunpack.c.l.b16 %v469
  %v540 = vunpack.c.h.b16 %v469
  %v541 = vunpack.c.l.b16 %v470
  %v542 = vunpack.c.h.b16 %v470
  %v543 = vunpack.c.l.b16 %v471
  %v544 = vunpack.c.h.b16 %v471
  %v545 = vunpack.c.l.b16 %v472
  %v546 = vunpack.c.h.b16 %v472
  %v547 = vunpack.c.l.b16 %v473
  %v548 = vunpack.c.h.b16 %v473
  %v549 = vunpack.c.l.b16 %v474
  %v550 = vunpack.c.h.b16 %v474
  %v551 = vunpack.c.l.b16 %v475
  %v552 = vunpack.c.h.b16 %v475
  %v553 = vunpack.c.l.b16 %v476
  %v554 = vunpack.c.h.b16 %v476
  %v555 = vunpack.c.l.b16 %v477
  %v556 = vunpack.c.h.b16 %v477
  %v557 = vunpack.c.l.b16 %v478
  %v558 = vunpack.c.h.b16 %v478
  %v559 = vunpack.c.l.b16 %v479
  %v560 = vunpack.c.h.b16 %v479
  %v561 = vunpack.c.l.b16 %v480
  %v562 = vunpack.c.h.b16 %v480
  %v563 = vunpack.c.l.b16 %v481
  %v564 = vunpack.c.h.b16 %v481
  %v565 = vunpack.c.l.b16 %v482
  %v566 = vunpack.c.h.b16 %v482
  %v567 = vunpack.c.l.b16 %v483
  %v568 = vunpack.c.h.b16 %v483
  %v569 = vunpack.c.l.b16 %v484
  %v570 = vunpack.c.h.b16 %v484
  %v571 = vunpack.c.l.b16 %v485
  %v572 = vunpack.c.h.b16 %v485
  %v573 = vunpack.c.l.b16 %v486
  %v574 = vunpack.c.h.b16 %v486
  %v575 = vunpack.c.l.b16 %v487
  %v576 = vunpack.c.h.b16 %v487
  %v577 = vunpack.c.l.b16 %v488
  %v578 = vunpack.c.h.b16 %v488
  %v579 = vunpack.c.l.b16 %v489
  %v580 = vunpack.c.h.b16 %v489
  %v581 = vunpack.c.l.b16 %v490
  %v582 = vunpack.c.h.b16 %v490
  %v583 = vunpack.c.l.b16 %v491
  %v584 = vunpack.c.h.b16 %v491
  %v585 = vunpack.c.l.b16 %v492
  %v586 = vunpack.c.h.b16 %v492
  %v587 = vunpack.c.l.b16 %v493
  %v588 = vunpack.c.h.b16 %v493
  %v589 = vunpack.c.l.b16 %v494
  %v590 = vunpack.c.h.b16 %v494
  %v591 = vpack.c.b16 %v527, %v527
  %v592 = vpack.c.b16 %v528, %v528
  %v593 = vpack.c.b16 %v529, %v529
  %v594 = vpack.c.b16 %v530, %v530
  %v595 = vpack.c.b16 %v531, %v531
  %v596 = vpack.c.b16 %v532, %v532
  %v597 = vpack.c.b16 %v533, %v533
  %v598 = vpack.c.b16 %v534, %v534
  %v599 = vpack.c.b16 %v535, %v535
  %v600 = vpack.c.b16 %v536, %v536
  %v601 = vpack.c.b16 %v537, %v537
  %v602 = vpack.c.b16 %v538, %v538
  %v603 = vpack.c.b16 %v539, %v539
  %v604 = vpack.c.b16 %v540, %v540
  %v605 = vpack.c.b16 %v541, %v541
  %v606 = vpack.c.b16 %v542, %v542
  %v607 = vpack.c.b16 %v543, %v543
  %v608 = vpack.c.b16 %v544, %v544
  %v609 = vpack.c.b16 %v545, %v545
  %v610 = vpack.c.b16 %v546, %v546
  %v611 = vpack.c.b16 %v547, %v547
  %v612 = vpack.c.b16 %v548, %v548
  %v613 = vpack.c.b16 %v549, %v549
  %v614 = vpack.c.b16 %v550, %v550
  %v615 = vpack.c.b16 %v551, %v551
  %v616 = vpack.c.b16 %v552, %v552
  %v617 = vpack.c.b16 %v553, %v553
  %v618 = vpack.c.b16 %v554, %v554
  %v619 = vpack.c.b16 %v555, %v555
  %v620 = vpack.c.b16 %v556, %v556
  %v621 = vpack.c.b16 %v557, %v557
  %v622 = vpack.c.b16 %v558, %v558
  %v623 = vpack.c.b16 %v559, %v559
  %v624 = vpack.c.b16 %v560, %v560
  %v625 = vpack.c.b16 %v561, %v561
  %v626 = vpack.c.b16 %v562, %v562
  %v627 = vpack.c.b16 %v563, %v563
  %v628 = vpack.c.b16 %v564, %v564
  %v629 = vpack.c.b16 %v565, %v565
  %v630 = vpack.c.b16 %v566, %v566
  %v631 = vpack.c.b16 %v567, %v567
  %v632 = vpack.c.b16 %v568, %v568
  %v633 = vpack.c.b16 %v569, %v569
  %v634 = vpack.c.b16 %v570, %v570
  %v635 = vpack.c.b16 %v571, %v571
  %v636 = vpack.c.b16 %v572, %v572
  %v637 = vpack.c.b16 %v573, %v573
  %v638 = vpack.c.b16 %v574, %v574
  %v639 = vpack.c.b16 %v575, %v575
  %v640 = vpack.c.b16 %v576, %v576
  %v641 = vpack.c.b16 %v577, %v577
  %v642 = vpack.c.b16 %v578, %v578
  %v643 = vpack.c.b16 %v579, %v579
  %v644 = vpack.c.b16 %v580, %v580
  %v645 = vpack.c.b16 %v581, %v581
  %v646 = vpack.c.b16 %v582, %v582
  %v647 = vpack.c.b16 %v583, %v583
  %v648 = vpack.c.b16 %v584, %v584
  %v649 = vpack.c.b16 %v585, %v585
  %v650 = vpack.c.b16 %v586, %v586
  %v651 = vpack.c.b16 %v587, %v587
  %v652 = vpack.c.b16 %v588, %v588
  %v653 = vpack.c.b16 %v589, %v589
  %v654 = vpack.c.b16 %v590, %v590
  %719 = vst [vmem:[%s2] sm:$0xf] %v591
  %720 = vst [vmem:[%s2 + $0x4] sm:$0xf] %v592
  %721 = vst [vmem:[%s2 + $0x8] sm:$0xf] %v593
  %722 = vst [vmem:[%s2 + $0xc] sm:$0xf] %v594
  %723 = vst [vmem:[%s2 + $0x10] sm:$0xf] %v595
  %724 = vst [vmem:[%s2 + $0x14] sm:$0xf] %v596
  %725 = vst [vmem:[%s2 + $0x18] sm:$0xf] %v597
  %726 = vst [vmem:[%s2 + $0x1c] sm:$0xf] %v598
  %727 = vst [vmem:[%s2 + $0x20] sm:$0xf] %v599
  %728 = vst [vmem:[%s2 + $0x24] sm:$0xf] %v600
  %729 = vst [vmem:[%s2 + $0x28] sm:$0xf] %v601
  %730 = vst [vmem:[%s2 + $0x2c] sm:$0xf] %v602
  %731 = vst [vmem:[%s2 + $0x30] sm:$0xf] %v603
  %732 = vst [vmem:[%s2 + $0x34] sm:$0xf] %v604
  %733 = vst [vmem:[%s2 + $0x38] sm:$0xf] %v605
  %734 = vst [vmem:[%s2 + $0x3c] sm:$0xf] %v606
  %735 = vst [vmem:[%s2 + $0x40] sm:$0xf] %v607
  %736 = vst [vmem:[%s2 + $0x44] sm:$0xf] %v608
  %737 = vst [vmem:[%s2 + $0x48] sm:$0xf] %v609
  %738 = vst [vmem:[%s2 + $0x4c] sm:$0xf] %v610
  %739 = vst [vmem:[%s2 + $0x50] sm:$0xf] %v611
  %740 = vst [vmem:[%s2 + $0x54] sm:$0xf] %v612
  %741 = vst [vmem:[%s2 + $0x58] sm:$0xf] %v613
  %742 = vst [vmem:[%s2 + $0x5c] sm:$0xf] %v614
  %743 = vst [vmem:[%s2 + $0x60] sm:$0xf] %v615
  %744 = vst [vmem:[%s2 + $0x64] sm:$0xf] %v616
  %745 = vst [vmem:[%s2 + $0x68] sm:$0xf] %v617
  %746 = vst [vmem:[%s2 + $0x6c] sm:$0xf] %v618
  %747 = vst [vmem:[%s2 + $0x70] sm:$0xf] %v619
  %748 = vst [vmem:[%s2 + $0x74] sm:$0xf] %v620
  %749 = vst [vmem:[%s2 + $0x78] sm:$0xf] %v621
  %750 = vst [vmem:[%s2 + $0x7c] sm:$0xf] %v622
  %751 = vst [vmem:[%s2 + $0x80] sm:$0xf] %v623
  %752 = vst [vmem:[%s2 + $0x84] sm:$0xf] %v624
  %753 = vst [vmem:[%s2 + $0x88] sm:$0xf] %v625
  %754 = vst [vmem:[%s2 + $0x8c] sm:$0xf] %v626
  %755 = vst [vmem:[%s2 + $0x90] sm:$0xf] %v627
  %756 = vst [vmem:[%s2 + $0x94] sm:$0xf] %v628
  %757 = vst [vmem:[%s2 + $0x98] sm:$0xf] %v629
  %758 = vst [vmem:[%s2 + $0x9c] sm:$0xf] %v630
  %759 = vst [vmem:[%s2 + $0xa0] sm:$0xf] %v631
  %760 = vst [vmem:[%s2 + $0xa4] sm:$0xf] %v632
  %761 = vst [vmem:[%s2 + $0xa8] sm:$0xf] %v633
  %762 = vst [vmem:[%s2 + $0xac] sm:$0xf] %v634
  %763 = vst [vmem:[%s2 + $0xb0] sm:$0xf] %v635
  %764 = vst [vmem:[%s2 + $0xb4] sm:$0xf] %v636
  %765 = vst [vmem:[%s2 + $0xb8] sm:$0xf] %v637
  %766 = vst [vmem:[%s2 + $0xbc] sm:$0xf] %v638
  %767 = vst [vmem:[%s2 + $0xc0] sm:$0xf] %v639
  %768 = vst [vmem:[%s2 + $0xc4] sm:$0xf] %v640
  %769 = vst [vmem:[%s2 + $0xc8] sm:$0xf] %v641
  %770 = vst [vmem:[%s2 + $0xcc] sm:$0xf] %v642
  %771 = vst [vmem:[%s2 + $0xd0] sm:$0xf] %v643
  %772 = vst [vmem:[%s2 + $0xd4] sm:$0xf] %v644
  %773 = vst [vmem:[%s2 + $0xd8] sm:$0xf] %v645
  %774 = vst [vmem:[%s2 + $0xdc] sm:$0xf] %v646
  %775 = vst [vmem:[%s2 + $0xe0] sm:$0xf] %v647
  %776 = vst [vmem:[%s2 + $0xe4] sm:$0xf] %v648
  %777 = vst [vmem:[%s2 + $0xe8] sm:$0xf] %v649
  %778 = vst [vmem:[%s2 + $0xec] sm:$0xf] %v650
  %779 = vst [vmem:[%s2 + $0xf0] sm:$0xf] %v651
  %780 = vst [vmem:[%s2 + $0xf4] sm:$0xf] %v652
  %781 = vst [vmem:[%s2 + $0xf8] sm:$0xf] %v653
  %782 = vst [vmem:[%s2 + $0xfc] sm:$0xf] %v654
  %v783 = vadd.f32 %v209, %v212
  %v784 = vadd.f32 %v783, %v217
  %v785 = vadd.f32 %v784, %v220
  %v786 = vadd.f32 %v785, %v225
  %v787 = vadd.f32 %v786, %v228
  %v788 = vadd.f32 %v787, %v233
  %v789 = vadd.f32 %v788, %v236
  %v790 = vadd.f32 %v789, %v241
  %v791 = vadd.f32 %v790, %v244
  %v792 = vadd.f32 %v791, %v249
  %v793 = vadd.f32 %v792, %v252
  %v794 = vadd.f32 %v793, %v257
  %v795 = vadd.f32 %v794, %v260
  %v796 = vadd.f32 %v795, %v265
  %v797 = vadd.f32 %v796, %v268
  %v798 = vadd.f32 %v797, %v273
  %v799 = vadd.f32 %v798, %v276
  %v800 = vadd.f32 %v799, %v281
  %v801 = vadd.f32 %v800, %v284
  %v802 = vadd.f32 %v801, %v289
  %v803 = vadd.f32 %v802, %v292
  %v804 = vadd.f32 %v803, %v297
  %v805 = vadd.f32 %v804, %v300
  %v806 = vadd.f32 %v805, %v305
  %v807 = vadd.f32 %v806, %v308
  %v808 = vadd.f32 %v807, %v313
  %v809 = vadd.f32 %v808, %v316
  %v810 = vadd.f32 %v809, %v321
  %v811 = vadd.f32 %v810, %v324
  %v812 = vadd.f32 %v811, %v329
  %v813 = vadd.f32 %v812, %v332
  %v814 = vadd.f32 %v813, %v337
  %v815 = vadd.f32 %v814, %v340
  %v816 = vadd.f32 %v815, %v345
  %v817 = vadd.f32 %v816, %v348
  %v818 = vadd.f32 %v817, %v353
  %v819 = vadd.f32 %v818, %v356
  %v820 = vadd.f32 %v819, %v361
  %v821 = vadd.f32 %v820, %v364
  %v822 = vadd.f32 %v821, %v369
  %v823 = vadd.f32 %v822, %v372
  %v824 = vadd.f32 %v823, %v377
  %v825 = vadd.f32 %v824, %v380
  %v826 = vadd.f32 %v825, %v385
  %v827 = vadd.f32 %v826, %v388
  %v828 = vadd.f32 %v827, %v393
  %v829 = vadd.f32 %v828, %v396
  %v830 = vadd.f32 %v829, %v401
  %v831 = vadd.f32 %v830, %v404
  %v832 = vadd.f32 %v831, %v409
  %v833 = vadd.f32 %v832, %v412
  %v834 = vadd.f32 %v833, %v417
  %v835 = vadd.f32 %v834, %v420
  %v836 = vadd.f32 %v835, %v425
  %v837 = vadd.f32 %v836, %v428
  %v838 = vadd.f32 %v837, %v433
  %v839 = vadd.f32 %v838, %v436
  %v840 = vadd.f32 %v839, %v441
  %v841 = vadd.f32 %v840, %v444
  %v842 = vadd.f32 %v841, %v449
  %v843 = vadd.f32 %v842, %v452
  %v844 = vadd.f32 %v843, %v457
  %v845 = vadd.f32 %v844, %v460
  %v846 = vrot.slane %v845, 4
  %v847 = vadd.f32 %v845, %v846
  %v848 = vrot.slane %v847, 2
  %v849 = vadd.f32 %v847, %v848
  %v850 = vrot.slane %v849, 1
  %v851 = vadd.f32 %v849, %v850
  %v852 = vmul.f32 %v851, 0.001953125
  %v853 = vsub.f32 %v209, %v852
  %v854 = vsub.f32 %v212, %v852
  %v855 = vsub.f32 %v217, %v852
  %v856 = vsub.f32 %v220, %v852
  %v857 = vsub.f32 %v225, %v852
  %v858 = vsub.f32 %v228, %v852
  %v859 = vsub.f32 %v233, %v852
  %v860 = vsub.f32 %v236, %v852
  %v861 = vsub.f32 %v241, %v852
  %v862 = vsub.f32 %v244, %v852
  %v863 = vsub.f32 %v249, %v852
  %v864 = vsub.f32 %v252, %v852
  %v865 = vsub.f32 %v257, %v852
  %v866 = vsub.f32 %v260, %v852
  %v867 = vsub.f32 %v265, %v852
  %v868 = vsub.f32 %v268, %v852
  %v869 = vsub.f32 %v273, %v852
  %v870 = vsub.f32 %v276, %v852
  %v871 = vsub.f32 %v281, %v852
  %v872 = vsub.f32 %v284, %v852
  %v873 = vsub.f32 %v289, %v852
  %v874 = vsub.f32 %v292, %v852
  %v875 = vsub.f32 %v297, %v852
  %v876 = vsub.f32 %v300, %v852
  %v877 = vsub.f32 %v305, %v852
  %v878 = vsub.f32 %v308, %v852
  %v879 = vsub.f32 %v313, %v852
  %v880 = vsub.f32 %v316, %v852
  %v881 = vsub.f32 %v321, %v852
  %v882 = vsub.f32 %v324, %v852
  %v883 = vsub.f32 %v329, %v852
  %v884 = vsub.f32 %v332, %v852
  %v885 = vsub.f32 %v337, %v852
  %v886 = vsub.f32 %v340, %v852
  %v887 = vsub.f32 %v345, %v852
  %v888 = vsub.f32 %v348, %v852
  %v889 = vsub.f32 %v353, %v852
  %v890 = vsub.f32 %v356, %v852
  %v891 = vsub.f32 %v361, %v852
  %v892 = vsub.f32 %v364, %v852
  %v893 = vsub.f32 %v369, %v852
  %v894 = vsub.f32 %v372, %v852
  %v895 = vsub.f32 %v377, %v852
  %v896 = vsub.f32 %v380, %v852
  %v897 = vsub.f32 %v385, %v852
  %v898 = vsub.f32 %v388, %v852
  %v899 = vsub.f32 %v393, %v852
  %v900 = vsub.f32 %v396, %v852
  %v901 = vsub.f32 %v401, %v852
  %v902 = vsub.f32 %v404, %v852
  %v903 = vsub.f32 %v409, %v852
  %v904 = vsub.f32 %v412, %v852
  %v905 = vsub.f32 %v417, %v852
  %v906 = vsub.f32 %v420, %v852
  %v907 = vsub.f32 %v425, %v852
  %v908 = vsub.f32 %v428, %v852
  %v909 = vsub.f32 %v433, %v852
  %v910 = vsub.f32 %v436, %v852
  %v911 = vsub.f32 %v441, %v852
  %v912 = vsub.f32 %v444, %v852
  %v913 = vsub.f32 %v449, %v852
  %v914 = vsub.f32 %v452, %v852
  %v915 = vsub.f32 %v457, %v852
  %v916 = vsub.f32 %v460, %v852
  %v917 = vmul.f32 %v853, %v853
  %v918 = vmul.f32 %v854, %v854
  %v919 = vmul.f32 %v855, %v855
  %v920 = vmul.f32 %v856, %v856
  %v921 = vmul.f32 %v857, %v857
  %v922 = vmul.f32 %v858, %v858
  %v923 = vmul.f32 %v859, %v859
  %v924 = vmul.f32 %v860, %v860
  %v925 = vmul.f32 %v861, %v861
  %v926 = vmul.f32 %v862, %v862
  %v927 = vmul.f32 %v863, %v863
  %v928 = vmul.f32 %v864, %v864
  %v929 = vmul.f32 %v865, %v865
  %v930 = vmul.f32 %v866, %v866
  %v931 = vmul.f32 %v867, %v867
  %v932 = vmul.f32 %v868, %v868
  %v933 = vmul.f32 %v869, %v869
  %v934 = vmul.f32 %v870, %v870
  %v935 = vmul.f32 %v871, %v871
  %v936 = vmul.f32 %v872, %v872
  %v937 = vmul.f32 %v873, %v873
  %v938 = vmul.f32 %v874, %v874
  %v939 = vmul.f32 %v875, %v875
  %v940 = vmul.f32 %v876, %v876
  %v941 = vmul.f32 %v877, %v877
  %v942 = vmul.f32 %v878, %v878
  %v943 = vmul.f32 %v879, %v879
  %v944 = vmul.f32 %v880, %v880
  %v945 = vmul.f32 %v881, %v881
  %v946 = vmul.f32 %v882, %v882
  %v947 = vmul.f32 %v883, %v883
  %v948 = vmul.f32 %v884, %v884
  %v949 = vmul.f32 %v885, %v885
  %v950 = vmul.f32 %v886, %v886
  %v951 = vmul.f32 %v887, %v887
  %v952 = vmul.f32 %v888, %v888
  %v953 = vmul.f32 %v889, %v889
  %v954 = vmul.f32 %v890, %v890
  %v955 = vmul.f32 %v891, %v891
  %v956 = vmul.f32 %v892, %v892
  %v957 = vmul.f32 %v893, %v893
  %v958 = vmul.f32 %v894, %v894
  %v959 = vmul.f32 %v895, %v895
  %v960 = vmul.f32 %v896, %v896
  %v961 = vmul.f32 %v897, %v897
  %v962 = vmul.f32 %v898, %v898
  %v963 = vmul.f32 %v899, %v899
  %v964 = vmul.f32 %v900, %v900
  %v965 = vmul.f32 %v901, %v901
  %v966 = vmul.f32 %v902, %v902
  %v967 = vmul.f32 %v903, %v903
  %v968 = vmul.f32 %v904, %v904
  %v969 = vmul.f32 %v905, %v905
  %v970 = vmul.f32 %v906, %v906
  %v971 = vmul.f32 %v907, %v907
  %v972 = vmul.f32 %v908, %v908
  %v973 = vmul.f32 %v909, %v909
  %v974 = vmul.f32 %v910, %v910
  %v975 = vmul.f32 %v911, %v911
  %v976 = vmul.f32 %v912, %v912
  %v977 = vmul.f32 %v913, %v913
  %v978 = vmul.f32 %v914, %v914
  %v979 = vmul.f32 %v915, %v915
  %v980 = vmul.f32 %v916, %v916
  %v981 = vadd.f32 %v917, %v918
  %v982 = vadd.f32 %v981, %v919
  %v983 = vadd.f32 %v982, %v920
  %v984 = vadd.f32 %v983, %v921
  %v985 = vadd.f32 %v984, %v922
  %v986 = vadd.f32 %v985, %v923
  %v987 = vadd.f32 %v986, %v924
  %v988 = vadd.f32 %v987, %v925
  %v989 = vadd.f32 %v988, %v926
  %v990 = vadd.f32 %v989, %v927
  %v991 = vadd.f32 %v990, %v928
  %v992 = vadd.f32 %v991, %v929
  %v993 = vadd.f32 %v992, %v930
  %v994 = vadd.f32 %v993, %v931
  %v995 = vadd.f32 %v994, %v932
  %v996 = vadd.f32 %v995, %v933
  %v997 = vadd.f32 %v996, %v934
  %v998 = vadd.f32 %v997, %v935
  %v999 = vadd.f32 %v998, %v936
  %v1000 = vadd.f32 %v999, %v937
  %v1001 = vadd.f32 %v1000, %v938
  %v1002 = vadd.f32 %v1001, %v939
  %v1003 = vadd.f32 %v1002, %v940
  %v1004 = vadd.f32 %v1003, %v941
  %v1005 = vadd.f32 %v1004, %v942
  %v1006 = vadd.f32 %v1005, %v943
  %v1007 = vadd.f32 %v1006, %v944
  %v1008 = vadd.f32 %v1007, %v945
  %v1009 = vadd.f32 %v1008, %v946
  %v1010 = vadd.f32 %v1009, %v947
  %v1011 = vadd.f32 %v1010, %v948
  %v1012 = vadd.f32 %v1011, %v949
  %v1013 = vadd.f32 %v1012, %v950
  %v1014 = vadd.f32 %v1013, %v951
  %v1015 = vadd.f32 %v1014, %v952
  %v1016 = vadd.f32 %v1015, %v953
  %v1017 = vadd.f32 %v1016, %v954
  %v1018 = vadd.f32 %v1017, %v955
  %v1019 = vadd.f32 %v1018, %v956
  %v1020 = vadd.f32 %v1019, %v957
  %v1021 = vadd.f32 %v1020, %v958
  %v1022 = vadd.f32 %v1021, %v959
  %v1023 = vadd.f32 %v1022, %v960
  %v1024 = vadd.f32 %v1023, %v961
  %v1025 = vadd.f32 %v1024, %v962
  %v1026 = vadd.f32 %v1025, %v963
  %v1027 = vadd.f32 %v1026, %v964
  %v1028 = vadd.f32 %v1027, %v965
  %v1029 = vadd.f32 %v1028, %v966
  %v1030 = vadd.f32 %v1029, %v967
  %v1031 = vadd.f32 %v1030, %v968
  %v1032 = vadd.f32 %v1031, %v969
  %v1033 = vadd.f32 %v1032, %v970
  %v1034 = vadd.f32 %v1033, %v971
  %v1035 = vadd.f32 %v1034, %v972
  %v1036 = vadd.f32 %v1035, %v973
  %v1037 = vadd.f32 %v1036, %v974
  %v1038 = vadd.f32 %v1037, %v975
  %v1039 = vadd.f32 %v1038, %v976
  %v1040 = vadd.f32 %v1039, %v977
  %v1041 = vadd.f32 %v1040, %v978
  %v1042 = vadd.f32 %v1041, %v979
  %v1043 = vadd.f32 %v1042, %v980
  %v1044 = vrot.slane %v1043, 4
  %v1045 = vadd.f32 %v1043, %v1044
  %v1046 = vrot.slane %v1045, 2
  %v1047 = vadd.f32 %v1045, %v1046
  %v1048 = vrot.slane %v1047, 1
  %v1049 = vadd.f32 %v1047, %v1048
  %vm1050 = vcmask 1040384
  %v1051 = vsel %vm1050, %v851, %v1049
  %1052 = vst [vmem:[%s3] sm:$0x3] %v1051
  // Predicated region
  $region10: #{bottleneck_v1b_pallas.4} parent=0 // pred_check
    _
  $region11: #{bottleneck_v1b_pallas.4} parent=0 // pred_check_branch
    %1054 = sbr.rel (0) target = $region13
  $region12: #{bottleneck_v1b_pallas.4} parent=0 // pred_region
    _
  $region13: #{bottleneck_v1b_pallas.4} parent=0 // pred_fallthru
    _
  // Predicated region
  $region14: #{bottleneck_v1b_pallas.4} parent=0 // pred_check
    _
  $region15: #{bottleneck_v1b_pallas.4} parent=0 // pred_check_branch
    %1056 = sbr.rel (0) target = $region17
  $region16: #{bottleneck_v1b_pallas.4} parent=0 // pred_region
    _
  $region17: #{bottleneck_v1b_pallas.4} parent=0 // pred_fallthru
    _
  // Predicated region
  $region18: #{bottleneck_v1b_pallas.4} parent=0 // pred_check
    _
  $region19: #{bottleneck_v1b_pallas.4} parent=0 // pred_check_branch
    %1058 = sbr.rel (0) target = $region21
  $region20: #{bottleneck_v1b_pallas.4} parent=0 // pred_region
    _
  $region21: #{bottleneck_v1b_pallas.4} parent=0 // pred_fallthru
    _
  // Predicated region
  $region22: #{bottleneck_v1b_pallas.4} parent=0 // pred_check
    _
  $region23: #{bottleneck_v1b_pallas.4} parent=0 // pred_check_branch
    %1060 = sbr.rel (0) target = $region25
  $region24: #{bottleneck_v1b_pallas.4} parent=0 // pred_region
    _
  $region25: #{bottleneck_v1b_pallas.4} parent=0 // pred_fallthru
    _

// kernel: bottleneck_v1b_pallas.7
$region0: #{bottleneck_v1b_pallas.7}
  #allocation0 [shape = 'u32[]', space=smem, size = 0x4, offset = 0x4, fixed_abs, tag = 'smem constant byte address 0x4 - core index']
  #allocation1 [shape = 'u32[144,128]{1,0:T(1,128)}', space=vmem, size = 0x12000, scoped, tag = 'internal scratch']
  %s0 = inlined_call_operand.vmem [shape: f32[512,128], index: 0, kind: input, shape index: {}]
  %s1 = inlined_call_operand.vmem [shape: f32[512,128], index: 1, kind: input, shape index: {}, may-alias: {1,4}]
  %s2 = inlined_call_operand.vmem [shape: f32[1,128], index: 2, kind: input, shape index: {}]
  %s3 = inlined_call_operand.vmem [shape: f32[1,128], index: 3, kind: input, shape index: {}]
  %s4 = inlined_call_operand.vmem [shape: f32[512,128], index: 4, kind: output, shape index: {}, may-alias: {1,4}]
  %s5 = sld [smem:[#allocation0]]
  $region26: #{bottleneck_v1b_pallas.7} parent=0
    _
  %s7 = ssub.s32 1, %s5
  %s8 = scalar_select 0, %s7, %s5
  // Predicated region
  $region2: #{bottleneck_v1b_pallas.7} parent=0 // pred_check
    _
  $region3: #{bottleneck_v1b_pallas.7} parent=0 // pred_check_branch
    %10 = sbr.rel (0) target = $region5
  $region4: #{bottleneck_v1b_pallas.7} parent=0 // pred_region
    _
  $region5: #{bottleneck_v1b_pallas.7} parent=0 // pred_fallthru
    _
  // Predicated region
  $region6: #{bottleneck_v1b_pallas.7} parent=0 // pred_check
    _
  $region7: #{bottleneck_v1b_pallas.7} parent=0 // pred_check_branch
    %12 = sbr.rel (0) target = $region9
  $region8: #{bottleneck_v1b_pallas.7} parent=0 // pred_region
    _
  $region9: #{bottleneck_v1b_pallas.7} parent=0 // pred_fallthru
    _
  // Predicated region
  $region10: #{bottleneck_v1b_pallas.7} parent=0 // pred_check
    _
  $region11: #{bottleneck_v1b_pallas.7} parent=0 // pred_check_branch
    %14 = sbr.rel (0) target = $region13
  $region12: #{bottleneck_v1b_pallas.7} parent=0 // pred_region
    _
  $region13: #{bottleneck_v1b_pallas.7} parent=0 // pred_fallthru
    _
  // Predicated region
  $region14: #{bottleneck_v1b_pallas.7} parent=0 // pred_check
    _
  $region15: #{bottleneck_v1b_pallas.7} parent=0 // pred_check_branch
    %16 = sbr.rel (0) target = $region17
  $region16: #{bottleneck_v1b_pallas.7} parent=0 // pred_region
    _
  $region17: #{bottleneck_v1b_pallas.7} parent=0 // pred_fallthru
    _
  %v17 = vld [vmem:[%s0] sm:$0xff]
  %v18 = vld [vmem:[%s0 + $0x8] sm:$0xff]
  %v19 = vld [vmem:[%s0 + $0x10] sm:$0xff]
  %v20 = vld [vmem:[%s0 + $0x18] sm:$0xff]
  %v21 = vld [vmem:[%s0 + $0x20] sm:$0xff]
  %v22 = vld [vmem:[%s0 + $0x28] sm:$0xff]
  %v23 = vld [vmem:[%s0 + $0x30] sm:$0xff]
  %v24 = vld [vmem:[%s0 + $0x38] sm:$0xff]
  %v25 = vld [vmem:[%s0 + $0x40] sm:$0xff]
  %v26 = vld [vmem:[%s0 + $0x48] sm:$0xff]
  %v27 = vld [vmem:[%s0 + $0x50] sm:$0xff]
  %v28 = vld [vmem:[%s0 + $0x58] sm:$0xff]
  %v29 = vld [vmem:[%s0 + $0x60] sm:$0xff]
  %v30 = vld [vmem:[%s0 + $0x68] sm:$0xff]
  %v31 = vld [vmem:[%s0 + $0x70] sm:$0xff]
  %v32 = vld [vmem:[%s0 + $0x78] sm:$0xff]
  %v33 = vld [vmem:[%s0 + $0x80] sm:$0xff]
  %v34 = vld [vmem:[%s0 + $0x88] sm:$0xff]
  %v35 = vld [vmem:[%s0 + $0x90] sm:$0xff]
  %v36 = vld [vmem:[%s0 + $0x98] sm:$0xff]
  %v37 = vld [vmem:[%s0 + $0xa0] sm:$0xff]
  %v38 = vld [vmem:[%s0 + $0xa8] sm:$0xff]
  %v39 = vld [vmem:[%s0 + $0xb0] sm:$0xff]
  %v40 = vld [vmem:[%s0 + $0xb8] sm:$0xff]
  %v41 = vld [vmem:[%s0 + $0xc0] sm:$0xff]
  %v42 = vld [vmem:[%s0 + $0xc8] sm:$0xff]
  %v43 = vld [vmem:[%s0 + $0xd0] sm:$0xff]
  %v44 = vld [vmem:[%s0 + $0xd8] sm:$0xff]
  %v45 = vld [vmem:[%s0 + $0xe0] sm:$0xff]
  %v46 = vld [vmem:[%s0 + $0xe8] sm:$0xff]
  %v47 = vld [vmem:[%s0 + $0xf0] sm:$0xff]
  %v48 = vld [vmem:[%s0 + $0xf8] sm:$0xff]
  %v49 = vld [vmem:[%s0 + $0x100] sm:$0xff]
  %v50 = vld [vmem:[%s0 + $0x108] sm:$0xff]
  %v51 = vld [vmem:[%s0 + $0x110] sm:$0xff]
  %v52 = vld [vmem:[%s0 + $0x118] sm:$0xff]
  %v53 = vld [vmem:[%s0 + $0x120] sm:$0xff]
  %v54 = vld [vmem:[%s0 + $0x128] sm:$0xff]
  %v55 = vld [vmem:[%s0 + $0x130] sm:$0xff]
  %v56 = vld [vmem:[%s0 + $0x138] sm:$0xff]
  %v57 = vld [vmem:[%s0 + $0x140] sm:$0xff]
  %v58 = vld [vmem:[%s0 + $0x148] sm:$0xff]
  %v59 = vld [vmem:[%s0 + $0x150] sm:$0xff]
  %v60 = vld [vmem:[%s0 + $0x158] sm:$0xff]
  %v61 = vld [vmem:[%s0 + $0x160] sm:$0xff]
  %v62 = vld [vmem:[%s0 + $0x168] sm:$0xff]
  %v63 = vld [vmem:[%s0 + $0x170] sm:$0xff]
  %v64 = vld [vmem:[%s0 + $0x178] sm:$0xff]
  %v65 = vld [vmem:[%s0 + $0x180] sm:$0xff]
  %v66 = vld [vmem:[%s0 + $0x188] sm:$0xff]
  %v67 = vld [vmem:[%s0 + $0x190] sm:$0xff]
  %v68 = vld [vmem:[%s0 + $0x198] sm:$0xff]
  %v69 = vld [vmem:[%s0 + $0x1a0] sm:$0xff]
  %v70 = vld [vmem:[%s0 + $0x1a8] sm:$0xff]
  %v71 = vld [vmem:[%s0 + $0x1b0] sm:$0xff]
  %v72 = vld [vmem:[%s0 + $0x1b8] sm:$0xff]
  %v73 = vld [vmem:[%s0 + $0x1c0] sm:$0xff]
  %v74 = vld [vmem:[%s0 + $0x1c8] sm:$0xff]
  %v75 = vld [vmem:[%s0 + $0x1d0] sm:$0xff]
  %v76 = vld [vmem:[%s0 + $0x1d8] sm:$0xff]
  %v77 = vld [vmem:[%s0 + $0x1e0] sm:$0xff]
  %v78 = vld [vmem:[%s0 + $0x1e8] sm:$0xff]
  %v79 = vld [vmem:[%s0 + $0x1f0] sm:$0xff]
  %v80 = vld [vmem:[%s0 + $0x1f8] sm:$0xff]
  %v81 = vld [vmem:[%s2] sm:$0x1]
  %v83 = vlaneseq
  %v84 = vshrl.u32 %v83, 7
  %v85 = vsub.s32 0, %v84
  %v86 = vrot.slane %v81, %v85
  %v88 = vmul.f32 %v17, %v86
  %v89 = vmul.f32 %v18, %v86
  %v90 = vmul.f32 %v19, %v86
  %v91 = vmul.f32 %v20, %v86
  %v92 = vmul.f32 %v21, %v86
  %v93 = vmul.f32 %v22, %v86
  %v94 = vmul.f32 %v23, %v86
  %v95 = vmul.f32 %v24, %v86
  %v96 = vmul.f32 %v25, %v86
  %v97 = vmul.f32 %v26, %v86
  %v98 = vmul.f32 %v27, %v86
  %v99 = vmul.f32 %v28, %v86
  %v100 = vmul.f32 %v29, %v86
  %v101 = vmul.f32 %v30, %v86
  %v102 = vmul.f32 %v31, %v86
  %v103 = vmul.f32 %v32, %v86
  %v104 = vmul.f32 %v33, %v86
  %v105 = vmul.f32 %v34, %v86
  %v106 = vmul.f32 %v35, %v86
  %v107 = vmul.f32 %v36, %v86
  %v108 = vmul.f32 %v37, %v86
  %v109 = vmul.f32 %v38, %v86
  %v110 = vmul.f32 %v39, %v86
  %v111 = vmul.f32 %v40, %v86
  %v112 = vmul.f32 %v41, %v86
  %v113 = vmul.f32 %v42, %v86
  %v114 = vmul.f32 %v43, %v86
  %v115 = vmul.f32 %v44, %v86
  %v116 = vmul.f32 %v45, %v86
  %v117 = vmul.f32 %v46, %v86
  %v118 = vmul.f32 %v47, %v86
  %v119 = vmul.f32 %v48, %v86
  %v120 = vmul.f32 %v49, %v86
  %v121 = vmul.f32 %v50, %v86
  %v122 = vmul.f32 %v51, %v86
  %v123 = vmul.f32 %v52, %v86
  %v124 = vmul.f32 %v53, %v86
  %v125 = vmul.f32 %v54, %v86
  %v126 = vmul.f32 %v55, %v86
  %v127 = vmul.f32 %v56, %v86
  %v128 = vmul.f32 %v57, %v86
  %v129 = vmul.f32 %v58, %v86
  %v130 = vmul.f32 %v59, %v86
  %v131 = vmul.f32 %v60, %v86
  %v132 = vmul.f32 %v61, %v86
  %v133 = vmul.f32 %v62, %v86
  %v134 = vmul.f32 %v63, %v86
  %v135 = vmul.f32 %v64, %v86
  %v136 = vmul.f32 %v65, %v86
  %v137 = vmul.f32 %v66, %v86
  %v138 = vmul.f32 %v67, %v86
  %v139 = vmul.f32 %v68, %v86
  %v140 = vmul.f32 %v69, %v86
  %v141 = vmul.f32 %v70, %v86
  %v142 = vmul.f32 %v71, %v86
  %v143 = vmul.f32 %v72, %v86
  %v144 = vmul.f32 %v73, %v86
  %v145 = vmul.f32 %v74, %v86
  %v146 = vmul.f32 %v75, %v86
  %v147 = vmul.f32 %v76, %v86
  %v148 = vmul.f32 %v77, %v86
  %v149 = vmul.f32 %v78, %v86
  %v150 = vmul.f32 %v79, %v86
  %v151 = vmul.f32 %v80, %v86
  %v152 = vld [vmem:[%s3] sm:$0x1]
  %v154 = vlaneseq
  %v155 = vshrl.u32 %v154, 7
  %v156 = vsub.s32 0, %v155
  %v157 = vrot.slane %v152, %v156
  %v159 = vadd.f32 %v88, %v157
  %v160 = vadd.f32 %v89, %v157
  %v161 = vadd.f32 %v90, %v157
  %v162 = vadd.f32 %v91, %v157
  %v163 = vadd.f32 %v92, %v157
  %v164 = vadd.f32 %v93, %v157
  %v165 = vadd.f32 %v94, %v157
  %v166 = vadd.f32 %v95, %v157
  %v167 = vadd.f32 %v96, %v157
  %v168 = vadd.f32 %v97, %v157
  %v169 = vadd.f32 %v98, %v157
  %v170 = vadd.f32 %v99, %v157
  %v171 = vadd.f32 %v100, %v157
  %v172 = vadd.f32 %v101, %v157
  %v173 = vadd.f32 %v102, %v157
  %v174 = vadd.f32 %v103, %v157
  %v175 = vadd.f32 %v104, %v157
  %v176 = vadd.f32 %v105, %v157
  %v177 = vadd.f32 %v106, %v157
  %v178 = vadd.f32 %v107, %v157
  %v179 = vadd.f32 %v108, %v157
  %v180 = vadd.f32 %v109, %v157
  %v181 = vadd.f32 %v110, %v157
  %v182 = vadd.f32 %v111, %v157
  %v183 = vadd.f32 %v112, %v157
  %v184 = vadd.f32 %v113, %v157
  %v185 = vadd.f32 %v114, %v157
  %v186 = vadd.f32 %v115, %v157
  %v187 = vadd.f32 %v116, %v157
  %v188 = vadd.f32 %v117, %v157
  %v189 = vadd.f32 %v118, %v157
  %v190 = vadd.f32 %v119, %v157
  %v191 = vadd.f32 %v120, %v157
  %v192 = vadd.f32 %v121, %v157
  %v193 = vadd.f32 %v122, %v157
  %v194 = vadd.f32 %v123, %v157
  %v195 = vadd.f32 %v124, %v157
  %v196 = vadd.f32 %v125, %v157
  %v197 = vadd.f32 %v126, %v157
  %v198 = vadd.f32 %v127, %v157
  %v199 = vadd.f32 %v128, %v157
  %v200 = vadd.f32 %v129, %v157
  %v201 = vadd.f32 %v130, %v157
  %v202 = vadd.f32 %v131, %v157
  %v203 = vadd.f32 %v132, %v157
  %v204 = vadd.f32 %v133, %v157
  %v205 = vadd.f32 %v134, %v157
  %v206 = vadd.f32 %v135, %v157
  %v207 = vadd.f32 %v136, %v157
  %v208 = vadd.f32 %v137, %v157
  %v209 = vadd.f32 %v138, %v157
  %v210 = vadd.f32 %v139, %v157
  %v211 = vadd.f32 %v140, %v157
  %v212 = vadd.f32 %v141, %v157
  %v213 = vadd.f32 %v142, %v157
  %v214 = vadd.f32 %v143, %v157
  %v215 = vadd.f32 %v144, %v157
  %v216 = vadd.f32 %v145, %v157
  %v217 = vadd.f32 %v146, %v157
  %v218 = vadd.f32 %v147, %v157
  %v219 = vadd.f32 %v148, %v157
  %v220 = vadd.f32 %v149, %v157
  %v221 = vadd.f32 %v150, %v157
  %v222 = vadd.f32 %v151, %v157
  %v223 = vld [vmem:[%s1] sm:$0xff]
  %v224 = vld [vmem:[%s1 + $0x8] sm:$0xff]
  %v225 = vld [vmem:[%s1 + $0x10] sm:$0xff]
  %v226 = vld [vmem:[%s1 + $0x18] sm:$0xff]
  %v227 = vld [vmem:[%s1 + $0x20] sm:$0xff]
  %v228 = vld [vmem:[%s1 + $0x28] sm:$0xff]
  %v229 = vld [vmem:[%s1 + $0x30] sm:$0xff]
  %v230 = vld [vmem:[%s1 + $0x38] sm:$0xff]
  %v231 = vld [vmem:[%s1 + $0x40] sm:$0xff]
  %v232 = vld [vmem:[%s1 + $0x48] sm:$0xff]
  %v233 = vld [vmem:[%s1 + $0x50] sm:$0xff]
  %v234 = vld [vmem:[%s1 + $0x58] sm:$0xff]
  %v235 = vld [vmem:[%s1 + $0x60] sm:$0xff]
  %v236 = vld [vmem:[%s1 + $0x68] sm:$0xff]
  %v237 = vld [vmem:[%s1 + $0x70] sm:$0xff]
  %v238 = vld [vmem:[%s1 + $0x78] sm:$0xff]
  %v239 = vld [vmem:[%s1 + $0x80] sm:$0xff]
  %v240 = vld [vmem:[%s1 + $0x88] sm:$0xff]
  %v241 = vld [vmem:[%s1 + $0x90] sm:$0xff]
  %v242 = vld [vmem:[%s1 + $0x98] sm:$0xff]
  %v243 = vld [vmem:[%s1 + $0xa0] sm:$0xff]
  %v244 = vld [vmem:[%s1 + $0xa8] sm:$0xff]
  %v245 = vld [vmem:[%s1 + $0xb0] sm:$0xff]
  %v246 = vld [vmem:[%s1 + $0xb8] sm:$0xff]
  %v247 = vld [vmem:[%s1 + $0xc0] sm:$0xff]
  %v248 = vld [vmem:[%s1 + $0xc8] sm:$0xff]
  %v249 = vld [vmem:[%s1 + $0xd0] sm:$0xff]
  %v250 = vld [vmem:[%s1 + $0xd8] sm:$0xff]
  %v251 = vld [vmem:[%s1 + $0xe0] sm:$0xff]
  %v252 = vld [vmem:[%s1 + $0xe8] sm:$0xff]
  %v253 = vld [vmem:[%s1 + $0xf0] sm:$0xff]
  %v254 = vld [vmem:[%s1 + $0xf8] sm:$0xff]
  %v255 = vld [vmem:[%s1 + $0x100] sm:$0xff]
  %v256 = vld [vmem:[%s1 + $0x108] sm:$0xff]
  %v257 = vld [vmem:[%s1 + $0x110] sm:$0xff]
  %v258 = vld [vmem:[%s1 + $0x118] sm:$0xff]
  %v259 = vld [vmem:[%s1 + $0x120] sm:$0xff]
  %v260 = vld [vmem:[%s1 + $0x128] sm:$0xff]
  %v261 = vld [vmem:[%s1 + $0x130] sm:$0xff]
  %v262 = vld [vmem:[%s1 + $0x138] sm:$0xff]
  %v263 = vld [vmem:[%s1 + $0x140] sm:$0xff]
  %v264 = vld [vmem:[%s1 + $0x148] sm:$0xff]
  %v265 = vld [vmem:[%s1 + $0x150] sm:$0xff]
  %v266 = vld [vmem:[%s1 + $0x158] sm:$0xff]
  %v267 = vld [vmem:[%s1 + $0x160] sm:$0xff]
  %v268 = vld [vmem:[%s1 + $0x168] sm:$0xff]
  %v269 = vld [vmem:[%s1 + $0x170] sm:$0xff]
  %v270 = vld [vmem:[%s1 + $0x178] sm:$0xff]
  %v271 = vld [vmem:[%s1 + $0x180] sm:$0xff]
  %v272 = vld [vmem:[%s1 + $0x188] sm:$0xff]
  %v273 = vld [vmem:[%s1 + $0x190] sm:$0xff]
  %v274 = vld [vmem:[%s1 + $0x198] sm:$0xff]
  %v275 = vld [vmem:[%s1 + $0x1a0] sm:$0xff]
  %v276 = vld [vmem:[%s1 + $0x1a8] sm:$0xff]
  %v277 = vld [vmem:[%s1 + $0x1b0] sm:$0xff]
  %v278 = vld [vmem:[%s1 + $0x1b8] sm:$0xff]
  %v279 = vld [vmem:[%s1 + $0x1c0] sm:$0xff]
  %v280 = vld [vmem:[%s1 + $0x1c8] sm:$0xff]
  %v281 = vld [vmem:[%s1 + $0x1d0] sm:$0xff]
  %v282 = vld [vmem:[%s1 + $0x1d8] sm:$0xff]
  %v283 = vld [vmem:[%s1 + $0x1e0] sm:$0xff]
  %v284 = vld [vmem:[%s1 + $0x1e8] sm:$0xff]
  %v285 = vld [vmem:[%s1 + $0x1f0] sm:$0xff]
  %v286 = vld [vmem:[%s1 + $0x1f8] sm:$0xff]
  %v287 = vadd.f32 %v159, %v223
  %v288 = vadd.f32 %v160, %v224
  %v289 = vadd.f32 %v161, %v225
  %v290 = vadd.f32 %v162, %v226
  %v291 = vadd.f32 %v163, %v227
  %v292 = vadd.f32 %v164, %v228
  %v293 = vadd.f32 %v165, %v229
  %v294 = vadd.f32 %v166, %v230
  %v295 = vadd.f32 %v167, %v231
  %v296 = vadd.f32 %v168, %v232
  %v297 = vadd.f32 %v169, %v233
  %v298 = vadd.f32 %v170, %v234
  %v299 = vadd.f32 %v171, %v235
  %v300 = vadd.f32 %v172, %v236
  %v301 = vadd.f32 %v173, %v237
  %v302 = vadd.f32 %v174, %v238
  %v303 = vadd.f32 %v175, %v239
  %v304 = vadd.f32 %v176, %v240
  %v305 = vadd.f32 %v177, %v241
  %v306 = vadd.f32 %v178, %v242
  %v307 = vadd.f32 %v179, %v243
  %v308 = vadd.f32 %v180, %v244
  %v309 = vadd.f32 %v181, %v245
  %v310 = vadd.f32 %v182, %v246
  %v311 = vadd.f32 %v183, %v247
  %v312 = vadd.f32 %v184, %v248
  %v313 = vadd.f32 %v185, %v249
  %v314 = vadd.f32 %v186, %v250
  %v315 = vadd.f32 %v187, %v251
  %v316 = vadd.f32 %v188, %v252
  %v317 = vadd.f32 %v189, %v253
  %v318 = vadd.f32 %v190, %v254
  %v319 = vadd.f32 %v191, %v255
  %v320 = vadd.f32 %v192, %v256
  %v321 = vadd.f32 %v193, %v257
  %v322 = vadd.f32 %v194, %v258
  %v323 = vadd.f32 %v195, %v259
  %v324 = vadd.f32 %v196, %v260
  %v325 = vadd.f32 %v197, %v261
  %v326 = vadd.f32 %v198, %v262
  %v327 = vadd.f32 %v199, %v263
  %v328 = vadd.f32 %v200, %v264
  %v329 = vadd.f32 %v201, %v265
  %v330 = vadd.f32 %v202, %v266
  %v331 = vadd.f32 %v203, %v267
  %v332 = vadd.f32 %v204, %v268
  %v333 = vadd.f32 %v205, %v269
  %v334 = vadd.f32 %v206, %v270
  %v335 = vadd.f32 %v207, %v271
  %v336 = vadd.f32 %v208, %v272
  %v337 = vadd.f32 %v209, %v273
  %v338 = vadd.f32 %v210, %v274
  %v339 = vadd.f32 %v211, %v275
  %v340 = vadd.f32 %v212, %v276
  %v341 = vadd.f32 %v213, %v277
  %v342 = vadd.f32 %v214, %v278
  %v343 = vadd.f32 %v215, %v279
  %v344 = vadd.f32 %v216, %v280
  %v345 = vadd.f32 %v217, %v281
  %v346 = vadd.f32 %v218, %v282
  %v347 = vadd.f32 %v219, %v283
  %v348 = vadd.f32 %v220, %v284
  %v349 = vadd.f32 %v221, %v285
  %v350 = vadd.f32 %v222, %v286
  %v351 = vmax.f32 %v287, 0.0
  %v352 = vmax.f32 %v288, 0.0
  %v353 = vmax.f32 %v289, 0.0
  %v354 = vmax.f32 %v290, 0.0
  %v355 = vmax.f32 %v291, 0.0
  %v356 = vmax.f32 %v292, 0.0
  %v357 = vmax.f32 %v293, 0.0
  %v358 = vmax.f32 %v294, 0.0
  %v359 = vmax.f32 %v295, 0.0
  %v360 = vmax.f32 %v296, 0.0
  %v361 = vmax.f32 %v297, 0.0
  %v362 = vmax.f32 %v298, 0.0
  %v363 = vmax.f32 %v299, 0.0
  %v364 = vmax.f32 %v300, 0.0
  %v365 = vmax.f32 %v301, 0.0
  %v366 = vmax.f32 %v302, 0.0
  %v367 = vmax.f32 %v303, 0.0
  %v368 = vmax.f32 %v304, 0.0
  %v369 = vmax.f32 %v305, 0.0
  %v370 = vmax.f32 %v306, 0.0
  %v371 = vmax.f32 %v307, 0.0
  %v372 = vmax.f32 %v308, 0.0
  %v373 = vmax.f32 %v309, 0.0
  %v374 = vmax.f32 %v310, 0.0
  %v375 = vmax.f32 %v311, 0.0
  %v376 = vmax.f32 %v312, 0.0
  %v377 = vmax.f32 %v313, 0.0
  %v378 = vmax.f32 %v314, 0.0
  %v379 = vmax.f32 %v315, 0.0
  %v380 = vmax.f32 %v316, 0.0
  %v381 = vmax.f32 %v317, 0.0
  %v382 = vmax.f32 %v318, 0.0
  %v383 = vmax.f32 %v319, 0.0
  %v384 = vmax.f32 %v320, 0.0
  %v385 = vmax.f32 %v321, 0.0
  %v386 = vmax.f32 %v322, 0.0
  %v387 = vmax.f32 %v323, 0.0
  %v388 = vmax.f32 %v324, 0.0
  %v389 = vmax.f32 %v325, 0.0
  %v390 = vmax.f32 %v326, 0.0
  %v391 = vmax.f32 %v327, 0.0
  %v392 = vmax.f32 %v328, 0.0
  %v393 = vmax.f32 %v329, 0.0
  %v394 = vmax.f32 %v330, 0.0
  %v395 = vmax.f32 %v331, 0.0
  %v396 = vmax.f32 %v332, 0.0
  %v397 = vmax.f32 %v333, 0.0
  %v398 = vmax.f32 %v334, 0.0
  %v399 = vmax.f32 %v335, 0.0
  %v400 = vmax.f32 %v336, 0.0
  %v401 = vmax.f32 %v337, 0.0
  %v402 = vmax.f32 %v338, 0.0
  %v403 = vmax.f32 %v339, 0.0
  %v404 = vmax.f32 %v340, 0.0
  %v405 = vmax.f32 %v341, 0.0
  %v406 = vmax.f32 %v342, 0.0
  %v407 = vmax.f32 %v343, 0.0
  %v408 = vmax.f32 %v344, 0.0
  %v409 = vmax.f32 %v345, 0.0
  %v410 = vmax.f32 %v346, 0.0
  %v411 = vmax.f32 %v347, 0.0
  %v412 = vmax.f32 %v348, 0.0
  %v413 = vmax.f32 %v349, 0.0
  %v414 = vmax.f32 %v350, 0.0
  %415 = vst [vmem:[%s4] sm:$0xff] %v351
  %416 = vst [vmem:[%s4 + $0x8] sm:$0xff] %v352
  %417 = vst [vmem:[%s4 + $0x10] sm:$0xff] %v353
  %418 = vst [vmem:[%s4 + $0x18] sm:$0xff] %v354
  %419 = vst [vmem:[%s4 + $0x20] sm:$0xff] %v355
  %420 = vst [vmem:[%s4 + $0x28] sm:$0xff] %v356
  %421 = vst [vmem:[%s4 + $0x30] sm:$0xff] %v357
  %422 = vst [vmem:[%s4 + $0x38] sm:$0xff] %v358
  %423 = vst [vmem:[%s4 + $0x40] sm:$0xff] %v359
  %424 = vst [vmem:[%s4 + $0x48] sm:$0xff] %v360
  %425 = vst [vmem:[%s4 + $0x50] sm:$0xff] %v361
  %426 = vst [vmem:[%s4 + $0x58] sm:$0xff] %v362
  %427 = vst [vmem:[%s4 + $0x60] sm:$0xff] %v363
  %428 = vst [vmem:[%s4 + $0x68] sm:$0xff] %v364
  %429 = vst [vmem:[%s4 + $0x70] sm:$0xff] %v365
  %430 = vst [vmem:[%s4 + $0x78] sm:$0xff] %v366
  %431 = vst [vmem:[%s4 + $0x80] sm:$0xff] %v367
  %432 = vst [vmem:[%s4 + $0x88] sm:$0xff] %v368
  %433 = vst [vmem:[%s4 + $0x90] sm:$0xff] %v369
  %434 = vst [vmem:[%s4 + $0x98] sm:$0xff] %v370
  %435 = vst [vmem:[%s4 + $0xa0] sm:$0xff] %v371
  %436 = vst [vmem:[%s4 + $0xa8] sm:$0xff] %v372
  %437 = vst [vmem:[%s4 + $0xb0] sm:$0xff] %v373
  %438 = vst [vmem:[%s4 + $0xb8] sm:$0xff] %v374
  %439 = vst [vmem:[%s4 + $0xc0] sm:$0xff] %v375
  %440 = vst [vmem:[%s4 + $0xc8] sm:$0xff] %v376
  %441 = vst [vmem:[%s4 + $0xd0] sm:$0xff] %v377
  %442 = vst [vmem:[%s4 + $0xd8] sm:$0xff] %v378
  %443 = vst [vmem:[%s4 + $0xe0] sm:$0xff] %v379
  %444 = vst [vmem:[%s4 + $0xe8] sm:$0xff] %v380
  %445 = vst [vmem:[%s4 + $0xf0] sm:$0xff] %v381
  %446 = vst [vmem:[%s4 + $0xf8] sm:$0xff] %v382
  %447 = vst [vmem:[%s4 + $0x100] sm:$0xff] %v383
  %448 = vst [vmem:[%s4 + $0x108] sm:$0xff] %v384
  %449 = vst [vmem:[%s4 + $0x110] sm:$0xff] %v385
  %450 = vst [vmem:[%s4 + $0x118] sm:$0xff] %v386
  %451 = vst [vmem:[%s4 + $0x120] sm:$0xff] %v387
  %452 = vst [vmem:[%s4 + $0x128] sm:$0xff] %v388
  %453 = vst [vmem:[%s4 + $0x130] sm:$0xff] %v389
  %454 = vst [vmem:[%s4 + $0x138] sm:$0xff] %v390
  %455 = vst [vmem:[%s4 + $0x140] sm:$0xff] %v391
  %456 = vst [vmem:[%s4 + $0x148] sm:$0xff] %v392
  %457 = vst [vmem:[%s4 + $0x150] sm:$0xff] %v393
  %458 = vst [vmem:[%s4 + $0x158] sm:$0xff] %v394
  %459 = vst [vmem:[%s4 + $0x160] sm:$0xff] %v395
  %460 = vst [vmem:[%s4 + $0x168] sm:$0xff] %v396
  %461 = vst [vmem:[%s4 + $0x170] sm:$0xff] %v397
  %462 = vst [vmem:[%s4 + $0x178] sm:$0xff] %v398
  %463 = vst [vmem:[%s4 + $0x180] sm:$0xff] %v399
  %464 = vst [vmem:[%s4 + $0x188] sm:$0xff] %v400
  %465 = vst [vmem:[%s4 + $0x190] sm:$0xff] %v401
  %466 = vst [vmem:[%s4 + $0x198] sm:$0xff] %v402
  %467 = vst [vmem:[%s4 + $0x1a0] sm:$0xff] %v403
  %468 = vst [vmem:[%s4 + $0x1a8] sm:$0xff] %v404
  %469 = vst [vmem:[%s4 + $0x1b0] sm:$0xff] %v405
  %470 = vst [vmem:[%s4 + $0x1b8] sm:$0xff] %v406
  %471 = vst [vmem:[%s4 + $0x1c0] sm:$0xff] %v407
  %472 = vst [vmem:[%s4 + $0x1c8] sm:$0xff] %v408
  %473 = vst [vmem:[%s4 + $0x1d0] sm:$0xff] %v409
  %474 = vst [vmem:[%s4 + $0x1d8] sm:$0xff] %v410
  %475 = vst [vmem:[%s4 + $0x1e0] sm:$0xff] %v411
  %476 = vst [vmem:[%s4 + $0x1e8] sm:$0xff] %v412
  %477 = vst [vmem:[%s4 + $0x1f0] sm:$0xff] %v413
  %478 = vst [vmem:[%s4 + $0x1f8] sm:$0xff] %v414
  // Predicated region
  $region18: #{bottleneck_v1b_pallas.7} parent=0 // pred_check
    _
  $region19: #{bottleneck_v1b_pallas.7} parent=0 // pred_check_branch
    %480 = sbr.rel (0) target = $region21
  $region20: #{bottleneck_v1b_pallas.7} parent=0 // pred_region
    _
  $region21: #{bottleneck_v1b_pallas.7} parent=0 // pred_fallthru
    _
  // Predicated region
  $region22: #{bottleneck_v1b_pallas.7} parent=0 // pred_check
    _
  $region23: #{bottleneck_v1b_pallas.7} parent=0 // pred_check_branch
    %482 = sbr.rel (0) target = $region25
  $region24: #{bottleneck_v1b_pallas.7} parent=0 // pred_region
    _
  $region25: #{bottleneck_v1b_pallas.7} parent=0 // pred_fallthru
    _

// kernel: bottleneck_v1b_pallas.6
$region0: #{bottleneck_v1b_pallas.6}
  #allocation0 [shape = 'u32[]', space=smem, size = 0x4, offset = 0x4, fixed_abs, tag = 'smem constant byte address 0x4 - core index']
  #allocation1 [shape = 'u32[144,128]{1,0:T(1,128)}', space=vmem, size = 0x12000, scoped, tag = 'internal scratch']
  %s0 = inlined_call_operand.vmem [shape: bf16[512,128], index: 0, kind: input, shape index: {}]
  %s1 = inlined_call_operand.vmem [shape: f32[1,128], index: 1, kind: input, shape index: {}]
  %s2 = inlined_call_operand.vmem [shape: f32[1,128], index: 2, kind: input, shape index: {}]
  %s3 = inlined_call_operand.vmem [shape: bf16[128,128], index: 3, kind: input, shape index: {}]
  %s4 = inlined_call_operand.vmem [shape: f32[512,128], index: 4, kind: output, shape index: {0}]
  %s5 = inlined_call_operand.vmem [shape: f32[1,2,128], index: 5, kind: output, shape index: {1}]
  %6 = xla_tuple %s4, %s5
  %s7 = sld [smem:[#allocation0]]
  $region34: #{bottleneck_v1b_pallas.6} parent=0
    _
  %s9 = ssub.s32 1, %s7
  %s10 = scalar_select 0, %s9, %s7
  // Predicated region
  $region2: #{bottleneck_v1b_pallas.6} parent=0 // pred_check
    _
  $region3: #{bottleneck_v1b_pallas.6} parent=0 // pred_check_branch
    %12 = sbr.rel (0) target = $region5
  $region4: #{bottleneck_v1b_pallas.6} parent=0 // pred_region
    _
  $region5: #{bottleneck_v1b_pallas.6} parent=0 // pred_fallthru
    _
  // Predicated region
  $region6: #{bottleneck_v1b_pallas.6} parent=0 // pred_check
    _
  $region7: #{bottleneck_v1b_pallas.6} parent=0 // pred_check_branch
    %14 = sbr.rel (0) target = $region9
  $region8: #{bottleneck_v1b_pallas.6} parent=0 // pred_region
    _
  $region9: #{bottleneck_v1b_pallas.6} parent=0 // pred_fallthru
    _
  // Predicated region
  $region10: #{bottleneck_v1b_pallas.6} parent=0 // pred_check
    _
  $region11: #{bottleneck_v1b_pallas.6} parent=0 // pred_check_branch
    %16 = sbr.rel (0) target = $region13
  $region12: #{bottleneck_v1b_pallas.6} parent=0 // pred_region
    _
  $region13: #{bottleneck_v1b_pallas.6} parent=0 // pred_fallthru
    _
  // Predicated region
  $region14: #{bottleneck_v1b_pallas.6} parent=0 // pred_check
    _
  $region15: #{bottleneck_v1b_pallas.6} parent=0 // pred_check_branch
    %18 = sbr.rel (0) target = $region17
  $region16: #{bottleneck_v1b_pallas.6} parent=0 // pred_region
    _
  $region17: #{bottleneck_v1b_pallas.6} parent=0 // pred_fallthru
    _
  %v20 = vld [vmem:[%s0] sm:$0xf]
  %v21 = vld [vmem:[%s0 + $0x4] sm:$0xf]
  %v22 = vld [vmem:[%s0 + $0x8] sm:$0xf]
  %v23 = vld [vmem:[%s0 + $0xc] sm:$0xf]
  %v24 = vld [vmem:[%s0 + $0x10] sm:$0xf]
  %v25 = vld [vmem:[%s0 + $0x14] sm:$0xf]
  %v26 = vld [vmem:[%s0 + $0x18] sm:$0xf]
  %v27 = vld [vmem:[%s0 + $0x1c] sm:$0xf]
  %v28 = vld [vmem:[%s0 + $0x20] sm:$0xf]
  %v29 = vld [vmem:[%s0 + $0x24] sm:$0xf]
  %v30 = vld [vmem:[%s0 + $0x28] sm:$0xf]
  %v31 = vld [vmem:[%s0 + $0x2c] sm:$0xf]
  %v32 = vld [vmem:[%s0 + $0x30] sm:$0xf]
  %v33 = vld [vmem:[%s0 + $0x34] sm:$0xf]
  %v34 = vld [vmem:[%s0 + $0x38] sm:$0xf]
  %v35 = vld [vmem:[%s0 + $0x3c] sm:$0xf]
  %v36 = vld [vmem:[%s0 + $0x40] sm:$0xf]
  %v37 = vld [vmem:[%s0 + $0x44] sm:$0xf]
  %v38 = vld [vmem:[%s0 + $0x48] sm:$0xf]
  %v39 = vld [vmem:[%s0 + $0x4c] sm:$0xf]
  %v40 = vld [vmem:[%s0 + $0x50] sm:$0xf]
  %v41 = vld [vmem:[%s0 + $0x54] sm:$0xf]
  %v42 = vld [vmem:[%s0 + $0x58] sm:$0xf]
  %v43 = vld [vmem:[%s0 + $0x5c] sm:$0xf]
  %v44 = vld [vmem:[%s0 + $0x60] sm:$0xf]
  %v45 = vld [vmem:[%s0 + $0x64] sm:$0xf]
  %v46 = vld [vmem:[%s0 + $0x68] sm:$0xf]
  %v47 = vld [vmem:[%s0 + $0x6c] sm:$0xf]
  %v48 = vld [vmem:[%s0 + $0x70] sm:$0xf]
  %v49 = vld [vmem:[%s0 + $0x74] sm:$0xf]
  %v50 = vld [vmem:[%s0 + $0x78] sm:$0xf]
  %v51 = vld [vmem:[%s0 + $0x7c] sm:$0xf]
  %v52 = vld [vmem:[%s0 + $0x80] sm:$0xf]
  %v53 = vld [vmem:[%s0 + $0x84] sm:$0xf]
  %v54 = vld [vmem:[%s0 + $0x88] sm:$0xf]
  %v55 = vld [vmem:[%s0 + $0x8c] sm:$0xf]
  %v56 = vld [vmem:[%s0 + $0x90] sm:$0xf]
  %v57 = vld [vmem:[%s0 + $0x94] sm:$0xf]
  %v58 = vld [vmem:[%s0 + $0x98] sm:$0xf]
  %v59 = vld [vmem:[%s0 + $0x9c] sm:$0xf]
  %v60 = vld [vmem:[%s0 + $0xa0] sm:$0xf]
  %v61 = vld [vmem:[%s0 + $0xa4] sm:$0xf]
  %v62 = vld [vmem:[%s0 + $0xa8] sm:$0xf]
  %v63 = vld [vmem:[%s0 + $0xac] sm:$0xf]
  %v64 = vld [vmem:[%s0 + $0xb0] sm:$0xf]
  %v65 = vld [vmem:[%s0 + $0xb4] sm:$0xf]
  %v66 = vld [vmem:[%s0 + $0xb8] sm:$0xf]
  %v67 = vld [vmem:[%s0 + $0xbc] sm:$0xf]
  %v68 = vld [vmem:[%s0 + $0xc0] sm:$0xf]
  %v69 = vld [vmem:[%s0 + $0xc4] sm:$0xf]
  %v70 = vld [vmem:[%s0 + $0xc8] sm:$0xf]
  %v71 = vld [vmem:[%s0 + $0xcc] sm:$0xf]
  %v72 = vld [vmem:[%s0 + $0xd0] sm:$0xf]
  %v73 = vld [vmem:[%s0 + $0xd4] sm:$0xf]
  %v74 = vld [vmem:[%s0 + $0xd8] sm:$0xf]
  %v75 = vld [vmem:[%s0 + $0xdc] sm:$0xf]
  %v76 = vld [vmem:[%s0 + $0xe0] sm:$0xf]
  %v77 = vld [vmem:[%s0 + $0xe4] sm:$0xf]
  %v78 = vld [vmem:[%s0 + $0xe8] sm:$0xf]
  %v79 = vld [vmem:[%s0 + $0xec] sm:$0xf]
  %v80 = vld [vmem:[%s0 + $0xf0] sm:$0xf]
  %v81 = vld [vmem:[%s0 + $0xf4] sm:$0xf]
  %v82 = vld [vmem:[%s0 + $0xf8] sm:$0xf]
  %v83 = vld [vmem:[%s0 + $0xfc] sm:$0xf]
  %v84 = vunpack.c.l.bf16 %v20
  %v85 = vunpack.c.l.bf16 %v21
  %v86 = vunpack.c.l.bf16 %v22
  %v87 = vunpack.c.l.bf16 %v23
  %v88 = vunpack.c.l.bf16 %v24
  %v89 = vunpack.c.l.bf16 %v25
  %v90 = vunpack.c.l.bf16 %v26
  %v91 = vunpack.c.l.bf16 %v27
  %v92 = vunpack.c.l.bf16 %v28
  %v93 = vunpack.c.l.bf16 %v29
  %v94 = vunpack.c.l.bf16 %v30
  %v95 = vunpack.c.l.bf16 %v31
  %v96 = vunpack.c.l.bf16 %v32
  %v97 = vunpack.c.l.bf16 %v33
  %v98 = vunpack.c.l.bf16 %v34
  %v99 = vunpack.c.l.bf16 %v35
  %v100 = vunpack.c.l.bf16 %v36
  %v101 = vunpack.c.l.bf16 %v37
  %v102 = vunpack.c.l.bf16 %v38
  %v103 = vunpack.c.l.bf16 %v39
  %v104 = vunpack.c.l.bf16 %v40
  %v105 = vunpack.c.l.bf16 %v41
  %v106 = vunpack.c.l.bf16 %v42
  %v107 = vunpack.c.l.bf16 %v43
  %v108 = vunpack.c.l.bf16 %v44
  %v109 = vunpack.c.l.bf16 %v45
  %v110 = vunpack.c.l.bf16 %v46
  %v111 = vunpack.c.l.bf16 %v47
  %v112 = vunpack.c.l.bf16 %v48
  %v113 = vunpack.c.l.bf16 %v49
  %v114 = vunpack.c.l.bf16 %v50
  %v115 = vunpack.c.l.bf16 %v51
  %v116 = vunpack.c.l.bf16 %v52
  %v117 = vunpack.c.l.bf16 %v53
  %v118 = vunpack.c.l.bf16 %v54
  %v119 = vunpack.c.l.bf16 %v55
  %v120 = vunpack.c.l.bf16 %v56
  %v121 = vunpack.c.l.bf16 %v57
  %v122 = vunpack.c.l.bf16 %v58
  %v123 = vunpack.c.l.bf16 %v59
  %v124 = vunpack.c.l.bf16 %v60
  %v125 = vunpack.c.l.bf16 %v61
  %v126 = vunpack.c.l.bf16 %v62
  %v127 = vunpack.c.l.bf16 %v63
  %v128 = vunpack.c.l.bf16 %v64
  %v129 = vunpack.c.l.bf16 %v65
  %v130 = vunpack.c.l.bf16 %v66
  %v131 = vunpack.c.l.bf16 %v67
  %v132 = vunpack.c.l.bf16 %v68
  %v133 = vunpack.c.l.bf16 %v69
  %v134 = vunpack.c.l.bf16 %v70
  %v135 = vunpack.c.l.bf16 %v71
  %v136 = vunpack.c.l.bf16 %v72
  %v137 = vunpack.c.l.bf16 %v73
  %v138 = vunpack.c.l.bf16 %v74
  %v139 = vunpack.c.l.bf16 %v75
  %v140 = vunpack.c.l.bf16 %v76
  %v141 = vunpack.c.l.bf16 %v77
  %v142 = vunpack.c.l.bf16 %v78
  %v143 = vunpack.c.l.bf16 %v79
  %v144 = vunpack.c.l.bf16 %v80
  %v145 = vunpack.c.l.bf16 %v81
  %v146 = vunpack.c.l.bf16 %v82
  %v147 = vunpack.c.l.bf16 %v83
  %v148 = vld [vmem:[%s1] sm:$0x1]
  %v150 = vlaneseq
  %v151 = vshrl.u32 %v150, 7
  %v152 = vsub.s32 0, %v151
  %v153 = vrot.slane %v148, %v152
  %v155 = vmul.f32 %v84, %v153
  %v156 = vmul.f32 %v85, %v153
  %v157 = vmul.f32 %v86, %v153
  %v158 = vmul.f32 %v87, %v153
  %v159 = vmul.f32 %v88, %v153
  %v160 = vmul.f32 %v89, %v153
  %v161 = vmul.f32 %v90, %v153
  %v162 = vmul.f32 %v91, %v153
  %v163 = vmul.f32 %v92, %v153
  %v164 = vmul.f32 %v93, %v153
  %v165 = vmul.f32 %v94, %v153
  %v166 = vmul.f32 %v95, %v153
  %v167 = vmul.f32 %v96, %v153
  %v168 = vmul.f32 %v97, %v153
  %v169 = vmul.f32 %v98, %v153
  %v170 = vmul.f32 %v99, %v153
  %v171 = vmul.f32 %v100, %v153
  %v172 = vmul.f32 %v101, %v153
  %v173 = vmul.f32 %v102, %v153
  %v174 = vmul.f32 %v103, %v153
  %v175 = vmul.f32 %v104, %v153
  %v176 = vmul.f32 %v105, %v153
  %v177 = vmul.f32 %v106, %v153
  %v178 = vmul.f32 %v107, %v153
  %v179 = vmul.f32 %v108, %v153
  %v180 = vmul.f32 %v109, %v153
  %v181 = vmul.f32 %v110, %v153
  %v182 = vmul.f32 %v111, %v153
  %v183 = vmul.f32 %v112, %v153
  %v184 = vmul.f32 %v113, %v153
  %v185 = vmul.f32 %v114, %v153
  %v186 = vmul.f32 %v115, %v153
  %v187 = vmul.f32 %v116, %v153
  %v188 = vmul.f32 %v117, %v153
  %v189 = vmul.f32 %v118, %v153
  %v190 = vmul.f32 %v119, %v153
  %v191 = vmul.f32 %v120, %v153
  %v192 = vmul.f32 %v121, %v153
  %v193 = vmul.f32 %v122, %v153
  %v194 = vmul.f32 %v123, %v153
  %v195 = vmul.f32 %v124, %v153
  %v196 = vmul.f32 %v125, %v153
  %v197 = vmul.f32 %v126, %v153
  %v198 = vmul.f32 %v127, %v153
  %v199 = vmul.f32 %v128, %v153
  %v200 = vmul.f32 %v129, %v153
  %v201 = vmul.f32 %v130, %v153
  %v202 = vmul.f32 %v131, %v153
  %v203 = vmul.f32 %v132, %v153
  %v204 = vmul.f32 %v133, %v153
  %v205 = vmul.f32 %v134, %v153
  %v206 = vmul.f32 %v135, %v153
  %v207 = vmul.f32 %v136, %v153
  %v208 = vmul.f32 %v137, %v153
  %v209 = vmul.f32 %v138, %v153
  %v210 = vmul.f32 %v139, %v153
  %v211 = vmul.f32 %v140, %v153
  %v212 = vmul.f32 %v141, %v153
  %v213 = vmul.f32 %v142, %v153
  %v214 = vmul.f32 %v143, %v153
  %v215 = vmul.f32 %v144, %v153
  %v216 = vmul.f32 %v145, %v153
  %v217 = vmul.f32 %v146, %v153
  %v218 = vmul.f32 %v147, %v153
  %v219 = vld [vmem:[%s2] sm:$0x1]
  %v221 = vlaneseq
  %v222 = vshrl.u32 %v221, 7
  %v223 = vsub.s32 0, %v222
  %v224 = vrot.slane %v219, %v223
  %v226 = vadd.f32 %v155, %v224
  %v227 = vadd.f32 %v156, %v224
  %v228 = vadd.f32 %v157, %v224
  %v229 = vadd.f32 %v158, %v224
  %v230 = vadd.f32 %v159, %v224
  %v231 = vadd.f32 %v160, %v224
  %v232 = vadd.f32 %v161, %v224
  %v233 = vadd.f32 %v162, %v224
  %v234 = vadd.f32 %v163, %v224
  %v235 = vadd.f32 %v164, %v224
  %v236 = vadd.f32 %v165, %v224
  %v237 = vadd.f32 %v166, %v224
  %v238 = vadd.f32 %v167, %v224
  %v239 = vadd.f32 %v168, %v224
  %v240 = vadd.f32 %v169, %v224
  %v241 = vadd.f32 %v170, %v224
  %v242 = vadd.f32 %v171, %v224
  %v243 = vadd.f32 %v172, %v224
  %v244 = vadd.f32 %v173, %v224
  %v245 = vadd.f32 %v174, %v224
  %v246 = vadd.f32 %v175, %v224
  %v247 = vadd.f32 %v176, %v224
  %v248 = vadd.f32 %v177, %v224
  %v249 = vadd.f32 %v178, %v224
  %v250 = vadd.f32 %v179, %v224
  %v251 = vadd.f32 %v180, %v224
  %v252 = vadd.f32 %v181, %v224
  %v253 = vadd.f32 %v182, %v224
  %v254 = vadd.f32 %v183, %v224
  %v255 = vadd.f32 %v184, %v224
  %v256 = vadd.f32 %v185, %v224
  %v257 = vadd.f32 %v186, %v224
  %v258 = vadd.f32 %v187, %v224
  %v259 = vadd.f32 %v188, %v224
  %v260 = vadd.f32 %v189, %v224
  %v261 = vadd.f32 %v190, %v224
  %v262 = vadd.f32 %v191, %v224
  %v263 = vadd.f32 %v192, %v224
  %v264 = vadd.f32 %v193, %v224
  %v265 = vadd.f32 %v194, %v224
  %v266 = vadd.f32 %v195, %v224
  %v267 = vadd.f32 %v196, %v224
  %v268 = vadd.f32 %v197, %v224
  %v269 = vadd.f32 %v198, %v224
  %v270 = vadd.f32 %v199, %v224
  %v271 = vadd.f32 %v200, %v224
  %v272 = vadd.f32 %v201, %v224
  %v273 = vadd.f32 %v202, %v224
  %v274 = vadd.f32 %v203, %v224
  %v275 = vadd.f32 %v204, %v224
  %v276 = vadd.f32 %v205, %v224
  %v277 = vadd.f32 %v206, %v224
  %v278 = vadd.f32 %v207, %v224
  %v279 = vadd.f32 %v208, %v224
  %v280 = vadd.f32 %v209, %v224
  %v281 = vadd.f32 %v210, %v224
  %v282 = vadd.f32 %v211, %v224
  %v283 = vadd.f32 %v212, %v224
  %v284 = vadd.f32 %v213, %v224
  %v285 = vadd.f32 %v214, %v224
  %v286 = vadd.f32 %v215, %v224
  %v287 = vadd.f32 %v216, %v224
  %v288 = vadd.f32 %v217, %v224
  %v289 = vadd.f32 %v218, %v224
  %v290 = vmax.f32 %v226, 0.0
  %v291 = vmax.f32 %v227, 0.0
  %v292 = vmax.f32 %v228, 0.0
  %v293 = vmax.f32 %v229, 0.0
  %v294 = vmax.f32 %v230, 0.0
  %v295 = vmax.f32 %v231, 0.0
  %v296 = vmax.f32 %v232, 0.0
  %v297 = vmax.f32 %v233, 0.0
  %v298 = vmax.f32 %v234, 0.0
  %v299 = vmax.f32 %v235, 0.0
  %v300 = vmax.f32 %v236, 0.0
  %v301 = vmax.f32 %v237, 0.0
  %v302 = vmax.f32 %v238, 0.0
  %v303 = vmax.f32 %v239, 0.0
  %v304 = vmax.f32 %v240, 0.0
  %v305 = vmax.f32 %v241, 0.0
  %v306 = vmax.f32 %v242, 0.0
  %v307 = vmax.f32 %v243, 0.0
  %v308 = vmax.f32 %v244, 0.0
  %v309 = vmax.f32 %v245, 0.0
  %v310 = vmax.f32 %v246, 0.0
  %v311 = vmax.f32 %v247, 0.0
  %v312 = vmax.f32 %v248, 0.0
  %v313 = vmax.f32 %v249, 0.0
  %v314 = vmax.f32 %v250, 0.0
  %v315 = vmax.f32 %v251, 0.0
  %v316 = vmax.f32 %v252, 0.0
  %v317 = vmax.f32 %v253, 0.0
  %v318 = vmax.f32 %v254, 0.0
  %v319 = vmax.f32 %v255, 0.0
  %v320 = vmax.f32 %v256, 0.0
  %v321 = vmax.f32 %v257, 0.0
  %v322 = vmax.f32 %v258, 0.0
  %v323 = vmax.f32 %v259, 0.0
  %v324 = vmax.f32 %v260, 0.0
  %v325 = vmax.f32 %v261, 0.0
  %v326 = vmax.f32 %v262, 0.0
  %v327 = vmax.f32 %v263, 0.0
  %v328 = vmax.f32 %v264, 0.0
  %v329 = vmax.f32 %v265, 0.0
  %v330 = vmax.f32 %v266, 0.0
  %v331 = vmax.f32 %v267, 0.0
  %v332 = vmax.f32 %v268, 0.0
  %v333 = vmax.f32 %v269, 0.0
  %v334 = vmax.f32 %v270, 0.0
  %v335 = vmax.f32 %v271, 0.0
  %v336 = vmax.f32 %v272, 0.0
  %v337 = vmax.f32 %v273, 0.0
  %v338 = vmax.f32 %v274, 0.0
  %v339 = vmax.f32 %v275, 0.0
  %v340 = vmax.f32 %v276, 0.0
  %v341 = vmax.f32 %v277, 0.0
  %v342 = vmax.f32 %v278, 0.0
  %v343 = vmax.f32 %v279, 0.0
  %v344 = vmax.f32 %v280, 0.0
  %v345 = vmax.f32 %v281, 0.0
  %v346 = vmax.f32 %v282, 0.0
  %v347 = vmax.f32 %v283, 0.0
  %v348 = vmax.f32 %v284, 0.0
  %v349 = vmax.f32 %v285, 0.0
  %v350 = vmax.f32 %v286, 0.0
  %v351 = vmax.f32 %v287, 0.0
  %v352 = vmax.f32 %v288, 0.0
  %v353 = vmax.f32 %v289, 0.0
  %v354 = vpack.c.bf16 %v291, %v290
  %v355 = vpack.c.bf16 %v293, %v292
  %v356 = vpack.c.bf16 %v295, %v294
  %v357 = vpack.c.bf16 %v297, %v296
  %v358 = vpack.c.bf16 %v299, %v298
  %v359 = vpack.c.bf16 %v301, %v300
  %v360 = vpack.c.bf16 %v303, %v302
  %v361 = vpack.c.bf16 %v305, %v304
  %v362 = vpack.c.bf16 %v307, %v306
  %v363 = vpack.c.bf16 %v309, %v308
  %v364 = vpack.c.bf16 %v311, %v310
  %v365 = vpack.c.bf16 %v313, %v312
  %v366 = vpack.c.bf16 %v315, %v314
  %v367 = vpack.c.bf16 %v317, %v316
  %v368 = vpack.c.bf16 %v319, %v318
  %v369 = vpack.c.bf16 %v321, %v320
  %v370 = vpack.c.bf16 %v323, %v322
  %v371 = vpack.c.bf16 %v325, %v324
  %v372 = vpack.c.bf16 %v327, %v326
  %v373 = vpack.c.bf16 %v329, %v328
  %v374 = vpack.c.bf16 %v331, %v330
  %v375 = vpack.c.bf16 %v333, %v332
  %v376 = vpack.c.bf16 %v335, %v334
  %v377 = vpack.c.bf16 %v337, %v336
  %v378 = vpack.c.bf16 %v339, %v338
  %v379 = vpack.c.bf16 %v341, %v340
  %v380 = vpack.c.bf16 %v343, %v342
  %v381 = vpack.c.bf16 %v345, %v344
  %v382 = vpack.c.bf16 %v347, %v346
  %v383 = vpack.c.bf16 %v349, %v348
  %v384 = vpack.c.bf16 %v351, %v350
  %v385 = vpack.c.bf16 %v353, %v352
  %v386 = vld [vmem:[%s3] sm:$0xf]
  %v387 = vld [vmem:[%s3 + $0x4] sm:$0xf]
  %v388 = vld [vmem:[%s3 + $0x8] sm:$0xf]
  %v389 = vld [vmem:[%s3 + $0xc] sm:$0xf]
  %v390 = vld [vmem:[%s3 + $0x10] sm:$0xf]
  %v391 = vld [vmem:[%s3 + $0x14] sm:$0xf]
  %v392 = vld [vmem:[%s3 + $0x18] sm:$0xf]
  %v393 = vld [vmem:[%s3 + $0x1c] sm:$0xf]
  %v394 = vld [vmem:[%s3 + $0x20] sm:$0xf]
  %v395 = vld [vmem:[%s3 + $0x24] sm:$0xf]
  %v396 = vld [vmem:[%s3 + $0x28] sm:$0xf]
  %v397 = vld [vmem:[%s3 + $0x2c] sm:$0xf]
  %v398 = vld [vmem:[%s3 + $0x30] sm:$0xf]
  %v399 = vld [vmem:[%s3 + $0x34] sm:$0xf]
  %v400 = vld [vmem:[%s3 + $0x38] sm:$0xf]
  %v401 = vld [vmem:[%s3 + $0x3c] sm:$0xf]
  %v418 = vunpack.c.l.b16 %v386
  %v419 = vunpack.c.l.b16 %v387
  %v420 = vunpack.c.l.b16 %v388
  %v421 = vunpack.c.l.b16 %v389
  %v422 = vunpack.c.l.b16 %v390
  %v423 = vunpack.c.l.b16 %v391
  %v424 = vunpack.c.l.b16 %v392
  %v425 = vunpack.c.l.b16 %v393
  %v426 = vunpack.c.l.b16 %v394
  %v427 = vunpack.c.l.b16 %v395
  %v428 = vunpack.c.l.b16 %v396
  %v429 = vunpack.c.l.b16 %v397
  %v430 = vunpack.c.l.b16 %v398
  %v431 = vunpack.c.l.b16 %v399
  %v432 = vunpack.c.l.b16 %v400
  %v433 = vunpack.c.l.b16 %v401
  %v434 = vpack.c.b16 %v419, %v418
  %v435 = vpack.c.b16 %v421, %v420
  %v436 = vpack.c.b16 %v423, %v422
  %v437 = vpack.c.b16 %v425, %v424
  %v438 = vpack.c.b16 %v427, %v426
  %v439 = vpack.c.b16 %v429, %v428
  %v440 = vpack.c.b16 %v431, %v430
  %v441 = vpack.c.b16 %v433, %v432
  %450 = vmatprep.subr.bf16.mxu0 0
  %451 = vmatpush1.bf16.msra.mxu0 %v434
  %452 = vmatprep.subr.bf16.mxu0 0
  %453 = vmatpush1.bf16.msra.mxu0 %v435
  %454 = vmatprep.subr.bf16.mxu0 0
  %455 = vmatpush1.bf16.msra.mxu0 %v436
  %456 = vmatprep.subr.bf16.mxu0 0
  %457 = vmatpush1.bf16.msra.mxu0 %v437
  %458 = vmatprep.subr.bf16.mxu0 0
  %459 = vmatpush1.bf16.msra.mxu0 %v438
  %460 = vmatprep.subr.bf16.mxu0 0
  %461 = vmatpush1.bf16.msra.mxu0 %v439
  %462 = vmatprep.subr.bf16.mxu0 0
  %463 = vmatpush1.bf16.msra.mxu0 %v440
  %464 = vmatprep.subr.bf16.mxu0 0
  %465 = vmatpush1.bf16.msra.mxu0 %v441
  %466 = vmatprep.subr.bf16.mxu0 0
  %467 = vmatpush1.bf16.msra.mxu0 0
  %468 = vmatprep.subr.bf16.mxu0 0
  %469 = vmatpush1.bf16.msra.mxu0 0
  %470 = vmatprep.subr.bf16.mxu0 0
  %471 = vmatpush1.bf16.msra.mxu0 0
  %472 = vmatprep.subr.bf16.mxu0 0
  %473 = vmatpush1.bf16.msra.mxu0 0
  %474 = vmatprep.subr.bf16.mxu0 0
  %475 = vmatpush1.bf16.msra.mxu0 0
  %476 = vmatprep.subr.bf16.mxu0 0
  %477 = vmatpush1.bf16.msra.mxu0 0
  %478 = vmatprep.subr.bf16.mxu0 0
  %479 = vmatpush1.bf16.msra.mxu0 0
  %480 = vmatprep.subr.bf16.mxu0 0
  %481 = vmatpush1.bf16.msra.mxu0 0
  %482 = vmatprep.mubr.bf16.mxu0 0
  %483 = vmatmul.mubr.bf16.gmra.mrb[0].mxu0 %v354
  %v484 = vpop.f32.mrb[0].mxu0
  %v485 = vadd.f32 0.0, %v484
  %v486 = vpop.f32.mrb[0].mxu0
  %v487 = vpop.f32.mrb[0].mxu0
  %v488 = vadd.f32 0.0, %v487
  %v489 = vpop.f32.mrb[0].mxu0
  %490 = vmatprep.mubr.bf16.mxu0 0
  %491 = vmatmul.mubr.bf16.gmra.mrb[0].mxu0 %v355
  %v492 = vpop.f32.mrb[0].mxu0
  %v493 = vadd.f32 0.0, %v492
  %v494 = vpop.f32.mrb[0].mxu0
  %v495 = vpop.f32.mrb[0].mxu0
  %v496 = vadd.f32 0.0, %v495
  %v497 = vpop.f32.mrb[0].mxu0
  %498 = vmatprep.mubr.bf16.mxu0 0
  %499 = vmatmul.mubr.bf16.gmra.mrb[0].mxu0 %v356
  %v500 = vpop.f32.mrb[0].mxu0
  %v501 = vadd.f32 0.0, %v500
  %v502 = vpop.f32.mrb[0].mxu0
  %v503 = vpop.f32.mrb[0].mxu0
  %v504 = vadd.f32 0.0, %v503
  %v505 = vpop.f32.mrb[0].mxu0
  %506 = vmatprep.mubr.bf16.mxu0 0
  %507 = vmatmul.mubr.bf16.gmra.mrb[0].mxu0 %v357
  %v508 = vpop.f32.mrb[0].mxu0
  %v509 = vadd.f32 0.0, %v508
  %v510 = vpop.f32.mrb[0].mxu0
  %v511 = vpop.f32.mrb[0].mxu0
  %v512 = vadd.f32 0.0, %v511
  %v513 = vpop.f32.mrb[0].mxu0
  %514 = vmatprep.mubr.bf16.mxu0 0
  %515 = vmatmul.mubr.bf16.gmra.mrb[0].mxu0 %v358
  %v516 = vpop.f32.mrb[0].mxu0
  %v517 = vadd.f32 0.0, %v516
  %v518 = vpop.f32.mrb[0].mxu0
  %v519 = vpop.f32.mrb[0].mxu0
  %v520 = vadd.f32 0.0, %v519
  %v521 = vpop.f32.mrb[0].mxu0
  %522 = vmatprep.mubr.bf16.mxu0 0
  %523 = vmatmul.mubr.bf16.gmra.mrb[0].mxu0 %v359
  %v524 = vpop.f32.mrb[0].mxu0
  %v525 = vadd.f32 0.0, %v524
  %v526 = vpop.f32.mrb[0].mxu0
  %v527 = vpop.f32.mrb[0].mxu0
  %v528 = vadd.f32 0.0, %v527
  %v529 = vpop.f32.mrb[0].mxu0
  %530 = vmatprep.mubr.bf16.mxu0 0
  %531 = vmatmul.mubr.bf16.gmra.mrb[0].mxu0 %v360
  %v532 = vpop.f32.mrb[0].mxu0
  %v533 = vadd.f32 0.0, %v532
  %v534 = vpop.f32.mrb[0].mxu0
  %v535 = vpop.f32.mrb[0].mxu0
  %v536 = vadd.f32 0.0, %v535
  %v537 = vpop.f32.mrb[0].mxu0
  %538 = vmatprep.mubr.bf16.mxu0 0
  %539 = vmatmul.mubr.bf16.gmra.mrb[0].mxu0 %v361
  %v540 = vpop.f32.mrb[0].mxu0
  %v541 = vadd.f32 0.0, %v540
  %v542 = vpop.f32.mrb[0].mxu0
  %v543 = vpop.f32.mrb[0].mxu0
  %v544 = vadd.f32 0.0, %v543
  %v545 = vpop.f32.mrb[0].mxu0
  %546 = vmatprep.mubr.bf16.mxu0 0
  %547 = vmatmul.mubr.bf16.gmra.mrb[0].mxu0 %v362
  %v548 = vpop.f32.mrb[0].mxu0
  %v549 = vadd.f32 0.0, %v548
  %v550 = vpop.f32.mrb[0].mxu0
  %v551 = vpop.f32.mrb[0].mxu0
  %v552 = vadd.f32 0.0, %v551
  %v553 = vpop.f32.mrb[0].mxu0
  %554 = vmatprep.mubr.bf16.mxu0 0
  %555 = vmatmul.mubr.bf16.gmra.mrb[0].mxu0 %v363
  %v556 = vpop.f32.mrb[0].mxu0
  %v557 = vadd.f32 0.0, %v556
  %v558 = vpop.f32.mrb[0].mxu0
  %v559 = vpop.f32.mrb[0].mxu0
  %v560 = vadd.f32 0.0, %v559
  %v561 = vpop.f32.mrb[0].mxu0
  %562 = vmatprep.mubr.bf16.mxu0 0
  %563 = vmatmul.mubr.bf16.gmra.mrb[0].mxu0 %v364
  %v564 = vpop.f32.mrb[0].mxu0
  %v565 = vadd.f32 0.0, %v564
  %v566 = vpop.f32.mrb[0].mxu0
  %v567 = vpop.f32.mrb[0].mxu0
  %v568 = vadd.f32 0.0, %v567
  %v569 = vpop.f32.mrb[0].mxu0
  %570 = vmatprep.mubr.bf16.mxu0 0
  %571 = vmatmul.mubr.bf16.gmra.mrb[0].mxu0 %v365
  %v572 = vpop.f32.mrb[0].mxu0
  %v573 = vadd.f32 0.0, %v572
  %v574 = vpop.f32.mrb[0].mxu0
  %v575 = vpop.f32.mrb[0].mxu0
  %v576 = vadd.f32 0.0, %v575
  %v577 = vpop.f32.mrb[0].mxu0
  %578 = vmatprep.mubr.bf16.mxu0 0
  %579 = vmatmul.mubr.bf16.gmra.mrb[0].mxu0 %v366
  %v580 = vpop.f32.mrb[0].mxu0
  %v581 = vadd.f32 0.0, %v580
  %v582 = vpop.f32.mrb[0].mxu0
  %v583 = vpop.f32.mrb[0].mxu0
  %v584 = vadd.f32 0.0, %v583
  %v585 = vpop.f32.mrb[0].mxu0
  %586 = vmatprep.mubr.bf16.mxu0 0
  %587 = vmatmul.mubr.bf16.gmra.mrb[0].mxu0 %v367
  %v588 = vpop.f32.mrb[0].mxu0
  %v589 = vadd.f32 0.0, %v588
  %v590 = vpop.f32.mrb[0].mxu0
  %v591 = vpop.f32.mrb[0].mxu0
  %v592 = vadd.f32 0.0, %v591
  %v593 = vpop.f32.mrb[0].mxu0
  %594 = vmatprep.mubr.bf16.mxu0 0
  %595 = vmatmul.mubr.bf16.gmra.mrb[0].mxu0 %v368
  %v596 = vpop.f32.mrb[0].mxu0
  %v597 = vadd.f32 0.0, %v596
  %v598 = vpop.f32.mrb[0].mxu0
  %v599 = vpop.f32.mrb[0].mxu0
  %v600 = vadd.f32 0.0, %v599
  %v601 = vpop.f32.mrb[0].mxu0
  %602 = vmatprep.mubr.bf16.mxu0 0
  %603 = vmatmul.mubr.bf16.gmra.mrb[0].mxu0 %v369
  %v604 = vpop.f32.mrb[0].mxu0
  %v605 = vadd.f32 0.0, %v604
  %v606 = vpop.f32.mrb[0].mxu0
  %v607 = vpop.f32.mrb[0].mxu0
  %v608 = vadd.f32 0.0, %v607
  %v609 = vpop.f32.mrb[0].mxu0
  %610 = vmatprep.mubr.bf16.mxu0 0
  %611 = vmatmul.mubr.bf16.gmra.mrb[0].mxu0 %v370
  %v612 = vpop.f32.mrb[0].mxu0
  %v613 = vadd.f32 0.0, %v612
  %v614 = vpop.f32.mrb[0].mxu0
  %v615 = vpop.f32.mrb[0].mxu0
  %v616 = vadd.f32 0.0, %v615
  %v617 = vpop.f32.mrb[0].mxu0
  %618 = vmatprep.mubr.bf16.mxu0 0
  %619 = vmatmul.mubr.bf16.gmra.mrb[0].mxu0 %v371
  %v620 = vpop.f32.mrb[0].mxu0
  %v621 = vadd.f32 0.0, %v620
  %v622 = vpop.f32.mrb[0].mxu0
  %v623 = vpop.f32.mrb[0].mxu0
  %v624 = vadd.f32 0.0, %v623
  %v625 = vpop.f32.mrb[0].mxu0
  %626 = vmatprep.mubr.bf16.mxu0 0
  %627 = vmatmul.mubr.bf16.gmra.mrb[0].mxu0 %v372
  %v628 = vpop.f32.mrb[0].mxu0
  %v629 = vadd.f32 0.0, %v628
  %v630 = vpop.f32.mrb[0].mxu0
  %v631 = vpop.f32.mrb[0].mxu0
  %v632 = vadd.f32 0.0, %v631
  %v633 = vpop.f32.mrb[0].mxu0
  %634 = vmatprep.mubr.bf16.mxu0 0
  %635 = vmatmul.mubr.bf16.gmra.mrb[0].mxu0 %v373
  %v636 = vpop.f32.mrb[0].mxu0
  %v637 = vadd.f32 0.0, %v636
  %v638 = vpop.f32.mrb[0].mxu0
  %v639 = vpop.f32.mrb[0].mxu0
  %v640 = vadd.f32 0.0, %v639
  %v641 = vpop.f32.mrb[0].mxu0
  %642 = vmatprep.mubr.bf16.mxu0 0
  %643 = vmatmul.mubr.bf16.gmra.mrb[0].mxu0 %v374
  %v644 = vpop.f32.mrb[0].mxu0
  %v645 = vadd.f32 0.0, %v644
  %v646 = vpop.f32.mrb[0].mxu0
  %v647 = vpop.f32.mrb[0].mxu0
  %v648 = vadd.f32 0.0, %v647
  %v649 = vpop.f32.mrb[0].mxu0
  %650 = vmatprep.mubr.bf16.mxu0 0
  %651 = vmatmul.mubr.bf16.gmra.mrb[0].mxu0 %v375
  %v652 = vpop.f32.mrb[0].mxu0
  %v653 = vadd.f32 0.0, %v652
  %v654 = vpop.f32.mrb[0].mxu0
  %v655 = vpop.f32.mrb[0].mxu0
  %v656 = vadd.f32 0.0, %v655
  %v657 = vpop.f32.mrb[0].mxu0
  %658 = vmatprep.mubr.bf16.mxu0 0
  %659 = vmatmul.mubr.bf16.gmra.mrb[0].mxu0 %v376
  %v660 = vpop.f32.mrb[0].mxu0
  %v661 = vadd.f32 0.0, %v660
  %v662 = vpop.f32.mrb[0].mxu0
  %v663 = vpop.f32.mrb[0].mxu0
  %v664 = vadd.f32 0.0, %v663
  %v665 = vpop.f32.mrb[0].mxu0
  %666 = vmatprep.mubr.bf16.mxu0 0
  %667 = vmatmul.mubr.bf16.gmra.mrb[0].mxu0 %v377
  %v668 = vpop.f32.mrb[0].mxu0
  %v669 = vadd.f32 0.0, %v668
  %v670 = vpop.f32.mrb[0].mxu0
  %v671 = vpop.f32.mrb[0].mxu0
  %v672 = vadd.f32 0.0, %v671
  %v673 = vpop.f32.mrb[0].mxu0
  %674 = vmatprep.mubr.bf16.mxu0 0
  %675 = vmatmul.mubr.bf16.gmra.mrb[0].mxu0 %v378
  %v676 = vpop.f32.mrb[0].mxu0
  %v677 = vadd.f32 0.0, %v676
  %v678 = vpop.f32.mrb[0].mxu0
  %v679 = vpop.f32.mrb[0].mxu0
  %v680 = vadd.f32 0.0, %v679
  %v681 = vpop.f32.mrb[0].mxu0
  %682 = vmatprep.mubr.bf16.mxu0 0
  %683 = vmatmul.mubr.bf16.gmra.mrb[0].mxu0 %v379
  %v684 = vpop.f32.mrb[0].mxu0
  %v685 = vadd.f32 0.0, %v684
  %v686 = vpop.f32.mrb[0].mxu0
  %v687 = vpop.f32.mrb[0].mxu0
  %v688 = vadd.f32 0.0, %v687
  %v689 = vpop.f32.mrb[0].mxu0
  %690 = vmatprep.mubr.bf16.mxu0 0
  %691 = vmatmul.mubr.bf16.gmra.mrb[0].mxu0 %v380
  %v692 = vpop.f32.mrb[0].mxu0
  %v693 = vadd.f32 0.0, %v692
  %v694 = vpop.f32.mrb[0].mxu0
  %v695 = vpop.f32.mrb[0].mxu0
  %v696 = vadd.f32 0.0, %v695
  %v697 = vpop.f32.mrb[0].mxu0
  %698 = vmatprep.mubr.bf16.mxu0 0
  %699 = vmatmul.mubr.bf16.gmra.mrb[0].mxu0 %v381
  %v700 = vpop.f32.mrb[0].mxu0
  %v701 = vadd.f32 0.0, %v700
  %v702 = vpop.f32.mrb[0].mxu0
  %v703 = vpop.f32.mrb[0].mxu0
  %v704 = vadd.f32 0.0, %v703
  %v705 = vpop.f32.mrb[0].mxu0
  %706 = vmatprep.mubr.bf16.mxu0 0
  %707 = vmatmul.mubr.bf16.gmra.mrb[0].mxu0 %v382
  %v708 = vpop.f32.mrb[0].mxu0
  %v709 = vadd.f32 0.0, %v708
  %v710 = vpop.f32.mrb[0].mxu0
  %v711 = vpop.f32.mrb[0].mxu0
  %v712 = vadd.f32 0.0, %v711
  %v713 = vpop.f32.mrb[0].mxu0
  %714 = vmatprep.mubr.bf16.mxu0 0
  %715 = vmatmul.mubr.bf16.gmra.mrb[0].mxu0 %v383
  %v716 = vpop.f32.mrb[0].mxu0
  %v717 = vadd.f32 0.0, %v716
  %v718 = vpop.f32.mrb[0].mxu0
  %v719 = vpop.f32.mrb[0].mxu0
  %v720 = vadd.f32 0.0, %v719
  %v721 = vpop.f32.mrb[0].mxu0
  %722 = vmatprep.mubr.bf16.mxu0 0
  %723 = vmatmul.mubr.bf16.gmra.mrb[0].mxu0 %v384
  %v724 = vpop.f32.mrb[0].mxu0
  %v725 = vadd.f32 0.0, %v724
  %v726 = vpop.f32.mrb[0].mxu0
  %v727 = vpop.f32.mrb[0].mxu0
  %v728 = vadd.f32 0.0, %v727
  %v729 = vpop.f32.mrb[0].mxu0
  %730 = vmatprep.mubr.bf16.mxu0 0
  %731 = vmatmul.mubr.bf16.gmra.mrb[0].mxu0 %v385
  %v732 = vpop.f32.mrb[0].mxu0
  %v733 = vadd.f32 0.0, %v732
  %v734 = vpop.f32.mrb[0].mxu0
  %v735 = vpop.f32.mrb[0].mxu0
  %v736 = vadd.f32 0.0, %v735
  %v737 = vpop.f32.mrb[0].mxu0
  %738 = vdwg.mxu0
  %739 = vst [vmem:[%s4] sm:$0xff] %v485
  %740 = vst [vmem:[%s4 + $0x8] sm:$0xff] %v488
  %741 = vst [vmem:[%s4 + $0x10] sm:$0xff] %v493
  %742 = vst [vmem:[%s4 + $0x18] sm:$0xff] %v496
  %743 = vst [vmem:[%s4 + $0x20] sm:$0xff] %v501
  %744 = vst [vmem:[%s4 + $0x28] sm:$0xff] %v504
  %745 = vst [vmem:[%s4 + $0x30] sm:$0xff] %v509
  %746 = vst [vmem:[%s4 + $0x38] sm:$0xff] %v512
  %747 = vst [vmem:[%s4 + $0x40] sm:$0xff] %v517
  %748 = vst [vmem:[%s4 + $0x48] sm:$0xff] %v520
  %749 = vst [vmem:[%s4 + $0x50] sm:$0xff] %v525
  %750 = vst [vmem:[%s4 + $0x58] sm:$0xff] %v528
  %751 = vst [vmem:[%s4 + $0x60] sm:$0xff] %v533
  %752 = vst [vmem:[%s4 + $0x68] sm:$0xff] %v536
  %753 = vst [vmem:[%s4 + $0x70] sm:$0xff] %v541
  %754 = vst [vmem:[%s4 + $0x78] sm:$0xff] %v544
  %755 = vst [vmem:[%s4 + $0x80] sm:$0xff] %v549
  %756 = vst [vmem:[%s4 + $0x88] sm:$0xff] %v552
  %757 = vst [vmem:[%s4 + $0x90] sm:$0xff] %v557
  %758 = vst [vmem:[%s4 + $0x98] sm:$0xff] %v560
  %759 = vst [vmem:[%s4 + $0xa0] sm:$0xff] %v565
  %760 = vst [vmem:[%s4 + $0xa8] sm:$0xff] %v568
  %761 = vst [vmem:[%s4 + $0xb0] sm:$0xff] %v573
  %762 = vst [vmem:[%s4 + $0xb8] sm:$0xff] %v576
  %763 = vst [vmem:[%s4 + $0xc0] sm:$0xff] %v581
  %764 = vst [vmem:[%s4 + $0xc8] sm:$0xff] %v584
  %765 = vst [vmem:[%s4 + $0xd0] sm:$0xff] %v589
  %766 = vst [vmem:[%s4 + $0xd8] sm:$0xff] %v592
  %767 = vst [vmem:[%s4 + $0xe0] sm:$0xff] %v597
  %768 = vst [vmem:[%s4 + $0xe8] sm:$0xff] %v600
  %769 = vst [vmem:[%s4 + $0xf0] sm:$0xff] %v605
  %770 = vst [vmem:[%s4 + $0xf8] sm:$0xff] %v608
  %771 = vst [vmem:[%s4 + $0x100] sm:$0xff] %v613
  %772 = vst [vmem:[%s4 + $0x108] sm:$0xff] %v616
  %773 = vst [vmem:[%s4 + $0x110] sm:$0xff] %v621
  %774 = vst [vmem:[%s4 + $0x118] sm:$0xff] %v624
  %775 = vst [vmem:[%s4 + $0x120] sm:$0xff] %v629
  %776 = vst [vmem:[%s4 + $0x128] sm:$0xff] %v632
  %777 = vst [vmem:[%s4 + $0x130] sm:$0xff] %v637
  %778 = vst [vmem:[%s4 + $0x138] sm:$0xff] %v640
  %779 = vst [vmem:[%s4 + $0x140] sm:$0xff] %v645
  %780 = vst [vmem:[%s4 + $0x148] sm:$0xff] %v648
  %781 = vst [vmem:[%s4 + $0x150] sm:$0xff] %v653
  %782 = vst [vmem:[%s4 + $0x158] sm:$0xff] %v656
  %783 = vst [vmem:[%s4 + $0x160] sm:$0xff] %v661
  %784 = vst [vmem:[%s4 + $0x168] sm:$0xff] %v664
  %785 = vst [vmem:[%s4 + $0x170] sm:$0xff] %v669
  %786 = vst [vmem:[%s4 + $0x178] sm:$0xff] %v672
  %787 = vst [vmem:[%s4 + $0x180] sm:$0xff] %v677
  %788 = vst [vmem:[%s4 + $0x188] sm:$0xff] %v680
  %789 = vst [vmem:[%s4 + $0x190] sm:$0xff] %v685
  %790 = vst [vmem:[%s4 + $0x198] sm:$0xff] %v688
  %791 = vst [vmem:[%s4 + $0x1a0] sm:$0xff] %v693
  %792 = vst [vmem:[%s4 + $0x1a8] sm:$0xff] %v696
  %793 = vst [vmem:[%s4 + $0x1b0] sm:$0xff] %v701
  %794 = vst [vmem:[%s4 + $0x1b8] sm:$0xff] %v704
  %795 = vst [vmem:[%s4 + $0x1c0] sm:$0xff] %v709
  %796 = vst [vmem:[%s4 + $0x1c8] sm:$0xff] %v712
  %797 = vst [vmem:[%s4 + $0x1d0] sm:$0xff] %v717
  %798 = vst [vmem:[%s4 + $0x1d8] sm:$0xff] %v720
  %799 = vst [vmem:[%s4 + $0x1e0] sm:$0xff] %v725
  %800 = vst [vmem:[%s4 + $0x1e8] sm:$0xff] %v728
  %801 = vst [vmem:[%s4 + $0x1f0] sm:$0xff] %v733
  %802 = vst [vmem:[%s4 + $0x1f8] sm:$0xff] %v736
  %v803 = vadd.f32 %v485, %v488
  %v804 = vadd.f32 %v803, %v493
  %v805 = vadd.f32 %v804, %v496
  %v806 = vadd.f32 %v805, %v501
  %v807 = vadd.f32 %v806, %v504
  %v808 = vadd.f32 %v807, %v509
  %v809 = vadd.f32 %v808, %v512
  %v810 = vadd.f32 %v809, %v517
  %v811 = vadd.f32 %v810, %v520
  %v812 = vadd.f32 %v811, %v525
  %v813 = vadd.f32 %v812, %v528
  %v814 = vadd.f32 %v813, %v533
  %v815 = vadd.f32 %v814, %v536
  %v816 = vadd.f32 %v815, %v541
  %v817 = vadd.f32 %v816, %v544
  %v818 = vadd.f32 %v817, %v549
  %v819 = vadd.f32 %v818, %v552
  %v820 = vadd.f32 %v819, %v557
  %v821 = vadd.f32 %v820, %v560
  %v822 = vadd.f32 %v821, %v565
  %v823 = vadd.f32 %v822, %v568
  %v824 = vadd.f32 %v823, %v573
  %v825 = vadd.f32 %v824, %v576
  %v826 = vadd.f32 %v825, %v581
  %v827 = vadd.f32 %v826, %v584
  %v828 = vadd.f32 %v827, %v589
  %v829 = vadd.f32 %v828, %v592
  %v830 = vadd.f32 %v829, %v597
  %v831 = vadd.f32 %v830, %v600
  %v832 = vadd.f32 %v831, %v605
  %v833 = vadd.f32 %v832, %v608
  %v834 = vadd.f32 %v833, %v613
  %v835 = vadd.f32 %v834, %v616
  %v836 = vadd.f32 %v835, %v621
  %v837 = vadd.f32 %v836, %v624
  %v838 = vadd.f32 %v837, %v629
  %v839 = vadd.f32 %v838, %v632
  %v840 = vadd.f32 %v839, %v637
  %v841 = vadd.f32 %v840, %v640
  %v842 = vadd.f32 %v841, %v645
  %v843 = vadd.f32 %v842, %v648
  %v844 = vadd.f32 %v843, %v653
  %v845 = vadd.f32 %v844, %v656
  %v846 = vadd.f32 %v845, %v661
  %v847 = vadd.f32 %v846, %v664
  %v848 = vadd.f32 %v847, %v669
  %v849 = vadd.f32 %v848, %v672
  %v850 = vadd.f32 %v849, %v677
  %v851 = vadd.f32 %v850, %v680
  %v852 = vadd.f32 %v851, %v685
  %v853 = vadd.f32 %v852, %v688
  %v854 = vadd.f32 %v853, %v693
  %v855 = vadd.f32 %v854, %v696
  %v856 = vadd.f32 %v855, %v701
  %v857 = vadd.f32 %v856, %v704
  %v858 = vadd.f32 %v857, %v709
  %v859 = vadd.f32 %v858, %v712
  %v860 = vadd.f32 %v859, %v717
  %v861 = vadd.f32 %v860, %v720
  %v862 = vadd.f32 %v861, %v725
  %v863 = vadd.f32 %v862, %v728
  %v864 = vadd.f32 %v863, %v733
  %v865 = vadd.f32 %v864, %v736
  %v866 = vrot.slane %v865, 4
  %v867 = vadd.f32 %v865, %v866
  %v868 = vrot.slane %v867, 2
  %v869 = vadd.f32 %v867, %v868
  %v870 = vrot.slane %v869, 1
  %v871 = vadd.f32 %v869, %v870
  %v872 = vmul.f32 %v871, 0.001953125
  %v873 = vsub.f32 %v485, %v872
  %v874 = vsub.f32 %v488, %v872
  %v875 = vsub.f32 %v493, %v872
  %v876 = vsub.f32 %v496, %v872
  %v877 = vsub.f32 %v501, %v872
  %v878 = vsub.f32 %v504, %v872
  %v879 = vsub.f32 %v509, %v872
  %v880 = vsub.f32 %v512, %v872
  %v881 = vsub.f32 %v517, %v872
  %v882 = vsub.f32 %v520, %v872
  %v883 = vsub.f32 %v525, %v872
  %v884 = vsub.f32 %v528, %v872
  %v885 = vsub.f32 %v533, %v872
  %v886 = vsub.f32 %v536, %v872
  %v887 = vsub.f32 %v541, %v872
  %v888 = vsub.f32 %v544, %v872
  %v889 = vsub.f32 %v549, %v872
  %v890 = vsub.f32 %v552, %v872
  %v891 = vsub.f32 %v557, %v872
  %v892 = vsub.f32 %v560, %v872
  %v893 = vsub.f32 %v565, %v872
  %v894 = vsub.f32 %v568, %v872
  %v895 = vsub.f32 %v573, %v872
  %v896 = vsub.f32 %v576, %v872
  %v897 = vsub.f32 %v581, %v872
  %v898 = vsub.f32 %v584, %v872
  %v899 = vsub.f32 %v589, %v872
  %v900 = vsub.f32 %v592, %v872
  %v901 = vsub.f32 %v597, %v872
  %v902 = vsub.f32 %v600, %v872
  %v903 = vsub.f32 %v605, %v872
  %v904 = vsub.f32 %v608, %v872
  %v905 = vsub.f32 %v613, %v872
  %v906 = vsub.f32 %v616, %v872
  %v907 = vsub.f32 %v621, %v872
  %v908 = vsub.f32 %v624, %v872
  %v909 = vsub.f32 %v629, %v872
  %v910 = vsub.f32 %v632, %v872
  %v911 = vsub.f32 %v637, %v872
  %v912 = vsub.f32 %v640, %v872
  %v913 = vsub.f32 %v645, %v872
  %v914 = vsub.f32 %v648, %v872
  %v915 = vsub.f32 %v653, %v872
  %v916 = vsub.f32 %v656, %v872
  %v917 = vsub.f32 %v661, %v872
  %v918 = vsub.f32 %v664, %v872
  %v919 = vsub.f32 %v669, %v872
  %v920 = vsub.f32 %v672, %v872
  %v921 = vsub.f32 %v677, %v872
  %v922 = vsub.f32 %v680, %v872
  %v923 = vsub.f32 %v685, %v872
  %v924 = vsub.f32 %v688, %v872
  %v925 = vsub.f32 %v693, %v872
  %v926 = vsub.f32 %v696, %v872
  %v927 = vsub.f32 %v701, %v872
  %v928 = vsub.f32 %v704, %v872
  %v929 = vsub.f32 %v709, %v872
  %v930 = vsub.f32 %v712, %v872
  %v931 = vsub.f32 %v717, %v872
  %v932 = vsub.f32 %v720, %v872
  %v933 = vsub.f32 %v725, %v872
  %v934 = vsub.f32 %v728, %v872
  %v935 = vsub.f32 %v733, %v872
  %v936 = vsub.f32 %v736, %v872
  %v937 = vmul.f32 %v873, %v873
  %v938 = vmul.f32 %v874, %v874
  %v939 = vmul.f32 %v875, %v875
  %v940 = vmul.f32 %v876, %v876
  %v941 = vmul.f32 %v877, %v877
  %v942 = vmul.f32 %v878, %v878
  %v943 = vmul.f32 %v879, %v879
  %v944 = vmul.f32 %v880, %v880
  %v945 = vmul.f32 %v881, %v881
  %v946 = vmul.f32 %v882, %v882
  %v947 = vmul.f32 %v883, %v883
  %v948 = vmul.f32 %v884, %v884
  %v949 = vmul.f32 %v885, %v885
  %v950 = vmul.f32 %v886, %v886
  %v951 = vmul.f32 %v887, %v887
  %v952 = vmul.f32 %v888, %v888
  %v953 = vmul.f32 %v889, %v889
  %v954 = vmul.f32 %v890, %v890
  %v955 = vmul.f32 %v891, %v891
  %v956 = vmul.f32 %v892, %v892
  %v957 = vmul.f32 %v893, %v893
  %v958 = vmul.f32 %v894, %v894
  %v959 = vmul.f32 %v895, %v895
  %v960 = vmul.f32 %v896, %v896
  %v961 = vmul.f32 %v897, %v897
  %v962 = vmul.f32 %v898, %v898
  %v963 = vmul.f32 %v899, %v899
  %v964 = vmul.f32 %v900, %v900
  %v965 = vmul.f32 %v901, %v901
  %v966 = vmul.f32 %v902, %v902
  %v967 = vmul.f32 %v903, %v903
  %v968 = vmul.f32 %v904, %v904
  %v969 = vmul.f32 %v905, %v905
  %v970 = vmul.f32 %v906, %v906
  %v971 = vmul.f32 %v907, %v907
  %v972 = vmul.f32 %v908, %v908
  %v973 = vmul.f32 %v909, %v909
  %v974 = vmul.f32 %v910, %v910
  %v975 = vmul.f32 %v911, %v911
  %v976 = vmul.f32 %v912, %v912
  %v977 = vmul.f32 %v913, %v913
  %v978 = vmul.f32 %v914, %v914
  %v979 = vmul.f32 %v915, %v915
  %v980 = vmul.f32 %v916, %v916
  %v981 = vmul.f32 %v917, %v917
  %v982 = vmul.f32 %v918, %v918
  %v983 = vmul.f32 %v919, %v919
  %v984 = vmul.f32 %v920, %v920
  %v985 = vmul.f32 %v921, %v921
  %v986 = vmul.f32 %v922, %v922
  %v987 = vmul.f32 %v923, %v923
  %v988 = vmul.f32 %v924, %v924
  %v989 = vmul.f32 %v925, %v925
  %v990 = vmul.f32 %v926, %v926
  %v991 = vmul.f32 %v927, %v927
  %v992 = vmul.f32 %v928, %v928
  %v993 = vmul.f32 %v929, %v929
  %v994 = vmul.f32 %v930, %v930
  %v995 = vmul.f32 %v931, %v931
  %v996 = vmul.f32 %v932, %v932
  %v997 = vmul.f32 %v933, %v933
  %v998 = vmul.f32 %v934, %v934
  %v999 = vmul.f32 %v935, %v935
  %v1000 = vmul.f32 %v936, %v936
  %v1001 = vadd.f32 %v937, %v938
  %v1002 = vadd.f32 %v1001, %v939
  %v1003 = vadd.f32 %v1002, %v940
  %v1004 = vadd.f32 %v1003, %v941
  %v1005 = vadd.f32 %v1004, %v942
  %v1006 = vadd.f32 %v1005, %v943
  %v1007 = vadd.f32 %v1006, %v944
  %v1008 = vadd.f32 %v1007, %v945
  %v1009 = vadd.f32 %v1008, %v946
  %v1010 = vadd.f32 %v1009, %v947
  %v1011 = vadd.f32 %v1010, %v948
  %v1012 = vadd.f32 %v1011, %v949
  %v1013 = vadd.f32 %v1012, %v950
  %v1014 = vadd.f32 %v1013, %v951
  %v1015 = vadd.f32 %v1014, %v952
  %v1016 = vadd.f32 %v1015, %v953
  %v1017 = vadd.f32 %v1016, %v954
  %v1018 = vadd.f32 %v1017, %v955
  %v1019 = vadd.f32 %v1018, %v956
  %v1020 = vadd.f32 %v1019, %v957
  %v1021 = vadd.f32 %v1020, %v958
  %v1022 = vadd.f32 %v1021, %v959
  %v1023 = vadd.f32 %v1022, %v960
  %v1024 = vadd.f32 %v1023, %v961
  %v1025 = vadd.f32 %v1024, %v962
  %v1026 = vadd.f32 %v1025, %v963
  %v1027 = vadd.f32 %v1026, %v964
  %v1028 = vadd.f32 %v1027, %v965
  %v1029 = vadd.f32 %v1028, %v966
  %v1030 = vadd.f32 %v1029, %v967
  %v1031 = vadd.f32 %v1030, %v968
  %v1032 = vadd.f32 %v1031, %v969
  %v1033 = vadd.f32 %v1032, %v970
  %v1034 = vadd.f32 %v1033, %v971
  %v1035 = vadd.f32 %v1034, %v972
  %v1036 = vadd.f32 %v1035, %v973
  %v1037 = vadd.f32 %v1036, %v974
  %v1038 = vadd.f32 %v1037, %v975
  %v1039 = vadd.f32 %v1038, %v976
  %v1040 = vadd.f32 %v1039, %v977
  %v1041 = vadd.f32 %v1040, %v978
  %v1042 = vadd.f32 %v1041, %v979
  %v1043 = vadd.f32 %v1042, %v980
  %v1044 = vadd.f32 %v1043, %v981
  %v1045 = vadd.f32 %v1044, %v982
  %v1046 = vadd.f32 %v1045, %v983
  %v1047 = vadd.f32 %v1046, %v984
  %v1048 = vadd.f32 %v1047, %v985
  %v1049 = vadd.f32 %v1048, %v986
  %v1050 = vadd.f32 %v1049, %v987
  %v1051 = vadd.f32 %v1050, %v988
  %v1052 = vadd.f32 %v1051, %v989
  %v1053 = vadd.f32 %v1052, %v990
  %v1054 = vadd.f32 %v1053, %v991
  %v1055 = vadd.f32 %v1054, %v992
  %v1056 = vadd.f32 %v1055, %v993
  %v1057 = vadd.f32 %v1056, %v994
  %v1058 = vadd.f32 %v1057, %v995
  %v1059 = vadd.f32 %v1058, %v996
  %v1060 = vadd.f32 %v1059, %v997
  %v1061 = vadd.f32 %v1060, %v998
  %v1062 = vadd.f32 %v1061, %v999
  %v1063 = vadd.f32 %v1062, %v1000
  %v1064 = vrot.slane %v1063, 4
  %v1065 = vadd.f32 %v1063, %v1064
  %v1066 = vrot.slane %v1065, 2
  %v1067 = vadd.f32 %v1065, %v1066
  %v1068 = vrot.slane %v1067, 1
  %v1069 = vadd.f32 %v1067, %v1068
  %vm1070 = vcmask 1040384
  %v1071 = vsel %vm1070, %v871, %v1069
  %1072 = vst [vmem:[%s5] sm:$0x3] %v1071
  // Predicated region
  $region18: #{bottleneck_v1b_pallas.6} parent=0 // pred_check
    _
  $region19: #{bottleneck_v1b_pallas.6} parent=0 // pred_check_branch
    %1074 = sbr.rel (0) target = $region21
  $region20: #{bottleneck_v1b_pallas.6} parent=0 // pred_region
    _
  $region21: #{bottleneck_v1b_pallas.6} parent=0 // pred_fallthru
    _
  // Predicated region
  $region22: #{bottleneck_v1b_pallas.6} parent=0 // pred_check
    _
  $region23: #{bottleneck_v1b_pallas.6} parent=0 // pred_check_branch
    %1076 = sbr.rel (0) target = $region25
  $region24: #{bottleneck_v1b_pallas.6} parent=0 // pred_region
    _
  $region25: #{bottleneck_v1b_pallas.6} parent=0 // pred_fallthru
    _
  // Predicated region
  $region26: #{bottleneck_v1b_pallas.6} parent=0 // pred_check
    _
  $region27: #{bottleneck_v1b_pallas.6} parent=0 // pred_check_branch
    %1078 = sbr.rel (0) target = $region29
  $region28: #{bottleneck_v1b_pallas.6} parent=0 // pred_region
    _
  $region29: #{bottleneck_v1b_pallas.6} parent=0 // pred_fallthru
    _
  // Predicated region
  $region30: #{bottleneck_v1b_pallas.6} parent=0 // pred_check
    _
  $region31: #{bottleneck_v1b_pallas.6} parent=0 // pred_check_branch
    %1080 = sbr.rel (0) target = $region33
  $region32: #{bottleneck_v1b_pallas.6} parent=0 // pred_region
    _
  $region33: #{bottleneck_v1b_pallas.6} parent=0 // pred_fallthru
    _

// kernel: bottleneck_v1b_pallas.5
$region0: #{bottleneck_v1b_pallas.5}
  #allocation0 [shape = 'u32[]', space=smem, size = 0x4, offset = 0x4, fixed_abs, tag = 'smem constant byte address 0x4 - core index']
  #allocation1 [shape = 'u32[144,128]{1,0:T(1,128)}', space=vmem, size = 0x12000, scoped, tag = 'internal scratch']
  %s0 = inlined_call_operand.vmem [shape: bf16[2,16,16,128], index: 0, kind: input, shape index: {}]
  %s1 = inlined_call_operand.vmem [shape: f32[1,128], index: 1, kind: input, shape index: {}]
  %s2 = inlined_call_operand.vmem [shape: f32[1,128], index: 2, kind: input, shape index: {}]
  %s3 = inlined_call_operand.vmem [shape: bf16[1152,128], index: 3, kind: input, shape index: {}]
  %s4 = inlined_call_operand.vmem [shape: f32[9,256,1], index: 4, kind: input, shape index: {}]
  %s5 = inlined_call_operand.vmem [shape: bf16[2,16,16,128], index: 5, kind: output, shape index: {0}]
  %s6 = inlined_call_operand.vmem [shape: f32[2,2,128], index: 6, kind: output, shape index: {1}]
  %7 = xla_tuple %s5, %s6
  %s8 = sld [smem:[#allocation0]]
  $region61: #{bottleneck_v1b_pallas.5} parent=0
    _
  %s10 = ssub.s32 1, %s8
  %s11 = scalar_select 0, %s10, %s8
  loop: start=0, step=1, limit=4
  $region2: #{bottleneck_v1b_pallas.5} parent=0 // loop_pre_header
    _
  $region3: #{bottleneck_v1b_pallas.5} parent=0 // loop_header
    %s13 = sphi 0, %s17
    %p14 = scmp.ge.s32.totalorder %s13, 4
    %s23 = sphi 0, %s25
    %s26 = sphi 0, %s23
    %s27 = sphi 0, %s26
    %s43 = sphi 0, %s27
    %s47 = sphi 0, %s47
    %s49 = sphi 0, %s47
    %s50 = sphi 0, %s49
    %s64 = sphi 0, %s50
    %s68 = sphi 0, %s68
    %s70 = sphi 0, %s68
    %s71 = sphi 0, %s70
    %s85 = sphi 0, %s71
    %s89 = sphi 0, %s89
    %s91 = sphi 0, %s89
    %s92 = sphi 0, %s91
    %s106 = sphi 0, %s92
    %s110 = sphi 0, %s110
    %s112 = sphi 0, %s110
    %s113 = sphi 0, %s112
    %s127 = sphi 0, %s113
    %s133 = sphi 0, %s135
    %s136 = sphi 0, %s133
    %s137 = sphi 0, %s136
    %s153 = sphi 0, %s137
    %s159 = sphi 0, %s161
    %s162 = sphi 0, %s159
    %s163 = sphi 0, %s162
    %s179 = sphi 0, %s163
  $region4: #{bottleneck_v1b_pallas.5} parent=0 // loop_header_branch
    %16 = sbr.rel (%p14) target = $region8
  $region5: #{bottleneck_v1b_pallas.5} parent=0 // loop_body
    %s18 = ssub.s32 %s13, 1
    %s19 = ssub.s32 %s13, 2
    %s20 = sadd.s32 %s13, 1
    %s21 = ssub.s32 %s13, %s20
    %p22 = scmp.eq.s32.totalorder %s21, 0
    %s24 = sadd.s32 %s23, 1
    %s25 = scalar_select %p22, %s23, %s24
    %p28 = pneg %p22
    %p29 = scmp.eq.s32.totalorder %s13, 1
    %p30 = por %p28, %p29
    %p31 = scmp.ne.s32.totalorder %s23, %s26
    %p32 = scmp.eq.s32.totalorder %s13, 0
    %p33 = por %p31, %p32
    %p34 = scmp.ne.s32.totalorder %s23, %s26
    %p35 = scmp.eq.s32.totalorder %s18, 1
    %p36 = por %p34, %p35
    %p37 = scmp.ne.s32.totalorder %s26, %s27
    %p38 = scmp.eq.s32.totalorder %s18, 0
    %p39 = por %p37, %p38
    %p40 = scmp.ne.s32.totalorder %s26, %s27
    %p41 = scmp.eq.s32.totalorder %s19, 1
    %p42 = por %p40, %p41
    %p44 = scmp.ne.s32.totalorder %s27, %s43
    %p45 = scmp.eq.s32.totalorder %s19, 0
    %p46 = por %p44, %p45
    %s48 = sadd.s32 %s47, 1
    %p51 = scmp.eq.s32.totalorder %s13, 1
    %p52 = scmp.ne.s32.totalorder %s47, %s49
    %p53 = scmp.eq.s32.totalorder %s13, 0
    %p54 = por %p52, %p53
    %p55 = scmp.ne.s32.totalorder %s47, %s49
    %p56 = scmp.eq.s32.totalorder %s18, 1
    %p57 = por %p55, %p56
    %p58 = scmp.ne.s32.totalorder %s49, %s50
    %p59 = scmp.eq.s32.totalorder %s18, 0
    %p60 = por %p58, %p59
    %p61 = scmp.ne.s32.totalorder %s49, %s50
    %p62 = scmp.eq.s32.totalorder %s19, 1
    %p63 = por %p61, %p62
    %p65 = scmp.ne.s32.totalorder %s50, %s64
    %p66 = scmp.eq.s32.totalorder %s19, 0
    %p67 = por %p65, %p66
    %s69 = sadd.s32 %s68, 1
    %p72 = scmp.eq.s32.totalorder %s13, 1
    %p73 = scmp.ne.s32.totalorder %s68, %s70
    %p74 = scmp.eq.s32.totalorder %s13, 0
    %p75 = por %p73, %p74
    %p76 = scmp.ne.s32.totalorder %s68, %s70
    %p77 = scmp.eq.s32.totalorder %s18, 1
    %p78 = por %p76, %p77
    %p79 = scmp.ne.s32.totalorder %s70, %s71
    %p80 = scmp.eq.s32.totalorder %s18, 0
    %p81 = por %p79, %p80
    %p82 = scmp.ne.s32.totalorder %s70, %s71
    %p83 = scmp.eq.s32.totalorder %s19, 1
    %p84 = por %p82, %p83
    %p86 = scmp.ne.s32.totalorder %s71, %s85
    %p87 = scmp.eq.s32.totalorder %s19, 0
    %p88 = por %p86, %p87
    %s90 = sadd.s32 %s89, 1
    %p93 = scmp.eq.s32.totalorder %s13, 1
    %p94 = scmp.ne.s32.totalorder %s89, %s91
    %p95 = scmp.eq.s32.totalorder %s13, 0
    %p96 = por %p94, %p95
    %p97 = scmp.ne.s32.totalorder %s89, %s91
    %p98 = scmp.eq.s32.totalorder %s18, 1
    %p99 = por %p97, %p98
    %p100 = scmp.ne.s32.totalorder %s91, %s92
    %p101 = scmp.eq.s32.totalorder %s18, 0
    %p102 = por %p100, %p101
    %p103 = scmp.ne.s32.totalorder %s91, %s92
    %p104 = scmp.eq.s32.totalorder %s19, 1
    %p105 = por %p103, %p104
    %p107 = scmp.ne.s32.totalorder %s92, %s106
    %p108 = scmp.eq.s32.totalorder %s19, 0
    %p109 = por %p107, %p108
    %s111 = sadd.s32 %s110, 1
    %p114 = scmp.eq.s32.totalorder %s13, 1
    %p115 = scmp.ne.s32.totalorder %s110, %s112
    %p116 = scmp.eq.s32.totalorder %s13, 0
    %p117 = por %p115, %p116
    %p118 = scmp.ne.s32.totalorder %s110, %s112
    %p119 = scmp.eq.s32.totalorder %s18, 1
    %p120 = por %p118, %p119
    %p121 = scmp.ne.s32.totalorder %s112, %s113
    %p122 = scmp.eq.s32.totalorder %s18, 0
    %p123 = por %p121, %p122
    %p124 = scmp.ne.s32.totalorder %s112, %s113
    %p125 = scmp.eq.s32.totalorder %s19, 1
    %p126 = por %p124, %p125
    %p128 = scmp.ne.s32.totalorder %s113, %s127
    %p129 = scmp.eq.s32.totalorder %s19, 0
    %p130 = por %p128, %p129
    %s131 = ssub.s32 %s13, %s20
    %p132 = scmp.eq.s32.totalorder %s131, 0
    %s134 = sadd.s32 %s133, 1
    %s135 = scalar_select %p132, %s133, %s134
    %p138 = pneg %p132
    %p139 = scmp.eq.s32.totalorder %s13, 1
    %p140 = por %p138, %p139
    %p141 = scmp.ne.s32.totalorder %s133, %s136
    %p142 = scmp.eq.s32.totalorder %s13, 0
    %p143 = por %p141, %p142
    %p144 = scmp.ne.s32.totalorder %s133, %s136
    %p145 = scmp.eq.s32.totalorder %s18, 1
    %p146 = por %p144, %p145
    %p147 = scmp.ne.s32.totalorder %s136, %s137
    %p148 = scmp.eq.s32.totalorder %s18, 0
    %p149 = por %p147, %p148
    %p150 = scmp.ne.s32.totalorder %s136, %s137
    %p151 = scmp.eq.s32.totalorder %s19, 1
    %p152 = por %p150, %p151
    %p154 = scmp.ne.s32.totalorder %s137, %s153
    %p155 = scmp.eq.s32.totalorder %s19, 0
    %p156 = por %p154, %p155
    %s157 = ssub.s32 %s13, %s20
    %p158 = scmp.eq.s32.totalorder %s157, 0
    %s160 = sadd.s32 %s159, 1
    %s161 = scalar_select %p158, %s159, %s160
    %p164 = pneg %p158
    %p165 = scmp.eq.s32.totalorder %s13, 1
    %p166 = por %p164, %p165
    %p167 = scmp.ne.s32.totalorder %s159, %s162
    %p168 = scmp.eq.s32.totalorder %s13, 0
    %p169 = por %p167, %p168
    %p170 = scmp.ne.s32.totalorder %s159, %s162
    %p171 = scmp.eq.s32.totalorder %s18, 1
    %p172 = por %p170, %p171
    %p173 = scmp.ne.s32.totalorder %s162, %s163
    %p174 = scmp.eq.s32.totalorder %s18, 0
    %p175 = por %p173, %p174
    %p176 = scmp.ne.s32.totalorder %s162, %s163
    %p177 = scmp.eq.s32.totalorder %s19, 1
    %p178 = por %p176, %p177
    %p180 = scmp.ne.s32.totalorder %s163, %s179
    %p181 = scmp.eq.s32.totalorder %s19, 0
    %p182 = por %p180, %p181
    %p183 = scmp.le.s32.totalorder 1, %s13
    %p184 = scmp.lt.s32.totalorder %s13, 3
    %p185 = pnand %p183, %p184
    %p186 = pneg %p185
    // Predicated region
    $region9: #{bottleneck_v1b_pallas.5} parent=5 // pred_check
      _
    $region10: #{bottleneck_v1b_pallas.5} parent=5 // pred_check_branch
      %188 = sbr.rel (%p185) target = $region12
    $region11: #{bottleneck_v1b_pallas.5} parent=5 // pred_region
      %s189 = ssub.s32 %s13, 1
      // Predicated region
      $region13: #{bottleneck_v1b_pallas.5} parent=11 // pred_check
        %p190 = pneg %p60
      $region14: #{bottleneck_v1b_pallas.5} parent=11 // pred_check_branch
        %192 = sbr.rel (%p190) target = $region16
      $region15: #{bottleneck_v1b_pallas.5} parent=11 // pred_region
        _
      $region16: #{bottleneck_v1b_pallas.5} parent=11 // pred_fallthru
        _
      // Predicated region
      $region17: #{bottleneck_v1b_pallas.5} parent=11 // pred_check
        %p193 = pneg %p81
      $region18: #{bottleneck_v1b_pallas.5} parent=11 // pred_check_branch
        %195 = sbr.rel (%p193) target = $region20
      $region19: #{bottleneck_v1b_pallas.5} parent=11 // pred_region
        _
      $region20: #{bottleneck_v1b_pallas.5} parent=11 // pred_fallthru
        _
      // Predicated region
      $region21: #{bottleneck_v1b_pallas.5} parent=11 // pred_check
        %p196 = pneg %p102
      $region22: #{bottleneck_v1b_pallas.5} parent=11 // pred_check_branch
        %198 = sbr.rel (%p196) target = $region24
      $region23: #{bottleneck_v1b_pallas.5} parent=11 // pred_region
        _
      $region24: #{bottleneck_v1b_pallas.5} parent=11 // pred_fallthru
        _
      // Predicated region
      $region25: #{bottleneck_v1b_pallas.5} parent=11 // pred_check
        %p199 = pneg %p123
      $region26: #{bottleneck_v1b_pallas.5} parent=11 // pred_check_branch
        %201 = sbr.rel (%p199) target = $region28
      $region27: #{bottleneck_v1b_pallas.5} parent=11 // pred_region
        _
      $region28: #{bottleneck_v1b_pallas.5} parent=11 // pred_fallthru
        _
    $region12: #{bottleneck_v1b_pallas.5} parent=5 // pred_fallthru
      _
    %p202 = scmp.lt.s32.totalorder %s13, 2
    // Predicated region
    $region29: #{bottleneck_v1b_pallas.5} parent=5 // pred_check
      %p203 = pneg %p202
    $region30: #{bottleneck_v1b_pallas.5} parent=5 // pred_check_branch
      %205 = sbr.rel (%p203) target = $region32
    $region31: #{bottleneck_v1b_pallas.5} parent=5 // pred_region
      // Predicated region
      $region33: #{bottleneck_v1b_pallas.5} parent=31 // pred_check
        %p206 = pneg %p33
      $region34: #{bottleneck_v1b_pallas.5} parent=31 // pred_check_branch
        %208 = sbr.rel (%p206) target = $region36
      $region35: #{bottleneck_v1b_pallas.5} parent=31 // pred_region
        %p209 = scmp.lt.s32.totalorder %s13, 1
        %s210 = scalar_select %p209, %s13, 1
        %s211 = smul.addr %s210, 32
        %s212 = smul.addr %s211, 4
        %s213 = scalar_lea.vmem %s0, %s212
      $region36: #{bottleneck_v1b_pallas.5} parent=31 // pred_fallthru
        _
    $region32: #{bottleneck_v1b_pallas.5} parent=5 // pred_fallthru
      _
    %p214 = scmp.le.s32.totalorder 1, %s13
    %p215 = scmp.lt.s32.totalorder %s13, 3
    %p216 = pnand %p214, %p215
    %p217 = pneg %p216
    // Predicated region
    $region37: #{bottleneck_v1b_pallas.5} parent=5 // pred_check
      _
    $region38: #{bottleneck_v1b_pallas.5} parent=5 // pred_check_branch
      %219 = sbr.rel (%p216) target = $region40
    $region39: #{bottleneck_v1b_pallas.5} parent=5 // pred_region
      %s220 = ssub.s32 %s13, 1
      %p221 = scmp.lt.s32.totalorder %s18, 1
      %s222 = scalar_select %p221, %s18, 1
      %s223 = smul.addr %s222, 32
      %s224 = smul.addr %s223, 4
      %s225 = scalar_lea.vmem %s0, %s224
      %p226 = pneg %p39
      %p227 = pneg %p36
      %p228 = pneg %p60
      %p229 = pneg %p57
      %p230 = pneg %p81
      %p231 = pneg %p78
      %p232 = pneg %p102
      %p233 = pneg %p99
      %p234 = pneg %p123
      %p235 = pneg %p120
      %p236 = pneg %p149
      %p237 = pneg %p146
      %p238 = scmp.lt.s32.totalorder %s18, 1
      %s239 = scalar_select %p238, %s18, 1
      %s240 = smul.addr %s239, 32
      %s241 = smul.addr %s240, 4
      %s242 = scalar_lea.vmem %s5, %s241
      %p243 = pneg %p175
      %p244 = pneg %p172
      %p245 = scmp.lt.s32.totalorder %s18, 1
      %s246 = scalar_select %p245, %s18, 1
      %s247 = smul.addr %s246, 2
      %s248 = scalar_lea.vmem %s6, %s247
      %p249 = scmp.lt.s32.totalorder %s18, 1
      %s250 = scalar_select %p249, %s18, 1
      %s251 = smul.addr %s250, 32
      %s252 = smul.addr %s251, 4
      %s253 = scalar_lea.vmem %s0, %s252
      %p254 = scmp.lt.s32.totalorder %s18, 1
      %s255 = scalar_select %p254, %s18, 1
      %s256 = smul.addr %s255, 32
      %s257 = smul.addr %s256, 4
      %s258 = scalar_lea.vmem %s5, %s257
      %p259 = scmp.lt.s32.totalorder %s18, 1
      %s260 = scalar_select %p259, %s18, 1
      %s261 = smul.addr %s260, 2
      %s262 = scalar_lea.vmem %s6, %s261
      %v264 = vld [vmem:[%s253] sm:$0xf]
      %v265 = vld [vmem:[%s253 + $0x4] sm:$0xf]
      %v266 = vld [vmem:[%s253 + $0x8] sm:$0xf]
      %v267 = vld [vmem:[%s253 + $0xc] sm:$0xf]
      %v268 = vld [vmem:[%s253 + $0x10] sm:$0xf]
      %v269 = vld [vmem:[%s253 + $0x14] sm:$0xf]
      %v270 = vld [vmem:[%s253 + $0x18] sm:$0xf]
      %v271 = vld [vmem:[%s253 + $0x1c] sm:$0xf]
      %v272 = vld [vmem:[%s253 + $0x20] sm:$0xf]
      %v273 = vld [vmem:[%s253 + $0x24] sm:$0xf]
      %v274 = vld [vmem:[%s253 + $0x28] sm:$0xf]
      %v275 = vld [vmem:[%s253 + $0x2c] sm:$0xf]
      %v276 = vld [vmem:[%s253 + $0x30] sm:$0xf]
      %v277 = vld [vmem:[%s253 + $0x34] sm:$0xf]
      %v278 = vld [vmem:[%s253 + $0x38] sm:$0xf]
      %v279 = vld [vmem:[%s253 + $0x3c] sm:$0xf]
      %v280 = vld [vmem:[%s253 + $0x40] sm:$0xf]
      %v281 = vld [vmem:[%s253 + $0x44] sm:$0xf]
      %v282 = vld [vmem:[%s253 + $0x48] sm:$0xf]
      %v283 = vld [vmem:[%s253 + $0x4c] sm:$0xf]
      %v284 = vld [vmem:[%s253 + $0x50] sm:$0xf]
      %v285 = vld [vmem:[%s253 + $0x54] sm:$0xf]
      %v286 = vld [vmem:[%s253 + $0x58] sm:$0xf]
      %v287 = vld [vmem:[%s253 + $0x5c] sm:$0xf]
      %v288 = vld [vmem:[%s253 + $0x60] sm:$0xf]
      %v289 = vld [vmem:[%s253 + $0x64] sm:$0xf]
      %v290 = vld [vmem:[%s253 + $0x68] sm:$0xf]
      %v291 = vld [vmem:[%s253 + $0x6c] sm:$0xf]
      %v292 = vld [vmem:[%s253 + $0x70] sm:$0xf]
      %v293 = vld [vmem:[%s253 + $0x74] sm:$0xf]
      %v294 = vld [vmem:[%s253 + $0x78] sm:$0xf]
      %v295 = vld [vmem:[%s253 + $0x7c] sm:$0xf]
      %v296 = vunpack.c.l.bf16 %v264
      %v297 = vunpack.c.l.bf16 %v265
      %v298 = vunpack.c.l.bf16 %v266
      %v299 = vunpack.c.l.bf16 %v267
      %v300 = vunpack.c.l.bf16 %v268
      %v301 = vunpack.c.l.bf16 %v269
      %v302 = vunpack.c.l.bf16 %v270
      %v303 = vunpack.c.l.bf16 %v271
      %v304 = vunpack.c.l.bf16 %v272
      %v305 = vunpack.c.l.bf16 %v273
      %v306 = vunpack.c.l.bf16 %v274
      %v307 = vunpack.c.l.bf16 %v275
      %v308 = vunpack.c.l.bf16 %v276
      %v309 = vunpack.c.l.bf16 %v277
      %v310 = vunpack.c.l.bf16 %v278
      %v311 = vunpack.c.l.bf16 %v279
      %v312 = vunpack.c.l.bf16 %v280
      %v313 = vunpack.c.l.bf16 %v281
      %v314 = vunpack.c.l.bf16 %v282
      %v315 = vunpack.c.l.bf16 %v283
      %v316 = vunpack.c.l.bf16 %v284
      %v317 = vunpack.c.l.bf16 %v285
      %v318 = vunpack.c.l.bf16 %v286
      %v319 = vunpack.c.l.bf16 %v287
      %v320 = vunpack.c.l.bf16 %v288
      %v321 = vunpack.c.l.bf16 %v289
      %v322 = vunpack.c.l.bf16 %v290
      %v323 = vunpack.c.l.bf16 %v291
      %v324 = vunpack.c.l.bf16 %v292
      %v325 = vunpack.c.l.bf16 %v293
      %v326 = vunpack.c.l.bf16 %v294
      %v327 = vunpack.c.l.bf16 %v295
      %v328 = vld [vmem:[%s1] sm:$0x1]
      %v330 = vlaneseq
      %v331 = vshrl.u32 %v330, 7
      %v332 = vsub.s32 0, %v331
      %v333 = vrot.slane %v328, %v332
      %v335 = vmul.f32 %v296, %v333
      %v336 = vmul.f32 %v297, %v333
      %v337 = vmul.f32 %v298, %v333
      %v338 = vmul.f32 %v299, %v333
      %v339 = vmul.f32 %v300, %v333
      %v340 = vmul.f32 %v301, %v333
      %v341 = vmul.f32 %v302, %v333
      %v342 = vmul.f32 %v303, %v333
      %v343 = vmul.f32 %v304, %v333
      %v344 = vmul.f32 %v305, %v333
      %v345 = vmul.f32 %v306, %v333
      %v346 = vmul.f32 %v307, %v333
      %v347 = vmul.f32 %v308, %v333
      %v348 = vmul.f32 %v309, %v333
      %v349 = vmul.f32 %v310, %v333
      %v350 = vmul.f32 %v311, %v333
      %v351 = vmul.f32 %v312, %v333
      %v352 = vmul.f32 %v313, %v333
      %v353 = vmul.f32 %v314, %v333
      %v354 = vmul.f32 %v315, %v333
      %v355 = vmul.f32 %v316, %v333
      %v356 = vmul.f32 %v317, %v333
      %v357 = vmul.f32 %v318, %v333
      %v358 = vmul.f32 %v319, %v333
      %v359 = vmul.f32 %v320, %v333
      %v360 = vmul.f32 %v321, %v333
      %v361 = vmul.f32 %v322, %v333
      %v362 = vmul.f32 %v323, %v333
      %v363 = vmul.f32 %v324, %v333
      %v364 = vmul.f32 %v325, %v333
      %v365 = vmul.f32 %v326, %v333
      %v366 = vmul.f32 %v327, %v333
      %v367 = vld [vmem:[%s2] sm:$0x1]
      %v369 = vlaneseq
      %v370 = vshrl.u32 %v369, 7
      %v371 = vsub.s32 0, %v370
      %v372 = vrot.slane %v367, %v371
      %v374 = vadd.f32 %v335, %v372
      %v375 = vadd.f32 %v336, %v372
      %v376 = vadd.f32 %v337, %v372
      %v377 = vadd.f32 %v338, %v372
      %v378 = vadd.f32 %v339, %v372
      %v379 = vadd.f32 %v340, %v372
      %v380 = vadd.f32 %v341, %v372
      %v381 = vadd.f32 %v342, %v372
      %v382 = vadd.f32 %v343, %v372
      %v383 = vadd.f32 %v344, %v372
      %v384 = vadd.f32 %v345, %v372
      %v385 = vadd.f32 %v346, %v372
      %v386 = vadd.f32 %v347, %v372
      %v387 = vadd.f32 %v348, %v372
      %v388 = vadd.f32 %v349, %v372
      %v389 = vadd.f32 %v350, %v372
      %v390 = vadd.f32 %v351, %v372
      %v391 = vadd.f32 %v352, %v372
      %v392 = vadd.f32 %v353, %v372
      %v393 = vadd.f32 %v354, %v372
      %v394 = vadd.f32 %v355, %v372
      %v395 = vadd.f32 %v356, %v372
      %v396 = vadd.f32 %v357, %v372
      %v397 = vadd.f32 %v358, %v372
      %v398 = vadd.f32 %v359, %v372
      %v399 = vadd.f32 %v360, %v372
      %v400 = vadd.f32 %v361, %v372
      %v401 = vadd.f32 %v362, %v372
      %v402 = vadd.f32 %v363, %v372
      %v403 = vadd.f32 %v364, %v372
      %v404 = vadd.f32 %v365, %v372
      %v405 = vadd.f32 %v366, %v372
      %v406 = vmax.f32 %v374, 0.0
      %v407 = vmax.f32 %v375, 0.0
      %v408 = vmax.f32 %v376, 0.0
      %v409 = vmax.f32 %v377, 0.0
      %v410 = vmax.f32 %v378, 0.0
      %v411 = vmax.f32 %v379, 0.0
      %v412 = vmax.f32 %v380, 0.0
      %v413 = vmax.f32 %v381, 0.0
      %v414 = vmax.f32 %v382, 0.0
      %v415 = vmax.f32 %v383, 0.0
      %v416 = vmax.f32 %v384, 0.0
      %v417 = vmax.f32 %v385, 0.0
      %v418 = vmax.f32 %v386, 0.0
      %v419 = vmax.f32 %v387, 0.0
      %v420 = vmax.f32 %v388, 0.0
      %v421 = vmax.f32 %v389, 0.0
      %v422 = vmax.f32 %v390, 0.0
      %v423 = vmax.f32 %v391, 0.0
      %v424 = vmax.f32 %v392, 0.0
      %v425 = vmax.f32 %v393, 0.0
      %v426 = vmax.f32 %v394, 0.0
      %v427 = vmax.f32 %v395, 0.0
      %v428 = vmax.f32 %v396, 0.0
      %v429 = vmax.f32 %v397, 0.0
      %v430 = vmax.f32 %v398, 0.0
      %v431 = vmax.f32 %v399, 0.0
      %v432 = vmax.f32 %v400, 0.0
      %v433 = vmax.f32 %v401, 0.0
      %v434 = vmax.f32 %v402, 0.0
      %v435 = vmax.f32 %v403, 0.0
      %v436 = vmax.f32 %v404, 0.0
      %v437 = vmax.f32 %v405, 0.0
      %v438 = vrot.slane %v406, 7
      %v439 = vrot.slane %v407, 7
      %v440 = vrot.slane %v408, 7
      %v441 = vrot.slane %v409, 7
      %v442 = vrot.slane %v410, 7
      %v443 = vrot.slane %v411, 7
      %v444 = vrot.slane %v412, 7
      %v445 = vrot.slane %v413, 7
      %v446 = vrot.slane %v414, 7
      %v447 = vrot.slane %v415, 7
      %v448 = vrot.slane %v416, 7
      %v449 = vrot.slane %v417, 7
      %v450 = vrot.slane %v418, 7
      %v451 = vrot.slane %v419, 7
      %v452 = vrot.slane %v420, 7
      %v453 = vrot.slane %v421, 7
      %v454 = vrot.slane %v422, 7
      %v455 = vrot.slane %v423, 7
      %v456 = vrot.slane %v424, 7
      %v457 = vrot.slane %v425, 7
      %v458 = vrot.slane %v426, 7
      %v459 = vrot.slane %v427, 7
      %v460 = vrot.slane %v428, 7
      %v461 = vrot.slane %v429, 7
      %v462 = vrot.slane %v430, 7
      %v463 = vrot.slane %v431, 7
      %v464 = vrot.slane %v432, 7
      %v465 = vrot.slane %v433, 7
      %v466 = vrot.slane %v434, 7
      %v467 = vrot.slane %v435, 7
      %v468 = vrot.slane %v436, 7
      %v469 = vrot.slane %v437, 7
      %v470 = vlaneseq
      %v471 = vshrl.u32 %v470, 7
      %vm472 = vcmp.lt.s32.totalorder %v471, 1
      %v473 = vsel %vm472, %v468, %v469
      %v474 = vsel %vm472, %v467, %v468
      %v475 = vsel %vm472, %v466, %v467
      %v476 = vsel %vm472, %v465, %v466
      %v477 = vsel %vm472, %v464, %v465
      %v478 = vsel %vm472, %v463, %v464
      %v479 = vsel %vm472, %v462, %v463
      %v480 = vsel %vm472, %v461, %v462
      %v481 = vsel %vm472, %v460, %v461
      %v482 = vsel %vm472, %v459, %v460
      %v483 = vsel %vm472, %v458, %v459
      %v484 = vsel %vm472, %v457, %v458
      %v485 = vsel %vm472, %v456, %v457
      %v486 = vsel %vm472, %v455, %v456
      %v487 = vsel %vm472, %v454, %v455
      %v488 = vsel %vm472, %v453, %v454
      %v489 = vsel %vm472, %v452, %v453
      %v490 = vsel %vm472, %v451, %v452
      %v491 = vsel %vm472, %v450, %v451
      %v492 = vsel %vm472, %v449, %v450
      %v493 = vsel %vm472, %v448, %v449
      %v494 = vsel %vm472, %v447, %v448
      %v495 = vsel %vm472, %v446, %v447
      %v496 = vsel %vm472, %v445, %v446
      %v497 = vsel %vm472, %v444, %v445
      %v498 = vsel %vm472, %v443, %v444
      %v499 = vsel %vm472, %v442, %v443
      %v500 = vsel %vm472, %v441, %v442
      %v501 = vsel %vm472, %v440, %v441
      %v502 = vsel %vm472, %v439, %v440
      %v503 = vsel %vm472, %v438, %v439
      %v504 = vsel %vm472, %v469, %v438
      %v505 = vld [vmem:[%s4] sm:$0xff]
      %v506 = vld [vmem:[%s4 + $0x8] sm:$0xff]
      %v507 = vld [vmem:[%s4 + $0x10] sm:$0xff]
      %v508 = vld [vmem:[%s4 + $0x18] sm:$0xff]
      %v509 = vld [vmem:[%s4 + $0x20] sm:$0xff]
      %v510 = vld [vmem:[%s4 + $0x28] sm:$0xff]
      %v511 = vld [vmem:[%s4 + $0x30] sm:$0xff]
      %v512 = vld [vmem:[%s4 + $0x38] sm:$0xff]
      %v513 = vld [vmem:[%s4 + $0x40] sm:$0xff]
      %v514 = vld [vmem:[%s4 + $0x48] sm:$0xff]
      %v515 = vld [vmem:[%s4 + $0x50] sm:$0xff]
      %v516 = vld [vmem:[%s4 + $0x58] sm:$0xff]
      %v517 = vld [vmem:[%s4 + $0x60] sm:$0xff]
      %v518 = vld [vmem:[%s4 + $0x68] sm:$0xff]
      %v519 = vld [vmem:[%s4 + $0x70] sm:$0xff]
      %v520 = vld [vmem:[%s4 + $0x78] sm:$0xff]
      %v521 = vld [vmem:[%s4 + $0x80] sm:$0xff]
      %v522 = vld [vmem:[%s4 + $0x88] sm:$0xff]
      %v523 = vld [vmem:[%s4 + $0x90] sm:$0xff]
      %v524 = vld [vmem:[%s4 + $0x98] sm:$0xff]
      %v525 = vld [vmem:[%s4 + $0xa0] sm:$0xff]
      %v526 = vld [vmem:[%s4 + $0xa8] sm:$0xff]
      %v527 = vld [vmem:[%s4 + $0xb0] sm:$0xff]
      %v528 = vld [vmem:[%s4 + $0xb8] sm:$0xff]
      %v529 = vld [vmem:[%s4 + $0xc0] sm:$0xff]
      %v530 = vld [vmem:[%s4 + $0xc8] sm:$0xff]
      %v531 = vld [vmem:[%s4 + $0xd0] sm:$0xff]
      %v532 = vld [vmem:[%s4 + $0xd8] sm:$0xff]
      %v533 = vld [vmem:[%s4 + $0xe0] sm:$0xff]
      %v534 = vld [vmem:[%s4 + $0xe8] sm:$0xff]
      %v535 = vld [vmem:[%s4 + $0xf0] sm:$0xff]
      %v536 = vld [vmem:[%s4 + $0xf8] sm:$0xff]
      %538 = vset.pattern.permute.xlu0 0
      %539 = vperm.xlu0 %538, %v505
      %v540 = vpop.permute.xlu0 %539
      %543 = vset.pattern.permute.xlu0 0
      %544 = vperm.xlu0 %543, %v506
      %v545 = vpop.permute.xlu0 %544
      %548 = vset.pattern.permute.xlu0 0
      %549 = vperm.xlu0 %548, %v507
      %v550 = vpop.permute.xlu0 %549
      %553 = vset.pattern.permute.xlu0 0
      %554 = vperm.xlu0 %553, %v508
      %v555 = vpop.permute.xlu0 %554
      %558 = vset.pattern.permute.xlu0 0
      %559 = vperm.xlu0 %558, %v509
      %v560 = vpop.permute.xlu0 %559
      %563 = vset.pattern.permute.xlu0 0
      %564 = vperm.xlu0 %563, %v510
      %v565 = vpop.permute.xlu0 %564
      %568 = vset.pattern.permute.xlu0 0
      %569 = vperm.xlu0 %568, %v511
      %v570 = vpop.permute.xlu0 %569
      %573 = vset.pattern.permute.xlu0 0
      %574 = vperm.xlu0 %573, %v512
      %v575 = vpop.permute.xlu0 %574
      %578 = vset.pattern.permute.xlu0 0
      %579 = vperm.xlu0 %578, %v513
      %v580 = vpop.permute.xlu0 %579
      %583 = vset.pattern.permute.xlu0 0
      %584 = vperm.xlu0 %583, %v514
      %v585 = vpop.permute.xlu0 %584
      %588 = vset.pattern.permute.xlu0 0
      %589 = vperm.xlu0 %588, %v515
      %v590 = vpop.permute.xlu0 %589
      %593 = vset.pattern.permute.xlu0 0
      %594 = vperm.xlu0 %593, %v516
      %v595 = vpop.permute.xlu0 %594
      %598 = vset.pattern.permute.xlu0 0
      %599 = vperm.xlu0 %598, %v517
      %v600 = vpop.permute.xlu0 %599
      %603 = vset.pattern.permute.xlu0 0
      %604 = vperm.xlu0 %603, %v518
      %v605 = vpop.permute.xlu0 %604
      %608 = vset.pattern.permute.xlu0 0
      %609 = vperm.xlu0 %608, %v519
      %v610 = vpop.permute.xlu0 %609
      %613 = vset.pattern.permute.xlu0 0
      %614 = vperm.xlu0 %613, %v520
      %v615 = vpop.permute.xlu0 %614
      %618 = vset.pattern.permute.xlu0 0
      %619 = vperm.xlu0 %618, %v521
      %v620 = vpop.permute.xlu0 %619
      %623 = vset.pattern.permute.xlu0 0
      %624 = vperm.xlu0 %623, %v522
      %v625 = vpop.permute.xlu0 %624
      %628 = vset.pattern.permute.xlu0 0
      %629 = vperm.xlu0 %628, %v523
      %v630 = vpop.permute.xlu0 %629
      %633 = vset.pattern.permute.xlu0 0
      %634 = vperm.xlu0 %633, %v524
      %v635 = vpop.permute.xlu0 %634
      %638 = vset.pattern.permute.xlu0 0
      %639 = vperm.xlu0 %638, %v525
      %v640 = vpop.permute.xlu0 %639
      %643 = vset.pattern.permute.xlu0 0
      %644 = vperm.xlu0 %643, %v526
      %v645 = vpop.permute.xlu0 %644
      %648 = vset.pattern.permute.xlu0 0
      %649 = vperm.xlu0 %648, %v527
      %v650 = vpop.permute.xlu0 %649
      %653 = vset.pattern.permute.xlu0 0
      %654 = vperm.xlu0 %653, %v528
      %v655 = vpop.permute.xlu0 %654
      %658 = vset.pattern.permute.xlu0 0
      %659 = vperm.xlu0 %658, %v529
      %v660 = vpop.permute.xlu0 %659
      %663 = vset.pattern.permute.xlu0 0
      %664 = vperm.xlu0 %663, %v530
      %v665 = vpop.permute.xlu0 %664
      %668 = vset.pattern.permute.xlu0 0
      %669 = vperm.xlu0 %668, %v531
      %v670 = vpop.permute.xlu0 %669
      %673 = vset.pattern.permute.xlu0 0
      %674 = vperm.xlu0 %673, %v532
      %v675 = vpop.permute.xlu0 %674
      %678 = vset.pattern.permute.xlu0 0
      %679 = vperm.xlu0 %678, %v533
      %v680 = vpop.permute.xlu0 %679
      %683 = vset.pattern.permute.xlu0 0
      %684 = vperm.xlu0 %683, %v534
      %v685 = vpop.permute.xlu0 %684
      %688 = vset.pattern.permute.xlu0 0
      %689 = vperm.xlu0 %688, %v535
      %v690 = vpop.permute.xlu0 %689
      %693 = vset.pattern.permute.xlu0 0
      %694 = vperm.xlu0 %693, %v536
      %v695 = vpop.permute.xlu0 %694
      %v697 = vmul.f32 %v474, %v540
      %v698 = vmul.f32 %v473, %v545
      %v699 = vmul.f32 %v504, %v550
      %v700 = vmul.f32 %v503, %v555
      %v701 = vmul.f32 %v502, %v560
      %v702 = vmul.f32 %v501, %v565
      %v703 = vmul.f32 %v500, %v570
      %v704 = vmul.f32 %v499, %v575
      %v705 = vmul.f32 %v498, %v580
      %v706 = vmul.f32 %v497, %v585
      %v707 = vmul.f32 %v496, %v590
      %v708 = vmul.f32 %v495, %v595
      %v709 = vmul.f32 %v494, %v600
      %v710 = vmul.f32 %v493, %v605
      %v711 = vmul.f32 %v492, %v610
      %v712 = vmul.f32 %v491, %v615
      %v713 = vmul.f32 %v490, %v620
      %v714 = vmul.f32 %v489, %v625
      %v715 = vmul.f32 %v488, %v630
      %v716 = vmul.f32 %v487, %v635
      %v717 = vmul.f32 %v486, %v640
      %v718 = vmul.f32 %v485, %v645
      %v719 = vmul.f32 %v484, %v650
      %v720 = vmul.f32 %v483, %v655
      %v721 = vmul.f32 %v482, %v660
      %v722 = vmul.f32 %v481, %v665
      %v723 = vmul.f32 %v480, %v670
      %v724 = vmul.f32 %v479, %v675
      %v725 = vmul.f32 %v478, %v680
      %v726 = vmul.f32 %v477, %v685
      %v727 = vmul.f32 %v476, %v690
      %v728 = vmul.f32 %v475, %v695
      %v729 = vpack.c.bf16 %v698, %v697
      %v730 = vpack.c.bf16 %v700, %v699
      %v731 = vpack.c.bf16 %v702, %v701
      %v732 = vpack.c.bf16 %v704, %v703
      %v733 = vpack.c.bf16 %v706, %v705
      %v734 = vpack.c.bf16 %v708, %v707
      %v735 = vpack.c.bf16 %v710, %v709
      %v736 = vpack.c.bf16 %v712, %v711
      %v737 = vpack.c.bf16 %v714, %v713
      %v738 = vpack.c.bf16 %v716, %v715
      %v739 = vpack.c.bf16 %v718, %v717
      %v740 = vpack.c.bf16 %v720, %v719
      %v741 = vpack.c.bf16 %v722, %v721
      %v742 = vpack.c.bf16 %v724, %v723
      %v743 = vpack.c.bf16 %v726, %v725
      %v744 = vpack.c.bf16 %v728, %v727
      %v745 = vld [vmem:[%s3] sm:$0xf]
      %v746 = vld [vmem:[%s3 + $0x4] sm:$0xf]
      %v747 = vld [vmem:[%s3 + $0x8] sm:$0xf]
      %v748 = vld [vmem:[%s3 + $0xc] sm:$0xf]
      %v749 = vld [vmem:[%s3 + $0x10] sm:$0xf]
      %v750 = vld [vmem:[%s3 + $0x14] sm:$0xf]
      %v751 = vld [vmem:[%s3 + $0x18] sm:$0xf]
      %v752 = vld [vmem:[%s3 + $0x1c] sm:$0xf]
      %v753 = vld [vmem:[%s3 + $0x20] sm:$0xf]
      %v754 = vld [vmem:[%s3 + $0x24] sm:$0xf]
      %v755 = vld [vmem:[%s3 + $0x28] sm:$0xf]
      %v756 = vld [vmem:[%s3 + $0x2c] sm:$0xf]
      %v757 = vld [vmem:[%s3 + $0x30] sm:$0xf]
      %v758 = vld [vmem:[%s3 + $0x34] sm:$0xf]
      %v759 = vld [vmem:[%s3 + $0x38] sm:$0xf]
      %v760 = vld [vmem:[%s3 + $0x3c] sm:$0xf]
      %s761 = scalar_lea.vmem %s4, 256
      %v762 = vld [vmem:[%s761] sm:$0xff]
      %v763 = vld [vmem:[%s761 + $0x8] sm:$0xff]
      %v764 = vld [vmem:[%s761 + $0x10] sm:$0xff]
      %v765 = vld [vmem:[%s761 + $0x18] sm:$0xff]
      %v766 = vld [vmem:[%s761 + $0x20] sm:$0xff]
      %v767 = vld [vmem:[%s761 + $0x28] sm:$0xff]
      %v768 = vld [vmem:[%s761 + $0x30] sm:$0xff]
      %v769 = vld [vmem:[%s761 + $0x38] sm:$0xff]
      %v770 = vld [vmem:[%s761 + $0x40] sm:$0xff]
      %v771 = vld [vmem:[%s761 + $0x48] sm:$0xff]
      %v772 = vld [vmem:[%s761 + $0x50] sm:$0xff]
      %v773 = vld [vmem:[%s761 + $0x58] sm:$0xff]
      %v774 = vld [vmem:[%s761 + $0x60] sm:$0xff]
      %v775 = vld [vmem:[%s761 + $0x68] sm:$0xff]
      %v776 = vld [vmem:[%s761 + $0x70] sm:$0xff]
      %v777 = vld [vmem:[%s761 + $0x78] sm:$0xff]
      %v778 = vld [vmem:[%s761 + $0x80] sm:$0xff]
      %v779 = vld [vmem:[%s761 + $0x88] sm:$0xff]
      %v780 = vld [vmem:[%s761 + $0x90] sm:$0xff]
      %v781 = vld [vmem:[%s761 + $0x98] sm:$0xff]
      %v782 = vld [vmem:[%s761 + $0xa0] sm:$0xff]
      %v783 = vld [vmem:[%s761 + $0xa8] sm:$0xff]
      %v784 = vld [vmem:[%s761 + $0xb0] sm:$0xff]
      %v785 = vld [vmem:[%s761 + $0xb8] sm:$0xff]
      %v786 = vld [vmem:[%s761 + $0xc0] sm:$0xff]
      %v787 = vld [vmem:[%s761 + $0xc8] sm:$0xff]
      %v788 = vld [vmem:[%s761 + $0xd0] sm:$0xff]
      %v789 = vld [vmem:[%s761 + $0xd8] sm:$0xff]
      %v790 = vld [vmem:[%s761 + $0xe0] sm:$0xff]
      %v791 = vld [vmem:[%s761 + $0xe8] sm:$0xff]
      %v792 = vld [vmem:[%s761 + $0xf0] sm:$0xff]
      %v793 = vld [vmem:[%s761 + $0xf8] sm:$0xff]
      %795 = vset.pattern.permute.xlu0 0
      %796 = vperm.xlu0 %795, %v762
      %v797 = vpop.permute.xlu0 %796
      %800 = vset.pattern.permute.xlu0 0
      %801 = vperm.xlu0 %800, %v763
      %v802 = vpop.permute.xlu0 %801
      %805 = vset.pattern.permute.xlu0 0
      %806 = vperm.xlu0 %805, %v764
      %v807 = vpop.permute.xlu0 %806
      %810 = vset.pattern.permute.xlu0 0
      %811 = vperm.xlu0 %810, %v765
      %v812 = vpop.permute.xlu0 %811
      %815 = vset.pattern.permute.xlu0 0
      %816 = vperm.xlu0 %815, %v766
      %v817 = vpop.permute.xlu0 %816
      %820 = vset.pattern.permute.xlu0 0
      %821 = vperm.xlu0 %820, %v767
      %v822 = vpop.permute.xlu0 %821
      %825 = vset.pattern.permute.xlu0 0
      %826 = vperm.xlu0 %825, %v768
      %v827 = vpop.permute.xlu0 %826
      %830 = vset.pattern.permute.xlu0 0
      %831 = vperm.xlu0 %830, %v769
      %v832 = vpop.permute.xlu0 %831
      %835 = vset.pattern.permute.xlu0 0
      %836 = vperm.xlu0 %835, %v770
      %v837 = vpop.permute.xlu0 %836
      %840 = vset.pattern.permute.xlu0 0
      %841 = vperm.xlu0 %840, %v771
      %v842 = vpop.permute.xlu0 %841
      %845 = vset.pattern.permute.xlu0 0
      %846 = vperm.xlu0 %845, %v772
      %v847 = vpop.permute.xlu0 %846
      %850 = vset.pattern.permute.xlu0 0
      %851 = vperm.xlu0 %850, %v773
      %v852 = vpop.permute.xlu0 %851
      %855 = vset.pattern.permute.xlu0 0
      %856 = vperm.xlu0 %855, %v774
      %v857 = vpop.permute.xlu0 %856
      %860 = vset.pattern.permute.xlu0 0
      %861 = vperm.xlu0 %860, %v775
      %v862 = vpop.permute.xlu0 %861
      %865 = vset.pattern.permute.xlu0 0
      %866 = vperm.xlu0 %865, %v776
      %v867 = vpop.permute.xlu0 %866
      %870 = vset.pattern.permute.xlu0 0
      %871 = vperm.xlu0 %870, %v777
      %v872 = vpop.permute.xlu0 %871
      %875 = vset.pattern.permute.xlu0 0
      %876 = vperm.xlu0 %875, %v778
      %v877 = vpop.permute.xlu0 %876
      %880 = vset.pattern.permute.xlu0 0
      %881 = vperm.xlu0 %880, %v779
      %v882 = vpop.permute.xlu0 %881
      %885 = vset.pattern.permute.xlu0 0
      %886 = vperm.xlu0 %885, %v780
      %v887 = vpop.permute.xlu0 %886
      %890 = vset.pattern.permute.xlu0 0
      %891 = vperm.xlu0 %890, %v781
      %v892 = vpop.permute.xlu0 %891
      %895 = vset.pattern.permute.xlu0 0
      %896 = vperm.xlu0 %895, %v782
      %v897 = vpop.permute.xlu0 %896
      %900 = vset.pattern.permute.xlu0 0
      %901 = vperm.xlu0 %900, %v783
      %v902 = vpop.permute.xlu0 %901
      %905 = vset.pattern.permute.xlu0 0
      %906 = vperm.xlu0 %905, %v784
      %v907 = vpop.permute.xlu0 %906
      %910 = vset.pattern.permute.xlu0 0
      %911 = vperm.xlu0 %910, %v785
      %v912 = vpop.permute.xlu0 %911
      %915 = vset.pattern.permute.xlu0 0
      %916 = vperm.xlu0 %915, %v786
      %v917 = vpop.permute.xlu0 %916
      %920 = vset.pattern.permute.xlu0 0
      %921 = vperm.xlu0 %920, %v787
      %v922 = vpop.permute.xlu0 %921
      %925 = vset.pattern.permute.xlu0 0
      %926 = vperm.xlu0 %925, %v788
      %v927 = vpop.permute.xlu0 %926
      %930 = vset.pattern.permute.xlu0 0
      %931 = vperm.xlu0 %930, %v789
      %v932 = vpop.permute.xlu0 %931
      %935 = vset.pattern.permute.xlu0 0
      %936 = vperm.xlu0 %935, %v790
      %v937 = vpop.permute.xlu0 %936
      %940 = vset.pattern.permute.xlu0 0
      %941 = vperm.xlu0 %940, %v791
      %v942 = vpop.permute.xlu0 %941
      %945 = vset.pattern.permute.xlu0 0
      %946 = vperm.xlu0 %945, %v792
      %v947 = vpop.permute.xlu0 %946
      %950 = vset.pattern.permute.xlu0 0
      %951 = vperm.xlu0 %950, %v793
      %v952 = vpop.permute.xlu0 %951
      %v954 = vmul.f32 %v436, %v797
      %v955 = vmul.f32 %v437, %v802
      %v956 = vmul.f32 %v406, %v807
      %v957 = vmul.f32 %v407, %v812
      %v958 = vmul.f32 %v408, %v817
      %v959 = vmul.f32 %v409, %v822
      %v960 = vmul.f32 %v410, %v827
      %v961 = vmul.f32 %v411, %v832
      %v962 = vmul.f32 %v412, %v837
      %v963 = vmul.f32 %v413, %v842
      %v964 = vmul.f32 %v414, %v847
      %v965 = vmul.f32 %v415, %v852
      %v966 = vmul.f32 %v416, %v857
      %v967 = vmul.f32 %v417, %v862
      %v968 = vmul.f32 %v418, %v867
      %v969 = vmul.f32 %v419, %v872
      %v970 = vmul.f32 %v420, %v877
      %v971 = vmul.f32 %v421, %v882
      %v972 = vmul.f32 %v422, %v887
      %v973 = vmul.f32 %v423, %v892
      %v974 = vmul.f32 %v424, %v897
      %v975 = vmul.f32 %v425, %v902
      %v976 = vmul.f32 %v426, %v907
      %v977 = vmul.f32 %v427, %v912
      %v978 = vmul.f32 %v428, %v917
      %v979 = vmul.f32 %v429, %v922
      %v980 = vmul.f32 %v430, %v927
      %v981 = vmul.f32 %v431, %v932
      %v982 = vmul.f32 %v432, %v937
      %v983 = vmul.f32 %v433, %v942
      %v984 = vmul.f32 %v434, %v947
      %v985 = vmul.f32 %v435, %v952
      %v986 = vpack.c.bf16 %v955, %v954
      %v987 = vpack.c.bf16 %v957, %v956
      %v988 = vpack.c.bf16 %v959, %v958
      %v989 = vpack.c.bf16 %v961, %v960
      %v990 = vpack.c.bf16 %v963, %v962
      %v991 = vpack.c.bf16 %v965, %v964
      %v992 = vpack.c.bf16 %v967, %v966
      %v993 = vpack.c.bf16 %v969, %v968
      %v994 = vpack.c.bf16 %v971, %v970
      %v995 = vpack.c.bf16 %v973, %v972
      %v996 = vpack.c.bf16 %v975, %v974
      %v997 = vpack.c.bf16 %v977, %v976
      %v998 = vpack.c.bf16 %v979, %v978
      %v999 = vpack.c.bf16 %v981, %v980
      %v1000 = vpack.c.bf16 %v983, %v982
      %v1001 = vpack.c.bf16 %v985, %v984
      %v1002 = vld [vmem:[%s3 + $0x40] sm:$0xf]
      %v1003 = vld [vmem:[%s3 + $0x44] sm:$0xf]
      %v1004 = vld [vmem:[%s3 + $0x48] sm:$0xf]
      %v1005 = vld [vmem:[%s3 + $0x4c] sm:$0xf]
      %v1006 = vld [vmem:[%s3 + $0x50] sm:$0xf]
      %v1007 = vld [vmem:[%s3 + $0x54] sm:$0xf]
      %v1008 = vld [vmem:[%s3 + $0x58] sm:$0xf]
      %v1009 = vld [vmem:[%s3 + $0x5c] sm:$0xf]
      %v1010 = vld [vmem:[%s3 + $0x60] sm:$0xf]
      %v1011 = vld [vmem:[%s3 + $0x64] sm:$0xf]
      %v1012 = vld [vmem:[%s3 + $0x68] sm:$0xf]
      %v1013 = vld [vmem:[%s3 + $0x6c] sm:$0xf]
      %v1014 = vld [vmem:[%s3 + $0x70] sm:$0xf]
      %v1015 = vld [vmem:[%s3 + $0x74] sm:$0xf]
      %v1016 = vld [vmem:[%s3 + $0x78] sm:$0xf]
      %v1017 = vld [vmem:[%s3 + $0x7c] sm:$0xf]
      %v1034 = vunpack.c.l.b16 %v1002
      %v1035 = vunpack.c.l.b16 %v1003
      %v1036 = vunpack.c.l.b16 %v1004
      %v1037 = vunpack.c.l.b16 %v1005
      %v1038 = vunpack.c.l.b16 %v1006
      %v1039 = vunpack.c.l.b16 %v1007
      %v1040 = vunpack.c.l.b16 %v1008
      %v1041 = vunpack.c.l.b16 %v1009
      %v1042 = vunpack.c.l.b16 %v1010
      %v1043 = vunpack.c.l.b16 %v1011
      %v1044 = vunpack.c.l.b16 %v1012
      %v1045 = vunpack.c.l.b16 %v1013
      %v1046 = vunpack.c.l.b16 %v1014
      %v1047 = vunpack.c.l.b16 %v1015
      %v1048 = vunpack.c.l.b16 %v1016
      %v1049 = vunpack.c.l.b16 %v1017
      %v1050 = vpack.c.b16 %v1035, %v1034
      %v1051 = vpack.c.b16 %v1037, %v1036
      %v1052 = vpack.c.b16 %v1039, %v1038
      %v1053 = vpack.c.b16 %v1041, %v1040
      %v1054 = vpack.c.b16 %v1043, %v1042
      %v1055 = vpack.c.b16 %v1045, %v1044
      %v1056 = vpack.c.b16 %v1047, %v1046
      %v1057 = vpack.c.b16 %v1049, %v1048
      %1066 = vmatprep.subr.bf16.mxu0 0
      %1067 = vmatpush1.bf16.msra.mxu0 %v1050
      %1068 = vmatprep.subr.bf16.mxu0 0
      %1069 = vmatpush1.bf16.msra.mxu0 %v1051
      %1070 = vmatprep.subr.bf16.mxu0 0
      %1071 = vmatpush1.bf16.msra.mxu0 %v1052
      %1072 = vmatprep.subr.bf16.mxu0 0
      %1073 = vmatpush1.bf16.msra.mxu0 %v1053
      %1074 = vmatprep.subr.bf16.mxu0 0
      %1075 = vmatpush1.bf16.msra.mxu0 %v1054
      %1076 = vmatprep.subr.bf16.mxu0 0
      %1077 = vmatpush1.bf16.msra.mxu0 %v1055
      %1078 = vmatprep.subr.bf16.mxu0 0
      %1079 = vmatpush1.bf16.msra.mxu0 %v1056
      %1080 = vmatprep.subr.bf16.mxu0 0
      %1081 = vmatpush1.bf16.msra.mxu0 %v1057
      %1082 = vmatprep.subr.bf16.mxu0 0
      %1083 = vmatpush1.bf16.msra.mxu0 0
      %1084 = vmatprep.subr.bf16.mxu0 0
      %1085 = vmatpush1.bf16.msra.mxu0 0
      %1086 = vmatprep.subr.bf16.mxu0 0
      %1087 = vmatpush1.bf16.msra.mxu0 0
      %1088 = vmatprep.subr.bf16.mxu0 0
      %1089 = vmatpush1.bf16.msra.mxu0 0
      %1090 = vmatprep.subr.bf16.mxu0 0
      %1091 = vmatpush1.bf16.msra.mxu0 0
      %1092 = vmatprep.subr.bf16.mxu0 0
      %1093 = vmatpush1.bf16.msra.mxu0 0
      %1094 = vmatprep.subr.bf16.mxu0 0
      %1095 = vmatpush1.bf16.msra.mxu0 0
      %1096 = vmatprep.subr.bf16.mxu0 0
      %1097 = vmatpush1.bf16.msra.mxu0 0
      %1098 = vmatprep.mubr.bf16.mxu0 0
      %1099 = vmatmul.mubr.bf16.gmra.mrb[0].mxu0 %v986
      %v1100 = vpop.f32.mrb[0].mxu0
      %v1101 = vadd.f32 0.0, %v1100
      %v1102 = vpop.f32.mrb[0].mxu0
      %v1103 = vpop.f32.mrb[0].mxu0
      %v1104 = vadd.f32 0.0, %v1103
      %v1105 = vpop.f32.mrb[0].mxu0
      %1106 = vmatprep.mubr.bf16.mxu0 0
      %1107 = vmatmul.mubr.bf16.gmra.mrb[0].mxu0 %v987
      %v1108 = vpop.f32.mrb[0].mxu0
      %v1109 = vadd.f32 0.0, %v1108
      %v1110 = vpop.f32.mrb[0].mxu0
      %v1111 = vpop.f32.mrb[0].mxu0
      %v1112 = vadd.f32 0.0, %v1111
      %v1113 = vpop.f32.mrb[0].mxu0
      %1114 = vmatprep.mubr.bf16.mxu0 0
      %1115 = vmatmul.mubr.bf16.gmra.mrb[0].mxu0 %v988
      %v1116 = vpop.f32.mrb[0].mxu0
      %v1117 = vadd.f32 0.0, %v1116
      %v1118 = vpop.f32.mrb[0].mxu0
      %v1119 = vpop.f32.mrb[0].mxu0
      %v1120 = vadd.f32 0.0, %v1119
      %v1121 = vpop.f32.mrb[0].mxu0
      %1122 = vmatprep.mubr.bf16.mxu0 0
      %1123 = vmatmul.mubr.bf16.gmra.mrb[0].mxu0 %v989
      %v1124 = vpop.f32.mrb[0].mxu0
      %v1125 = vadd.f32 0.0, %v1124
      %v1126 = vpop.f32.mrb[0].mxu0
      %v1127 = vpop.f32.mrb[0].mxu0
      %v1128 = vadd.f32 0.0, %v1127
      %v1129 = vpop.f32.mrb[0].mxu0
      %1130 = vmatprep.mubr.bf16.mxu0 0
      %1131 = vmatmul.mubr.bf16.gmra.mrb[0].mxu0 %v990
      %v1132 = vpop.f32.mrb[0].mxu0
      %v1133 = vadd.f32 0.0, %v1132
      %v1134 = vpop.f32.mrb[0].mxu0
      %v1135 = vpop.f32.mrb[0].mxu0
      %v1136 = vadd.f32 0.0, %v1135
      %v1137 = vpop.f32.mrb[0].mxu0
      %1138 = vmatprep.mubr.bf16.mxu0 0
      %1139 = vmatmul.mubr.bf16.gmra.mrb[0].mxu0 %v991
      %v1140 = vpop.f32.mrb[0].mxu0
      %v1141 = vadd.f32 0.0, %v1140
      %v1142 = vpop.f32.mrb[0].mxu0
      %v1143 = vpop.f32.mrb[0].mxu0
      %v1144 = vadd.f32 0.0, %v1143
      %v1145 = vpop.f32.mrb[0].mxu0
      %1146 = vmatprep.mubr.bf16.mxu0 0
      %1147 = vmatmul.mubr.bf16.gmra.mrb[0].mxu0 %v992
      %v1148 = vpop.f32.mrb[0].mxu0
      %v1149 = vadd.f32 0.0, %v1148
      %v1150 = vpop.f32.mrb[0].mxu0
      %v1151 = vpop.f32.mrb[0].mxu0
      %v1152 = vadd.f32 0.0, %v1151
      %v1153 = vpop.f32.mrb[0].mxu0
      %1154 = vmatprep.mubr.bf16.mxu0 0
      %1155 = vmatmul.mubr.bf16.gmra.mrb[0].mxu0 %v993
      %v1156 = vpop.f32.mrb[0].mxu0
      %v1157 = vadd.f32 0.0, %v1156
      %v1158 = vpop.f32.mrb[0].mxu0
      %v1159 = vpop.f32.mrb[0].mxu0
      %v1160 = vadd.f32 0.0, %v1159
      %v1161 = vpop.f32.mrb[0].mxu0
      %1162 = vmatprep.mubr.bf16.mxu0 0
      %1163 = vmatmul.mubr.bf16.gmra.mrb[0].mxu0 %v994
      %v1164 = vpop.f32.mrb[0].mxu0
      %v1165 = vadd.f32 0.0, %v1164
      %v1166 = vpop.f32.mrb[0].mxu0
      %v1167 = vpop.f32.mrb[0].mxu0
      %v1168 = vadd.f32 0.0, %v1167
      %v1169 = vpop.f32.mrb[0].mxu0
      %1170 = vmatprep.mubr.bf16.mxu0 0
      %1171 = vmatmul.mubr.bf16.gmra.mrb[0].mxu0 %v995
      %v1172 = vpop.f32.mrb[0].mxu0
      %v1173 = vadd.f32 0.0, %v1172
      %v1174 = vpop.f32.mrb[0].mxu0
      %v1175 = vpop.f32.mrb[0].mxu0
      %v1176 = vadd.f32 0.0, %v1175
      %v1177 = vpop.f32.mrb[0].mxu0
      %1178 = vmatprep.mubr.bf16.mxu0 0
      %1179 = vmatmul.mubr.bf16.gmra.mrb[0].mxu0 %v996
      %v1180 = vpop.f32.mrb[0].mxu0
      %v1181 = vadd.f32 0.0, %v1180
      %v1182 = vpop.f32.mrb[0].mxu0
      %v1183 = vpop.f32.mrb[0].mxu0
      %v1184 = vadd.f32 0.0, %v1183
      %v1185 = vpop.f32.mrb[0].mxu0
      %1186 = vmatprep.mubr.bf16.mxu0 0
      %1187 = vmatmul.mubr.bf16.gmra.mrb[0].mxu0 %v997
      %v1188 = vpop.f32.mrb[0].mxu0
      %v1189 = vadd.f32 0.0, %v1188
      %v1190 = vpop.f32.mrb[0].mxu0
      %v1191 = vpop.f32.mrb[0].mxu0
      %v1192 = vadd.f32 0.0, %v1191
      %v1193 = vpop.f32.mrb[0].mxu0
      %1194 = vmatprep.mubr.bf16.mxu0 0
      %1195 = vmatmul.mubr.bf16.gmra.mrb[0].mxu0 %v998
      %v1196 = vpop.f32.mrb[0].mxu0
      %v1197 = vadd.f32 0.0, %v1196
      %v1198 = vpop.f32.mrb[0].mxu0
      %v1199 = vpop.f32.mrb[0].mxu0
      %v1200 = vadd.f32 0.0, %v1199
      %v1201 = vpop.f32.mrb[0].mxu0
      %1202 = vmatprep.mubr.bf16.mxu0 0
      %1203 = vmatmul.mubr.bf16.gmra.mrb[0].mxu0 %v999
      %v1204 = vpop.f32.mrb[0].mxu0
      %v1205 = vadd.f32 0.0, %v1204
      %v1206 = vpop.f32.mrb[0].mxu0
      %v1207 = vpop.f32.mrb[0].mxu0
      %v1208 = vadd.f32 0.0, %v1207
      %v1209 = vpop.f32.mrb[0].mxu0
      %1210 = vmatprep.mubr.bf16.mxu0 0
      %1211 = vmatmul.mubr.bf16.gmra.mrb[0].mxu0 %v1000
      %v1212 = vpop.f32.mrb[0].mxu0
      %v1213 = vadd.f32 0.0, %v1212
      %v1214 = vpop.f32.mrb[0].mxu0
      %v1215 = vpop.f32.mrb[0].mxu0
      %v1216 = vadd.f32 0.0, %v1215
      %v1217 = vpop.f32.mrb[0].mxu0
      %1218 = vmatprep.mubr.bf16.mxu0 0
      %1219 = vmatmul.mubr.bf16.gmra.mrb[0].mxu0 %v1001
      %v1220 = vpop.f32.mrb[0].mxu0
      %v1221 = vadd.f32 0.0, %v1220
      %v1222 = vpop.f32.mrb[0].mxu0
      %v1223 = vpop.f32.mrb[0].mxu0
      %v1224 = vadd.f32 0.0, %v1223
      %v1225 = vpop.f32.mrb[0].mxu0
      %1226 = vdwg.mxu0
      %v1243 = vunpack.c.l.b16 %v745
      %v1244 = vunpack.c.l.b16 %v746
      %v1245 = vunpack.c.l.b16 %v747
      %v1246 = vunpack.c.l.b16 %v748
      %v1247 = vunpack.c.l.b16 %v749
      %v1248 = vunpack.c.l.b16 %v750
      %v1249 = vunpack.c.l.b16 %v751
      %v1250 = vunpack.c.l.b16 %v752
      %v1251 = vunpack.c.l.b16 %v753
      %v1252 = vunpack.c.l.b16 %v754
      %v1253 = vunpack.c.l.b16 %v755
      %v1254 = vunpack.c.l.b16 %v756
      %v1255 = vunpack.c.l.b16 %v757
      %v1256 = vunpack.c.l.b16 %v758
      %v1257 = vunpack.c.l.b16 %v759
      %v1258 = vunpack.c.l.b16 %v760
      %v1259 = vpack.c.b16 %v1244, %v1243
      %v1260 = vpack.c.b16 %v1246, %v1245
      %v1261 = vpack.c.b16 %v1248, %v1247
      %v1262 = vpack.c.b16 %v1250, %v1249
      %v1263 = vpack.c.b16 %v1252, %v1251
      %v1264 = vpack.c.b16 %v1254, %v1253
      %v1265 = vpack.c.b16 %v1256, %v1255
      %v1266 = vpack.c.b16 %v1258, %v1257
      %1275 = vmatprep.subr.bf16.mxu0 0
      %1276 = vmatpush1.bf16.msra.mxu0 %v1259
      %1277 = vmatprep.subr.bf16.mxu0 0
      %1278 = vmatpush1.bf16.msra.mxu0 %v1260
      %1279 = vmatprep.subr.bf16.mxu0 0
      %1280 = vmatpush1.bf16.msra.mxu0 %v1261
      %1281 = vmatprep.subr.bf16.mxu0 0
      %1282 = vmatpush1.bf16.msra.mxu0 %v1262
      %1283 = vmatprep.subr.bf16.mxu0 0
      %1284 = vmatpush1.bf16.msra.mxu0 %v1263
      %1285 = vmatprep.subr.bf16.mxu0 0
      %1286 = vmatpush1.bf16.msra.mxu0 %v1264
      %1287 = vmatprep.subr.bf16.mxu0 0
      %1288 = vmatpush1.bf16.msra.mxu0 %v1265
      %1289 = vmatprep.subr.bf16.mxu0 0
      %1290 = vmatpush1.bf16.msra.mxu0 %v1266
      %1291 = vmatprep.subr.bf16.mxu0 0
      %1292 = vmatpush1.bf16.msra.mxu0 0
      %1293 = vmatprep.subr.bf16.mxu0 0
      %1294 = vmatpush1.bf16.msra.mxu0 0
      %1295 = vmatprep.subr.bf16.mxu0 0
      %1296 = vmatpush1.bf16.msra.mxu0 0
      %1297 = vmatprep.subr.bf16.mxu0 0
      %1298 = vmatpush1.bf16.msra.mxu0 0
      %1299 = vmatprep.subr.bf16.mxu0 0
      %1300 = vmatpush1.bf16.msra.mxu0 0
      %1301 = vmatprep.subr.bf16.mxu0 0
      %1302 = vmatpush1.bf16.msra.mxu0 0
      %1303 = vmatprep.subr.bf16.mxu0 0
      %1304 = vmatpush1.bf16.msra.mxu0 0
      %1305 = vmatprep.subr.bf16.mxu0 0
      %1306 = vmatpush1.bf16.msra.mxu0 0
      %1307 = vmatprep.mubr.bf16.mxu0 0
      %1308 = vmatmul.mubr.bf16.gmra.mrb[0].mxu0 %v729
      %v1309 = vpop.f32.mrb[0].mxu0
      %v1310 = vadd.f32 %v1101, %v1309
      %v1311 = vpop.f32.mrb[0].mxu0
      %v1312 = vpop.f32.mrb[0].mxu0
      %v1313 = vadd.f32 %v1104, %v1312
      %v1314 = vpop.f32.mrb[0].mxu0
      %1315 = vmatprep.mubr.bf16.mxu0 0
      %1316 = vmatmul.mubr.bf16.gmra.mrb[0].mxu0 %v730
      %v1317 = vpop.f32.mrb[0].mxu0
      %v1318 = vadd.f32 %v1109, %v1317
      %v1319 = vpop.f32.mrb[0].mxu0
      %v1320 = vpop.f32.mrb[0].mxu0
      %v1321 = vadd.f32 %v1112, %v1320
      %v1322 = vpop.f32.mrb[0].mxu0
      %1323 = vmatprep.mubr.bf16.mxu0 0
      %1324 = vmatmul.mubr.bf16.gmra.mrb[0].mxu0 %v731
      %v1325 = vpop.f32.mrb[0].mxu0
      %v1326 = vadd.f32 %v1117, %v1325
      %v1327 = vpop.f32.mrb[0].mxu0
      %v1328 = vpop.f32.mrb[0].mxu0
      %v1329 = vadd.f32 %v1120, %v1328
      %v1330 = vpop.f32.mrb[0].mxu0
      %1331 = vmatprep.mubr.bf16.mxu0 0
      %1332 = vmatmul.mubr.bf16.gmra.mrb[0].mxu0 %v732
      %v1333 = vpop.f32.mrb[0].mxu0
      %v1334 = vadd.f32 %v1125, %v1333
      %v1335 = vpop.f32.mrb[0].mxu0
      %v1336 = vpop.f32.mrb[0].mxu0
      %v1337 = vadd.f32 %v1128, %v1336
      %v1338 = vpop.f32.mrb[0].mxu0
      %1339 = vmatprep.mubr.bf16.mxu0 0
      %1340 = vmatmul.mubr.bf16.gmra.mrb[0].mxu0 %v733
      %v1341 = vpop.f32.mrb[0].mxu0
      %v1342 = vadd.f32 %v1133, %v1341
      %v1343 = vpop.f32.mrb[0].mxu0
      %v1344 = vpop.f32.mrb[0].mxu0
      %v1345 = vadd.f32 %v1136, %v1344
      %v1346 = vpop.f32.mrb[0].mxu0
      %1347 = vmatprep.mubr.bf16.mxu0 0
      %1348 = vmatmul.mubr.bf16.gmra.mrb[0].mxu0 %v734
      %v1349 = vpop.f32.mrb[0].mxu0
      %v1350 = vadd.f32 %v1141, %v1349
      %v1351 = vpop.f32.mrb[0].mxu0
      %v1352 = vpop.f32.mrb[0].mxu0
      %v1353 = vadd.f32 %v1144, %v1352
      %v1354 = vpop.f32.mrb[0].mxu0
      %1355 = vmatprep.mubr.bf16.mxu0 0
      %1356 = vmatmul.mubr.bf16.gmra.mrb[0].mxu0 %v735
      %v1357 = vpop.f32.mrb[0].mxu0
      %v1358 = vadd.f32 %v1149, %v1357
      %v1359 = vpop.f32.mrb[0].mxu0
      %v1360 = vpop.f32.mrb[0].mxu0
      %v1361 = vadd.f32 %v1152, %v1360
      %v1362 = vpop.f32.mrb[0].mxu0
      %1363 = vmatprep.mubr.bf16.mxu0 0
      %1364 = vmatmul.mubr.bf16.gmra.mrb[0].mxu0 %v736
      %v1365 = vpop.f32.mrb[0].mxu0
      %v1366 = vadd.f32 %v1157, %v1365
      %v1367 = vpop.f32.mrb[0].mxu0
      %v1368 = vpop.f32.mrb[0].mxu0
      %v1369 = vadd.f32 %v1160, %v1368
      %v1370 = vpop.f32.mrb[0].mxu0
      %1371 = vmatprep.mubr.bf16.mxu0 0
      %1372 = vmatmul.mubr.bf16.gmra.mrb[0].mxu0 %v737
      %v1373 = vpop.f32.mrb[0].mxu0
      %v1374 = vadd.f32 %v1165, %v1373
      %v1375 = vpop.f32.mrb[0].mxu0
      %v1376 = vpop.f32.mrb[0].mxu0
      %v1377 = vadd.f32 %v1168, %v1376
      %v1378 = vpop.f32.mrb[0].mxu0
      %1379 = vmatprep.mubr.bf16.mxu0 0
      %1380 = vmatmul.mubr.bf16.gmra.mrb[0].mxu0 %v738
      %v1381 = vpop.f32.mrb[0].mxu0
      %v1382 = vadd.f32 %v1173, %v1381
      %v1383 = vpop.f32.mrb[0].mxu0
      %v1384 = vpop.f32.mrb[0].mxu0
      %v1385 = vadd.f32 %v1176, %v1384
      %v1386 = vpop.f32.mrb[0].mxu0
      %1387 = vmatprep.mubr.bf16.mxu0 0
      %1388 = vmatmul.mubr.bf16.gmra.mrb[0].mxu0 %v739
      %v1389 = vpop.f32.mrb[0].mxu0
      %v1390 = vadd.f32 %v1181, %v1389
      %v1391 = vpop.f32.mrb[0].mxu0
      %v1392 = vpop.f32.mrb[0].mxu0
      %v1393 = vadd.f32 %v1184, %v1392
      %v1394 = vpop.f32.mrb[0].mxu0
      %1395 = vmatprep.mubr.bf16.mxu0 0
      %1396 = vmatmul.mubr.bf16.gmra.mrb[0].mxu0 %v740
      %v1397 = vpop.f32.mrb[0].mxu0
      %v1398 = vadd.f32 %v1189, %v1397
      %v1399 = vpop.f32.mrb[0].mxu0
      %v1400 = vpop.f32.mrb[0].mxu0
      %v1401 = vadd.f32 %v1192, %v1400
      %v1402 = vpop.f32.mrb[0].mxu0
      %1403 = vmatprep.mubr.bf16.mxu0 0
      %1404 = vmatmul.mubr.bf16.gmra.mrb[0].mxu0 %v741
      %v1405 = vpop.f32.mrb[0].mxu0
      %v1406 = vadd.f32 %v1197, %v1405
      %v1407 = vpop.f32.mrb[0].mxu0
      %v1408 = vpop.f32.mrb[0].mxu0
      %v1409 = vadd.f32 %v1200, %v1408
      %v1410 = vpop.f32.mrb[0].mxu0
      %1411 = vmatprep.mubr.bf16.mxu0 0
      %1412 = vmatmul.mubr.bf16.gmra.mrb[0].mxu0 %v742
      %v1413 = vpop.f32.mrb[0].mxu0
      %v1414 = vadd.f32 %v1205, %v1413
      %v1415 = vpop.f32.mrb[0].mxu0
      %v1416 = vpop.f32.mrb[0].mxu0
      %v1417 = vadd.f32 %v1208, %v1416
      %v1418 = vpop.f32.mrb[0].mxu0
      %1419 = vmatprep.mubr.bf16.mxu0 0
      %1420 = vmatmul.mubr.bf16.gmra.mrb[0].mxu0 %v743
      %v1421 = vpop.f32.mrb[0].mxu0
      %v1422 = vadd.f32 %v1213, %v1421
      %v1423 = vpop.f32.mrb[0].mxu0
      %v1424 = vpop.f32.mrb[0].mxu0
      %v1425 = vadd.f32 %v1216, %v1424
      %v1426 = vpop.f32.mrb[0].mxu0
      %1427 = vmatprep.mubr.bf16.mxu0 0
      %1428 = vmatmul.mubr.bf16.gmra.mrb[0].mxu0 %v744
      %v1429 = vpop.f32.mrb[0].mxu0
      %v1430 = vadd.f32 %v1221, %v1429
      %v1431 = vpop.f32.mrb[0].mxu0
      %v1432 = vpop.f32.mrb[0].mxu0
      %v1433 = vadd.f32 %v1224, %v1432
      %v1434 = vpop.f32.mrb[0].mxu0
      %1435 = vdwg.mxu0
      %v1436 = vrot.slane %v406, 1
      %v1437 = vrot.slane %v407, 1
      %v1438 = vrot.slane %v408, 1
      %v1439 = vrot.slane %v409, 1
      %v1440 = vrot.slane %v410, 1
      %v1441 = vrot.slane %v411, 1
      %v1442 = vrot.slane %v412, 1
      %v1443 = vrot.slane %v413, 1
      %v1444 = vrot.slane %v414, 1
      %v1445 = vrot.slane %v415, 1
      %v1446 = vrot.slane %v416, 1
      %v1447 = vrot.slane %v417, 1
      %v1448 = vrot.slane %v418, 1
      %v1449 = vrot.slane %v419, 1
      %v1450 = vrot.slane %v420, 1
      %v1451 = vrot.slane %v421, 1
      %v1452 = vrot.slane %v422, 1
      %v1453 = vrot.slane %v423, 1
      %v1454 = vrot.slane %v424, 1
      %v1455 = vrot.slane %v425, 1
      %v1456 = vrot.slane %v426, 1
      %v1457 = vrot.slane %v427, 1
      %v1458 = vrot.slane %v428, 1
      %v1459 = vrot.slane %v429, 1
      %v1460 = vrot.slane %v430, 1
      %v1461 = vrot.slane %v431, 1
      %v1462 = vrot.slane %v432, 1
      %v1463 = vrot.slane %v433, 1
      %v1464 = vrot.slane %v434, 1
      %v1465 = vrot.slane %v435, 1
      %v1466 = vrot.slane %v436, 1
      %v1467 = vrot.slane %v437, 1
      %vm1468 = vcmp.lt.s32.totalorder %v471, 7
      %v1469 = vsel %vm1468, %v1466, %v1467
      %v1470 = vsel %vm1468, %v1465, %v1466
      %v1471 = vsel %vm1468, %v1464, %v1465
      %v1472 = vsel %vm1468, %v1463, %v1464
      %v1473 = vsel %vm1468, %v1462, %v1463
      %v1474 = vsel %vm1468, %v1461, %v1462
      %v1475 = vsel %vm1468, %v1460, %v1461
      %v1476 = vsel %vm1468, %v1459, %v1460
      %v1477 = vsel %vm1468, %v1458, %v1459
      %v1478 = vsel %vm1468, %v1457, %v1458
      %v1479 = vsel %vm1468, %v1456, %v1457
      %v1480 = vsel %vm1468, %v1455, %v1456
      %v1481 = vsel %vm1468, %v1454, %v1455
      %v1482 = vsel %vm1468, %v1453, %v1454
      %v1483 = vsel %vm1468, %v1452, %v1453
      %v1484 = vsel %vm1468, %v1451, %v1452
      %v1485 = vsel %vm1468, %v1450, %v1451
      %v1486 = vsel %vm1468, %v1449, %v1450
      %v1487 = vsel %vm1468, %v1448, %v1449
      %v1488 = vsel %vm1468, %v1447, %v1448
      %v1489 = vsel %vm1468, %v1446, %v1447
      %v1490 = vsel %vm1468, %v1445, %v1446
      %v1491 = vsel %vm1468, %v1444, %v1445
      %v1492 = vsel %vm1468, %v1443, %v1444
      %v1493 = vsel %vm1468, %v1442, %v1443
      %v1494 = vsel %vm1468, %v1441, %v1442
      %v1495 = vsel %vm1468, %v1440, %v1441
      %v1496 = vsel %vm1468, %v1439, %v1440
      %v1497 = vsel %vm1468, %v1438, %v1439
      %v1498 = vsel %vm1468, %v1437, %v1438
      %v1499 = vsel %vm1468, %v1436, %v1437
      %v1500 = vsel %vm1468, %v1467, %v1436
      %s1501 = scalar_lea.vmem %s4, 512
      %v1502 = vld [vmem:[%s1501] sm:$0xff]
      %v1503 = vld [vmem:[%s1501 + $0x8] sm:$0xff]
      %v1504 = vld [vmem:[%s1501 + $0x10] sm:$0xff]
      %v1505 = vld [vmem:[%s1501 + $0x18] sm:$0xff]
      %v1506 = vld [vmem:[%s1501 + $0x20] sm:$0xff]
      %v1507 = vld [vmem:[%s1501 + $0x28] sm:$0xff]
      %v1508 = vld [vmem:[%s1501 + $0x30] sm:$0xff]
      %v1509 = vld [vmem:[%s1501 + $0x38] sm:$0xff]
      %v1510 = vld [vmem:[%s1501 + $0x40] sm:$0xff]
      %v1511 = vld [vmem:[%s1501 + $0x48] sm:$0xff]
      %v1512 = vld [vmem:[%s1501 + $0x50] sm:$0xff]
      %v1513 = vld [vmem:[%s1501 + $0x58] sm:$0xff]
      %v1514 = vld [vmem:[%s1501 + $0x60] sm:$0xff]
      %v1515 = vld [vmem:[%s1501 + $0x68] sm:$0xff]
      %v1516 = vld [vmem:[%s1501 + $0x70] sm:$0xff]
      %v1517 = vld [vmem:[%s1501 + $0x78] sm:$0xff]
      %v1518 = vld [vmem:[%s1501 + $0x80] sm:$0xff]
      %v1519 = vld [vmem:[%s1501 + $0x88] sm:$0xff]
      %v1520 = vld [vmem:[%s1501 + $0x90] sm:$0xff]
      %v1521 = vld [vmem:[%s1501 + $0x98] sm:$0xff]
      %v1522 = vld [vmem:[%s1501 + $0xa0] sm:$0xff]
      %v1523 = vld [vmem:[%s1501 + $0xa8] sm:$0xff]
      %v1524 = vld [vmem:[%s1501 + $0xb0] sm:$0xff]
      %v1525 = vld [vmem:[%s1501 + $0xb8] sm:$0xff]
      %v1526 = vld [vmem:[%s1501 + $0xc0] sm:$0xff]
      %v1527 = vld [vmem:[%s1501 + $0xc8] sm:$0xff]
      %v1528 = vld [vmem:[%s1501 + $0xd0] sm:$0xff]
      %v1529 = vld [vmem:[%s1501 + $0xd8] sm:$0xff]
      %v1530 = vld [vmem:[%s1501 + $0xe0] sm:$0xff]
      %v1531 = vld [vmem:[%s1501 + $0xe8] sm:$0xff]
      %v1532 = vld [vmem:[%s1501 + $0xf0] sm:$0xff]
      %v1533 = vld [vmem:[%s1501 + $0xf8] sm:$0xff]
      %1535 = vset.pattern.permute.xlu0 0
      %1536 = vperm.xlu0 %1535, %v1502
      %v1537 = vpop.permute.xlu0 %1536
      %1540 = vset.pattern.permute.xlu0 0
      %1541 = vperm.xlu0 %1540, %v1503
      %v1542 = vpop.permute.xlu0 %1541
      %1545 = vset.pattern.permute.xlu0 0
      %1546 = vperm.xlu0 %1545, %v1504
      %v1547 = vpop.permute.xlu0 %1546
      %1550 = vset.pattern.permute.xlu0 0
      %1551 = vperm.xlu0 %1550, %v1505
      %v1552 = vpop.permute.xlu0 %1551
      %1555 = vset.pattern.permute.xlu0 0
      %1556 = vperm.xlu0 %1555, %v1506
      %v1557 = vpop.permute.xlu0 %1556
      %1560 = vset.pattern.permute.xlu0 0
      %1561 = vperm.xlu0 %1560, %v1507
      %v1562 = vpop.permute.xlu0 %1561
      %1565 = vset.pattern.permute.xlu0 0
      %1566 = vperm.xlu0 %1565, %v1508
      %v1567 = vpop.permute.xlu0 %1566
      %1570 = vset.pattern.permute.xlu0 0
      %1571 = vperm.xlu0 %1570, %v1509
      %v1572 = vpop.permute.xlu0 %1571
      %1575 = vset.pattern.permute.xlu0 0
      %1576 = vperm.xlu0 %1575, %v1510
      %v1577 = vpop.permute.xlu0 %1576
      %1580 = vset.pattern.permute.xlu0 0
      %1581 = vperm.xlu0 %1580, %v1511
      %v1582 = vpop.permute.xlu0 %1581
      %1585 = vset.pattern.permute.xlu0 0
      %1586 = vperm.xlu0 %1585, %v1512
      %v1587 = vpop.permute.xlu0 %1586
      %1590 = vset.pattern.permute.xlu0 0
      %1591 = vperm.xlu0 %1590, %v1513
      %v1592 = vpop.permute.xlu0 %1591
      %1595 = vset.pattern.permute.xlu0 0
      %1596 = vperm.xlu0 %1595, %v1514
      %v1597 = vpop.permute.xlu0 %1596
      %1600 = vset.pattern.permute.xlu0 0
      %1601 = vperm.xlu0 %1600, %v1515
      %v1602 = vpop.permute.xlu0 %1601
      %1605 = vset.pattern.permute.xlu0 0
      %1606 = vperm.xlu0 %1605, %v1516
      %v1607 = vpop.permute.xlu0 %1606
      %1610 = vset.pattern.permute.xlu0 0
      %1611 = vperm.xlu0 %1610, %v1517
      %v1612 = vpop.permute.xlu0 %1611
      %1615 = vset.pattern.permute.xlu0 0
      %1616 = vperm.xlu0 %1615, %v1518
      %v1617 = vpop.permute.xlu0 %1616
      %1620 = vset.pattern.permute.xlu0 0
      %1621 = vperm.xlu0 %1620, %v1519
      %v1622 = vpop.permute.xlu0 %1621
      %1625 = vset.pattern.permute.xlu0 0
      %1626 = vperm.xlu0 %1625, %v1520
      %v1627 = vpop.permute.xlu0 %1626
      %1630 = vset.pattern.permute.xlu0 0
      %1631 = vperm.xlu0 %1630, %v1521
      %v1632 = vpop.permute.xlu0 %1631
      %1635 = vset.pattern.permute.xlu0 0
      %1636 = vperm.xlu0 %1635, %v1522
      %v1637 = vpop.permute.xlu0 %1636
      %1640 = vset.pattern.permute.xlu0 0
      %1641 = vperm.xlu0 %1640, %v1523
      %v1642 = vpop.permute.xlu0 %1641
      %1645 = vset.pattern.permute.xlu0 0
      %1646 = vperm.xlu0 %1645, %v1524
      %v1647 = vpop.permute.xlu0 %1646
      %1650 = vset.pattern.permute.xlu0 0
      %1651 = vperm.xlu0 %1650, %v1525
      %v1652 = vpop.permute.xlu0 %1651
      %1655 = vset.pattern.permute.xlu0 0
      %1656 = vperm.xlu0 %1655, %v1526
      %v1657 = vpop.permute.xlu0 %1656
      %1660 = vset.pattern.permute.xlu0 0
      %1661 = vperm.xlu0 %1660, %v1527
      %v1662 = vpop.permute.xlu0 %1661
      %1665 = vset.pattern.permute.xlu0 0
      %1666 = vperm.xlu0 %1665, %v1528
      %v1667 = vpop.permute.xlu0 %1666
      %1670 = vset.pattern.permute.xlu0 0
      %1671 = vperm.xlu0 %1670, %v1529
      %v1672 = vpop.permute.xlu0 %1671
      %1675 = vset.pattern.permute.xlu0 0
      %1676 = vperm.xlu0 %1675, %v1530
      %v1677 = vpop.permute.xlu0 %1676
      %1680 = vset.pattern.permute.xlu0 0
      %1681 = vperm.xlu0 %1680, %v1531
      %v1682 = vpop.permute.xlu0 %1681
      %1685 = vset.pattern.permute.xlu0 0
      %1686 = vperm.xlu0 %1685, %v1532
      %v1687 = vpop.permute.xlu0 %1686
      %1690 = vset.pattern.permute.xlu0 0
      %1691 = vperm.xlu0 %1690, %v1533
      %v1692 = vpop.permute.xlu0 %1691
      %v1694 = vmul.f32 %v1469, %v1537
      %v1695 = vmul.f32 %v1500, %v1542
      %v1696 = vmul.f32 %v1499, %v1547
      %v1697 = vmul.f32 %v1498, %v1552
      %v1698 = vmul.f32 %v1497, %v1557
      %v1699 = vmul.f32 %v1496, %v1562
      %v1700 = vmul.f32 %v1495, %v1567
      %v1701 = vmul.f32 %v1494, %v1572
      %v1702 = vmul.f32 %v1493, %v1577
      %v1703 = vmul.f32 %v1492, %v1582
      %v1704 = vmul.f32 %v1491, %v1587
      %v1705 = vmul.f32 %v1490, %v1592
      %v1706 = vmul.f32 %v1489, %v1597
      %v1707 = vmul.f32 %v1488, %v1602
      %v1708 = vmul.f32 %v1487, %v1607
      %v1709 = vmul.f32 %v1486, %v1612
      %v1710 = vmul.f32 %v1485, %v1617
      %v1711 = vmul.f32 %v1484, %v1622
      %v1712 = vmul.f32 %v1483, %v1627
      %v1713 = vmul.f32 %v1482, %v1632
      %v1714 = vmul.f32 %v1481, %v1637
      %v1715 = vmul.f32 %v1480, %v1642
      %v1716 = vmul.f32 %v1479, %v1647
      %v1717 = vmul.f32 %v1478, %v1652
      %v1718 = vmul.f32 %v1477, %v1657
      %v1719 = vmul.f32 %v1476, %v1662
      %v1720 = vmul.f32 %v1475, %v1667
      %v1721 = vmul.f32 %v1474, %v1672
      %v1722 = vmul.f32 %v1473, %v1677
      %v1723 = vmul.f32 %v1472, %v1682
      %v1724 = vmul.f32 %v1471, %v1687
      %v1725 = vmul.f32 %v1470, %v1692
      %v1726 = vpack.c.bf16 %v1695, %v1694
      %v1727 = vpack.c.bf16 %v1697, %v1696
      %v1728 = vpack.c.bf16 %v1699, %v1698
      %v1729 = vpack.c.bf16 %v1701, %v1700
      %v1730 = vpack.c.bf16 %v1703, %v1702
      %v1731 = vpack.c.bf16 %v1705, %v1704
      %v1732 = vpack.c.bf16 %v1707, %v1706
      %v1733 = vpack.c.bf16 %v1709, %v1708
      %v1734 = vpack.c.bf16 %v1711, %v1710
      %v1735 = vpack.c.bf16 %v1713, %v1712
      %v1736 = vpack.c.bf16 %v1715, %v1714
      %v1737 = vpack.c.bf16 %v1717, %v1716
      %v1738 = vpack.c.bf16 %v1719, %v1718
      %v1739 = vpack.c.bf16 %v1721, %v1720
      %v1740 = vpack.c.bf16 %v1723, %v1722
      %v1741 = vpack.c.bf16 %v1725, %v1724
      %v1742 = vld [vmem:[%s3 + $0x80] sm:$0xf]
      %v1743 = vld [vmem:[%s3 + $0x84] sm:$0xf]
      %v1744 = vld [vmem:[%s3 + $0x88] sm:$0xf]
      %v1745 = vld [vmem:[%s3 + $0x8c] sm:$0xf]
      %v1746 = vld [vmem:[%s3 + $0x90] sm:$0xf]
      %v1747 = vld [vmem:[%s3 + $0x94] sm:$0xf]
      %v1748 = vld [vmem:[%s3 + $0x98] sm:$0xf]
      %v1749 = vld [vmem:[%s3 + $0x9c] sm:$0xf]
      %v1750 = vld [vmem:[%s3 + $0xa0] sm:$0xf]
      %v1751 = vld [vmem:[%s3 + $0xa4] sm:$0xf]
      %v1752 = vld [vmem:[%s3 + $0xa8] sm:$0xf]
      %v1753 = vld [vmem:[%s3 + $0xac] sm:$0xf]
      %v1754 = vld [vmem:[%s3 + $0xb0] sm:$0xf]
      %v1755 = vld [vmem:[%s3 + $0xb4] sm:$0xf]
      %v1756 = vld [vmem:[%s3 + $0xb8] sm:$0xf]
      %v1757 = vld [vmem:[%s3 + $0xbc] sm:$0xf]
      %v1774 = vunpack.c.l.b16 %v1742
      %v1775 = vunpack.c.l.b16 %v1743
      %v1776 = vunpack.c.l.b16 %v1744
      %v1777 = vunpack.c.l.b16 %v1745
      %v1778 = vunpack.c.l.b16 %v1746
      %v1779 = vunpack.c.l.b16 %v1747
      %v1780 = vunpack.c.l.b16 %v1748
      %v1781 = vunpack.c.l.b16 %v1749
      %v1782 = vunpack.c.l.b16 %v1750
      %v1783 = vunpack.c.l.b16 %v1751
      %v1784 = vunpack.c.l.b16 %v1752
      %v1785 = vunpack.c.l.b16 %v1753
      %v1786 = vunpack.c.l.b16 %v1754
      %v1787 = vunpack.c.l.b16 %v1755
      %v1788 = vunpack.c.l.b16 %v1756
      %v1789 = vunpack.c.l.b16 %v1757
      %v1790 = vpack.c.b16 %v1775, %v1774
      %v1791 = vpack.c.b16 %v1777, %v1776
      %v1792 = vpack.c.b16 %v1779, %v1778
      %v1793 = vpack.c.b16 %v1781, %v1780
      %v1794 = vpack.c.b16 %v1783, %v1782
      %v1795 = vpack.c.b16 %v1785, %v1784
      %v1796 = vpack.c.b16 %v1787, %v1786
      %v1797 = vpack.c.b16 %v1789, %v1788
      %1806 = vmatprep.subr.bf16.mxu0 0
      %1807 = vmatpush1.bf16.msra.mxu0 %v1790
      %1808 = vmatprep.subr.bf16.mxu0 0
      %1809 = vmatpush1.bf16.msra.mxu0 %v1791
      %1810 = vmatprep.subr.bf16.mxu0 0
      %1811 = vmatpush1.bf16.msra.mxu0 %v1792
      %1812 = vmatprep.subr.bf16.mxu0 0
      %1813 = vmatpush1.bf16.msra.mxu0 %v1793
      %1814 = vmatprep.subr.bf16.mxu0 0
      %1815 = vmatpush1.bf16.msra.mxu0 %v1794
      %1816 = vmatprep.subr.bf16.mxu0 0
      %1817 = vmatpush1.bf16.msra.mxu0 %v1795
      %1818 = vmatprep.subr.bf16.mxu0 0
      %1819 = vmatpush1.bf16.msra.mxu0 %v1796
      %1820 = vmatprep.subr.bf16.mxu0 0
      %1821 = vmatpush1.bf16.msra.mxu0 %v1797
      %1822 = vmatprep.subr.bf16.mxu0 0
      %1823 = vmatpush1.bf16.msra.mxu0 0
      %1824 = vmatprep.subr.bf16.mxu0 0
      %1825 = vmatpush1.bf16.msra.mxu0 0
      %1826 = vmatprep.subr.bf16.mxu0 0
      %1827 = vmatpush1.bf16.msra.mxu0 0
      %1828 = vmatprep.subr.bf16.mxu0 0
      %1829 = vmatpush1.bf16.msra.mxu0 0
      %1830 = vmatprep.subr.bf16.mxu0 0
      %1831 = vmatpush1.bf16.msra.mxu0 0
      %1832 = vmatprep.subr.bf16.mxu0 0
      %1833 = vmatpush1.bf16.msra.mxu0 0
      %1834 = vmatprep.subr.bf16.mxu0 0
      %1835 = vmatpush1.bf16.msra.mxu0 0
      %1836 = vmatprep.subr.bf16.mxu0 0
      %1837 = vmatpush1.bf16.msra.mxu0 0
      %1838 = vmatprep.mubr.bf16.mxu0 0
      %1839 = vmatmul.mubr.bf16.gmra.mrb[0].mxu0 %v1726
      %v1840 = vpop.f32.mrb[0].mxu0
      %v1841 = vadd.f32 0.0, %v1840
      %v1842 = vpop.f32.mrb[0].mxu0
      %v1843 = vpop.f32.mrb[0].mxu0
      %v1844 = vadd.f32 0.0, %v1843
      %v1845 = vpop.f32.mrb[0].mxu0
      %1846 = vmatprep.mubr.bf16.mxu0 0
      %1847 = vmatmul.mubr.bf16.gmra.mrb[0].mxu0 %v1727
      %v1848 = vpop.f32.mrb[0].mxu0
      %v1849 = vadd.f32 0.0, %v1848
      %v1850 = vpop.f32.mrb[0].mxu0
      %v1851 = vpop.f32.mrb[0].mxu0
      %v1852 = vadd.f32 0.0, %v1851
      %v1853 = vpop.f32.mrb[0].mxu0
      %1854 = vmatprep.mubr.bf16.mxu0 0
      %1855 = vmatmul.mubr.bf16.gmra.mrb[0].mxu0 %v1728
      %v1856 = vpop.f32.mrb[0].mxu0
      %v1857 = vadd.f32 0.0, %v1856
      %v1858 = vpop.f32.mrb[0].mxu0
      %v1859 = vpop.f32.mrb[0].mxu0
      %v1860 = vadd.f32 0.0, %v1859
      %v1861 = vpop.f32.mrb[0].mxu0
      %1862 = vmatprep.mubr.bf16.mxu0 0
      %1863 = vmatmul.mubr.bf16.gmra.mrb[0].mxu0 %v1729
      %v1864 = vpop.f32.mrb[0].mxu0
      %v1865 = vadd.f32 0.0, %v1864
      %v1866 = vpop.f32.mrb[0].mxu0
      %v1867 = vpop.f32.mrb[0].mxu0
      %v1868 = vadd.f32 0.0, %v1867
      %v1869 = vpop.f32.mrb[0].mxu0
      %1870 = vmatprep.mubr.bf16.mxu0 0
      %1871 = vmatmul.mubr.bf16.gmra.mrb[0].mxu0 %v1730
      %v1872 = vpop.f32.mrb[0].mxu0
      %v1873 = vadd.f32 0.0, %v1872
      %v1874 = vpop.f32.mrb[0].mxu0
      %v1875 = vpop.f32.mrb[0].mxu0
      %v1876 = vadd.f32 0.0, %v1875
      %v1877 = vpop.f32.mrb[0].mxu0
      %1878 = vmatprep.mubr.bf16.mxu0 0
      %1879 = vmatmul.mubr.bf16.gmra.mrb[0].mxu0 %v1731
      %v1880 = vpop.f32.mrb[0].mxu0
      %v1881 = vadd.f32 0.0, %v1880
      %v1882 = vpop.f32.mrb[0].mxu0
      %v1883 = vpop.f32.mrb[0].mxu0
      %v1884 = vadd.f32 0.0, %v1883
      %v1885 = vpop.f32.mrb[0].mxu0
      %1886 = vmatprep.mubr.bf16.mxu0 0
      %1887 = vmatmul.mubr.bf16.gmra.mrb[0].mxu0 %v1732
      %v1888 = vpop.f32.mrb[0].mxu0
      %v1889 = vadd.f32 0.0, %v1888
      %v1890 = vpop.f32.mrb[0].mxu0
      %v1891 = vpop.f32.mrb[0].mxu0
      %v1892 = vadd.f32 0.0, %v1891
      %v1893 = vpop.f32.mrb[0].mxu0
      %1894 = vmatprep.mubr.bf16.mxu0 0
      %1895 = vmatmul.mubr.bf16.gmra.mrb[0].mxu0 %v1733
      %v1896 = vpop.f32.mrb[0].mxu0
      %v1897 = vadd.f32 0.0, %v1896
      %v1898 = vpop.f32.mrb[0].mxu0
      %v1899 = vpop.f32.mrb[0].mxu0
      %v1900 = vadd.f32 0.0, %v1899
      %v1901 = vpop.f32.mrb[0].mxu0
      %1902 = vmatprep.mubr.bf16.mxu0 0
      %1903 = vmatmul.mubr.bf16.gmra.mrb[0].mxu0 %v1734
      %v1904 = vpop.f32.mrb[0].mxu0
      %v1905 = vadd.f32 0.0, %v1904
      %v1906 = vpop.f32.mrb[0].mxu0
      %v1907 = vpop.f32.mrb[0].mxu0
      %v1908 = vadd.f32 0.0, %v1907
      %v1909 = vpop.f32.mrb[0].mxu0
      %1910 = vmatprep.mubr.bf16.mxu0 0
      %1911 = vmatmul.mubr.bf16.gmra.mrb[0].mxu0 %v1735
      %v1912 = vpop.f32.mrb[0].mxu0
      %v1913 = vadd.f32 0.0, %v1912
      %v1914 = vpop.f32.mrb[0].mxu0
      %v1915 = vpop.f32.mrb[0].mxu0
      %v1916 = vadd.f32 0.0, %v1915
      %v1917 = vpop.f32.mrb[0].mxu0
      %1918 = vmatprep.mubr.bf16.mxu0 0
      %1919 = vmatmul.mubr.bf16.gmra.mrb[0].mxu0 %v1736
      %v1920 = vpop.f32.mrb[0].mxu0
      %v1921 = vadd.f32 0.0, %v1920
      %v1922 = vpop.f32.mrb[0].mxu0
      %v1923 = vpop.f32.mrb[0].mxu0
      %v1924 = vadd.f32 0.0, %v1923
      %v1925 = vpop.f32.mrb[0].mxu0
      %1926 = vmatprep.mubr.bf16.mxu0 0
      %1927 = vmatmul.mubr.bf16.gmra.mrb[0].mxu0 %v1737
      %v1928 = vpop.f32.mrb[0].mxu0
      %v1929 = vadd.f32 0.0, %v1928
      %v1930 = vpop.f32.mrb[0].mxu0
      %v1931 = vpop.f32.mrb[0].mxu0
      %v1932 = vadd.f32 0.0, %v1931
      %v1933 = vpop.f32.mrb[0].mxu0
      %1934 = vmatprep.mubr.bf16.mxu0 0
      %1935 = vmatmul.mubr.bf16.gmra.mrb[0].mxu0 %v1738
      %v1936 = vpop.f32.mrb[0].mxu0
      %v1937 = vadd.f32 0.0, %v1936
      %v1938 = vpop.f32.mrb[0].mxu0
      %v1939 = vpop.f32.mrb[0].mxu0
      %v1940 = vadd.f32 0.0, %v1939
      %v1941 = vpop.f32.mrb[0].mxu0
      %1942 = vmatprep.mubr.bf16.mxu0 0
      %1943 = vmatmul.mubr.bf16.gmra.mrb[0].mxu0 %v1739
      %v1944 = vpop.f32.mrb[0].mxu0
      %v1945 = vadd.f32 0.0, %v1944
      %v1946 = vpop.f32.mrb[0].mxu0
      %v1947 = vpop.f32.mrb[0].mxu0
      %v1948 = vadd.f32 0.0, %v1947
      %v1949 = vpop.f32.mrb[0].mxu0
      %1950 = vmatprep.mubr.bf16.mxu0 0
      %1951 = vmatmul.mubr.bf16.gmra.mrb[0].mxu0 %v1740
      %v1952 = vpop.f32.mrb[0].mxu0
      %v1953 = vadd.f32 0.0, %v1952
      %v1954 = vpop.f32.mrb[0].mxu0
      %v1955 = vpop.f32.mrb[0].mxu0
      %v1956 = vadd.f32 0.0, %v1955
      %v1957 = vpop.f32.mrb[0].mxu0
      %1958 = vmatprep.mubr.bf16.mxu0 0
      %1959 = vmatmul.mubr.bf16.gmra.mrb[0].mxu0 %v1741
      %v1960 = vpop.f32.mrb[0].mxu0
      %v1961 = vadd.f32 0.0, %v1960
      %v1962 = vpop.f32.mrb[0].mxu0
      %v1963 = vpop.f32.mrb[0].mxu0
      %v1964 = vadd.f32 0.0, %v1963
      %v1965 = vpop.f32.mrb[0].mxu0
      %1966 = vdwg.mxu0
      %v1967 = vadd.f32 %v1310, %v1841
      %v1968 = vadd.f32 %v1313, %v1844
      %v1969 = vadd.f32 %v1318, %v1849
      %v1970 = vadd.f32 %v1321, %v1852
      %v1971 = vadd.f32 %v1326, %v1857
      %v1972 = vadd.f32 %v1329, %v1860
      %v1973 = vadd.f32 %v1334, %v1865
      %v1974 = vadd.f32 %v1337, %v1868
      %v1975 = vadd.f32 %v1342, %v1873
      %v1976 = vadd.f32 %v1345, %v1876
      %v1977 = vadd.f32 %v1350, %v1881
      %v1978 = vadd.f32 %v1353, %v1884
      %v1979 = vadd.f32 %v1358, %v1889
      %v1980 = vadd.f32 %v1361, %v1892
      %v1981 = vadd.f32 %v1366, %v1897
      %v1982 = vadd.f32 %v1369, %v1900
      %v1983 = vadd.f32 %v1374, %v1905
      %v1984 = vadd.f32 %v1377, %v1908
      %v1985 = vadd.f32 %v1382, %v1913
      %v1986 = vadd.f32 %v1385, %v1916
      %v1987 = vadd.f32 %v1390, %v1921
      %v1988 = vadd.f32 %v1393, %v1924
      %v1989 = vadd.f32 %v1398, %v1929
      %v1990 = vadd.f32 %v1401, %v1932
      %v1991 = vadd.f32 %v1406, %v1937
      %v1992 = vadd.f32 %v1409, %v1940
      %v1993 = vadd.f32 %v1414, %v1945
      %v1994 = vadd.f32 %v1417, %v1948
      %v1995 = vadd.f32 %v1422, %v1953
      %v1996 = vadd.f32 %v1425, %v1956
      %v1997 = vadd.f32 %v1430, %v1961
      %v1998 = vadd.f32 %v1433, %v1964
      %s1999 = scalar_lea.vmem %s4, 768
      %v2000 = vld [vmem:[%s1999] sm:$0xff]
      %v2001 = vld [vmem:[%s1999 + $0x8] sm:$0xff]
      %v2002 = vld [vmem:[%s1999 + $0x10] sm:$0xff]
      %v2003 = vld [vmem:[%s1999 + $0x18] sm:$0xff]
      %v2004 = vld [vmem:[%s1999 + $0x20] sm:$0xff]
      %v2005 = vld [vmem:[%s1999 + $0x28] sm:$0xff]
      %v2006 = vld [vmem:[%s1999 + $0x30] sm:$0xff]
      %v2007 = vld [vmem:[%s1999 + $0x38] sm:$0xff]
      %v2008 = vld [vmem:[%s1999 + $0x40] sm:$0xff]
      %v2009 = vld [vmem:[%s1999 + $0x48] sm:$0xff]
      %v2010 = vld [vmem:[%s1999 + $0x50] sm:$0xff]
      %v2011 = vld [vmem:[%s1999 + $0x58] sm:$0xff]
      %v2012 = vld [vmem:[%s1999 + $0x60] sm:$0xff]
      %v2013 = vld [vmem:[%s1999 + $0x68] sm:$0xff]
      %v2014 = vld [vmem:[%s1999 + $0x70] sm:$0xff]
      %v2015 = vld [vmem:[%s1999 + $0x78] sm:$0xff]
      %v2016 = vld [vmem:[%s1999 + $0x80] sm:$0xff]
      %v2017 = vld [vmem:[%s1999 + $0x88] sm:$0xff]
      %v2018 = vld [vmem:[%s1999 + $0x90] sm:$0xff]
      %v2019 = vld [vmem:[%s1999 + $0x98] sm:$0xff]
      %v2020 = vld [vmem:[%s1999 + $0xa0] sm:$0xff]
      %v2021 = vld [vmem:[%s1999 + $0xa8] sm:$0xff]
      %v2022 = vld [vmem:[%s1999 + $0xb0] sm:$0xff]
      %v2023 = vld [vmem:[%s1999 + $0xb8] sm:$0xff]
      %v2024 = vld [vmem:[%s1999 + $0xc0] sm:$0xff]
      %v2025 = vld [vmem:[%s1999 + $0xc8] sm:$0xff]
      %v2026 = vld [vmem:[%s1999 + $0xd0] sm:$0xff]
      %v2027 = vld [vmem:[%s1999 + $0xd8] sm:$0xff]
      %v2028 = vld [vmem:[%s1999 + $0xe0] sm:$0xff]
      %v2029 = vld [vmem:[%s1999 + $0xe8] sm:$0xff]
      %v2030 = vld [vmem:[%s1999 + $0xf0] sm:$0xff]
      %v2031 = vld [vmem:[%s1999 + $0xf8] sm:$0xff]
      %2033 = vset.pattern.permute.xlu0 0
      %2034 = vperm.xlu0 %2033, %v2000
      %v2035 = vpop.permute.xlu0 %2034
      %2038 = vset.pattern.permute.xlu0 0
      %2039 = vperm.xlu0 %2038, %v2001
      %v2040 = vpop.permute.xlu0 %2039
      %2043 = vset.pattern.permute.xlu0 0
      %2044 = vperm.xlu0 %2043, %v2002
      %v2045 = vpop.permute.xlu0 %2044
      %2048 = vset.pattern.permute.xlu0 0
      %2049 = vperm.xlu0 %2048, %v2003
      %v2050 = vpop.permute.xlu0 %2049
      %2053 = vset.pattern.permute.xlu0 0
      %2054 = vperm.xlu0 %2053, %v2004
      %v2055 = vpop.permute.xlu0 %2054
      %2058 = vset.pattern.permute.xlu0 0
      %2059 = vperm.xlu0 %2058, %v2005
      %v2060 = vpop.permute.xlu0 %2059
      %2063 = vset.pattern.permute.xlu0 0
      %2064 = vperm.xlu0 %2063, %v2006
      %v2065 = vpop.permute.xlu0 %2064
      %2068 = vset.pattern.permute.xlu0 0
      %2069 = vperm.xlu0 %2068, %v2007
      %v2070 = vpop.permute.xlu0 %2069
      %2073 = vset.pattern.permute.xlu0 0
      %2074 = vperm.xlu0 %2073, %v2008
      %v2075 = vpop.permute.xlu0 %2074
      %2078 = vset.pattern.permute.xlu0 0
      %2079 = vperm.xlu0 %2078, %v2009
      %v2080 = vpop.permute.xlu0 %2079
      %2083 = vset.pattern.permute.xlu0 0
      %2084 = vperm.xlu0 %2083, %v2010
      %v2085 = vpop.permute.xlu0 %2084
      %2088 = vset.pattern.permute.xlu0 0
      %2089 = vperm.xlu0 %2088, %v2011
      %v2090 = vpop.permute.xlu0 %2089
      %2093 = vset.pattern.permute.xlu0 0
      %2094 = vperm.xlu0 %2093, %v2012
      %v2095 = vpop.permute.xlu0 %2094
      %2098 = vset.pattern.permute.xlu0 0
      %2099 = vperm.xlu0 %2098, %v2013
      %v2100 = vpop.permute.xlu0 %2099
      %2103 = vset.pattern.permute.xlu0 0
      %2104 = vperm.xlu0 %2103, %v2014
      %v2105 = vpop.permute.xlu0 %2104
      %2108 = vset.pattern.permute.xlu0 0
      %2109 = vperm.xlu0 %2108, %v2015
      %v2110 = vpop.permute.xlu0 %2109
      %2113 = vset.pattern.permute.xlu0 0
      %2114 = vperm.xlu0 %2113, %v2016
      %v2115 = vpop.permute.xlu0 %2114
      %2118 = vset.pattern.permute.xlu0 0
      %2119 = vperm.xlu0 %2118, %v2017
      %v2120 = vpop.permute.xlu0 %2119
      %2123 = vset.pattern.permute.xlu0 0
      %2124 = vperm.xlu0 %2123, %v2018
      %v2125 = vpop.permute.xlu0 %2124
      %2128 = vset.pattern.permute.xlu0 0
      %2129 = vperm.xlu0 %2128, %v2019
      %v2130 = vpop.permute.xlu0 %2129
      %2133 = vset.pattern.permute.xlu0 0
      %2134 = vperm.xlu0 %2133, %v2020
      %v2135 = vpop.permute.xlu0 %2134
      %2138 = vset.pattern.permute.xlu0 0
      %2139 = vperm.xlu0 %2138, %v2021
      %v2140 = vpop.permute.xlu0 %2139
      %2143 = vset.pattern.permute.xlu0 0
      %2144 = vperm.xlu0 %2143, %v2022
      %v2145 = vpop.permute.xlu0 %2144
      %2148 = vset.pattern.permute.xlu0 0
      %2149 = vperm.xlu0 %2148, %v2023
      %v2150 = vpop.permute.xlu0 %2149
      %2153 = vset.pattern.permute.xlu0 0
      %2154 = vperm.xlu0 %2153, %v2024
      %v2155 = vpop.permute.xlu0 %2154
      %2158 = vset.pattern.permute.xlu0 0
      %2159 = vperm.xlu0 %2158, %v2025
      %v2160 = vpop.permute.xlu0 %2159
      %2163 = vset.pattern.permute.xlu0 0
      %2164 = vperm.xlu0 %2163, %v2026
      %v2165 = vpop.permute.xlu0 %2164
      %2168 = vset.pattern.permute.xlu0 0
      %2169 = vperm.xlu0 %2168, %v2027
      %v2170 = vpop.permute.xlu0 %2169
      %2173 = vset.pattern.permute.xlu0 0
      %2174 = vperm.xlu0 %2173, %v2028
      %v2175 = vpop.permute.xlu0 %2174
      %2178 = vset.pattern.permute.xlu0 0
      %2179 = vperm.xlu0 %2178, %v2029
      %v2180 = vpop.permute.xlu0 %2179
      %2183 = vset.pattern.permute.xlu0 0
      %2184 = vperm.xlu0 %2183, %v2030
      %v2185 = vpop.permute.xlu0 %2184
      %2188 = vset.pattern.permute.xlu0 0
      %2189 = vperm.xlu0 %2188, %v2031
      %v2190 = vpop.permute.xlu0 %2189
      %v2192 = vmul.f32 %v504, %v2035
      %v2193 = vmul.f32 %v503, %v2040
      %v2194 = vmul.f32 %v502, %v2045
      %v2195 = vmul.f32 %v501, %v2050
      %v2196 = vmul.f32 %v500, %v2055
      %v2197 = vmul.f32 %v499, %v2060
      %v2198 = vmul.f32 %v498, %v2065
      %v2199 = vmul.f32 %v497, %v2070
      %v2200 = vmul.f32 %v496, %v2075
      %v2201 = vmul.f32 %v495, %v2080
      %v2202 = vmul.f32 %v494, %v2085
      %v2203 = vmul.f32 %v493, %v2090
      %v2204 = vmul.f32 %v492, %v2095
      %v2205 = vmul.f32 %v491, %v2100
      %v2206 = vmul.f32 %v490, %v2105
      %v2207 = vmul.f32 %v489, %v2110
      %v2208 = vmul.f32 %v488, %v2115
      %v2209 = vmul.f32 %v487, %v2120
      %v2210 = vmul.f32 %v486, %v2125
      %v2211 = vmul.f32 %v485, %v2130
      %v2212 = vmul.f32 %v484, %v2135
      %v2213 = vmul.f32 %v483, %v2140
      %v2214 = vmul.f32 %v482, %v2145
      %v2215 = vmul.f32 %v481, %v2150
      %v2216 = vmul.f32 %v480, %v2155
      %v2217 = vmul.f32 %v479, %v2160
      %v2218 = vmul.f32 %v478, %v2165
      %v2219 = vmul.f32 %v477, %v2170
      %v2220 = vmul.f32 %v476, %v2175
      %v2221 = vmul.f32 %v475, %v2180
      %v2222 = vmul.f32 %v474, %v2185
      %v2223 = vmul.f32 %v473, %v2190
      %v2224 = vpack.c.bf16 %v2193, %v2192
      %v2225 = vpack.c.bf16 %v2195, %v2194
      %v2226 = vpack.c.bf16 %v2197, %v2196
      %v2227 = vpack.c.bf16 %v2199, %v2198
      %v2228 = vpack.c.bf16 %v2201, %v2200
      %v2229 = vpack.c.bf16 %v2203, %v2202
      %v2230 = vpack.c.bf16 %v2205, %v2204
      %v2231 = vpack.c.bf16 %v2207, %v2206
      %v2232 = vpack.c.bf16 %v2209, %v2208
      %v2233 = vpack.c.bf16 %v2211, %v2210
      %v2234 = vpack.c.bf16 %v2213, %v2212
      %v2235 = vpack.c.bf16 %v2215, %v2214
      %v2236 = vpack.c.bf16 %v2217, %v2216
      %v2237 = vpack.c.bf16 %v2219, %v2218
      %v2238 = vpack.c.bf16 %v2221, %v2220
      %v2239 = vpack.c.bf16 %v2223, %v2222
      %v2240 = vld [vmem:[%s3 + $0xc0] sm:$0xf]
      %v2241 = vld [vmem:[%s3 + $0xc4] sm:$0xf]
      %v2242 = vld [vmem:[%s3 + $0xc8] sm:$0xf]
      %v2243 = vld [vmem:[%s3 + $0xcc] sm:$0xf]
      %v2244 = vld [vmem:[%s3 + $0xd0] sm:$0xf]
      %v2245 = vld [vmem:[%s3 + $0xd4] sm:$0xf]
      %v2246 = vld [vmem:[%s3 + $0xd8] sm:$0xf]
      %v2247 = vld [vmem:[%s3 + $0xdc] sm:$0xf]
      %v2248 = vld [vmem:[%s3 + $0xe0] sm:$0xf]
      %v2249 = vld [vmem:[%s3 + $0xe4] sm:$0xf]
      %v2250 = vld [vmem:[%s3 + $0xe8] sm:$0xf]
      %v2251 = vld [vmem:[%s3 + $0xec] sm:$0xf]
      %v2252 = vld [vmem:[%s3 + $0xf0] sm:$0xf]
      %v2253 = vld [vmem:[%s3 + $0xf4] sm:$0xf]
      %v2254 = vld [vmem:[%s3 + $0xf8] sm:$0xf]
      %v2255 = vld [vmem:[%s3 + $0xfc] sm:$0xf]
      %v2272 = vunpack.c.l.b16 %v2240
      %v2273 = vunpack.c.l.b16 %v2241
      %v2274 = vunpack.c.l.b16 %v2242
      %v2275 = vunpack.c.l.b16 %v2243
      %v2276 = vunpack.c.l.b16 %v2244
      %v2277 = vunpack.c.l.b16 %v2245
      %v2278 = vunpack.c.l.b16 %v2246
      %v2279 = vunpack.c.l.b16 %v2247
      %v2280 = vunpack.c.l.b16 %v2248
      %v2281 = vunpack.c.l.b16 %v2249
      %v2282 = vunpack.c.l.b16 %v2250
      %v2283 = vunpack.c.l.b16 %v2251
      %v2284 = vunpack.c.l.b16 %v2252
      %v2285 = vunpack.c.l.b16 %v2253
      %v2286 = vunpack.c.l.b16 %v2254
      %v2287 = vunpack.c.l.b16 %v2255
      %v2288 = vpack.c.b16 %v2273, %v2272
      %v2289 = vpack.c.b16 %v2275, %v2274
      %v2290 = vpack.c.b16 %v2277, %v2276
      %v2291 = vpack.c.b16 %v2279, %v2278
      %v2292 = vpack.c.b16 %v2281, %v2280
      %v2293 = vpack.c.b16 %v2283, %v2282
      %v2294 = vpack.c.b16 %v2285, %v2284
      %v2295 = vpack.c.b16 %v2287, %v2286
      %2304 = vmatprep.subr.bf16.mxu0 0
      %2305 = vmatpush1.bf16.msra.mxu0 %v2288
      %2306 = vmatprep.subr.bf16.mxu0 0
      %2307 = vmatpush1.bf16.msra.mxu0 %v2289
      %2308 = vmatprep.subr.bf16.mxu0 0
      %2309 = vmatpush1.bf16.msra.mxu0 %v2290
      %2310 = vmatprep.subr.bf16.mxu0 0
      %2311 = vmatpush1.bf16.msra.mxu0 %v2291
      %2312 = vmatprep.subr.bf16.mxu0 0
      %2313 = vmatpush1.bf16.msra.mxu0 %v2292
      %2314 = vmatprep.subr.bf16.mxu0 0
      %2315 = vmatpush1.bf16.msra.mxu0 %v2293
      %2316 = vmatprep.subr.bf16.mxu0 0
      %2317 = vmatpush1.bf16.msra.mxu0 %v2294
      %2318 = vmatprep.subr.bf16.mxu0 0
      %2319 = vmatpush1.bf16.msra.mxu0 %v2295
      %2320 = vmatprep.subr.bf16.mxu0 0
      %2321 = vmatpush1.bf16.msra.mxu0 0
      %2322 = vmatprep.subr.bf16.mxu0 0
      %2323 = vmatpush1.bf16.msra.mxu0 0
      %2324 = vmatprep.subr.bf16.mxu0 0
      %2325 = vmatpush1.bf16.msra.mxu0 0
      %2326 = vmatprep.subr.bf16.mxu0 0
      %2327 = vmatpush1.bf16.msra.mxu0 0
      %2328 = vmatprep.subr.bf16.mxu0 0
      %2329 = vmatpush1.bf16.msra.mxu0 0
      %2330 = vmatprep.subr.bf16.mxu0 0
      %2331 = vmatpush1.bf16.msra.mxu0 0
      %2332 = vmatprep.subr.bf16.mxu0 0
      %2333 = vmatpush1.bf16.msra.mxu0 0
      %2334 = vmatprep.subr.bf16.mxu0 0
      %2335 = vmatpush1.bf16.msra.mxu0 0
      %2336 = vmatprep.mubr.bf16.mxu0 0
      %2337 = vmatmul.mubr.bf16.gmra.mrb[0].mxu0 %v2224
      %v2338 = vpop.f32.mrb[0].mxu0
      %v2339 = vadd.f32 0.0, %v2338
      %v2340 = vpop.f32.mrb[0].mxu0
      %v2341 = vpop.f32.mrb[0].mxu0
      %v2342 = vadd.f32 0.0, %v2341
      %v2343 = vpop.f32.mrb[0].mxu0
      %2344 = vmatprep.mubr.bf16.mxu0 0
      %2345 = vmatmul.mubr.bf16.gmra.mrb[0].mxu0 %v2225
      %v2346 = vpop.f32.mrb[0].mxu0
      %v2347 = vadd.f32 0.0, %v2346
      %v2348 = vpop.f32.mrb[0].mxu0
      %v2349 = vpop.f32.mrb[0].mxu0
      %v2350 = vadd.f32 0.0, %v2349
      %v2351 = vpop.f32.mrb[0].mxu0
      %2352 = vmatprep.mubr.bf16.mxu0 0
      %2353 = vmatmul.mubr.bf16.gmra.mrb[0].mxu0 %v2226
      %v2354 = vpop.f32.mrb[0].mxu0
      %v2355 = vadd.f32 0.0, %v2354
      %v2356 = vpop.f32.mrb[0].mxu0
      %v2357 = vpop.f32.mrb[0].mxu0
      %v2358 = vadd.f32 0.0, %v2357
      %v2359 = vpop.f32.mrb[0].mxu0
      %2360 = vmatprep.mubr.bf16.mxu0 0
      %2361 = vmatmul.mubr.bf16.gmra.mrb[0].mxu0 %v2227
      %v2362 = vpop.f32.mrb[0].mxu0
      %v2363 = vadd.f32 0.0, %v2362
      %v2364 = vpop.f32.mrb[0].mxu0
      %v2365 = vpop.f32.mrb[0].mxu0
      %v2366 = vadd.f32 0.0, %v2365
      %v2367 = vpop.f32.mrb[0].mxu0
      %2368 = vmatprep.mubr.bf16.mxu0 0
      %2369 = vmatmul.mubr.bf16.gmra.mrb[0].mxu0 %v2228
      %v2370 = vpop.f32.mrb[0].mxu0
      %v2371 = vadd.f32 0.0, %v2370
      %v2372 = vpop.f32.mrb[0].mxu0
      %v2373 = vpop.f32.mrb[0].mxu0
      %v2374 = vadd.f32 0.0, %v2373
      %v2375 = vpop.f32.mrb[0].mxu0
      %2376 = vmatprep.mubr.bf16.mxu0 0
      %2377 = vmatmul.mubr.bf16.gmra.mrb[0].mxu0 %v2229
      %v2378 = vpop.f32.mrb[0].mxu0
      %v2379 = vadd.f32 0.0, %v2378
      %v2380 = vpop.f32.mrb[0].mxu0
      %v2381 = vpop.f32.mrb[0].mxu0
      %v2382 = vadd.f32 0.0, %v2381
      %v2383 = vpop.f32.mrb[0].mxu0
      %2384 = vmatprep.mubr.bf16.mxu0 0
      %2385 = vmatmul.mubr.bf16.gmra.mrb[0].mxu0 %v2230
      %v2386 = vpop.f32.mrb[0].mxu0
      %v2387 = vadd.f32 0.0, %v2386
      %v2388 = vpop.f32.mrb[0].mxu0
      %v2389 = vpop.f32.mrb[0].mxu0
      %v2390 = vadd.f32 0.0, %v2389
      %v2391 = vpop.f32.mrb[0].mxu0
      %2392 = vmatprep.mubr.bf16.mxu0 0
      %2393 = vmatmul.mubr.bf16.gmra.mrb[0].mxu0 %v2231
      %v2394 = vpop.f32.mrb[0].mxu0
      %v2395 = vadd.f32 0.0, %v2394
      %v2396 = vpop.f32.mrb[0].mxu0
      %v2397 = vpop.f32.mrb[0].mxu0
      %v2398 = vadd.f32 0.0, %v2397
      %v2399 = vpop.f32.mrb[0].mxu0
      %2400 = vmatprep.mubr.bf16.mxu0 0
      %2401 = vmatmul.mubr.bf16.gmra.mrb[0].mxu0 %v2232
      %v2402 = vpop.f32.mrb[0].mxu0
      %v2403 = vadd.f32 0.0, %v2402
      %v2404 = vpop.f32.mrb[0].mxu0
      %v2405 = vpop.f32.mrb[0].mxu0
      %v2406 = vadd.f32 0.0, %v2405
      %v2407 = vpop.f32.mrb[0].mxu0
      %2408 = vmatprep.mubr.bf16.mxu0 0
      %2409 = vmatmul.mubr.bf16.gmra.mrb[0].mxu0 %v2233
      %v2410 = vpop.f32.mrb[0].mxu0
      %v2411 = vadd.f32 0.0, %v2410
      %v2412 = vpop.f32.mrb[0].mxu0
      %v2413 = vpop.f32.mrb[0].mxu0
      %v2414 = vadd.f32 0.0, %v2413
      %v2415 = vpop.f32.mrb[0].mxu0
      %2416 = vmatprep.mubr.bf16.mxu0 0
      %2417 = vmatmul.mubr.bf16.gmra.mrb[0].mxu0 %v2234
      %v2418 = vpop.f32.mrb[0].mxu0
      %v2419 = vadd.f32 0.0, %v2418
      %v2420 = vpop.f32.mrb[0].mxu0
      %v2421 = vpop.f32.mrb[0].mxu0
      %v2422 = vadd.f32 0.0, %v2421
      %v2423 = vpop.f32.mrb[0].mxu0
      %2424 = vmatprep.mubr.bf16.mxu0 0
      %2425 = vmatmul.mubr.bf16.gmra.mrb[0].mxu0 %v2235
      %v2426 = vpop.f32.mrb[0].mxu0
      %v2427 = vadd.f32 0.0, %v2426
      %v2428 = vpop.f32.mrb[0].mxu0
      %v2429 = vpop.f32.mrb[0].mxu0
      %v2430 = vadd.f32 0.0, %v2429
      %v2431 = vpop.f32.mrb[0].mxu0
      %2432 = vmatprep.mubr.bf16.mxu0 0
      %2433 = vmatmul.mubr.bf16.gmra.mrb[0].mxu0 %v2236
      %v2434 = vpop.f32.mrb[0].mxu0
      %v2435 = vadd.f32 0.0, %v2434
      %v2436 = vpop.f32.mrb[0].mxu0
      %v2437 = vpop.f32.mrb[0].mxu0
      %v2438 = vadd.f32 0.0, %v2437
      %v2439 = vpop.f32.mrb[0].mxu0
      %2440 = vmatprep.mubr.bf16.mxu0 0
      %2441 = vmatmul.mubr.bf16.gmra.mrb[0].mxu0 %v2237
      %v2442 = vpop.f32.mrb[0].mxu0
      %v2443 = vadd.f32 0.0, %v2442
      %v2444 = vpop.f32.mrb[0].mxu0
      %v2445 = vpop.f32.mrb[0].mxu0
      %v2446 = vadd.f32 0.0, %v2445
      %v2447 = vpop.f32.mrb[0].mxu0
      %2448 = vmatprep.mubr.bf16.mxu0 0
      %2449 = vmatmul.mubr.bf16.gmra.mrb[0].mxu0 %v2238
      %v2450 = vpop.f32.mrb[0].mxu0
      %v2451 = vadd.f32 0.0, %v2450
      %v2452 = vpop.f32.mrb[0].mxu0
      %v2453 = vpop.f32.mrb[0].mxu0
      %v2454 = vadd.f32 0.0, %v2453
      %v2455 = vpop.f32.mrb[0].mxu0
      %2456 = vmatprep.mubr.bf16.mxu0 0
      %2457 = vmatmul.mubr.bf16.gmra.mrb[0].mxu0 %v2239
      %v2458 = vpop.f32.mrb[0].mxu0
      %v2459 = vadd.f32 0.0, %v2458
      %v2460 = vpop.f32.mrb[0].mxu0
      %v2461 = vpop.f32.mrb[0].mxu0
      %v2462 = vadd.f32 0.0, %v2461
      %v2463 = vpop.f32.mrb[0].mxu0
      %2464 = vdwg.mxu0
      %v2465 = vadd.f32 %v1967, %v2339
      %v2466 = vadd.f32 %v1968, %v2342
      %v2467 = vadd.f32 %v1969, %v2347
      %v2468 = vadd.f32 %v1970, %v2350
      %v2469 = vadd.f32 %v1971, %v2355
      %v2470 = vadd.f32 %v1972, %v2358
      %v2471 = vadd.f32 %v1973, %v2363
      %v2472 = vadd.f32 %v1974, %v2366
      %v2473 = vadd.f32 %v1975, %v2371
      %v2474 = vadd.f32 %v1976, %v2374
      %v2475 = vadd.f32 %v1977, %v2379
      %v2476 = vadd.f32 %v1978, %v2382
      %v2477 = vadd.f32 %v1979, %v2387
      %v2478 = vadd.f32 %v1980, %v2390
      %v2479 = vadd.f32 %v1981, %v2395
      %v2480 = vadd.f32 %v1982, %v2398
      %v2481 = vadd.f32 %v1983, %v2403
      %v2482 = vadd.f32 %v1984, %v2406
      %v2483 = vadd.f32 %v1985, %v2411
      %v2484 = vadd.f32 %v1986, %v2414
      %v2485 = vadd.f32 %v1987, %v2419
      %v2486 = vadd.f32 %v1988, %v2422
      %v2487 = vadd.f32 %v1989, %v2427
      %v2488 = vadd.f32 %v1990, %v2430
      %v2489 = vadd.f32 %v1991, %v2435
      %v2490 = vadd.f32 %v1992, %v2438
      %v2491 = vadd.f32 %v1993, %v2443
      %v2492 = vadd.f32 %v1994, %v2446
      %v2493 = vadd.f32 %v1995, %v2451
      %v2494 = vadd.f32 %v1996, %v2454
      %v2495 = vadd.f32 %v1997, %v2459
      %v2496 = vadd.f32 %v1998, %v2462
      %v2497 = vpack.c.bf16 %v407, %v406
      %v2498 = vpack.c.bf16 %v409, %v408
      %v2499 = vpack.c.bf16 %v411, %v410
      %v2500 = vpack.c.bf16 %v413, %v412
      %v2501 = vpack.c.bf16 %v415, %v414
      %v2502 = vpack.c.bf16 %v417, %v416
      %v2503 = vpack.c.bf16 %v419, %v418
      %v2504 = vpack.c.bf16 %v421, %v420
      %v2505 = vpack.c.bf16 %v423, %v422
      %v2506 = vpack.c.bf16 %v425, %v424
      %v2507 = vpack.c.bf16 %v427, %v426
      %v2508 = vpack.c.bf16 %v429, %v428
      %v2509 = vpack.c.bf16 %v431, %v430
      %v2510 = vpack.c.bf16 %v433, %v432
      %v2511 = vpack.c.bf16 %v435, %v434
      %v2512 = vpack.c.bf16 %v437, %v436
      %v2513 = vld [vmem:[%s3 + $0x100] sm:$0xf]
      %v2514 = vld [vmem:[%s3 + $0x104] sm:$0xf]
      %v2515 = vld [vmem:[%s3 + $0x108] sm:$0xf]
      %v2516 = vld [vmem:[%s3 + $0x10c] sm:$0xf]
      %v2517 = vld [vmem:[%s3 + $0x110] sm:$0xf]
      %v2518 = vld [vmem:[%s3 + $0x114] sm:$0xf]
      %v2519 = vld [vmem:[%s3 + $0x118] sm:$0xf]
      %v2520 = vld [vmem:[%s3 + $0x11c] sm:$0xf]
      %v2521 = vld [vmem:[%s3 + $0x120] sm:$0xf]
      %v2522 = vld [vmem:[%s3 + $0x124] sm:$0xf]
      %v2523 = vld [vmem:[%s3 + $0x128] sm:$0xf]
      %v2524 = vld [vmem:[%s3 + $0x12c] sm:$0xf]
      %v2525 = vld [vmem:[%s3 + $0x130] sm:$0xf]
      %v2526 = vld [vmem:[%s3 + $0x134] sm:$0xf]
      %v2527 = vld [vmem:[%s3 + $0x138] sm:$0xf]
      %v2528 = vld [vmem:[%s3 + $0x13c] sm:$0xf]
      %v2545 = vunpack.c.l.b16 %v2513
      %v2546 = vunpack.c.l.b16 %v2514
      %v2547 = vunpack.c.l.b16 %v2515
      %v2548 = vunpack.c.l.b16 %v2516
      %v2549 = vunpack.c.l.b16 %v2517
      %v2550 = vunpack.c.l.b16 %v2518
      %v2551 = vunpack.c.l.b16 %v2519
      %v2552 = vunpack.c.l.b16 %v2520
      %v2553 = vunpack.c.l.b16 %v2521
      %v2554 = vunpack.c.l.b16 %v2522
      %v2555 = vunpack.c.l.b16 %v2523
      %v2556 = vunpack.c.l.b16 %v2524
      %v2557 = vunpack.c.l.b16 %v2525
      %v2558 = vunpack.c.l.b16 %v2526
      %v2559 = vunpack.c.l.b16 %v2527
      %v2560 = vunpack.c.l.b16 %v2528
      %v2561 = vpack.c.b16 %v2546, %v2545
      %v2562 = vpack.c.b16 %v2548, %v2547
      %v2563 = vpack.c.b16 %v2550, %v2549
      %v2564 = vpack.c.b16 %v2552, %v2551
      %v2565 = vpack.c.b16 %v2554, %v2553
      %v2566 = vpack.c.b16 %v2556, %v2555
      %v2567 = vpack.c.b16 %v2558, %v2557
      %v2568 = vpack.c.b16 %v2560, %v2559
      %2577 = vmatprep.subr.bf16.mxu0 0
      %2578 = vmatpush1.bf16.msra.mxu0 %v2561
      %2579 = vmatprep.subr.bf16.mxu0 0
      %2580 = vmatpush1.bf16.msra.mxu0 %v2562
      %2581 = vmatprep.subr.bf16.mxu0 0
      %2582 = vmatpush1.bf16.msra.mxu0 %v2563
      %2583 = vmatprep.subr.bf16.mxu0 0
      %2584 = vmatpush1.bf16.msra.mxu0 %v2564
      %2585 = vmatprep.subr.bf16.mxu0 0
      %2586 = vmatpush1.bf16.msra.mxu0 %v2565
      %2587 = vmatprep.subr.bf16.mxu0 0
      %2588 = vmatpush1.bf16.msra.mxu0 %v2566
      %2589 = vmatprep.subr.bf16.mxu0 0
      %2590 = vmatpush1.bf16.msra.mxu0 %v2567
      %2591 = vmatprep.subr.bf16.mxu0 0
      %2592 = vmatpush1.bf16.msra.mxu0 %v2568
      %2593 = vmatprep.subr.bf16.mxu0 0
      %2594 = vmatpush1.bf16.msra.mxu0 0
      %2595 = vmatprep.subr.bf16.mxu0 0
      %2596 = vmatpush1.bf16.msra.mxu0 0
      %2597 = vmatprep.subr.bf16.mxu0 0
      %2598 = vmatpush1.bf16.msra.mxu0 0
      %2599 = vmatprep.subr.bf16.mxu0 0
      %2600 = vmatpush1.bf16.msra.mxu0 0
      %2601 = vmatprep.subr.bf16.mxu0 0
      %2602 = vmatpush1.bf16.msra.mxu0 0
      %2603 = vmatprep.subr.bf16.mxu0 0
      %2604 = vmatpush1.bf16.msra.mxu0 0
      %2605 = vmatprep.subr.bf16.mxu0 0
      %2606 = vmatpush1.bf16.msra.mxu0 0
      %2607 = vmatprep.subr.bf16.mxu0 0
      %2608 = vmatpush1.bf16.msra.mxu0 0
      %2609 = vmatprep.mubr.bf16.mxu0 0
      %2610 = vmatmul.mubr.bf16.gmra.mrb[0].mxu0 %v2497
      %v2611 = vpop.f32.mrb[0].mxu0
      %v2612 = vadd.f32 0.0, %v2611
      %v2613 = vpop.f32.mrb[0].mxu0
      %v2614 = vpop.f32.mrb[0].mxu0
      %v2615 = vadd.f32 0.0, %v2614
      %v2616 = vpop.f32.mrb[0].mxu0
      %2617 = vmatprep.mubr.bf16.mxu0 0
      %2618 = vmatmul.mubr.bf16.gmra.mrb[0].mxu0 %v2498
      %v2619 = vpop.f32.mrb[0].mxu0
      %v2620 = vadd.f32 0.0, %v2619
      %v2621 = vpop.f32.mrb[0].mxu0
      %v2622 = vpop.f32.mrb[0].mxu0
      %v2623 = vadd.f32 0.0, %v2622
      %v2624 = vpop.f32.mrb[0].mxu0
      %2625 = vmatprep.mubr.bf16.mxu0 0
      %2626 = vmatmul.mubr.bf16.gmra.mrb[0].mxu0 %v2499
      %v2627 = vpop.f32.mrb[0].mxu0
      %v2628 = vadd.f32 0.0, %v2627
      %v2629 = vpop.f32.mrb[0].mxu0
      %v2630 = vpop.f32.mrb[0].mxu0
      %v2631 = vadd.f32 0.0, %v2630
      %v2632 = vpop.f32.mrb[0].mxu0
      %2633 = vmatprep.mubr.bf16.mxu0 0
      %2634 = vmatmul.mubr.bf16.gmra.mrb[0].mxu0 %v2500
      %v2635 = vpop.f32.mrb[0].mxu0
      %v2636 = vadd.f32 0.0, %v2635
      %v2637 = vpop.f32.mrb[0].mxu0
      %v2638 = vpop.f32.mrb[0].mxu0
      %v2639 = vadd.f32 0.0, %v2638
      %v2640 = vpop.f32.mrb[0].mxu0
      %2641 = vmatprep.mubr.bf16.mxu0 0
      %2642 = vmatmul.mubr.bf16.gmra.mrb[0].mxu0 %v2501
      %v2643 = vpop.f32.mrb[0].mxu0
      %v2644 = vadd.f32 0.0, %v2643
      %v2645 = vpop.f32.mrb[0].mxu0
      %v2646 = vpop.f32.mrb[0].mxu0
      %v2647 = vadd.f32 0.0, %v2646
      %v2648 = vpop.f32.mrb[0].mxu0
      %2649 = vmatprep.mubr.bf16.mxu0 0
      %2650 = vmatmul.mubr.bf16.gmra.mrb[0].mxu0 %v2502
      %v2651 = vpop.f32.mrb[0].mxu0
      %v2652 = vadd.f32 0.0, %v2651
      %v2653 = vpop.f32.mrb[0].mxu0
      %v2654 = vpop.f32.mrb[0].mxu0
      %v2655 = vadd.f32 0.0, %v2654
      %v2656 = vpop.f32.mrb[0].mxu0
      %2657 = vmatprep.mubr.bf16.mxu0 0
      %2658 = vmatmul.mubr.bf16.gmra.mrb[0].mxu0 %v2503
      %v2659 = vpop.f32.mrb[0].mxu0
      %v2660 = vadd.f32 0.0, %v2659
      %v2661 = vpop.f32.mrb[0].mxu0
      %v2662 = vpop.f32.mrb[0].mxu0
      %v2663 = vadd.f32 0.0, %v2662
      %v2664 = vpop.f32.mrb[0].mxu0
      %2665 = vmatprep.mubr.bf16.mxu0 0
      %2666 = vmatmul.mubr.bf16.gmra.mrb[0].mxu0 %v2504
      %v2667 = vpop.f32.mrb[0].mxu0
      %v2668 = vadd.f32 0.0, %v2667
      %v2669 = vpop.f32.mrb[0].mxu0
      %v2670 = vpop.f32.mrb[0].mxu0
      %v2671 = vadd.f32 0.0, %v2670
      %v2672 = vpop.f32.mrb[0].mxu0
      %2673 = vmatprep.mubr.bf16.mxu0 0
      %2674 = vmatmul.mubr.bf16.gmra.mrb[0].mxu0 %v2505
      %v2675 = vpop.f32.mrb[0].mxu0
      %v2676 = vadd.f32 0.0, %v2675
      %v2677 = vpop.f32.mrb[0].mxu0
      %v2678 = vpop.f32.mrb[0].mxu0
      %v2679 = vadd.f32 0.0, %v2678
      %v2680 = vpop.f32.mrb[0].mxu0
      %2681 = vmatprep.mubr.bf16.mxu0 0
      %2682 = vmatmul.mubr.bf16.gmra.mrb[0].mxu0 %v2506
      %v2683 = vpop.f32.mrb[0].mxu0
      %v2684 = vadd.f32 0.0, %v2683
      %v2685 = vpop.f32.mrb[0].mxu0
      %v2686 = vpop.f32.mrb[0].mxu0
      %v2687 = vadd.f32 0.0, %v2686
      %v2688 = vpop.f32.mrb[0].mxu0
      %2689 = vmatprep.mubr.bf16.mxu0 0
      %2690 = vmatmul.mubr.bf16.gmra.mrb[0].mxu0 %v2507
      %v2691 = vpop.f32.mrb[0].mxu0
      %v2692 = vadd.f32 0.0, %v2691
      %v2693 = vpop.f32.mrb[0].mxu0
      %v2694 = vpop.f32.mrb[0].mxu0
      %v2695 = vadd.f32 0.0, %v2694
      %v2696 = vpop.f32.mrb[0].mxu0
      %2697 = vmatprep.mubr.bf16.mxu0 0
      %2698 = vmatmul.mubr.bf16.gmra.mrb[0].mxu0 %v2508
      %v2699 = vpop.f32.mrb[0].mxu0
      %v2700 = vadd.f32 0.0, %v2699
      %v2701 = vpop.f32.mrb[0].mxu0
      %v2702 = vpop.f32.mrb[0].mxu0
      %v2703 = vadd.f32 0.0, %v2702
      %v2704 = vpop.f32.mrb[0].mxu0
      %2705 = vmatprep.mubr.bf16.mxu0 0
      %2706 = vmatmul.mubr.bf16.gmra.mrb[0].mxu0 %v2509
      %v2707 = vpop.f32.mrb[0].mxu0
      %v2708 = vadd.f32 0.0, %v2707
      %v2709 = vpop.f32.mrb[0].mxu0
      %v2710 = vpop.f32.mrb[0].mxu0
      %v2711 = vadd.f32 0.0, %v2710
      %v2712 = vpop.f32.mrb[0].mxu0
      %2713 = vmatprep.mubr.bf16.mxu0 0
      %2714 = vmatmul.mubr.bf16.gmra.mrb[0].mxu0 %v2510
      %v2715 = vpop.f32.mrb[0].mxu0
      %v2716 = vadd.f32 0.0, %v2715
      %v2717 = vpop.f32.mrb[0].mxu0
      %v2718 = vpop.f32.mrb[0].mxu0
      %v2719 = vadd.f32 0.0, %v2718
      %v2720 = vpop.f32.mrb[0].mxu0
      %2721 = vmatprep.mubr.bf16.mxu0 0
      %2722 = vmatmul.mubr.bf16.gmra.mrb[0].mxu0 %v2511
      %v2723 = vpop.f32.mrb[0].mxu0
      %v2724 = vadd.f32 0.0, %v2723
      %v2725 = vpop.f32.mrb[0].mxu0
      %v2726 = vpop.f32.mrb[0].mxu0
      %v2727 = vadd.f32 0.0, %v2726
      %v2728 = vpop.f32.mrb[0].mxu0
      %2729 = vmatprep.mubr.bf16.mxu0 0
      %2730 = vmatmul.mubr.bf16.gmra.mrb[0].mxu0 %v2512
      %v2731 = vpop.f32.mrb[0].mxu0
      %v2732 = vadd.f32 0.0, %v2731
      %v2733 = vpop.f32.mrb[0].mxu0
      %v2734 = vpop.f32.mrb[0].mxu0
      %v2735 = vadd.f32 0.0, %v2734
      %v2736 = vpop.f32.mrb[0].mxu0
      %2737 = vdwg.mxu0
      %v2738 = vadd.f32 %v2465, %v2612
      %v2739 = vadd.f32 %v2466, %v2615
      %v2740 = vadd.f32 %v2467, %v2620
      %v2741 = vadd.f32 %v2468, %v2623
      %v2742 = vadd.f32 %v2469, %v2628
      %v2743 = vadd.f32 %v2470, %v2631
      %v2744 = vadd.f32 %v2471, %v2636
      %v2745 = vadd.f32 %v2472, %v2639
      %v2746 = vadd.f32 %v2473, %v2644
      %v2747 = vadd.f32 %v2474, %v2647
      %v2748 = vadd.f32 %v2475, %v2652
      %v2749 = vadd.f32 %v2476, %v2655
      %v2750 = vadd.f32 %v2477, %v2660
      %v2751 = vadd.f32 %v2478, %v2663
      %v2752 = vadd.f32 %v2479, %v2668
      %v2753 = vadd.f32 %v2480, %v2671
      %v2754 = vadd.f32 %v2481, %v2676
      %v2755 = vadd.f32 %v2482, %v2679
      %v2756 = vadd.f32 %v2483, %v2684
      %v2757 = vadd.f32 %v2484, %v2687
      %v2758 = vadd.f32 %v2485, %v2692
      %v2759 = vadd.f32 %v2486, %v2695
      %v2760 = vadd.f32 %v2487, %v2700
      %v2761 = vadd.f32 %v2488, %v2703
      %v2762 = vadd.f32 %v2489, %v2708
      %v2763 = vadd.f32 %v2490, %v2711
      %v2764 = vadd.f32 %v2491, %v2716
      %v2765 = vadd.f32 %v2492, %v2719
      %v2766 = vadd.f32 %v2493, %v2724
      %v2767 = vadd.f32 %v2494, %v2727
      %v2768 = vadd.f32 %v2495, %v2732
      %v2769 = vadd.f32 %v2496, %v2735
      %s2770 = scalar_lea.vmem %s4, 1280
      %v2771 = vld [vmem:[%s2770] sm:$0xff]
      %v2772 = vld [vmem:[%s2770 + $0x8] sm:$0xff]
      %v2773 = vld [vmem:[%s2770 + $0x10] sm:$0xff]
      %v2774 = vld [vmem:[%s2770 + $0x18] sm:$0xff]
      %v2775 = vld [vmem:[%s2770 + $0x20] sm:$0xff]
      %v2776 = vld [vmem:[%s2770 + $0x28] sm:$0xff]
      %v2777 = vld [vmem:[%s2770 + $0x30] sm:$0xff]
      %v2778 = vld [vmem:[%s2770 + $0x38] sm:$0xff]
      %v2779 = vld [vmem:[%s2770 + $0x40] sm:$0xff]
      %v2780 = vld [vmem:[%s2770 + $0x48] sm:$0xff]
      %v2781 = vld [vmem:[%s2770 + $0x50] sm:$0xff]
      %v2782 = vld [vmem:[%s2770 + $0x58] sm:$0xff]
      %v2783 = vld [vmem:[%s2770 + $0x60] sm:$0xff]
      %v2784 = vld [vmem:[%s2770 + $0x68] sm:$0xff]
      %v2785 = vld [vmem:[%s2770 + $0x70] sm:$0xff]
      %v2786 = vld [vmem:[%s2770 + $0x78] sm:$0xff]
      %v2787 = vld [vmem:[%s2770 + $0x80] sm:$0xff]
      %v2788 = vld [vmem:[%s2770 + $0x88] sm:$0xff]
      %v2789 = vld [vmem:[%s2770 + $0x90] sm:$0xff]
      %v2790 = vld [vmem:[%s2770 + $0x98] sm:$0xff]
      %v2791 = vld [vmem:[%s2770 + $0xa0] sm:$0xff]
      %v2792 = vld [vmem:[%s2770 + $0xa8] sm:$0xff]
      %v2793 = vld [vmem:[%s2770 + $0xb0] sm:$0xff]
      %v2794 = vld [vmem:[%s2770 + $0xb8] sm:$0xff]
      %v2795 = vld [vmem:[%s2770 + $0xc0] sm:$0xff]
      %v2796 = vld [vmem:[%s2770 + $0xc8] sm:$0xff]
      %v2797 = vld [vmem:[%s2770 + $0xd0] sm:$0xff]
      %v2798 = vld [vmem:[%s2770 + $0xd8] sm:$0xff]
      %v2799 = vld [vmem:[%s2770 + $0xe0] sm:$0xff]
      %v2800 = vld [vmem:[%s2770 + $0xe8] sm:$0xff]
      %v2801 = vld [vmem:[%s2770 + $0xf0] sm:$0xff]
      %v2802 = vld [vmem:[%s2770 + $0xf8] sm:$0xff]
      %2804 = vset.pattern.permute.xlu0 0
      %2805 = vperm.xlu0 %2804, %v2771
      %v2806 = vpop.permute.xlu0 %2805
      %2809 = vset.pattern.permute.xlu0 0
      %2810 = vperm.xlu0 %2809, %v2772
      %v2811 = vpop.permute.xlu0 %2810
      %2814 = vset.pattern.permute.xlu0 0
      %2815 = vperm.xlu0 %2814, %v2773
      %v2816 = vpop.permute.xlu0 %2815
      %2819 = vset.pattern.permute.xlu0 0
      %2820 = vperm.xlu0 %2819, %v2774
      %v2821 = vpop.permute.xlu0 %2820
      %2824 = vset.pattern.permute.xlu0 0
      %2825 = vperm.xlu0 %2824, %v2775
      %v2826 = vpop.permute.xlu0 %2825
      %2829 = vset.pattern.permute.xlu0 0
      %2830 = vperm.xlu0 %2829, %v2776
      %v2831 = vpop.permute.xlu0 %2830
      %2834 = vset.pattern.permute.xlu0 0
      %2835 = vperm.xlu0 %2834, %v2777
      %v2836 = vpop.permute.xlu0 %2835
      %2839 = vset.pattern.permute.xlu0 0
      %2840 = vperm.xlu0 %2839, %v2778
      %v2841 = vpop.permute.xlu0 %2840
      %2844 = vset.pattern.permute.xlu0 0
      %2845 = vperm.xlu0 %2844, %v2779
      %v2846 = vpop.permute.xlu0 %2845
      %2849 = vset.pattern.permute.xlu0 0
      %2850 = vperm.xlu0 %2849, %v2780
      %v2851 = vpop.permute.xlu0 %2850
      %2854 = vset.pattern.permute.xlu0 0
      %2855 = vperm.xlu0 %2854, %v2781
      %v2856 = vpop.permute.xlu0 %2855
      %2859 = vset.pattern.permute.xlu0 0
      %2860 = vperm.xlu0 %2859, %v2782
      %v2861 = vpop.permute.xlu0 %2860
      %2864 = vset.pattern.permute.xlu0 0
      %2865 = vperm.xlu0 %2864, %v2783
      %v2866 = vpop.permute.xlu0 %2865
      %2869 = vset.pattern.permute.xlu0 0
      %2870 = vperm.xlu0 %2869, %v2784
      %v2871 = vpop.permute.xlu0 %2870
      %2874 = vset.pattern.permute.xlu0 0
      %2875 = vperm.xlu0 %2874, %v2785
      %v2876 = vpop.permute.xlu0 %2875
      %2879 = vset.pattern.permute.xlu0 0
      %2880 = vperm.xlu0 %2879, %v2786
      %v2881 = vpop.permute.xlu0 %2880
      %2884 = vset.pattern.permute.xlu0 0
      %2885 = vperm.xlu0 %2884, %v2787
      %v2886 = vpop.permute.xlu0 %2885
      %2889 = vset.pattern.permute.xlu0 0
      %2890 = vperm.xlu0 %2889, %v2788
      %v2891 = vpop.permute.xlu0 %2890
      %2894 = vset.pattern.permute.xlu0 0
      %2895 = vperm.xlu0 %2894, %v2789
      %v2896 = vpop.permute.xlu0 %2895
      %2899 = vset.pattern.permute.xlu0 0
      %2900 = vperm.xlu0 %2899, %v2790
      %v2901 = vpop.permute.xlu0 %2900
      %2904 = vset.pattern.permute.xlu0 0
      %2905 = vperm.xlu0 %2904, %v2791
      %v2906 = vpop.permute.xlu0 %2905
      %2909 = vset.pattern.permute.xlu0 0
      %2910 = vperm.xlu0 %2909, %v2792
      %v2911 = vpop.permute.xlu0 %2910
      %2914 = vset.pattern.permute.xlu0 0
      %2915 = vperm.xlu0 %2914, %v2793
      %v2916 = vpop.permute.xlu0 %2915
      %2919 = vset.pattern.permute.xlu0 0
      %2920 = vperm.xlu0 %2919, %v2794
      %v2921 = vpop.permute.xlu0 %2920
      %2924 = vset.pattern.permute.xlu0 0
      %2925 = vperm.xlu0 %2924, %v2795
      %v2926 = vpop.permute.xlu0 %2925
      %2929 = vset.pattern.permute.xlu0 0
      %2930 = vperm.xlu0 %2929, %v2796
      %v2931 = vpop.permute.xlu0 %2930
      %2934 = vset.pattern.permute.xlu0 0
      %2935 = vperm.xlu0 %2934, %v2797
      %v2936 = vpop.permute.xlu0 %2935
      %2939 = vset.pattern.permute.xlu0 0
      %2940 = vperm.xlu0 %2939, %v2798
      %v2941 = vpop.permute.xlu0 %2940
      %2944 = vset.pattern.permute.xlu0 0
      %2945 = vperm.xlu0 %2944, %v2799
      %v2946 = vpop.permute.xlu0 %2945
      %2949 = vset.pattern.permute.xlu0 0
      %2950 = vperm.xlu0 %2949, %v2800
      %v2951 = vpop.permute.xlu0 %2950
      %2954 = vset.pattern.permute.xlu0 0
      %2955 = vperm.xlu0 %2954, %v2801
      %v2956 = vpop.permute.xlu0 %2955
      %2959 = vset.pattern.permute.xlu0 0
      %2960 = vperm.xlu0 %2959, %v2802
      %v2961 = vpop.permute.xlu0 %2960
      %v2963 = vmul.f32 %v1499, %v2806
      %v2964 = vmul.f32 %v1498, %v2811
      %v2965 = vmul.f32 %v1497, %v2816
      %v2966 = vmul.f32 %v1496, %v2821
      %v2967 = vmul.f32 %v1495, %v2826
      %v2968 = vmul.f32 %v1494, %v2831
      %v2969 = vmul.f32 %v1493, %v2836
      %v2970 = vmul.f32 %v1492, %v2841
      %v2971 = vmul.f32 %v1491, %v2846
      %v2972 = vmul.f32 %v1490, %v2851
      %v2973 = vmul.f32 %v1489, %v2856
      %v2974 = vmul.f32 %v1488, %v2861
      %v2975 = vmul.f32 %v1487, %v2866
      %v2976 = vmul.f32 %v1486, %v2871
      %v2977 = vmul.f32 %v1485, %v2876
      %v2978 = vmul.f32 %v1484, %v2881
      %v2979 = vmul.f32 %v1483, %v2886
      %v2980 = vmul.f32 %v1482, %v2891
      %v2981 = vmul.f32 %v1481, %v2896
      %v2982 = vmul.f32 %v1480, %v2901
      %v2983 = vmul.f32 %v1479, %v2906
      %v2984 = vmul.f32 %v1478, %v2911
      %v2985 = vmul.f32 %v1477, %v2916
      %v2986 = vmul.f32 %v1476, %v2921
      %v2987 = vmul.f32 %v1475, %v2926
      %v2988 = vmul.f32 %v1474, %v2931
      %v2989 = vmul.f32 %v1473, %v2936
      %v2990 = vmul.f32 %v1472, %v2941
      %v2991 = vmul.f32 %v1471, %v2946
      %v2992 = vmul.f32 %v1470, %v2951
      %v2993 = vmul.f32 %v1469, %v2956
      %v2994 = vmul.f32 %v1500, %v2961
      %v2995 = vpack.c.bf16 %v2964, %v2963
      %v2996 = vpack.c.bf16 %v2966, %v2965
      %v2997 = vpack.c.bf16 %v2968, %v2967
      %v2998 = vpack.c.bf16 %v2970, %v2969
      %v2999 = vpack.c.bf16 %v2972, %v2971
      %v3000 = vpack.c.bf16 %v2974, %v2973
      %v3001 = vpack.c.bf16 %v2976, %v2975
      %v3002 = vpack.c.bf16 %v2978, %v2977
      %v3003 = vpack.c.bf16 %v2980, %v2979
      %v3004 = vpack.c.bf16 %v2982, %v2981
      %v3005 = vpack.c.bf16 %v2984, %v2983
      %v3006 = vpack.c.bf16 %v2986, %v2985
      %v3007 = vpack.c.bf16 %v2988, %v2987
      %v3008 = vpack.c.bf16 %v2990, %v2989
      %v3009 = vpack.c.bf16 %v2992, %v2991
      %v3010 = vpack.c.bf16 %v2994, %v2993
      %v3011 = vld [vmem:[%s3 + $0x140] sm:$0xf]
      %v3012 = vld [vmem:[%s3 + $0x144] sm:$0xf]
      %v3013 = vld [vmem:[%s3 + $0x148] sm:$0xf]
      %v3014 = vld [vmem:[%s3 + $0x14c] sm:$0xf]
      %v3015 = vld [vmem:[%s3 + $0x150] sm:$0xf]
      %v3016 = vld [vmem:[%s3 + $0x154] sm:$0xf]
      %v3017 = vld [vmem:[%s3 + $0x158] sm:$0xf]
      %v3018 = vld [vmem:[%s3 + $0x15c] sm:$0xf]
      %v3019 = vld [vmem:[%s3 + $0x160] sm:$0xf]
      %v3020 = vld [vmem:[%s3 + $0x164] sm:$0xf]
      %v3021 = vld [vmem:[%s3 + $0x168] sm:$0xf]
      %v3022 = vld [vmem:[%s3 + $0x16c] sm:$0xf]
      %v3023 = vld [vmem:[%s3 + $0x170] sm:$0xf]
      %v3024 = vld [vmem:[%s3 + $0x174] sm:$0xf]
      %v3025 = vld [vmem:[%s3 + $0x178] sm:$0xf]
      %v3026 = vld [vmem:[%s3 + $0x17c] sm:$0xf]
      %v3043 = vunpack.c.l.b16 %v3011
      %v3044 = vunpack.c.l.b16 %v3012
      %v3045 = vunpack.c.l.b16 %v3013
      %v3046 = vunpack.c.l.b16 %v3014
      %v3047 = vunpack.c.l.b16 %v3015
      %v3048 = vunpack.c.l.b16 %v3016
      %v3049 = vunpack.c.l.b16 %v3017
      %v3050 = vunpack.c.l.b16 %v3018
      %v3051 = vunpack.c.l.b16 %v3019
      %v3052 = vunpack.c.l.b16 %v3020
      %v3053 = vunpack.c.l.b16 %v3021
      %v3054 = vunpack.c.l.b16 %v3022
      %v3055 = vunpack.c.l.b16 %v3023
      %v3056 = vunpack.c.l.b16 %v3024
      %v3057 = vunpack.c.l.b16 %v3025
      %v3058 = vunpack.c.l.b16 %v3026
      %v3059 = vpack.c.b16 %v3044, %v3043
      %v3060 = vpack.c.b16 %v3046, %v3045
      %v3061 = vpack.c.b16 %v3048, %v3047
      %v3062 = vpack.c.b16 %v3050, %v3049
      %v3063 = vpack.c.b16 %v3052, %v3051
      %v3064 = vpack.c.b16 %v3054, %v3053
      %v3065 = vpack.c.b16 %v3056, %v3055
      %v3066 = vpack.c.b16 %v3058, %v3057
      %3075 = vmatprep.subr.bf16.mxu0 0
      %3076 = vmatpush1.bf16.msra.mxu0 %v3059
      %3077 = vmatprep.subr.bf16.mxu0 0
      %3078 = vmatpush1.bf16.msra.mxu0 %v3060
      %3079 = vmatprep.subr.bf16.mxu0 0
      %3080 = vmatpush1.bf16.msra.mxu0 %v3061
      %3081 = vmatprep.subr.bf16.mxu0 0
      %3082 = vmatpush1.bf16.msra.mxu0 %v3062
      %3083 = vmatprep.subr.bf16.mxu0 0
      %3084 = vmatpush1.bf16.msra.mxu0 %v3063
      %3085 = vmatprep.subr.bf16.mxu0 0
      %3086 = vmatpush1.bf16.msra.mxu0 %v3064
      %3087 = vmatprep.subr.bf16.mxu0 0
      %3088 = vmatpush1.bf16.msra.mxu0 %v3065
      %3089 = vmatprep.subr.bf16.mxu0 0
      %3090 = vmatpush1.bf16.msra.mxu0 %v3066
      %3091 = vmatprep.subr.bf16.mxu0 0
      %3092 = vmatpush1.bf16.msra.mxu0 0
      %3093 = vmatprep.subr.bf16.mxu0 0
      %3094 = vmatpush1.bf16.msra.mxu0 0
      %3095 = vmatprep.subr.bf16.mxu0 0
      %3096 = vmatpush1.bf16.msra.mxu0 0
      %3097 = vmatprep.subr.bf16.mxu0 0
      %3098 = vmatpush1.bf16.msra.mxu0 0
      %3099 = vmatprep.subr.bf16.mxu0 0
      %3100 = vmatpush1.bf16.msra.mxu0 0
      %3101 = vmatprep.subr.bf16.mxu0 0
      %3102 = vmatpush1.bf16.msra.mxu0 0
      %3103 = vmatprep.subr.bf16.mxu0 0
      %3104 = vmatpush1.bf16.msra.mxu0 0
      %3105 = vmatprep.subr.bf16.mxu0 0
      %3106 = vmatpush1.bf16.msra.mxu0 0
      %3107 = vmatprep.mubr.bf16.mxu0 0
      %3108 = vmatmul.mubr.bf16.gmra.mrb[0].mxu0 %v2995
      %v3109 = vpop.f32.mrb[0].mxu0
      %v3110 = vadd.f32 0.0, %v3109
      %v3111 = vpop.f32.mrb[0].mxu0
      %v3112 = vpop.f32.mrb[0].mxu0
      %v3113 = vadd.f32 0.0, %v3112
      %v3114 = vpop.f32.mrb[0].mxu0
      %3115 = vmatprep.mubr.bf16.mxu0 0
      %3116 = vmatmul.mubr.bf16.gmra.mrb[0].mxu0 %v2996
      %v3117 = vpop.f32.mrb[0].mxu0
      %v3118 = vadd.f32 0.0, %v3117
      %v3119 = vpop.f32.mrb[0].mxu0
      %v3120 = vpop.f32.mrb[0].mxu0
      %v3121 = vadd.f32 0.0, %v3120
      %v3122 = vpop.f32.mrb[0].mxu0
      %3123 = vmatprep.mubr.bf16.mxu0 0
      %3124 = vmatmul.mubr.bf16.gmra.mrb[0].mxu0 %v2997
      %v3125 = vpop.f32.mrb[0].mxu0
      %v3126 = vadd.f32 0.0, %v3125
      %v3127 = vpop.f32.mrb[0].mxu0
      %v3128 = vpop.f32.mrb[0].mxu0
      %v3129 = vadd.f32 0.0, %v3128
      %v3130 = vpop.f32.mrb[0].mxu0
      %3131 = vmatprep.mubr.bf16.mxu0 0
      %3132 = vmatmul.mubr.bf16.gmra.mrb[0].mxu0 %v2998
      %v3133 = vpop.f32.mrb[0].mxu0
      %v3134 = vadd.f32 0.0, %v3133
      %v3135 = vpop.f32.mrb[0].mxu0
      %v3136 = vpop.f32.mrb[0].mxu0
      %v3137 = vadd.f32 0.0, %v3136
      %v3138 = vpop.f32.mrb[0].mxu0
      %3139 = vmatprep.mubr.bf16.mxu0 0
      %3140 = vmatmul.mubr.bf16.gmra.mrb[0].mxu0 %v2999
      %v3141 = vpop.f32.mrb[0].mxu0
      %v3142 = vadd.f32 0.0, %v3141
      %v3143 = vpop.f32.mrb[0].mxu0
      %v3144 = vpop.f32.mrb[0].mxu0
      %v3145 = vadd.f32 0.0, %v3144
      %v3146 = vpop.f32.mrb[0].mxu0
      %3147 = vmatprep.mubr.bf16.mxu0 0
      %3148 = vmatmul.mubr.bf16.gmra.mrb[0].mxu0 %v3000
      %v3149 = vpop.f32.mrb[0].mxu0
      %v3150 = vadd.f32 0.0, %v3149
      %v3151 = vpop.f32.mrb[0].mxu0
      %v3152 = vpop.f32.mrb[0].mxu0
      %v3153 = vadd.f32 0.0, %v3152
      %v3154 = vpop.f32.mrb[0].mxu0
      %3155 = vmatprep.mubr.bf16.mxu0 0
      %3156 = vmatmul.mubr.bf16.gmra.mrb[0].mxu0 %v3001
      %v3157 = vpop.f32.mrb[0].mxu0
      %v3158 = vadd.f32 0.0, %v3157
      %v3159 = vpop.f32.mrb[0].mxu0
      %v3160 = vpop.f32.mrb[0].mxu0
      %v3161 = vadd.f32 0.0, %v3160
      %v3162 = vpop.f32.mrb[0].mxu0
      %3163 = vmatprep.mubr.bf16.mxu0 0
      %3164 = vmatmul.mubr.bf16.gmra.mrb[0].mxu0 %v3002
      %v3165 = vpop.f32.mrb[0].mxu0
      %v3166 = vadd.f32 0.0, %v3165
      %v3167 = vpop.f32.mrb[0].mxu0
      %v3168 = vpop.f32.mrb[0].mxu0
      %v3169 = vadd.f32 0.0, %v3168
      %v3170 = vpop.f32.mrb[0].mxu0
      %3171 = vmatprep.mubr.bf16.mxu0 0
      %3172 = vmatmul.mubr.bf16.gmra.mrb[0].mxu0 %v3003
      %v3173 = vpop.f32.mrb[0].mxu0
      %v3174 = vadd.f32 0.0, %v3173
      %v3175 = vpop.f32.mrb[0].mxu0
      %v3176 = vpop.f32.mrb[0].mxu0
      %v3177 = vadd.f32 0.0, %v3176
      %v3178 = vpop.f32.mrb[0].mxu0
      %3179 = vmatprep.mubr.bf16.mxu0 0
      %3180 = vmatmul.mubr.bf16.gmra.mrb[0].mxu0 %v3004
      %v3181 = vpop.f32.mrb[0].mxu0
      %v3182 = vadd.f32 0.0, %v3181
      %v3183 = vpop.f32.mrb[0].mxu0
      %v3184 = vpop.f32.mrb[0].mxu0
      %v3185 = vadd.f32 0.0, %v3184
      %v3186 = vpop.f32.mrb[0].mxu0
      %3187 = vmatprep.mubr.bf16.mxu0 0
      %3188 = vmatmul.mubr.bf16.gmra.mrb[0].mxu0 %v3005
      %v3189 = vpop.f32.mrb[0].mxu0
      %v3190 = vadd.f32 0.0, %v3189
      %v3191 = vpop.f32.mrb[0].mxu0
      %v3192 = vpop.f32.mrb[0].mxu0
      %v3193 = vadd.f32 0.0, %v3192
      %v3194 = vpop.f32.mrb[0].mxu0
      %3195 = vmatprep.mubr.bf16.mxu0 0
      %3196 = vmatmul.mubr.bf16.gmra.mrb[0].mxu0 %v3006
      %v3197 = vpop.f32.mrb[0].mxu0
      %v3198 = vadd.f32 0.0, %v3197
      %v3199 = vpop.f32.mrb[0].mxu0
      %v3200 = vpop.f32.mrb[0].mxu0
      %v3201 = vadd.f32 0.0, %v3200
      %v3202 = vpop.f32.mrb[0].mxu0
      %3203 = vmatprep.mubr.bf16.mxu0 0
      %3204 = vmatmul.mubr.bf16.gmra.mrb[0].mxu0 %v3007
      %v3205 = vpop.f32.mrb[0].mxu0
      %v3206 = vadd.f32 0.0, %v3205
      %v3207 = vpop.f32.mrb[0].mxu0
      %v3208 = vpop.f32.mrb[0].mxu0
      %v3209 = vadd.f32 0.0, %v3208
      %v3210 = vpop.f32.mrb[0].mxu0
      %3211 = vmatprep.mubr.bf16.mxu0 0
      %3212 = vmatmul.mubr.bf16.gmra.mrb[0].mxu0 %v3008
      %v3213 = vpop.f32.mrb[0].mxu0
      %v3214 = vadd.f32 0.0, %v3213
      %v3215 = vpop.f32.mrb[0].mxu0
      %v3216 = vpop.f32.mrb[0].mxu0
      %v3217 = vadd.f32 0.0, %v3216
      %v3218 = vpop.f32.mrb[0].mxu0
      %3219 = vmatprep.mubr.bf16.mxu0 0
      %3220 = vmatmul.mubr.bf16.gmra.mrb[0].mxu0 %v3009
      %v3221 = vpop.f32.mrb[0].mxu0
      %v3222 = vadd.f32 0.0, %v3221
      %v3223 = vpop.f32.mrb[0].mxu0
      %v3224 = vpop.f32.mrb[0].mxu0
      %v3225 = vadd.f32 0.0, %v3224
      %v3226 = vpop.f32.mrb[0].mxu0
      %3227 = vmatprep.mubr.bf16.mxu0 0
      %3228 = vmatmul.mubr.bf16.gmra.mrb[0].mxu0 %v3010
      %v3229 = vpop.f32.mrb[0].mxu0
      %v3230 = vadd.f32 0.0, %v3229
      %v3231 = vpop.f32.mrb[0].mxu0
      %v3232 = vpop.f32.mrb[0].mxu0
      %v3233 = vadd.f32 0.0, %v3232
      %v3234 = vpop.f32.mrb[0].mxu0
      %3235 = vdwg.mxu0
      %v3236 = vadd.f32 %v2738, %v3110
      %v3237 = vadd.f32 %v2739, %v3113
      %v3238 = vadd.f32 %v2740, %v3118
      %v3239 = vadd.f32 %v2741, %v3121
      %v3240 = vadd.f32 %v2742, %v3126
      %v3241 = vadd.f32 %v2743, %v3129
      %v3242 = vadd.f32 %v2744, %v3134
      %v3243 = vadd.f32 %v2745, %v3137
      %v3244 = vadd.f32 %v2746, %v3142
      %v3245 = vadd.f32 %v2747, %v3145
      %v3246 = vadd.f32 %v2748, %v3150
      %v3247 = vadd.f32 %v2749, %v3153
      %v3248 = vadd.f32 %v2750, %v3158
      %v3249 = vadd.f32 %v2751, %v3161
      %v3250 = vadd.f32 %v2752, %v3166
      %v3251 = vadd.f32 %v2753, %v3169
      %v3252 = vadd.f32 %v2754, %v3174
      %v3253 = vadd.f32 %v2755, %v3177
      %v3254 = vadd.f32 %v2756, %v3182
      %v3255 = vadd.f32 %v2757, %v3185
      %v3256 = vadd.f32 %v2758, %v3190
      %v3257 = vadd.f32 %v2759, %v3193
      %v3258 = vadd.f32 %v2760, %v3198
      %v3259 = vadd.f32 %v2761, %v3201
      %v3260 = vadd.f32 %v2762, %v3206
      %v3261 = vadd.f32 %v2763, %v3209
      %v3262 = vadd.f32 %v2764, %v3214
      %v3263 = vadd.f32 %v2765, %v3217
      %v3264 = vadd.f32 %v2766, %v3222
      %v3265 = vadd.f32 %v2767, %v3225
      %v3266 = vadd.f32 %v2768, %v3230
      %v3267 = vadd.f32 %v2769, %v3233
      %s3268 = scalar_lea.vmem %s4, 1536
      %v3269 = vld [vmem:[%s3268] sm:$0xff]
      %v3270 = vld [vmem:[%s3268 + $0x8] sm:$0xff]
      %v3271 = vld [vmem:[%s3268 + $0x10] sm:$0xff]
      %v3272 = vld [vmem:[%s3268 + $0x18] sm:$0xff]
      %v3273 = vld [vmem:[%s3268 + $0x20] sm:$0xff]
      %v3274 = vld [vmem:[%s3268 + $0x28] sm:$0xff]
      %v3275 = vld [vmem:[%s3268 + $0x30] sm:$0xff]
      %v3276 = vld [vmem:[%s3268 + $0x38] sm:$0xff]
      %v3277 = vld [vmem:[%s3268 + $0x40] sm:$0xff]
      %v3278 = vld [vmem:[%s3268 + $0x48] sm:$0xff]
      %v3279 = vld [vmem:[%s3268 + $0x50] sm:$0xff]
      %v3280 = vld [vmem:[%s3268 + $0x58] sm:$0xff]
      %v3281 = vld [vmem:[%s3268 + $0x60] sm:$0xff]
      %v3282 = vld [vmem:[%s3268 + $0x68] sm:$0xff]
      %v3283 = vld [vmem:[%s3268 + $0x70] sm:$0xff]
      %v3284 = vld [vmem:[%s3268 + $0x78] sm:$0xff]
      %v3285 = vld [vmem:[%s3268 + $0x80] sm:$0xff]
      %v3286 = vld [vmem:[%s3268 + $0x88] sm:$0xff]
      %v3287 = vld [vmem:[%s3268 + $0x90] sm:$0xff]
      %v3288 = vld [vmem:[%s3268 + $0x98] sm:$0xff]
      %v3289 = vld [vmem:[%s3268 + $0xa0] sm:$0xff]
      %v3290 = vld [vmem:[%s3268 + $0xa8] sm:$0xff]
      %v3291 = vld [vmem:[%s3268 + $0xb0] sm:$0xff]
      %v3292 = vld [vmem:[%s3268 + $0xb8] sm:$0xff]
      %v3293 = vld [vmem:[%s3268 + $0xc0] sm:$0xff]
      %v3294 = vld [vmem:[%s3268 + $0xc8] sm:$0xff]
      %v3295 = vld [vmem:[%s3268 + $0xd0] sm:$0xff]
      %v3296 = vld [vmem:[%s3268 + $0xd8] sm:$0xff]
      %v3297 = vld [vmem:[%s3268 + $0xe0] sm:$0xff]
      %v3298 = vld [vmem:[%s3268 + $0xe8] sm:$0xff]
      %v3299 = vld [vmem:[%s3268 + $0xf0] sm:$0xff]
      %v3300 = vld [vmem:[%s3268 + $0xf8] sm:$0xff]
      %3302 = vset.pattern.permute.xlu0 0
      %3303 = vperm.xlu0 %3302, %v3269
      %v3304 = vpop.permute.xlu0 %3303
      %3307 = vset.pattern.permute.xlu0 0
      %3308 = vperm.xlu0 %3307, %v3270
      %v3309 = vpop.permute.xlu0 %3308
      %3312 = vset.pattern.permute.xlu0 0
      %3313 = vperm.xlu0 %3312, %v3271
      %v3314 = vpop.permute.xlu0 %3313
      %3317 = vset.pattern.permute.xlu0 0
      %3318 = vperm.xlu0 %3317, %v3272
      %v3319 = vpop.permute.xlu0 %3318
      %3322 = vset.pattern.permute.xlu0 0
      %3323 = vperm.xlu0 %3322, %v3273
      %v3324 = vpop.permute.xlu0 %3323
      %3327 = vset.pattern.permute.xlu0 0
      %3328 = vperm.xlu0 %3327, %v3274
      %v3329 = vpop.permute.xlu0 %3328
      %3332 = vset.pattern.permute.xlu0 0
      %3333 = vperm.xlu0 %3332, %v3275
      %v3334 = vpop.permute.xlu0 %3333
      %3337 = vset.pattern.permute.xlu0 0
      %3338 = vperm.xlu0 %3337, %v3276
      %v3339 = vpop.permute.xlu0 %3338
      %3342 = vset.pattern.permute.xlu0 0
      %3343 = vperm.xlu0 %3342, %v3277
      %v3344 = vpop.permute.xlu0 %3343
      %3347 = vset.pattern.permute.xlu0 0
      %3348 = vperm.xlu0 %3347, %v3278
      %v3349 = vpop.permute.xlu0 %3348
      %3352 = vset.pattern.permute.xlu0 0
      %3353 = vperm.xlu0 %3352, %v3279
      %v3354 = vpop.permute.xlu0 %3353
      %3357 = vset.pattern.permute.xlu0 0
      %3358 = vperm.xlu0 %3357, %v3280
      %v3359 = vpop.permute.xlu0 %3358
      %3362 = vset.pattern.permute.xlu0 0
      %3363 = vperm.xlu0 %3362, %v3281
      %v3364 = vpop.permute.xlu0 %3363
      %3367 = vset.pattern.permute.xlu0 0
      %3368 = vperm.xlu0 %3367, %v3282
      %v3369 = vpop.permute.xlu0 %3368
      %3372 = vset.pattern.permute.xlu0 0
      %3373 = vperm.xlu0 %3372, %v3283
      %v3374 = vpop.permute.xlu0 %3373
      %3377 = vset.pattern.permute.xlu0 0
      %3378 = vperm.xlu0 %3377, %v3284
      %v3379 = vpop.permute.xlu0 %3378
      %3382 = vset.pattern.permute.xlu0 0
      %3383 = vperm.xlu0 %3382, %v3285
      %v3384 = vpop.permute.xlu0 %3383
      %3387 = vset.pattern.permute.xlu0 0
      %3388 = vperm.xlu0 %3387, %v3286
      %v3389 = vpop.permute.xlu0 %3388
      %3392 = vset.pattern.permute.xlu0 0
      %3393 = vperm.xlu0 %3392, %v3287
      %v3394 = vpop.permute.xlu0 %3393
      %3397 = vset.pattern.permute.xlu0 0
      %3398 = vperm.xlu0 %3397, %v3288
      %v3399 = vpop.permute.xlu0 %3398
      %3402 = vset.pattern.permute.xlu0 0
      %3403 = vperm.xlu0 %3402, %v3289
      %v3404 = vpop.permute.xlu0 %3403
      %3407 = vset.pattern.permute.xlu0 0
      %3408 = vperm.xlu0 %3407, %v3290
      %v3409 = vpop.permute.xlu0 %3408
      %3412 = vset.pattern.permute.xlu0 0
      %3413 = vperm.xlu0 %3412, %v3291
      %v3414 = vpop.permute.xlu0 %3413
      %3417 = vset.pattern.permute.xlu0 0
      %3418 = vperm.xlu0 %3417, %v3292
      %v3419 = vpop.permute.xlu0 %3418
      %3422 = vset.pattern.permute.xlu0 0
      %3423 = vperm.xlu0 %3422, %v3293
      %v3424 = vpop.permute.xlu0 %3423
      %3427 = vset.pattern.permute.xlu0 0
      %3428 = vperm.xlu0 %3427, %v3294
      %v3429 = vpop.permute.xlu0 %3428
      %3432 = vset.pattern.permute.xlu0 0
      %3433 = vperm.xlu0 %3432, %v3295
      %v3434 = vpop.permute.xlu0 %3433
      %3437 = vset.pattern.permute.xlu0 0
      %3438 = vperm.xlu0 %3437, %v3296
      %v3439 = vpop.permute.xlu0 %3438
      %3442 = vset.pattern.permute.xlu0 0
      %3443 = vperm.xlu0 %3442, %v3297
      %v3444 = vpop.permute.xlu0 %3443
      %3447 = vset.pattern.permute.xlu0 0
      %3448 = vperm.xlu0 %3447, %v3298
      %v3449 = vpop.permute.xlu0 %3448
      %3452 = vset.pattern.permute.xlu0 0
      %3453 = vperm.xlu0 %3452, %v3299
      %v3454 = vpop.permute.xlu0 %3453
      %3457 = vset.pattern.permute.xlu0 0
      %3458 = vperm.xlu0 %3457, %v3300
      %v3459 = vpop.permute.xlu0 %3458
      %v3461 = vmul.f32 %v502, %v3304
      %v3462 = vmul.f32 %v501, %v3309
      %v3463 = vmul.f32 %v500, %v3314
      %v3464 = vmul.f32 %v499, %v3319
      %v3465 = vmul.f32 %v498, %v3324
      %v3466 = vmul.f32 %v497, %v3329
      %v3467 = vmul.f32 %v496, %v3334
      %v3468 = vmul.f32 %v495, %v3339
      %v3469 = vmul.f32 %v494, %v3344
      %v3470 = vmul.f32 %v493, %v3349
      %v3471 = vmul.f32 %v492, %v3354
      %v3472 = vmul.f32 %v491, %v3359
      %v3473 = vmul.f32 %v490, %v3364
      %v3474 = vmul.f32 %v489, %v3369
      %v3475 = vmul.f32 %v488, %v3374
      %v3476 = vmul.f32 %v487, %v3379
      %v3477 = vmul.f32 %v486, %v3384
      %v3478 = vmul.f32 %v485, %v3389
      %v3479 = vmul.f32 %v484, %v3394
      %v3480 = vmul.f32 %v483, %v3399
      %v3481 = vmul.f32 %v482, %v3404
      %v3482 = vmul.f32 %v481, %v3409
      %v3483 = vmul.f32 %v480, %v3414
      %v3484 = vmul.f32 %v479, %v3419
      %v3485 = vmul.f32 %v478, %v3424
      %v3486 = vmul.f32 %v477, %v3429
      %v3487 = vmul.f32 %v476, %v3434
      %v3488 = vmul.f32 %v475, %v3439
      %v3489 = vmul.f32 %v474, %v3444
      %v3490 = vmul.f32 %v473, %v3449
      %v3491 = vmul.f32 %v504, %v3454
      %v3492 = vmul.f32 %v503, %v3459
      %v3493 = vpack.c.bf16 %v3462, %v3461
      %v3494 = vpack.c.bf16 %v3464, %v3463
      %v3495 = vpack.c.bf16 %v3466, %v3465
      %v3496 = vpack.c.bf16 %v3468, %v3467
      %v3497 = vpack.c.bf16 %v3470, %v3469
      %v3498 = vpack.c.bf16 %v3472, %v3471
      %v3499 = vpack.c.bf16 %v3474, %v3473
      %v3500 = vpack.c.bf16 %v3476, %v3475
      %v3501 = vpack.c.bf16 %v3478, %v3477
      %v3502 = vpack.c.bf16 %v3480, %v3479
      %v3503 = vpack.c.bf16 %v3482, %v3481
      %v3504 = vpack.c.bf16 %v3484, %v3483
      %v3505 = vpack.c.bf16 %v3486, %v3485
      %v3506 = vpack.c.bf16 %v3488, %v3487
      %v3507 = vpack.c.bf16 %v3490, %v3489
      %v3508 = vpack.c.bf16 %v3492, %v3491
      %v3509 = vld [vmem:[%s3 + $0x180] sm:$0xf]
      %v3510 = vld [vmem:[%s3 + $0x184] sm:$0xf]
      %v3511 = vld [vmem:[%s3 + $0x188] sm:$0xf]
      %v3512 = vld [vmem:[%s3 + $0x18c] sm:$0xf]
      %v3513 = vld [vmem:[%s3 + $0x190] sm:$0xf]
      %v3514 = vld [vmem:[%s3 + $0x194] sm:$0xf]
      %v3515 = vld [vmem:[%s3 + $0x198] sm:$0xf]
      %v3516 = vld [vmem:[%s3 + $0x19c] sm:$0xf]
      %v3517 = vld [vmem:[%s3 + $0x1a0] sm:$0xf]
      %v3518 = vld [vmem:[%s3 + $0x1a4] sm:$0xf]
      %v3519 = vld [vmem:[%s3 + $0x1a8] sm:$0xf]
      %v3520 = vld [vmem:[%s3 + $0x1ac] sm:$0xf]
      %v3521 = vld [vmem:[%s3 + $0x1b0] sm:$0xf]
      %v3522 = vld [vmem:[%s3 + $0x1b4] sm:$0xf]
      %v3523 = vld [vmem:[%s3 + $0x1b8] sm:$0xf]
      %v3524 = vld [vmem:[%s3 + $0x1bc] sm:$0xf]
      %v3541 = vunpack.c.l.b16 %v3509
      %v3542 = vunpack.c.l.b16 %v3510
      %v3543 = vunpack.c.l.b16 %v3511
      %v3544 = vunpack.c.l.b16 %v3512
      %v3545 = vunpack.c.l.b16 %v3513
      %v3546 = vunpack.c.l.b16 %v3514
      %v3547 = vunpack.c.l.b16 %v3515
      %v3548 = vunpack.c.l.b16 %v3516
      %v3549 = vunpack.c.l.b16 %v3517
      %v3550 = vunpack.c.l.b16 %v3518
      %v3551 = vunpack.c.l.b16 %v3519
      %v3552 = vunpack.c.l.b16 %v3520
      %v3553 = vunpack.c.l.b16 %v3521
      %v3554 = vunpack.c.l.b16 %v3522
      %v3555 = vunpack.c.l.b16 %v3523
      %v3556 = vunpack.c.l.b16 %v3524
      %v3557 = vpack.c.b16 %v3542, %v3541
      %v3558 = vpack.c.b16 %v3544, %v3543
      %v3559 = vpack.c.b16 %v3546, %v3545
      %v3560 = vpack.c.b16 %v3548, %v3547
      %v3561 = vpack.c.b16 %v3550, %v3549
      %v3562 = vpack.c.b16 %v3552, %v3551
      %v3563 = vpack.c.b16 %v3554, %v3553
      %v3564 = vpack.c.b16 %v3556, %v3555
      %3573 = vmatprep.subr.bf16.mxu0 0
      %3574 = vmatpush1.bf16.msra.mxu0 %v3557
      %3575 = vmatprep.subr.bf16.mxu0 0
      %3576 = vmatpush1.bf16.msra.mxu0 %v3558
      %3577 = vmatprep.subr.bf16.mxu0 0
      %3578 = vmatpush1.bf16.msra.mxu0 %v3559
      %3579 = vmatprep.subr.bf16.mxu0 0
      %3580 = vmatpush1.bf16.msra.mxu0 %v3560
      %3581 = vmatprep.subr.bf16.mxu0 0
      %3582 = vmatpush1.bf16.msra.mxu0 %v3561
      %3583 = vmatprep.subr.bf16.mxu0 0
      %3584 = vmatpush1.bf16.msra.mxu0 %v3562
      %3585 = vmatprep.subr.bf16.mxu0 0
      %3586 = vmatpush1.bf16.msra.mxu0 %v3563
      %3587 = vmatprep.subr.bf16.mxu0 0
      %3588 = vmatpush1.bf16.msra.mxu0 %v3564
      %3589 = vmatprep.subr.bf16.mxu0 0
      %3590 = vmatpush1.bf16.msra.mxu0 0
      %3591 = vmatprep.subr.bf16.mxu0 0
      %3592 = vmatpush1.bf16.msra.mxu0 0
      %3593 = vmatprep.subr.bf16.mxu0 0
      %3594 = vmatpush1.bf16.msra.mxu0 0
      %3595 = vmatprep.subr.bf16.mxu0 0
      %3596 = vmatpush1.bf16.msra.mxu0 0
      %3597 = vmatprep.subr.bf16.mxu0 0
      %3598 = vmatpush1.bf16.msra.mxu0 0
      %3599 = vmatprep.subr.bf16.mxu0 0
      %3600 = vmatpush1.bf16.msra.mxu0 0
      %3601 = vmatprep.subr.bf16.mxu0 0
      %3602 = vmatpush1.bf16.msra.mxu0 0
      %3603 = vmatprep.subr.bf16.mxu0 0
      %3604 = vmatpush1.bf16.msra.mxu0 0
      %3605 = vmatprep.mubr.bf16.mxu0 0
      %3606 = vmatmul.mubr.bf16.gmra.mrb[0].mxu0 %v3493
      %v3607 = vpop.f32.mrb[0].mxu0
      %v3608 = vadd.f32 0.0, %v3607
      %v3609 = vpop.f32.mrb[0].mxu0
      %v3610 = vpop.f32.mrb[0].mxu0
      %v3611 = vadd.f32 0.0, %v3610
      %v3612 = vpop.f32.mrb[0].mxu0
      %3613 = vmatprep.mubr.bf16.mxu0 0
      %3614 = vmatmul.mubr.bf16.gmra.mrb[0].mxu0 %v3494
      %v3615 = vpop.f32.mrb[0].mxu0
      %v3616 = vadd.f32 0.0, %v3615
      %v3617 = vpop.f32.mrb[0].mxu0
      %v3618 = vpop.f32.mrb[0].mxu0
      %v3619 = vadd.f32 0.0, %v3618
      %v3620 = vpop.f32.mrb[0].mxu0
      %3621 = vmatprep.mubr.bf16.mxu0 0
      %3622 = vmatmul.mubr.bf16.gmra.mrb[0].mxu0 %v3495
      %v3623 = vpop.f32.mrb[0].mxu0
      %v3624 = vadd.f32 0.0, %v3623
      %v3625 = vpop.f32.mrb[0].mxu0
      %v3626 = vpop.f32.mrb[0].mxu0
      %v3627 = vadd.f32 0.0, %v3626
      %v3628 = vpop.f32.mrb[0].mxu0
      %3629 = vmatprep.mubr.bf16.mxu0 0
      %3630 = vmatmul.mubr.bf16.gmra.mrb[0].mxu0 %v3496
      %v3631 = vpop.f32.mrb[0].mxu0
      %v3632 = vadd.f32 0.0, %v3631
      %v3633 = vpop.f32.mrb[0].mxu0
      %v3634 = vpop.f32.mrb[0].mxu0
      %v3635 = vadd.f32 0.0, %v3634
      %v3636 = vpop.f32.mrb[0].mxu0
      %3637 = vmatprep.mubr.bf16.mxu0 0
      %3638 = vmatmul.mubr.bf16.gmra.mrb[0].mxu0 %v3497
      %v3639 = vpop.f32.mrb[0].mxu0
      %v3640 = vadd.f32 0.0, %v3639
      %v3641 = vpop.f32.mrb[0].mxu0
      %v3642 = vpop.f32.mrb[0].mxu0
      %v3643 = vadd.f32 0.0, %v3642
      %v3644 = vpop.f32.mrb[0].mxu0
      %3645 = vmatprep.mubr.bf16.mxu0 0
      %3646 = vmatmul.mubr.bf16.gmra.mrb[0].mxu0 %v3498
      %v3647 = vpop.f32.mrb[0].mxu0
      %v3648 = vadd.f32 0.0, %v3647
      %v3649 = vpop.f32.mrb[0].mxu0
      %v3650 = vpop.f32.mrb[0].mxu0
      %v3651 = vadd.f32 0.0, %v3650
      %v3652 = vpop.f32.mrb[0].mxu0
      %3653 = vmatprep.mubr.bf16.mxu0 0
      %3654 = vmatmul.mubr.bf16.gmra.mrb[0].mxu0 %v3499
      %v3655 = vpop.f32.mrb[0].mxu0
      %v3656 = vadd.f32 0.0, %v3655
      %v3657 = vpop.f32.mrb[0].mxu0
      %v3658 = vpop.f32.mrb[0].mxu0
      %v3659 = vadd.f32 0.0, %v3658
      %v3660 = vpop.f32.mrb[0].mxu0
      %3661 = vmatprep.mubr.bf16.mxu0 0
      %3662 = vmatmul.mubr.bf16.gmra.mrb[0].mxu0 %v3500
      %v3663 = vpop.f32.mrb[0].mxu0
      %v3664 = vadd.f32 0.0, %v3663
      %v3665 = vpop.f32.mrb[0].mxu0
      %v3666 = vpop.f32.mrb[0].mxu0
      %v3667 = vadd.f32 0.0, %v3666
      %v3668 = vpop.f32.mrb[0].mxu0
      %3669 = vmatprep.mubr.bf16.mxu0 0
      %3670 = vmatmul.mubr.bf16.gmra.mrb[0].mxu0 %v3501
      %v3671 = vpop.f32.mrb[0].mxu0
      %v3672 = vadd.f32 0.0, %v3671
      %v3673 = vpop.f32.mrb[0].mxu0
      %v3674 = vpop.f32.mrb[0].mxu0
      %v3675 = vadd.f32 0.0, %v3674
      %v3676 = vpop.f32.mrb[0].mxu0
      %3677 = vmatprep.mubr.bf16.mxu0 0
      %3678 = vmatmul.mubr.bf16.gmra.mrb[0].mxu0 %v3502
      %v3679 = vpop.f32.mrb[0].mxu0
      %v3680 = vadd.f32 0.0, %v3679
      %v3681 = vpop.f32.mrb[0].mxu0
      %v3682 = vpop.f32.mrb[0].mxu0
      %v3683 = vadd.f32 0.0, %v3682
      %v3684 = vpop.f32.mrb[0].mxu0
      %3685 = vmatprep.mubr.bf16.mxu0 0
      %3686 = vmatmul.mubr.bf16.gmra.mrb[0].mxu0 %v3503
      %v3687 = vpop.f32.mrb[0].mxu0
      %v3688 = vadd.f32 0.0, %v3687
      %v3689 = vpop.f32.mrb[0].mxu0
      %v3690 = vpop.f32.mrb[0].mxu0
      %v3691 = vadd.f32 0.0, %v3690
      %v3692 = vpop.f32.mrb[0].mxu0
      %3693 = vmatprep.mubr.bf16.mxu0 0
      %3694 = vmatmul.mubr.bf16.gmra.mrb[0].mxu0 %v3504
      %v3695 = vpop.f32.mrb[0].mxu0
      %v3696 = vadd.f32 0.0, %v3695
      %v3697 = vpop.f32.mrb[0].mxu0
      %v3698 = vpop.f32.mrb[0].mxu0
      %v3699 = vadd.f32 0.0, %v3698
      %v3700 = vpop.f32.mrb[0].mxu0
      %3701 = vmatprep.mubr.bf16.mxu0 0
      %3702 = vmatmul.mubr.bf16.gmra.mrb[0].mxu0 %v3505
      %v3703 = vpop.f32.mrb[0].mxu0
      %v3704 = vadd.f32 0.0, %v3703
      %v3705 = vpop.f32.mrb[0].mxu0
      %v3706 = vpop.f32.mrb[0].mxu0
      %v3707 = vadd.f32 0.0, %v3706
      %v3708 = vpop.f32.mrb[0].mxu0
      %3709 = vmatprep.mubr.bf16.mxu0 0
      %3710 = vmatmul.mubr.bf16.gmra.mrb[0].mxu0 %v3506
      %v3711 = vpop.f32.mrb[0].mxu0
      %v3712 = vadd.f32 0.0, %v3711
      %v3713 = vpop.f32.mrb[0].mxu0
      %v3714 = vpop.f32.mrb[0].mxu0
      %v3715 = vadd.f32 0.0, %v3714
      %v3716 = vpop.f32.mrb[0].mxu0
      %3717 = vmatprep.mubr.bf16.mxu0 0
      %3718 = vmatmul.mubr.bf16.gmra.mrb[0].mxu0 %v3507
      %v3719 = vpop.f32.mrb[0].mxu0
      %v3720 = vadd.f32 0.0, %v3719
      %v3721 = vpop.f32.mrb[0].mxu0
      %v3722 = vpop.f32.mrb[0].mxu0
      %v3723 = vadd.f32 0.0, %v3722
      %v3724 = vpop.f32.mrb[0].mxu0
      %3725 = vmatprep.mubr.bf16.mxu0 0
      %3726 = vmatmul.mubr.bf16.gmra.mrb[0].mxu0 %v3508
      %v3727 = vpop.f32.mrb[0].mxu0
      %v3728 = vadd.f32 0.0, %v3727
      %v3729 = vpop.f32.mrb[0].mxu0
      %v3730 = vpop.f32.mrb[0].mxu0
      %v3731 = vadd.f32 0.0, %v3730
      %v3732 = vpop.f32.mrb[0].mxu0
      %3733 = vdwg.mxu0
      %v3734 = vadd.f32 %v3236, %v3608
      %v3735 = vadd.f32 %v3237, %v3611
      %v3736 = vadd.f32 %v3238, %v3616
      %v3737 = vadd.f32 %v3239, %v3619
      %v3738 = vadd.f32 %v3240, %v3624
      %v3739 = vadd.f32 %v3241, %v3627
      %v3740 = vadd.f32 %v3242, %v3632
      %v3741 = vadd.f32 %v3243, %v3635
      %v3742 = vadd.f32 %v3244, %v3640
      %v3743 = vadd.f32 %v3245, %v3643
      %v3744 = vadd.f32 %v3246, %v3648
      %v3745 = vadd.f32 %v3247, %v3651
      %v3746 = vadd.f32 %v3248, %v3656
      %v3747 = vadd.f32 %v3249, %v3659
      %v3748 = vadd.f32 %v3250, %v3664
      %v3749 = vadd.f32 %v3251, %v3667
      %v3750 = vadd.f32 %v3252, %v3672
      %v3751 = vadd.f32 %v3253, %v3675
      %v3752 = vadd.f32 %v3254, %v3680
      %v3753 = vadd.f32 %v3255, %v3683
      %v3754 = vadd.f32 %v3256, %v3688
      %v3755 = vadd.f32 %v3257, %v3691
      %v3756 = vadd.f32 %v3258, %v3696
      %v3757 = vadd.f32 %v3259, %v3699
      %v3758 = vadd.f32 %v3260, %v3704
      %v3759 = vadd.f32 %v3261, %v3707
      %v3760 = vadd.f32 %v3262, %v3712
      %v3761 = vadd.f32 %v3263, %v3715
      %v3762 = vadd.f32 %v3264, %v3720
      %v3763 = vadd.f32 %v3265, %v3723
      %v3764 = vadd.f32 %v3266, %v3728
      %v3765 = vadd.f32 %v3267, %v3731
      %s3766 = scalar_lea.vmem %s4, 1792
      %v3767 = vld [vmem:[%s3766] sm:$0xff]
      %v3768 = vld [vmem:[%s3766 + $0x8] sm:$0xff]
      %v3769 = vld [vmem:[%s3766 + $0x10] sm:$0xff]
      %v3770 = vld [vmem:[%s3766 + $0x18] sm:$0xff]
      %v3771 = vld [vmem:[%s3766 + $0x20] sm:$0xff]
      %v3772 = vld [vmem:[%s3766 + $0x28] sm:$0xff]
      %v3773 = vld [vmem:[%s3766 + $0x30] sm:$0xff]
      %v3774 = vld [vmem:[%s3766 + $0x38] sm:$0xff]
      %v3775 = vld [vmem:[%s3766 + $0x40] sm:$0xff]
      %v3776 = vld [vmem:[%s3766 + $0x48] sm:$0xff]
      %v3777 = vld [vmem:[%s3766 + $0x50] sm:$0xff]
      %v3778 = vld [vmem:[%s3766 + $0x58] sm:$0xff]
      %v3779 = vld [vmem:[%s3766 + $0x60] sm:$0xff]
      %v3780 = vld [vmem:[%s3766 + $0x68] sm:$0xff]
      %v3781 = vld [vmem:[%s3766 + $0x70] sm:$0xff]
      %v3782 = vld [vmem:[%s3766 + $0x78] sm:$0xff]
      %v3783 = vld [vmem:[%s3766 + $0x80] sm:$0xff]
      %v3784 = vld [vmem:[%s3766 + $0x88] sm:$0xff]
      %v3785 = vld [vmem:[%s3766 + $0x90] sm:$0xff]
      %v3786 = vld [vmem:[%s3766 + $0x98] sm:$0xff]
      %v3787 = vld [vmem:[%s3766 + $0xa0] sm:$0xff]
      %v3788 = vld [vmem:[%s3766 + $0xa8] sm:$0xff]
      %v3789 = vld [vmem:[%s3766 + $0xb0] sm:$0xff]
      %v3790 = vld [vmem:[%s3766 + $0xb8] sm:$0xff]
      %v3791 = vld [vmem:[%s3766 + $0xc0] sm:$0xff]
      %v3792 = vld [vmem:[%s3766 + $0xc8] sm:$0xff]
      %v3793 = vld [vmem:[%s3766 + $0xd0] sm:$0xff]
      %v3794 = vld [vmem:[%s3766 + $0xd8] sm:$0xff]
      %v3795 = vld [vmem:[%s3766 + $0xe0] sm:$0xff]
      %v3796 = vld [vmem:[%s3766 + $0xe8] sm:$0xff]
      %v3797 = vld [vmem:[%s3766 + $0xf0] sm:$0xff]
      %v3798 = vld [vmem:[%s3766 + $0xf8] sm:$0xff]
      %3800 = vset.pattern.permute.xlu0 0
      %3801 = vperm.xlu0 %3800, %v3767
      %v3802 = vpop.permute.xlu0 %3801
      %3805 = vset.pattern.permute.xlu0 0
      %3806 = vperm.xlu0 %3805, %v3768
      %v3807 = vpop.permute.xlu0 %3806
      %3810 = vset.pattern.permute.xlu0 0
      %3811 = vperm.xlu0 %3810, %v3769
      %v3812 = vpop.permute.xlu0 %3811
      %3815 = vset.pattern.permute.xlu0 0
      %3816 = vperm.xlu0 %3815, %v3770
      %v3817 = vpop.permute.xlu0 %3816
      %3820 = vset.pattern.permute.xlu0 0
      %3821 = vperm.xlu0 %3820, %v3771
      %v3822 = vpop.permute.xlu0 %3821
      %3825 = vset.pattern.permute.xlu0 0
      %3826 = vperm.xlu0 %3825, %v3772
      %v3827 = vpop.permute.xlu0 %3826
      %3830 = vset.pattern.permute.xlu0 0
      %3831 = vperm.xlu0 %3830, %v3773
      %v3832 = vpop.permute.xlu0 %3831
      %3835 = vset.pattern.permute.xlu0 0
      %3836 = vperm.xlu0 %3835, %v3774
      %v3837 = vpop.permute.xlu0 %3836
      %3840 = vset.pattern.permute.xlu0 0
      %3841 = vperm.xlu0 %3840, %v3775
      %v3842 = vpop.permute.xlu0 %3841
      %3845 = vset.pattern.permute.xlu0 0
      %3846 = vperm.xlu0 %3845, %v3776
      %v3847 = vpop.permute.xlu0 %3846
      %3850 = vset.pattern.permute.xlu0 0
      %3851 = vperm.xlu0 %3850, %v3777
      %v3852 = vpop.permute.xlu0 %3851
      %3855 = vset.pattern.permute.xlu0 0
      %3856 = vperm.xlu0 %3855, %v3778
      %v3857 = vpop.permute.xlu0 %3856
      %3860 = vset.pattern.permute.xlu0 0
      %3861 = vperm.xlu0 %3860, %v3779
      %v3862 = vpop.permute.xlu0 %3861
      %3865 = vset.pattern.permute.xlu0 0
      %3866 = vperm.xlu0 %3865, %v3780
      %v3867 = vpop.permute.xlu0 %3866
      %3870 = vset.pattern.permute.xlu0 0
      %3871 = vperm.xlu0 %3870, %v3781
      %v3872 = vpop.permute.xlu0 %3871
      %3875 = vset.pattern.permute.xlu0 0
      %3876 = vperm.xlu0 %3875, %v3782
      %v3877 = vpop.permute.xlu0 %3876
      %3880 = vset.pattern.permute.xlu0 0
      %3881 = vperm.xlu0 %3880, %v3783
      %v3882 = vpop.permute.xlu0 %3881
      %3885 = vset.pattern.permute.xlu0 0
      %3886 = vperm.xlu0 %3885, %v3784
      %v3887 = vpop.permute.xlu0 %3886
      %3890 = vset.pattern.permute.xlu0 0
      %3891 = vperm.xlu0 %3890, %v3785
      %v3892 = vpop.permute.xlu0 %3891
      %3895 = vset.pattern.permute.xlu0 0
      %3896 = vperm.xlu0 %3895, %v3786
      %v3897 = vpop.permute.xlu0 %3896
      %3900 = vset.pattern.permute.xlu0 0
      %3901 = vperm.xlu0 %3900, %v3787
      %v3902 = vpop.permute.xlu0 %3901
      %3905 = vset.pattern.permute.xlu0 0
      %3906 = vperm.xlu0 %3905, %v3788
      %v3907 = vpop.permute.xlu0 %3906
      %3910 = vset.pattern.permute.xlu0 0
      %3911 = vperm.xlu0 %3910, %v3789
      %v3912 = vpop.permute.xlu0 %3911
      %3915 = vset.pattern.permute.xlu0 0
      %3916 = vperm.xlu0 %3915, %v3790
      %v3917 = vpop.permute.xlu0 %3916
      %3920 = vset.pattern.permute.xlu0 0
      %3921 = vperm.xlu0 %3920, %v3791
      %v3922 = vpop.permute.xlu0 %3921
      %3925 = vset.pattern.permute.xlu0 0
      %3926 = vperm.xlu0 %3925, %v3792
      %v3927 = vpop.permute.xlu0 %3926
      %3930 = vset.pattern.permute.xlu0 0
      %3931 = vperm.xlu0 %3930, %v3793
      %v3932 = vpop.permute.xlu0 %3931
      %3935 = vset.pattern.permute.xlu0 0
      %3936 = vperm.xlu0 %3935, %v3794
      %v3937 = vpop.permute.xlu0 %3936
      %3940 = vset.pattern.permute.xlu0 0
      %3941 = vperm.xlu0 %3940, %v3795
      %v3942 = vpop.permute.xlu0 %3941
      %3945 = vset.pattern.permute.xlu0 0
      %3946 = vperm.xlu0 %3945, %v3796
      %v3947 = vpop.permute.xlu0 %3946
      %3950 = vset.pattern.permute.xlu0 0
      %3951 = vperm.xlu0 %3950, %v3797
      %v3952 = vpop.permute.xlu0 %3951
      %3955 = vset.pattern.permute.xlu0 0
      %3956 = vperm.xlu0 %3955, %v3798
      %v3957 = vpop.permute.xlu0 %3956
      %v3959 = vmul.f32 %v408, %v3802
      %v3960 = vmul.f32 %v409, %v3807
      %v3961 = vmul.f32 %v410, %v3812
      %v3962 = vmul.f32 %v411, %v3817
      %v3963 = vmul.f32 %v412, %v3822
      %v3964 = vmul.f32 %v413, %v3827
      %v3965 = vmul.f32 %v414, %v3832
      %v3966 = vmul.f32 %v415, %v3837
      %v3967 = vmul.f32 %v416, %v3842
      %v3968 = vmul.f32 %v417, %v3847
      %v3969 = vmul.f32 %v418, %v3852
      %v3970 = vmul.f32 %v419, %v3857
      %v3971 = vmul.f32 %v420, %v3862
      %v3972 = vmul.f32 %v421, %v3867
      %v3973 = vmul.f32 %v422, %v3872
      %v3974 = vmul.f32 %v423, %v3877
      %v3975 = vmul.f32 %v424, %v3882
      %v3976 = vmul.f32 %v425, %v3887
      %v3977 = vmul.f32 %v426, %v3892
      %v3978 = vmul.f32 %v427, %v3897
      %v3979 = vmul.f32 %v428, %v3902
      %v3980 = vmul.f32 %v429, %v3907
      %v3981 = vmul.f32 %v430, %v3912
      %v3982 = vmul.f32 %v431, %v3917
      %v3983 = vmul.f32 %v432, %v3922
      %v3984 = vmul.f32 %v433, %v3927
      %v3985 = vmul.f32 %v434, %v3932
      %v3986 = vmul.f32 %v435, %v3937
      %v3987 = vmul.f32 %v436, %v3942
      %v3988 = vmul.f32 %v437, %v3947
      %v3989 = vmul.f32 %v406, %v3952
      %v3990 = vmul.f32 %v407, %v3957
      %v3991 = vpack.c.bf16 %v3960, %v3959
      %v3992 = vpack.c.bf16 %v3962, %v3961
      %v3993 = vpack.c.bf16 %v3964, %v3963
      %v3994 = vpack.c.bf16 %v3966, %v3965
      %v3995 = vpack.c.bf16 %v3968, %v3967
      %v3996 = vpack.c.bf16 %v3970, %v3969
      %v3997 = vpack.c.bf16 %v3972, %v3971
      %v3998 = vpack.c.bf16 %v3974, %v3973
      %v3999 = vpack.c.bf16 %v3976, %v3975
      %v4000 = vpack.c.bf16 %v3978, %v3977
      %v4001 = vpack.c.bf16 %v3980, %v3979
      %v4002 = vpack.c.bf16 %v3982, %v3981
      %v4003 = vpack.c.bf16 %v3984, %v3983
      %v4004 = vpack.c.bf16 %v3986, %v3985
      %v4005 = vpack.c.bf16 %v3988, %v3987
      %v4006 = vpack.c.bf16 %v3990, %v3989
      %v4007 = vld [vmem:[%s3 + $0x1c0] sm:$0xf]
      %v4008 = vld [vmem:[%s3 + $0x1c4] sm:$0xf]
      %v4009 = vld [vmem:[%s3 + $0x1c8] sm:$0xf]
      %v4010 = vld [vmem:[%s3 + $0x1cc] sm:$0xf]
      %v4011 = vld [vmem:[%s3 + $0x1d0] sm:$0xf]
      %v4012 = vld [vmem:[%s3 + $0x1d4] sm:$0xf]
      %v4013 = vld [vmem:[%s3 + $0x1d8] sm:$0xf]
      %v4014 = vld [vmem:[%s3 + $0x1dc] sm:$0xf]
      %v4015 = vld [vmem:[%s3 + $0x1e0] sm:$0xf]
      %v4016 = vld [vmem:[%s3 + $0x1e4] sm:$0xf]
      %v4017 = vld [vmem:[%s3 + $0x1e8] sm:$0xf]
      %v4018 = vld [vmem:[%s3 + $0x1ec] sm:$0xf]
      %v4019 = vld [vmem:[%s3 + $0x1f0] sm:$0xf]
      %v4020 = vld [vmem:[%s3 + $0x1f4] sm:$0xf]
      %v4021 = vld [vmem:[%s3 + $0x1f8] sm:$0xf]
      %v4022 = vld [vmem:[%s3 + $0x1fc] sm:$0xf]
      %v4039 = vunpack.c.l.b16 %v4007
      %v4040 = vunpack.c.l.b16 %v4008
      %v4041 = vunpack.c.l.b16 %v4009
      %v4042 = vunpack.c.l.b16 %v4010
      %v4043 = vunpack.c.l.b16 %v4011
      %v4044 = vunpack.c.l.b16 %v4012
      %v4045 = vunpack.c.l.b16 %v4013
      %v4046 = vunpack.c.l.b16 %v4014
      %v4047 = vunpack.c.l.b16 %v4015
      %v4048 = vunpack.c.l.b16 %v4016
      %v4049 = vunpack.c.l.b16 %v4017
      %v4050 = vunpack.c.l.b16 %v4018
      %v4051 = vunpack.c.l.b16 %v4019
      %v4052 = vunpack.c.l.b16 %v4020
      %v4053 = vunpack.c.l.b16 %v4021
      %v4054 = vunpack.c.l.b16 %v4022
      %v4055 = vpack.c.b16 %v4040, %v4039
      %v4056 = vpack.c.b16 %v4042, %v4041
      %v4057 = vpack.c.b16 %v4044, %v4043
      %v4058 = vpack.c.b16 %v4046, %v4045
      %v4059 = vpack.c.b16 %v4048, %v4047
      %v4060 = vpack.c.b16 %v4050, %v4049
      %v4061 = vpack.c.b16 %v4052, %v4051
      %v4062 = vpack.c.b16 %v4054, %v4053
      %4071 = vmatprep.subr.bf16.mxu0 0
      %4072 = vmatpush1.bf16.msra.mxu0 %v4055
      %4073 = vmatprep.subr.bf16.mxu0 0
      %4074 = vmatpush1.bf16.msra.mxu0 %v4056
      %4075 = vmatprep.subr.bf16.mxu0 0
      %4076 = vmatpush1.bf16.msra.mxu0 %v4057
      %4077 = vmatprep.subr.bf16.mxu0 0
      %4078 = vmatpush1.bf16.msra.mxu0 %v4058
      %4079 = vmatprep.subr.bf16.mxu0 0
      %4080 = vmatpush1.bf16.msra.mxu0 %v4059
      %4081 = vmatprep.subr.bf16.mxu0 0
      %4082 = vmatpush1.bf16.msra.mxu0 %v4060
      %4083 = vmatprep.subr.bf16.mxu0 0
      %4084 = vmatpush1.bf16.msra.mxu0 %v4061
      %4085 = vmatprep.subr.bf16.mxu0 0
      %4086 = vmatpush1.bf16.msra.mxu0 %v4062
      %4087 = vmatprep.subr.bf16.mxu0 0
      %4088 = vmatpush1.bf16.msra.mxu0 0
      %4089 = vmatprep.subr.bf16.mxu0 0
      %4090 = vmatpush1.bf16.msra.mxu0 0
      %4091 = vmatprep.subr.bf16.mxu0 0
      %4092 = vmatpush1.bf16.msra.mxu0 0
      %4093 = vmatprep.subr.bf16.mxu0 0
      %4094 = vmatpush1.bf16.msra.mxu0 0
      %4095 = vmatprep.subr.bf16.mxu0 0
      %4096 = vmatpush1.bf16.msra.mxu0 0
      %4097 = vmatprep.subr.bf16.mxu0 0
      %4098 = vmatpush1.bf16.msra.mxu0 0
      %4099 = vmatprep.subr.bf16.mxu0 0
      %4100 = vmatpush1.bf16.msra.mxu0 0
      %4101 = vmatprep.subr.bf16.mxu0 0
      %4102 = vmatpush1.bf16.msra.mxu0 0
      %4103 = vmatprep.mubr.bf16.mxu0 0
      %4104 = vmatmul.mubr.bf16.gmra.mrb[0].mxu0 %v3991
      %v4105 = vpop.f32.mrb[0].mxu0
      %v4106 = vadd.f32 0.0, %v4105
      %v4107 = vpop.f32.mrb[0].mxu0
      %v4108 = vpop.f32.mrb[0].mxu0
      %v4109 = vadd.f32 0.0, %v4108
      %v4110 = vpop.f32.mrb[0].mxu0
      %4111 = vmatprep.mubr.bf16.mxu0 0
      %4112 = vmatmul.mubr.bf16.gmra.mrb[0].mxu0 %v3992
      %v4113 = vpop.f32.mrb[0].mxu0
      %v4114 = vadd.f32 0.0, %v4113
      %v4115 = vpop.f32.mrb[0].mxu0
      %v4116 = vpop.f32.mrb[0].mxu0
      %v4117 = vadd.f32 0.0, %v4116
      %v4118 = vpop.f32.mrb[0].mxu0
      %4119 = vmatprep.mubr.bf16.mxu0 0
      %4120 = vmatmul.mubr.bf16.gmra.mrb[0].mxu0 %v3993
      %v4121 = vpop.f32.mrb[0].mxu0
      %v4122 = vadd.f32 0.0, %v4121
      %v4123 = vpop.f32.mrb[0].mxu0
      %v4124 = vpop.f32.mrb[0].mxu0
      %v4125 = vadd.f32 0.0, %v4124
      %v4126 = vpop.f32.mrb[0].mxu0
      %4127 = vmatprep.mubr.bf16.mxu0 0
      %4128 = vmatmul.mubr.bf16.gmra.mrb[0].mxu0 %v3994
      %v4129 = vpop.f32.mrb[0].mxu0
      %v4130 = vadd.f32 0.0, %v4129
      %v4131 = vpop.f32.mrb[0].mxu0
      %v4132 = vpop.f32.mrb[0].mxu0
      %v4133 = vadd.f32 0.0, %v4132
      %v4134 = vpop.f32.mrb[0].mxu0
      %4135 = vmatprep.mubr.bf16.mxu0 0
      %4136 = vmatmul.mubr.bf16.gmra.mrb[0].mxu0 %v3995
      %v4137 = vpop.f32.mrb[0].mxu0
      %v4138 = vadd.f32 0.0, %v4137
      %v4139 = vpop.f32.mrb[0].mxu0
      %v4140 = vpop.f32.mrb[0].mxu0
      %v4141 = vadd.f32 0.0, %v4140
      %v4142 = vpop.f32.mrb[0].mxu0
      %4143 = vmatprep.mubr.bf16.mxu0 0
      %4144 = vmatmul.mubr.bf16.gmra.mrb[0].mxu0 %v3996
      %v4145 = vpop.f32.mrb[0].mxu0
      %v4146 = vadd.f32 0.0, %v4145
      %v4147 = vpop.f32.mrb[0].mxu0
      %v4148 = vpop.f32.mrb[0].mxu0
      %v4149 = vadd.f32 0.0, %v4148
      %v4150 = vpop.f32.mrb[0].mxu0
      %4151 = vmatprep.mubr.bf16.mxu0 0
      %4152 = vmatmul.mubr.bf16.gmra.mrb[0].mxu0 %v3997
      %v4153 = vpop.f32.mrb[0].mxu0
      %v4154 = vadd.f32 0.0, %v4153
      %v4155 = vpop.f32.mrb[0].mxu0
      %v4156 = vpop.f32.mrb[0].mxu0
      %v4157 = vadd.f32 0.0, %v4156
      %v4158 = vpop.f32.mrb[0].mxu0
      %4159 = vmatprep.mubr.bf16.mxu0 0
      %4160 = vmatmul.mubr.bf16.gmra.mrb[0].mxu0 %v3998
      %v4161 = vpop.f32.mrb[0].mxu0
      %v4162 = vadd.f32 0.0, %v4161
      %v4163 = vpop.f32.mrb[0].mxu0
      %v4164 = vpop.f32.mrb[0].mxu0
      %v4165 = vadd.f32 0.0, %v4164
      %v4166 = vpop.f32.mrb[0].mxu0
      %4167 = vmatprep.mubr.bf16.mxu0 0
      %4168 = vmatmul.mubr.bf16.gmra.mrb[0].mxu0 %v3999
      %v4169 = vpop.f32.mrb[0].mxu0
      %v4170 = vadd.f32 0.0, %v4169
      %v4171 = vpop.f32.mrb[0].mxu0
      %v4172 = vpop.f32.mrb[0].mxu0
      %v4173 = vadd.f32 0.0, %v4172
      %v4174 = vpop.f32.mrb[0].mxu0
      %4175 = vmatprep.mubr.bf16.mxu0 0
      %4176 = vmatmul.mubr.bf16.gmra.mrb[0].mxu0 %v4000
      %v4177 = vpop.f32.mrb[0].mxu0
      %v4178 = vadd.f32 0.0, %v4177
      %v4179 = vpop.f32.mrb[0].mxu0
      %v4180 = vpop.f32.mrb[0].mxu0
      %v4181 = vadd.f32 0.0, %v4180
      %v4182 = vpop.f32.mrb[0].mxu0
      %4183 = vmatprep.mubr.bf16.mxu0 0
      %4184 = vmatmul.mubr.bf16.gmra.mrb[0].mxu0 %v4001
      %v4185 = vpop.f32.mrb[0].mxu0
      %v4186 = vadd.f32 0.0, %v4185
      %v4187 = vpop.f32.mrb[0].mxu0
      %v4188 = vpop.f32.mrb[0].mxu0
      %v4189 = vadd.f32 0.0, %v4188
      %v4190 = vpop.f32.mrb[0].mxu0
      %4191 = vmatprep.mubr.bf16.mxu0 0
      %4192 = vmatmul.mubr.bf16.gmra.mrb[0].mxu0 %v4002
      %v4193 = vpop.f32.mrb[0].mxu0
      %v4194 = vadd.f32 0.0, %v4193
      %v4195 = vpop.f32.mrb[0].mxu0
      %v4196 = vpop.f32.mrb[0].mxu0
      %v4197 = vadd.f32 0.0, %v4196
      %v4198 = vpop.f32.mrb[0].mxu0
      %4199 = vmatprep.mubr.bf16.mxu0 0
      %4200 = vmatmul.mubr.bf16.gmra.mrb[0].mxu0 %v4003
      %v4201 = vpop.f32.mrb[0].mxu0
      %v4202 = vadd.f32 0.0, %v4201
      %v4203 = vpop.f32.mrb[0].mxu0
      %v4204 = vpop.f32.mrb[0].mxu0
      %v4205 = vadd.f32 0.0, %v4204
      %v4206 = vpop.f32.mrb[0].mxu0
      %4207 = vmatprep.mubr.bf16.mxu0 0
      %4208 = vmatmul.mubr.bf16.gmra.mrb[0].mxu0 %v4004
      %v4209 = vpop.f32.mrb[0].mxu0
      %v4210 = vadd.f32 0.0, %v4209
      %v4211 = vpop.f32.mrb[0].mxu0
      %v4212 = vpop.f32.mrb[0].mxu0
      %v4213 = vadd.f32 0.0, %v4212
      %v4214 = vpop.f32.mrb[0].mxu0
      %4215 = vmatprep.mubr.bf16.mxu0 0
      %4216 = vmatmul.mubr.bf16.gmra.mrb[0].mxu0 %v4005
      %v4217 = vpop.f32.mrb[0].mxu0
      %v4218 = vadd.f32 0.0, %v4217
      %v4219 = vpop.f32.mrb[0].mxu0
      %v4220 = vpop.f32.mrb[0].mxu0
      %v4221 = vadd.f32 0.0, %v4220
      %v4222 = vpop.f32.mrb[0].mxu0
      %4223 = vmatprep.mubr.bf16.mxu0 0
      %4224 = vmatmul.mubr.bf16.gmra.mrb[0].mxu0 %v4006
      %v4225 = vpop.f32.mrb[0].mxu0
      %v4226 = vadd.f32 0.0, %v4225
      %v4227 = vpop.f32.mrb[0].mxu0
      %v4228 = vpop.f32.mrb[0].mxu0
      %v4229 = vadd.f32 0.0, %v4228
      %v4230 = vpop.f32.mrb[0].mxu0
      %4231 = vdwg.mxu0
      %v4232 = vadd.f32 %v3734, %v4106
      %v4233 = vadd.f32 %v3735, %v4109
      %v4234 = vadd.f32 %v3736, %v4114
      %v4235 = vadd.f32 %v3737, %v4117
      %v4236 = vadd.f32 %v3738, %v4122
      %v4237 = vadd.f32 %v3739, %v4125
      %v4238 = vadd.f32 %v3740, %v4130
      %v4239 = vadd.f32 %v3741, %v4133
      %v4240 = vadd.f32 %v3742, %v4138
      %v4241 = vadd.f32 %v3743, %v4141
      %v4242 = vadd.f32 %v3744, %v4146
      %v4243 = vadd.f32 %v3745, %v4149
      %v4244 = vadd.f32 %v3746, %v4154
      %v4245 = vadd.f32 %v3747, %v4157
      %v4246 = vadd.f32 %v3748, %v4162
      %v4247 = vadd.f32 %v3749, %v4165
      %v4248 = vadd.f32 %v3750, %v4170
      %v4249 = vadd.f32 %v3751, %v4173
      %v4250 = vadd.f32 %v3752, %v4178
      %v4251 = vadd.f32 %v3753, %v4181
      %v4252 = vadd.f32 %v3754, %v4186
      %v4253 = vadd.f32 %v3755, %v4189
      %v4254 = vadd.f32 %v3756, %v4194
      %v4255 = vadd.f32 %v3757, %v4197
      %v4256 = vadd.f32 %v3758, %v4202
      %v4257 = vadd.f32 %v3759, %v4205
      %v4258 = vadd.f32 %v3760, %v4210
      %v4259 = vadd.f32 %v3761, %v4213
      %v4260 = vadd.f32 %v3762, %v4218
      %v4261 = vadd.f32 %v3763, %v4221
      %v4262 = vadd.f32 %v3764, %v4226
      %v4263 = vadd.f32 %v3765, %v4229
      %s4264 = scalar_lea.vmem %s4, 2048
      %v4265 = vld [vmem:[%s4264] sm:$0xff]
      %v4266 = vld [vmem:[%s4264 + $0x8] sm:$0xff]
      %v4267 = vld [vmem:[%s4264 + $0x10] sm:$0xff]
      %v4268 = vld [vmem:[%s4264 + $0x18] sm:$0xff]
      %v4269 = vld [vmem:[%s4264 + $0x20] sm:$0xff]
      %v4270 = vld [vmem:[%s4264 + $0x28] sm:$0xff]
      %v4271 = vld [vmem:[%s4264 + $0x30] sm:$0xff]
      %v4272 = vld [vmem:[%s4264 + $0x38] sm:$0xff]
      %v4273 = vld [vmem:[%s4264 + $0x40] sm:$0xff]
      %v4274 = vld [vmem:[%s4264 + $0x48] sm:$0xff]
      %v4275 = vld [vmem:[%s4264 + $0x50] sm:$0xff]
      %v4276 = vld [vmem:[%s4264 + $0x58] sm:$0xff]
      %v4277 = vld [vmem:[%s4264 + $0x60] sm:$0xff]
      %v4278 = vld [vmem:[%s4264 + $0x68] sm:$0xff]
      %v4279 = vld [vmem:[%s4264 + $0x70] sm:$0xff]
      %v4280 = vld [vmem:[%s4264 + $0x78] sm:$0xff]
      %v4281 = vld [vmem:[%s4264 + $0x80] sm:$0xff]
      %v4282 = vld [vmem:[%s4264 + $0x88] sm:$0xff]
      %v4283 = vld [vmem:[%s4264 + $0x90] sm:$0xff]
      %v4284 = vld [vmem:[%s4264 + $0x98] sm:$0xff]
      %v4285 = vld [vmem:[%s4264 + $0xa0] sm:$0xff]
      %v4286 = vld [vmem:[%s4264 + $0xa8] sm:$0xff]
      %v4287 = vld [vmem:[%s4264 + $0xb0] sm:$0xff]
      %v4288 = vld [vmem:[%s4264 + $0xb8] sm:$0xff]
      %v4289 = vld [vmem:[%s4264 + $0xc0] sm:$0xff]
      %v4290 = vld [vmem:[%s4264 + $0xc8] sm:$0xff]
      %v4291 = vld [vmem:[%s4264 + $0xd0] sm:$0xff]
      %v4292 = vld [vmem:[%s4264 + $0xd8] sm:$0xff]
      %v4293 = vld [vmem:[%s4264 + $0xe0] sm:$0xff]
      %v4294 = vld [vmem:[%s4264 + $0xe8] sm:$0xff]
      %v4295 = vld [vmem:[%s4264 + $0xf0] sm:$0xff]
      %v4296 = vld [vmem:[%s4264 + $0xf8] sm:$0xff]
      %4298 = vset.pattern.permute.xlu0 0
      %4299 = vperm.xlu0 %4298, %v4265
      %v4300 = vpop.permute.xlu0 %4299
      %4303 = vset.pattern.permute.xlu0 0
      %4304 = vperm.xlu0 %4303, %v4266
      %v4305 = vpop.permute.xlu0 %4304
      %4308 = vset.pattern.permute.xlu0 0
      %4309 = vperm.xlu0 %4308, %v4267
      %v4310 = vpop.permute.xlu0 %4309
      %4313 = vset.pattern.permute.xlu0 0
      %4314 = vperm.xlu0 %4313, %v4268
      %v4315 = vpop.permute.xlu0 %4314
      %4318 = vset.pattern.permute.xlu0 0
      %4319 = vperm.xlu0 %4318, %v4269
      %v4320 = vpop.permute.xlu0 %4319
      %4323 = vset.pattern.permute.xlu0 0
      %4324 = vperm.xlu0 %4323, %v4270
      %v4325 = vpop.permute.xlu0 %4324
      %4328 = vset.pattern.permute.xlu0 0
      %4329 = vperm.xlu0 %4328, %v4271
      %v4330 = vpop.permute.xlu0 %4329
      %4333 = vset.pattern.permute.xlu0 0
      %4334 = vperm.xlu0 %4333, %v4272
      %v4335 = vpop.permute.xlu0 %4334
      %4338 = vset.pattern.permute.xlu0 0
      %4339 = vperm.xlu0 %4338, %v4273
      %v4340 = vpop.permute.xlu0 %4339
      %4343 = vset.pattern.permute.xlu0 0
      %4344 = vperm.xlu0 %4343, %v4274
      %v4345 = vpop.permute.xlu0 %4344
      %4348 = vset.pattern.permute.xlu0 0
      %4349 = vperm.xlu0 %4348, %v4275
      %v4350 = vpop.permute.xlu0 %4349
      %4353 = vset.pattern.permute.xlu0 0
      %4354 = vperm.xlu0 %4353, %v4276
      %v4355 = vpop.permute.xlu0 %4354
      %4358 = vset.pattern.permute.xlu0 0
      %4359 = vperm.xlu0 %4358, %v4277
      %v4360 = vpop.permute.xlu0 %4359
      %4363 = vset.pattern.permute.xlu0 0
      %4364 = vperm.xlu0 %4363, %v4278
      %v4365 = vpop.permute.xlu0 %4364
      %4368 = vset.pattern.permute.xlu0 0
      %4369 = vperm.xlu0 %4368, %v4279
      %v4370 = vpop.permute.xlu0 %4369
      %4373 = vset.pattern.permute.xlu0 0
      %4374 = vperm.xlu0 %4373, %v4280
      %v4375 = vpop.permute.xlu0 %4374
      %4378 = vset.pattern.permute.xlu0 0
      %4379 = vperm.xlu0 %4378, %v4281
      %v4380 = vpop.permute.xlu0 %4379
      %4383 = vset.pattern.permute.xlu0 0
      %4384 = vperm.xlu0 %4383, %v4282
      %v4385 = vpop.permute.xlu0 %4384
      %4388 = vset.pattern.permute.xlu0 0
      %4389 = vperm.xlu0 %4388, %v4283
      %v4390 = vpop.permute.xlu0 %4389
      %4393 = vset.pattern.permute.xlu0 0
      %4394 = vperm.xlu0 %4393, %v4284
      %v4395 = vpop.permute.xlu0 %4394
      %4398 = vset.pattern.permute.xlu0 0
      %4399 = vperm.xlu0 %4398, %v4285
      %v4400 = vpop.permute.xlu0 %4399
      %4403 = vset.pattern.permute.xlu0 0
      %4404 = vperm.xlu0 %4403, %v4286
      %v4405 = vpop.permute.xlu0 %4404
      %4408 = vset.pattern.permute.xlu0 0
      %4409 = vperm.xlu0 %4408, %v4287
      %v4410 = vpop.permute.xlu0 %4409
      %4413 = vset.pattern.permute.xlu0 0
      %4414 = vperm.xlu0 %4413, %v4288
      %v4415 = vpop.permute.xlu0 %4414
      %4418 = vset.pattern.permute.xlu0 0
      %4419 = vperm.xlu0 %4418, %v4289
      %v4420 = vpop.permute.xlu0 %4419
      %4423 = vset.pattern.permute.xlu0 0
      %4424 = vperm.xlu0 %4423, %v4290
      %v4425 = vpop.permute.xlu0 %4424
      %4428 = vset.pattern.permute.xlu0 0
      %4429 = vperm.xlu0 %4428, %v4291
      %v4430 = vpop.permute.xlu0 %4429
      %4433 = vset.pattern.permute.xlu0 0
      %4434 = vperm.xlu0 %4433, %v4292
      %v4435 = vpop.permute.xlu0 %4434
      %4438 = vset.pattern.permute.xlu0 0
      %4439 = vperm.xlu0 %4438, %v4293
      %v4440 = vpop.permute.xlu0 %4439
      %4443 = vset.pattern.permute.xlu0 0
      %4444 = vperm.xlu0 %4443, %v4294
      %v4445 = vpop.permute.xlu0 %4444
      %4448 = vset.pattern.permute.xlu0 0
      %4449 = vperm.xlu0 %4448, %v4295
      %v4450 = vpop.permute.xlu0 %4449
      %4453 = vset.pattern.permute.xlu0 0
      %4454 = vperm.xlu0 %4453, %v4296
      %v4455 = vpop.permute.xlu0 %4454
      %v4457 = vmul.f32 %v1497, %v4300
      %v4458 = vmul.f32 %v1496, %v4305
      %v4459 = vmul.f32 %v1495, %v4310
      %v4460 = vmul.f32 %v1494, %v4315
      %v4461 = vmul.f32 %v1493, %v4320
      %v4462 = vmul.f32 %v1492, %v4325
      %v4463 = vmul.f32 %v1491, %v4330
      %v4464 = vmul.f32 %v1490, %v4335
      %v4465 = vmul.f32 %v1489, %v4340
      %v4466 = vmul.f32 %v1488, %v4345
      %v4467 = vmul.f32 %v1487, %v4350
      %v4468 = vmul.f32 %v1486, %v4355
      %v4469 = vmul.f32 %v1485, %v4360
      %v4470 = vmul.f32 %v1484, %v4365
      %v4471 = vmul.f32 %v1483, %v4370
      %v4472 = vmul.f32 %v1482, %v4375
      %v4473 = vmul.f32 %v1481, %v4380
      %v4474 = vmul.f32 %v1480, %v4385
      %v4475 = vmul.f32 %v1479, %v4390
      %v4476 = vmul.f32 %v1478, %v4395
      %v4477 = vmul.f32 %v1477, %v4400
      %v4478 = vmul.f32 %v1476, %v4405
      %v4479 = vmul.f32 %v1475, %v4410
      %v4480 = vmul.f32 %v1474, %v4415
      %v4481 = vmul.f32 %v1473, %v4420
      %v4482 = vmul.f32 %v1472, %v4425
      %v4483 = vmul.f32 %v1471, %v4430
      %v4484 = vmul.f32 %v1470, %v4435
      %v4485 = vmul.f32 %v1469, %v4440
      %v4486 = vmul.f32 %v1500, %v4445
      %v4487 = vmul.f32 %v1499, %v4450
      %v4488 = vmul.f32 %v1498, %v4455
      %v4489 = vpack.c.bf16 %v4458, %v4457
      %v4490 = vpack.c.bf16 %v4460, %v4459
      %v4491 = vpack.c.bf16 %v4462, %v4461
      %v4492 = vpack.c.bf16 %v4464, %v4463
      %v4493 = vpack.c.bf16 %v4466, %v4465
      %v4494 = vpack.c.bf16 %v4468, %v4467
      %v4495 = vpack.c.bf16 %v4470, %v4469
      %v4496 = vpack.c.bf16 %v4472, %v4471
      %v4497 = vpack.c.bf16 %v4474, %v4473
      %v4498 = vpack.c.bf16 %v4476, %v4475
      %v4499 = vpack.c.bf16 %v4478, %v4477
      %v4500 = vpack.c.bf16 %v4480, %v4479
      %v4501 = vpack.c.bf16 %v4482, %v4481
      %v4502 = vpack.c.bf16 %v4484, %v4483
      %v4503 = vpack.c.bf16 %v4486, %v4485
      %v4504 = vpack.c.bf16 %v4488, %v4487
      %v4505 = vld [vmem:[%s3 + $0x200] sm:$0xf]
      %v4506 = vld [vmem:[%s3 + $0x204] sm:$0xf]
      %v4507 = vld [vmem:[%s3 + $0x208] sm:$0xf]
      %v4508 = vld [vmem:[%s3 + $0x20c] sm:$0xf]
      %v4509 = vld [vmem:[%s3 + $0x210] sm:$0xf]
      %v4510 = vld [vmem:[%s3 + $0x214] sm:$0xf]
      %v4511 = vld [vmem:[%s3 + $0x218] sm:$0xf]
      %v4512 = vld [vmem:[%s3 + $0x21c] sm:$0xf]
      %v4513 = vld [vmem:[%s3 + $0x220] sm:$0xf]
      %v4514 = vld [vmem:[%s3 + $0x224] sm:$0xf]
      %v4515 = vld [vmem:[%s3 + $0x228] sm:$0xf]
      %v4516 = vld [vmem:[%s3 + $0x22c] sm:$0xf]
      %v4517 = vld [vmem:[%s3 + $0x230] sm:$0xf]
      %v4518 = vld [vmem:[%s3 + $0x234] sm:$0xf]
      %v4519 = vld [vmem:[%s3 + $0x238] sm:$0xf]
      %v4520 = vld [vmem:[%s3 + $0x23c] sm:$0xf]
      %v4537 = vunpack.c.l.b16 %v4505
      %v4538 = vunpack.c.l.b16 %v4506
      %v4539 = vunpack.c.l.b16 %v4507
      %v4540 = vunpack.c.l.b16 %v4508
      %v4541 = vunpack.c.l.b16 %v4509
      %v4542 = vunpack.c.l.b16 %v4510
      %v4543 = vunpack.c.l.b16 %v4511
      %v4544 = vunpack.c.l.b16 %v4512
      %v4545 = vunpack.c.l.b16 %v4513
      %v4546 = vunpack.c.l.b16 %v4514
      %v4547 = vunpack.c.l.b16 %v4515
      %v4548 = vunpack.c.l.b16 %v4516
      %v4549 = vunpack.c.l.b16 %v4517
      %v4550 = vunpack.c.l.b16 %v4518
      %v4551 = vunpack.c.l.b16 %v4519
      %v4552 = vunpack.c.l.b16 %v4520
      %v4553 = vpack.c.b16 %v4538, %v4537
      %v4554 = vpack.c.b16 %v4540, %v4539
      %v4555 = vpack.c.b16 %v4542, %v4541
      %v4556 = vpack.c.b16 %v4544, %v4543
      %v4557 = vpack.c.b16 %v4546, %v4545
      %v4558 = vpack.c.b16 %v4548, %v4547
      %v4559 = vpack.c.b16 %v4550, %v4549
      %v4560 = vpack.c.b16 %v4552, %v4551
      %4569 = vmatprep.subr.bf16.mxu0 0
      %4570 = vmatpush1.bf16.msra.mxu0 %v4553
      %4571 = vmatprep.subr.bf16.mxu0 0
      %4572 = vmatpush1.bf16.msra.mxu0 %v4554
      %4573 = vmatprep.subr.bf16.mxu0 0
      %4574 = vmatpush1.bf16.msra.mxu0 %v4555
      %4575 = vmatprep.subr.bf16.mxu0 0
      %4576 = vmatpush1.bf16.msra.mxu0 %v4556
      %4577 = vmatprep.subr.bf16.mxu0 0
      %4578 = vmatpush1.bf16.msra.mxu0 %v4557
      %4579 = vmatprep.subr.bf16.mxu0 0
      %4580 = vmatpush1.bf16.msra.mxu0 %v4558
      %4581 = vmatprep.subr.bf16.mxu0 0
      %4582 = vmatpush1.bf16.msra.mxu0 %v4559
      %4583 = vmatprep.subr.bf16.mxu0 0
      %4584 = vmatpush1.bf16.msra.mxu0 %v4560
      %4585 = vmatprep.subr.bf16.mxu0 0
      %4586 = vmatpush1.bf16.msra.mxu0 0
      %4587 = vmatprep.subr.bf16.mxu0 0
      %4588 = vmatpush1.bf16.msra.mxu0 0
      %4589 = vmatprep.subr.bf16.mxu0 0
      %4590 = vmatpush1.bf16.msra.mxu0 0
      %4591 = vmatprep.subr.bf16.mxu0 0
      %4592 = vmatpush1.bf16.msra.mxu0 0
      %4593 = vmatprep.subr.bf16.mxu0 0
      %4594 = vmatpush1.bf16.msra.mxu0 0
      %4595 = vmatprep.subr.bf16.mxu0 0
      %4596 = vmatpush1.bf16.msra.mxu0 0
      %4597 = vmatprep.subr.bf16.mxu0 0
      %4598 = vmatpush1.bf16.msra.mxu0 0
      %4599 = vmatprep.subr.bf16.mxu0 0
      %4600 = vmatpush1.bf16.msra.mxu0 0
      %4601 = vmatprep.mubr.bf16.mxu0 0
      %4602 = vmatmul.mubr.bf16.gmra.mrb[0].mxu0 %v4489
      %v4603 = vpop.f32.mrb[0].mxu0
      %v4604 = vadd.f32 0.0, %v4603
      %v4605 = vpop.f32.mrb[0].mxu0
      %v4606 = vpop.f32.mrb[0].mxu0
      %v4607 = vadd.f32 0.0, %v4606
      %v4608 = vpop.f32.mrb[0].mxu0
      %4609 = vmatprep.mubr.bf16.mxu0 0
      %4610 = vmatmul.mubr.bf16.gmra.mrb[0].mxu0 %v4490
      %v4611 = vpop.f32.mrb[0].mxu0
      %v4612 = vadd.f32 0.0, %v4611
      %v4613 = vpop.f32.mrb[0].mxu0
      %v4614 = vpop.f32.mrb[0].mxu0
      %v4615 = vadd.f32 0.0, %v4614
      %v4616 = vpop.f32.mrb[0].mxu0
      %4617 = vmatprep.mubr.bf16.mxu0 0
      %4618 = vmatmul.mubr.bf16.gmra.mrb[0].mxu0 %v4491
      %v4619 = vpop.f32.mrb[0].mxu0
      %v4620 = vadd.f32 0.0, %v4619
      %v4621 = vpop.f32.mrb[0].mxu0
      %v4622 = vpop.f32.mrb[0].mxu0
      %v4623 = vadd.f32 0.0, %v4622
      %v4624 = vpop.f32.mrb[0].mxu0
      %4625 = vmatprep.mubr.bf16.mxu0 0
      %4626 = vmatmul.mubr.bf16.gmra.mrb[0].mxu0 %v4492
      %v4627 = vpop.f32.mrb[0].mxu0
      %v4628 = vadd.f32 0.0, %v4627
      %v4629 = vpop.f32.mrb[0].mxu0
      %v4630 = vpop.f32.mrb[0].mxu0
      %v4631 = vadd.f32 0.0, %v4630
      %v4632 = vpop.f32.mrb[0].mxu0
      %4633 = vmatprep.mubr.bf16.mxu0 0
      %4634 = vmatmul.mubr.bf16.gmra.mrb[0].mxu0 %v4493
      %v4635 = vpop.f32.mrb[0].mxu0
      %v4636 = vadd.f32 0.0, %v4635
      %v4637 = vpop.f32.mrb[0].mxu0
      %v4638 = vpop.f32.mrb[0].mxu0
      %v4639 = vadd.f32 0.0, %v4638
      %v4640 = vpop.f32.mrb[0].mxu0
      %4641 = vmatprep.mubr.bf16.mxu0 0
      %4642 = vmatmul.mubr.bf16.gmra.mrb[0].mxu0 %v4494
      %v4643 = vpop.f32.mrb[0].mxu0
      %v4644 = vadd.f32 0.0, %v4643
      %v4645 = vpop.f32.mrb[0].mxu0
      %v4646 = vpop.f32.mrb[0].mxu0
      %v4647 = vadd.f32 0.0, %v4646
      %v4648 = vpop.f32.mrb[0].mxu0
      %4649 = vmatprep.mubr.bf16.mxu0 0
      %4650 = vmatmul.mubr.bf16.gmra.mrb[0].mxu0 %v4495
      %v4651 = vpop.f32.mrb[0].mxu0
      %v4652 = vadd.f32 0.0, %v4651
      %v4653 = vpop.f32.mrb[0].mxu0
      %v4654 = vpop.f32.mrb[0].mxu0
      %v4655 = vadd.f32 0.0, %v4654
      %v4656 = vpop.f32.mrb[0].mxu0
      %4657 = vmatprep.mubr.bf16.mxu0 0
      %4658 = vmatmul.mubr.bf16.gmra.mrb[0].mxu0 %v4496
      %v4659 = vpop.f32.mrb[0].mxu0
      %v4660 = vadd.f32 0.0, %v4659
      %v4661 = vpop.f32.mrb[0].mxu0
      %v4662 = vpop.f32.mrb[0].mxu0
      %v4663 = vadd.f32 0.0, %v4662
      %v4664 = vpop.f32.mrb[0].mxu0
      %4665 = vmatprep.mubr.bf16.mxu0 0
      %4666 = vmatmul.mubr.bf16.gmra.mrb[0].mxu0 %v4497
      %v4667 = vpop.f32.mrb[0].mxu0
      %v4668 = vadd.f32 0.0, %v4667
      %v4669 = vpop.f32.mrb[0].mxu0
      %v4670 = vpop.f32.mrb[0].mxu0
      %v4671 = vadd.f32 0.0, %v4670
      %v4672 = vpop.f32.mrb[0].mxu0
      %4673 = vmatprep.mubr.bf16.mxu0 0
      %4674 = vmatmul.mubr.bf16.gmra.mrb[0].mxu0 %v4498
      %v4675 = vpop.f32.mrb[0].mxu0
      %v4676 = vadd.f32 0.0, %v4675
      %v4677 = vpop.f32.mrb[0].mxu0
      %v4678 = vpop.f32.mrb[0].mxu0
      %v4679 = vadd.f32 0.0, %v4678
      %v4680 = vpop.f32.mrb[0].mxu0
      %4681 = vmatprep.mubr.bf16.mxu0 0
      %4682 = vmatmul.mubr.bf16.gmra.mrb[0].mxu0 %v4499
      %v4683 = vpop.f32.mrb[0].mxu0
      %v4684 = vadd.f32 0.0, %v4683
      %v4685 = vpop.f32.mrb[0].mxu0
      %v4686 = vpop.f32.mrb[0].mxu0
      %v4687 = vadd.f32 0.0, %v4686
      %v4688 = vpop.f32.mrb[0].mxu0
      %4689 = vmatprep.mubr.bf16.mxu0 0
      %4690 = vmatmul.mubr.bf16.gmra.mrb[0].mxu0 %v4500
      %v4691 = vpop.f32.mrb[0].mxu0
      %v4692 = vadd.f32 0.0, %v4691
      %v4693 = vpop.f32.mrb[0].mxu0
      %v4694 = vpop.f32.mrb[0].mxu0
      %v4695 = vadd.f32 0.0, %v4694
      %v4696 = vpop.f32.mrb[0].mxu0
      %4697 = vmatprep.mubr.bf16.mxu0 0
      %4698 = vmatmul.mubr.bf16.gmra.mrb[0].mxu0 %v4501
      %v4699 = vpop.f32.mrb[0].mxu0
      %v4700 = vadd.f32 0.0, %v4699
      %v4701 = vpop.f32.mrb[0].mxu0
      %v4702 = vpop.f32.mrb[0].mxu0
      %v4703 = vadd.f32 0.0, %v4702
      %v4704 = vpop.f32.mrb[0].mxu0
      %4705 = vmatprep.mubr.bf16.mxu0 0
      %4706 = vmatmul.mubr.bf16.gmra.mrb[0].mxu0 %v4502
      %v4707 = vpop.f32.mrb[0].mxu0
      %v4708 = vadd.f32 0.0, %v4707
      %v4709 = vpop.f32.mrb[0].mxu0
      %v4710 = vpop.f32.mrb[0].mxu0
      %v4711 = vadd.f32 0.0, %v4710
      %v4712 = vpop.f32.mrb[0].mxu0
      %4713 = vmatprep.mubr.bf16.mxu0 0
      %4714 = vmatmul.mubr.bf16.gmra.mrb[0].mxu0 %v4503
      %v4715 = vpop.f32.mrb[0].mxu0
      %v4716 = vadd.f32 0.0, %v4715
      %v4717 = vpop.f32.mrb[0].mxu0
      %v4718 = vpop.f32.mrb[0].mxu0
      %v4719 = vadd.f32 0.0, %v4718
      %v4720 = vpop.f32.mrb[0].mxu0
      %4721 = vmatprep.mubr.bf16.mxu0 0
      %4722 = vmatmul.mubr.bf16.gmra.mrb[0].mxu0 %v4504
      %v4723 = vpop.f32.mrb[0].mxu0
      %v4724 = vadd.f32 0.0, %v4723
      %v4725 = vpop.f32.mrb[0].mxu0
      %v4726 = vpop.f32.mrb[0].mxu0
      %v4727 = vadd.f32 0.0, %v4726
      %v4728 = vpop.f32.mrb[0].mxu0
      %4729 = vdwg.mxu0
      %v4730 = vadd.f32 %v4232, %v4604
      %v4731 = vadd.f32 %v4233, %v4607
      %v4732 = vadd.f32 %v4234, %v4612
      %v4733 = vadd.f32 %v4235, %v4615
      %v4734 = vadd.f32 %v4236, %v4620
      %v4735 = vadd.f32 %v4237, %v4623
      %v4736 = vadd.f32 %v4238, %v4628
      %v4737 = vadd.f32 %v4239, %v4631
      %v4738 = vadd.f32 %v4240, %v4636
      %v4739 = vadd.f32 %v4241, %v4639
      %v4740 = vadd.f32 %v4242, %v4644
      %v4741 = vadd.f32 %v4243, %v4647
      %v4742 = vadd.f32 %v4244, %v4652
      %v4743 = vadd.f32 %v4245, %v4655
      %v4744 = vadd.f32 %v4246, %v4660
      %v4745 = vadd.f32 %v4247, %v4663
      %v4746 = vadd.f32 %v4248, %v4668
      %v4747 = vadd.f32 %v4249, %v4671
      %v4748 = vadd.f32 %v4250, %v4676
      %v4749 = vadd.f32 %v4251, %v4679
      %v4750 = vadd.f32 %v4252, %v4684
      %v4751 = vadd.f32 %v4253, %v4687
      %v4752 = vadd.f32 %v4254, %v4692
      %v4753 = vadd.f32 %v4255, %v4695
      %v4754 = vadd.f32 %v4256, %v4700
      %v4755 = vadd.f32 %v4257, %v4703
      %v4756 = vadd.f32 %v4258, %v4708
      %v4757 = vadd.f32 %v4259, %v4711
      %v4758 = vadd.f32 %v4260, %v4716
      %v4759 = vadd.f32 %v4261, %v4719
      %v4760 = vadd.f32 %v4262, %v4724
      %v4761 = vadd.f32 %v4263, %v4727
      %v4762 = vpack.c.bf16 %v4731, %v4730
      %v4763 = vpack.c.bf16 %v4733, %v4732
      %v4764 = vpack.c.bf16 %v4735, %v4734
      %v4765 = vpack.c.bf16 %v4737, %v4736
      %v4766 = vpack.c.bf16 %v4739, %v4738
      %v4767 = vpack.c.bf16 %v4741, %v4740
      %v4768 = vpack.c.bf16 %v4743, %v4742
      %v4769 = vpack.c.bf16 %v4745, %v4744
      %v4770 = vpack.c.bf16 %v4747, %v4746
      %v4771 = vpack.c.bf16 %v4749, %v4748
      %v4772 = vpack.c.bf16 %v4751, %v4750
      %v4773 = vpack.c.bf16 %v4753, %v4752
      %v4774 = vpack.c.bf16 %v4755, %v4754
      %v4775 = vpack.c.bf16 %v4757, %v4756
      %v4776 = vpack.c.bf16 %v4759, %v4758
      %v4777 = vpack.c.bf16 %v4761, %v4760
      %v4794 = vunpack.c.l.b16 %v4762
      %v4795 = vunpack.c.h.b16 %v4762
      %v4796 = vunpack.c.l.b16 %v4763
      %v4797 = vunpack.c.h.b16 %v4763
      %v4798 = vunpack.c.l.b16 %v4764
      %v4799 = vunpack.c.h.b16 %v4764
      %v4800 = vunpack.c.l.b16 %v4765
      %v4801 = vunpack.c.h.b16 %v4765
      %v4802 = vunpack.c.l.b16 %v4766
      %v4803 = vunpack.c.h.b16 %v4766
      %v4804 = vunpack.c.l.b16 %v4767
      %v4805 = vunpack.c.h.b16 %v4767
      %v4806 = vunpack.c.l.b16 %v4768
      %v4807 = vunpack.c.h.b16 %v4768
      %v4808 = vunpack.c.l.b16 %v4769
      %v4809 = vunpack.c.h.b16 %v4769
      %v4810 = vunpack.c.l.b16 %v4770
      %v4811 = vunpack.c.h.b16 %v4770
      %v4812 = vunpack.c.l.b16 %v4771
      %v4813 = vunpack.c.h.b16 %v4771
      %v4814 = vunpack.c.l.b16 %v4772
      %v4815 = vunpack.c.h.b16 %v4772
      %v4816 = vunpack.c.l.b16 %v4773
      %v4817 = vunpack.c.h.b16 %v4773
      %v4818 = vunpack.c.l.b16 %v4774
      %v4819 = vunpack.c.h.b16 %v4774
      %v4820 = vunpack.c.l.b16 %v4775
      %v4821 = vunpack.c.h.b16 %v4775
      %v4822 = vunpack.c.l.b16 %v4776
      %v4823 = vunpack.c.h.b16 %v4776
      %v4824 = vunpack.c.l.b16 %v4777
      %v4825 = vunpack.c.h.b16 %v4777
      %v4826 = vpack.c.b16 %v4794, %v4794
      %v4827 = vpack.c.b16 %v4795, %v4795
      %v4828 = vpack.c.b16 %v4796, %v4796
      %v4829 = vpack.c.b16 %v4797, %v4797
      %v4830 = vpack.c.b16 %v4798, %v4798
      %v4831 = vpack.c.b16 %v4799, %v4799
      %v4832 = vpack.c.b16 %v4800, %v4800
      %v4833 = vpack.c.b16 %v4801, %v4801
      %v4834 = vpack.c.b16 %v4802, %v4802
      %v4835 = vpack.c.b16 %v4803, %v4803
      %v4836 = vpack.c.b16 %v4804, %v4804
      %v4837 = vpack.c.b16 %v4805, %v4805
      %v4838 = vpack.c.b16 %v4806, %v4806
      %v4839 = vpack.c.b16 %v4807, %v4807
      %v4840 = vpack.c.b16 %v4808, %v4808
      %v4841 = vpack.c.b16 %v4809, %v4809
      %v4842 = vpack.c.b16 %v4810, %v4810
      %v4843 = vpack.c.b16 %v4811, %v4811
      %v4844 = vpack.c.b16 %v4812, %v4812
      %v4845 = vpack.c.b16 %v4813, %v4813
      %v4846 = vpack.c.b16 %v4814, %v4814
      %v4847 = vpack.c.b16 %v4815, %v4815
      %v4848 = vpack.c.b16 %v4816, %v4816
      %v4849 = vpack.c.b16 %v4817, %v4817
      %v4850 = vpack.c.b16 %v4818, %v4818
      %v4851 = vpack.c.b16 %v4819, %v4819
      %v4852 = vpack.c.b16 %v4820, %v4820
      %v4853 = vpack.c.b16 %v4821, %v4821
      %v4854 = vpack.c.b16 %v4822, %v4822
      %v4855 = vpack.c.b16 %v4823, %v4823
      %v4856 = vpack.c.b16 %v4824, %v4824
      %v4857 = vpack.c.b16 %v4825, %v4825
      %4890 = vst [vmem:[%s258] sm:$0xf] %v4826
      %4891 = vst [vmem:[%s258 + $0x4] sm:$0xf] %v4827
      %4892 = vst [vmem:[%s258 + $0x8] sm:$0xf] %v4828
      %4893 = vst [vmem:[%s258 + $0xc] sm:$0xf] %v4829
      %4894 = vst [vmem:[%s258 + $0x10] sm:$0xf] %v4830
      %4895 = vst [vmem:[%s258 + $0x14] sm:$0xf] %v4831
      %4896 = vst [vmem:[%s258 + $0x18] sm:$0xf] %v4832
      %4897 = vst [vmem:[%s258 + $0x1c] sm:$0xf] %v4833
      %4898 = vst [vmem:[%s258 + $0x20] sm:$0xf] %v4834
      %4899 = vst [vmem:[%s258 + $0x24] sm:$0xf] %v4835
      %4900 = vst [vmem:[%s258 + $0x28] sm:$0xf] %v4836
      %4901 = vst [vmem:[%s258 + $0x2c] sm:$0xf] %v4837
      %4902 = vst [vmem:[%s258 + $0x30] sm:$0xf] %v4838
      %4903 = vst [vmem:[%s258 + $0x34] sm:$0xf] %v4839
      %4904 = vst [vmem:[%s258 + $0x38] sm:$0xf] %v4840
      %4905 = vst [vmem:[%s258 + $0x3c] sm:$0xf] %v4841
      %4906 = vst [vmem:[%s258 + $0x40] sm:$0xf] %v4842
      %4907 = vst [vmem:[%s258 + $0x44] sm:$0xf] %v4843
      %4908 = vst [vmem:[%s258 + $0x48] sm:$0xf] %v4844
      %4909 = vst [vmem:[%s258 + $0x4c] sm:$0xf] %v4845
      %4910 = vst [vmem:[%s258 + $0x50] sm:$0xf] %v4846
      %4911 = vst [vmem:[%s258 + $0x54] sm:$0xf] %v4847
      %4912 = vst [vmem:[%s258 + $0x58] sm:$0xf] %v4848
      %4913 = vst [vmem:[%s258 + $0x5c] sm:$0xf] %v4849
      %4914 = vst [vmem:[%s258 + $0x60] sm:$0xf] %v4850
      %4915 = vst [vmem:[%s258 + $0x64] sm:$0xf] %v4851
      %4916 = vst [vmem:[%s258 + $0x68] sm:$0xf] %v4852
      %4917 = vst [vmem:[%s258 + $0x6c] sm:$0xf] %v4853
      %4918 = vst [vmem:[%s258 + $0x70] sm:$0xf] %v4854
      %4919 = vst [vmem:[%s258 + $0x74] sm:$0xf] %v4855
      %4920 = vst [vmem:[%s258 + $0x78] sm:$0xf] %v4856
      %4921 = vst [vmem:[%s258 + $0x7c] sm:$0xf] %v4857
      %v4922 = vadd.f32 %v4730, %v4731
      %v4923 = vadd.f32 %v4922, %v4732
      %v4924 = vadd.f32 %v4923, %v4733
      %v4925 = vadd.f32 %v4924, %v4734
      %v4926 = vadd.f32 %v4925, %v4735
      %v4927 = vadd.f32 %v4926, %v4736
      %v4928 = vadd.f32 %v4927, %v4737
      %v4929 = vadd.f32 %v4928, %v4738
      %v4930 = vadd.f32 %v4929, %v4739
      %v4931 = vadd.f32 %v4930, %v4740
      %v4932 = vadd.f32 %v4931, %v4741
      %v4933 = vadd.f32 %v4932, %v4742
      %v4934 = vadd.f32 %v4933, %v4743
      %v4935 = vadd.f32 %v4934, %v4744
      %v4936 = vadd.f32 %v4935, %v4745
      %v4937 = vadd.f32 %v4936, %v4746
      %v4938 = vadd.f32 %v4937, %v4747
      %v4939 = vadd.f32 %v4938, %v4748
      %v4940 = vadd.f32 %v4939, %v4749
      %v4941 = vadd.f32 %v4940, %v4750
      %v4942 = vadd.f32 %v4941, %v4751
      %v4943 = vadd.f32 %v4942, %v4752
      %v4944 = vadd.f32 %v4943, %v4753
      %v4945 = vadd.f32 %v4944, %v4754
      %v4946 = vadd.f32 %v4945, %v4755
      %v4947 = vadd.f32 %v4946, %v4756
      %v4948 = vadd.f32 %v4947, %v4757
      %v4949 = vadd.f32 %v4948, %v4758
      %v4950 = vadd.f32 %v4949, %v4759
      %v4951 = vadd.f32 %v4950, %v4760
      %v4952 = vadd.f32 %v4951, %v4761
      %v4953 = vrot.slane %v4952, 4
      %v4954 = vadd.f32 %v4952, %v4953
      %v4955 = vrot.slane %v4954, 2
      %v4956 = vadd.f32 %v4954, %v4955
      %v4957 = vrot.slane %v4956, 1
      %v4958 = vadd.f32 %v4956, %v4957
      %v4959 = vmul.f32 %v4958, 0.00390625
      %v4960 = vsub.f32 %v4730, %v4959
      %v4961 = vsub.f32 %v4731, %v4959
      %v4962 = vsub.f32 %v4732, %v4959
      %v4963 = vsub.f32 %v4733, %v4959
      %v4964 = vsub.f32 %v4734, %v4959
      %v4965 = vsub.f32 %v4735, %v4959
      %v4966 = vsub.f32 %v4736, %v4959
      %v4967 = vsub.f32 %v4737, %v4959
      %v4968 = vsub.f32 %v4738, %v4959
      %v4969 = vsub.f32 %v4739, %v4959
      %v4970 = vsub.f32 %v4740, %v4959
      %v4971 = vsub.f32 %v4741, %v4959
      %v4972 = vsub.f32 %v4742, %v4959
      %v4973 = vsub.f32 %v4743, %v4959
      %v4974 = vsub.f32 %v4744, %v4959
      %v4975 = vsub.f32 %v4745, %v4959
      %v4976 = vsub.f32 %v4746, %v4959
      %v4977 = vsub.f32 %v4747, %v4959
      %v4978 = vsub.f32 %v4748, %v4959
      %v4979 = vsub.f32 %v4749, %v4959
      %v4980 = vsub.f32 %v4750, %v4959
      %v4981 = vsub.f32 %v4751, %v4959
      %v4982 = vsub.f32 %v4752, %v4959
      %v4983 = vsub.f32 %v4753, %v4959
      %v4984 = vsub.f32 %v4754, %v4959
      %v4985 = vsub.f32 %v4755, %v4959
      %v4986 = vsub.f32 %v4756, %v4959
      %v4987 = vsub.f32 %v4757, %v4959
      %v4988 = vsub.f32 %v4758, %v4959
      %v4989 = vsub.f32 %v4759, %v4959
      %v4990 = vsub.f32 %v4760, %v4959
      %v4991 = vsub.f32 %v4761, %v4959
      %v4992 = vmul.f32 %v4960, %v4960
      %v4993 = vmul.f32 %v4961, %v4961
      %v4994 = vmul.f32 %v4962, %v4962
      %v4995 = vmul.f32 %v4963, %v4963
      %v4996 = vmul.f32 %v4964, %v4964
      %v4997 = vmul.f32 %v4965, %v4965
      %v4998 = vmul.f32 %v4966, %v4966
      %v4999 = vmul.f32 %v4967, %v4967
      %v5000 = vmul.f32 %v4968, %v4968
      %v5001 = vmul.f32 %v4969, %v4969
      %v5002 = vmul.f32 %v4970, %v4970
      %v5003 = vmul.f32 %v4971, %v4971
      %v5004 = vmul.f32 %v4972, %v4972
      %v5005 = vmul.f32 %v4973, %v4973
      %v5006 = vmul.f32 %v4974, %v4974
      %v5007 = vmul.f32 %v4975, %v4975
      %v5008 = vmul.f32 %v4976, %v4976
      %v5009 = vmul.f32 %v4977, %v4977
      %v5010 = vmul.f32 %v4978, %v4978
      %v5011 = vmul.f32 %v4979, %v4979
      %v5012 = vmul.f32 %v4980, %v4980
      %v5013 = vmul.f32 %v4981, %v4981
      %v5014 = vmul.f32 %v4982, %v4982
      %v5015 = vmul.f32 %v4983, %v4983
      %v5016 = vmul.f32 %v4984, %v4984
      %v5017 = vmul.f32 %v4985, %v4985
      %v5018 = vmul.f32 %v4986, %v4986
      %v5019 = vmul.f32 %v4987, %v4987
      %v5020 = vmul.f32 %v4988, %v4988
      %v5021 = vmul.f32 %v4989, %v4989
      %v5022 = vmul.f32 %v4990, %v4990
      %v5023 = vmul.f32 %v4991, %v4991
      %v5024 = vadd.f32 %v4992, %v4993
      %v5025 = vadd.f32 %v5024, %v4994
      %v5026 = vadd.f32 %v5025, %v4995
      %v5027 = vadd.f32 %v5026, %v4996
      %v5028 = vadd.f32 %v5027, %v4997
      %v5029 = vadd.f32 %v5028, %v4998
      %v5030 = vadd.f32 %v5029, %v4999
      %v5031 = vadd.f32 %v5030, %v5000
      %v5032 = vadd.f32 %v5031, %v5001
      %v5033 = vadd.f32 %v5032, %v5002
      %v5034 = vadd.f32 %v5033, %v5003
      %v5035 = vadd.f32 %v5034, %v5004
      %v5036 = vadd.f32 %v5035, %v5005
      %v5037 = vadd.f32 %v5036, %v5006
      %v5038 = vadd.f32 %v5037, %v5007
      %v5039 = vadd.f32 %v5038, %v5008
      %v5040 = vadd.f32 %v5039, %v5009
      %v5041 = vadd.f32 %v5040, %v5010
      %v5042 = vadd.f32 %v5041, %v5011
      %v5043 = vadd.f32 %v5042, %v5012
      %v5044 = vadd.f32 %v5043, %v5013
      %v5045 = vadd.f32 %v5044, %v5014
      %v5046 = vadd.f32 %v5045, %v5015
      %v5047 = vadd.f32 %v5046, %v5016
      %v5048 = vadd.f32 %v5047, %v5017
      %v5049 = vadd.f32 %v5048, %v5018
      %v5050 = vadd.f32 %v5049, %v5019
      %v5051 = vadd.f32 %v5050, %v5020
      %v5052 = vadd.f32 %v5051, %v5021
      %v5053 = vadd.f32 %v5052, %v5022
      %v5054 = vadd.f32 %v5053, %v5023
      %v5055 = vrot.slane %v5054, 4
      %v5056 = vadd.f32 %v5054, %v5055
      %v5057 = vrot.slane %v5056, 2
      %v5058 = vadd.f32 %v5056, %v5057
      %v5059 = vrot.slane %v5058, 1
      %v5060 = vadd.f32 %v5058, %v5059
      %vm5061 = vcmask 1040384
      %v5062 = vsel %vm5061, %v4958, %v5060
      %5063 = vst [vmem:[%s262] sm:$0x3] %v5062
      %p5064 = scmp.lt.s32.totalorder %s18, 1
      %s5065 = scalar_select %p5064, %s18, 1
      %s5066 = smul.addr %s5065, 32
      %s5067 = smul.addr %s5066, 4
      %s5068 = scalar_lea.vmem %s5, %s5067
      %p5069 = scmp.lt.s32.totalorder %s18, 1
      %s5070 = scalar_select %p5069, %s18, 1
      %s5071 = smul.addr %s5070, 2
      %s5072 = scalar_lea.vmem %s6, %s5071
      // Predicated region
      $region41: #{bottleneck_v1b_pallas.5} parent=39 // pred_check
        %p5073 = pneg %p146
      $region42: #{bottleneck_v1b_pallas.5} parent=39 // pred_check_branch
        %5075 = sbr.rel (%p5073) target = $region44
      $region43: #{bottleneck_v1b_pallas.5} parent=39 // pred_region
        _
      $region44: #{bottleneck_v1b_pallas.5} parent=39 // pred_fallthru
        _
      // Predicated region
      $region45: #{bottleneck_v1b_pallas.5} parent=39 // pred_check
        %p5076 = pneg %p172
      $region46: #{bottleneck_v1b_pallas.5} parent=39 // pred_check_branch
        %5078 = sbr.rel (%p5076) target = $region48
      $region47: #{bottleneck_v1b_pallas.5} parent=39 // pred_region
        _
      $region48: #{bottleneck_v1b_pallas.5} parent=39 // pred_fallthru
        _
    $region40: #{bottleneck_v1b_pallas.5} parent=5 // pred_fallthru
      _
    %p5079 = scmp.le.s32.totalorder 2, %s13
    // Predicated region
    $region49: #{bottleneck_v1b_pallas.5} parent=5 // pred_check
      %p5080 = pneg %p5079
    $region50: #{bottleneck_v1b_pallas.5} parent=5 // pred_check_branch
      %5082 = sbr.rel (%p5080) target = $region52
    $region51: #{bottleneck_v1b_pallas.5} parent=5 // pred_region
      %s5083 = ssub.s32 %s13, 2
      // Predicated region
      $region53: #{bottleneck_v1b_pallas.5} parent=51 // pred_check
        %p5084 = pneg %p152
      $region54: #{bottleneck_v1b_pallas.5} parent=51 // pred_check_branch
        %5086 = sbr.rel (%p5084) target = $region56
      $region55: #{bottleneck_v1b_pallas.5} parent=51 // pred_region
        %p5087 = scmp.lt.s32.totalorder %s19, 1
        %s5088 = scalar_select %p5087, %s19, 1
        %s5089 = smul.addr %s5088, 32
        %s5090 = smul.addr %s5089, 4
        %s5091 = scalar_lea.vmem %s5, %s5090
      $region56: #{bottleneck_v1b_pallas.5} parent=51 // pred_fallthru
        _
      // Predicated region
      $region57: #{bottleneck_v1b_pallas.5} parent=51 // pred_check
        %p5092 = pneg %p178
      $region58: #{bottleneck_v1b_pallas.5} parent=51 // pred_check_branch
        %5094 = sbr.rel (%p5092) target = $region60
      $region59: #{bottleneck_v1b_pallas.5} parent=51 // pred_region
        %p5095 = scmp.lt.s32.totalorder %s19, 1
        %s5096 = scalar_select %p5095, %s19, 1
        %s5097 = smul.addr %s5096, 2
        %s5098 = scalar_lea.vmem %s6, %s5097
      $region60: #{bottleneck_v1b_pallas.5} parent=51 // pred_fallthru
        _
    $region52: #{bottleneck_v1b_pallas.5} parent=5 // pred_fallthru
      _
  $region6: #{bottleneck_v1b_pallas.5} parent=0 // loop_footer
    %s17 = sadd.s32 1, %s13
  $region7: #{bottleneck_v1b_pallas.5} parent=0 // loop_footer_branch
    %12 = sbr.rel target = $region3
  $region8: #{bottleneck_v1b_pallas.5} parent=0 // loop_exit
    _

</llo_original>
